<compile_context>
chip_gen: v7x
topology: tpu7x:2x2x1
jax: 0.10.0
libtpu: 0.0.40
codegen_flags: <defaults>
</compile_context>

<pallas_src>
import jax
import jax.numpy as jnp
from jax.experimental import pallas as pl
from jax.experimental.pallas import tpu as pltpu

EPS = 1e-5          # nn.BatchNorm2d default eps
NEG_SLOPE = 0.2     # LeakyReLU(0.2)

# (in_ch, out_ch, kernel_size) exactly mirrors Discriminator.__init__
CFG = [(2, 64, 4), (64, 64, 4), (64, 128, 4), (128, 256, 4),
       (256, 512, 4), (512, 512, 2), (512, 512, 2), (512, 1, 2)]

_VMEM = pl.BlockSpec(memory_space=pltpu.MemorySpace.VMEM)
_CPARAMS = pltpu.CompilerParams(vmem_limit_bytes=32 * 1024 * 1024)


# --------------------------------------------------------------------------
# in-kernel helpers
# --------------------------------------------------------------------------
def _bn_lrelu(y, gamma, beta):
    """Training-mode BatchNorm2d (batch stats, biased var) + LeakyReLU(0.2).

    One-pass statistics: sum / sum-of-squares, single sweep over the [M, C]
    tile instead of two reductions.
    """
    m = y.shape[0]
    s1 = jnp.sum(y, axis=0, keepdims=True)
    s2 = jnp.sum(y * y, axis=0, keepdims=True)
    mean = s1 * (1.0 / m)
    var = jnp.maximum(s2 * (1.0 / m) - mean * mean, 0.0)
    scale = gamma * jax.lax.rsqrt(var + EPS)
    shift = beta - mean * scale
    z = y * scale + shift
    return jnp.where(z >= 0.0, z, NEG_SLOPE * z)


def _encoder_block_kernel(p_ref, w_ref, b_ref, g_ref, be_ref, o_ref):
    # p: [M, K] bf16   w: [K, C] bf16   b/g/be: [1, C] f32   o: [M, C] bf16
    y = jnp.dot(p_ref[...], w_ref[...], preferred_element_type=jnp.float32)
    y = y + b_ref[...]                       # conv bias (f32)
    o_ref[...] = _bn_lrelu(y, g_ref[...], be_ref[...]).astype(o_ref.dtype)


def _tail_kernel(x_ref,
                 w5_ref, w6_ref, w7_ref, w8_ref,
                 b5_ref, b6_ref, b7_ref, b8_ref,
                 g5_ref, g6_ref, g7_ref, g8_ref,
                 be5_ref, be6_ref, be7_ref, be8_ref,
                 o_ref):
    # Fused blocks 5-8 (all 1x1 spatial) + global pool (identity) + sigmoid.
    # x: [N, 1024] bf16 (block-4 output flattened, matches block-5 real taps).
    def block(h_bf16, w_ref, b_ref, g_ref, be_ref):
        y = jnp.dot(h_bf16, w_ref[...], preferred_element_type=jnp.float32)
        y = y + b_ref[...]
        return _bn_lrelu(y, g_ref[...], be_ref[...])

    h = x_ref[...]
    h = block(h, w5_ref, b5_ref, g5_ref, be5_ref).astype(jnp.bfloat16)   # enc5
    h = block(h, w6_ref, b6_ref, g6_ref, be6_ref).astype(jnp.bfloat16)   # enc6
    h = block(h, w7_ref, b7_ref, g7_ref, be7_ref).astype(jnp.bfloat16)   # enc7
    z = block(h, w8_ref, b8_ref, g8_ref, be8_ref)                        # enc8 [N,1] f32
    # AdaptiveAvgPool2d(1) over a 1x1 map is an identity; apply sigmoid head.
    o_ref[...] = 1.0 / (1.0 + jnp.exp(-z))


# --------------------------------------------------------------------------
# wrappers
# --------------------------------------------------------------------------
def _im2col(x_nhwc, k, stride, pad):
    """Channels-last im2col; K ordered (kh, kw, c_in). Rows are (n, ho, wo)."""
    n, h, w, cin = x_nhwc.shape
    xp = jnp.pad(x_nhwc, ((0, 0), (pad, pad), (pad, pad), (0, 0)))
    ho = (h + 2 * pad - k) // stride + 1
    wo = (w + 2 * pad - k) // stride + 1
    cols = []
    for di in range(k):
        for dj in range(k):
            cols.append(xp[:, di:di + stride * ho:stride,
                           dj:dj + stride * wo:stride, :])
    p = jnp.concatenate(cols, axis=-1)                     # [N, Ho, Wo, k*k*Cin]
    return p.reshape(n * ho * wo, k * k * cin), ho, wo


def encoder_block(x_nhwc, w_kc, b, gamma, beta, k, stride=2, pad=1):
    patches, ho, wo = _im2col(x_nhwc, k, stride, pad)
    m = patches.shape[0]
    cout = w_kc.shape[1]
    out = pl.pallas_call(
        _encoder_block_kernel,
        out_shape=jax.ShapeDtypeStruct((m, cout), jnp.bfloat16),
        in_specs=[_VMEM] * 5,
        out_specs=_VMEM,
        compiler_params=_CPARAMS,
    )(patches, w_kc, b.reshape(1, cout), gamma.reshape(1, cout),
      beta.reshape(1, cout))
    n = x_nhwc.shape[0]
    return out.reshape(n, ho, wo, cout)


def _tail(x4_nhwc, params):
    """Blocks 5-8 + pool + sigmoid in one pallas_call.

    Geometry (input 32x32): block-4 output is [N,2,2,256].  Block 5
    (k=4,s=2,p=1) produces a single 1x1 output whose 4x4 window covers the
    whole padded 4x4 map; only the centre 2x2 taps (kh,kw) in {1,2}x{1,2} hit
    real data, and flattening x4 row-major (h,w,c) matches that tap order.
    Blocks 6-8 (k=2,s=2,p=1 on 1x1 maps): only tap (1,1) hits real data.
    """
    n = x4_nhwc.shape[0]
    assert x4_nhwc.shape[1:] == (2, 2, 256), x4_nhwc.shape
    x_flat = x4_nhwc.reshape(n, 4 * 256)

    (w5, b5, g5, be5) = params[4]
    (w6, b6, g6, be6) = params[5]
    (w7, b7, g7, be7) = params[6]
    (w8, b8, g8, be8) = params[7]

    cin5 = 256
    # taps (kh,kw) = (1,1),(1,2),(2,1),(2,2) -> flat tap indices 5, 6, 9, 10
    w5_eff = jnp.concatenate(
        [w5[t * cin5:(t + 1) * cin5] for t in (5, 6, 9, 10)], axis=0)  # [1024,512]
    # k=2 blocks: tap (1,1) -> flat tap index 3
    w6_eff = w6[3 * 512:4 * 512]                                       # [512,512]
    w7_eff = w7[3 * 512:4 * 512]                                       # [512,512]
    w8_eff = w8[3 * 512:4 * 512]                                       # [512,1]

    return pl.pallas_call(
        _tail_kernel,
        out_shape=jax.ShapeDtypeStruct((n, 1), jnp.float32),
        in_specs=[_VMEM] * 17,
        out_specs=_VMEM,
        compiler_params=_CPARAMS,
    )(x_flat, w5_eff, w6_eff, w7_eff, w8_eff,
      b5.reshape(1, -1), b6.reshape(1, -1), b7.reshape(1, -1), b8.reshape(1, -1),
      g5.reshape(1, -1), g6.reshape(1, -1), g7.reshape(1, -1), g8.reshape(1, -1),
      be5.reshape(1, -1), be6.reshape(1, -1), be7.reshape(1, -1), be8.reshape(1, -1))


@jax.jit
def discriminator_forward(x_nchw, params):
    n, c, h, w = x_nchw.shape
    assert (c, h, w) == (2, 32, 32), "tail fusion assumes the 2x32x32 geometry"
    x = jnp.transpose(x_nchw, (0, 2, 3, 1)).astype(jnp.bfloat16)  # NCHW -> NHWC
    # enc1-enc4: spatial stride-2 convs (im2col + fused matmul/BN/LeakyReLU)
    for idx in range(4):
        w_kc, b, g, be = params[idx]
        x = encoder_block(x, w_kc, b, g, be, CFG[idx][2])
    # enc5-enc8 + global pool + sigmoid: single fused kernel
    return _tail(x, params)


def init_params(key):
    # Conv weights stored as [K, C_out] with K ordered (kh, kw, c_in); loading
    # a real PyTorch checkpoint [C_out, C_in, kh, kw] requires
    # w.permute(2, 3, 1, 0).reshape(K, C_out).
    params = []
    for i, (cin, cout, k) in enumerate(CFG):
        kw, kb = jax.random.split(jax.random.fold_in(key, i))
        fan_in = cin * k * k
        bound = 1.0 / (fan_in ** 0.5)
        w = jax.random.uniform(kw, (k * k * cin, cout), jnp.float32,
                               minval=-bound, maxval=bound).astype(jnp.bfloat16)
        b = jax.random.uniform(kb, (cout,), jnp.float32,
                               minval=-bound, maxval=bound)
        gamma = jnp.ones((cout,), jnp.float32)   # BatchNorm2d default weight
        beta = jnp.zeros((cout,), jnp.float32)   # BatchNorm2d default bias
        params.append((w, b, gamma, beta))
    return params
    # TODO(synk): BatchNorm running_mean/running_var momentum updates (training
    # side-effects) are not emulated; forward uses batch stats as PyTorch does
    # in training mode.


if __name__ == "__main__":
    key = jax.random.PRNGKey(0)
    params = init_params(key)
    # PyTorch-style NCHW input: [batch=2, channels=2, 32, 32] (32 is the
    # smallest spatial size the 5 stride-2 k=4 convs admit).
    x = jax.random.normal(jax.random.fold_in(key, 1000), (2, 2, 32, 32),
                          dtype=jnp.float32)
    out = discriminator_forward(x, params)
    out = jax.block_until_ready(out)
    assert out.shape == (2, 1), out.shape
    assert bool(jnp.all(jnp.isfinite(out)))
    print("KERNEL_OK")
</pallas_src>

<mosaic_0001>
module attributes {stable_mosaic.version = 11 : i64} {
  func.func @_encoder_block_kernel(%arg0: memref<512x32xbf16, #tpu.memory_space<vmem>>, %arg1: memref<32x64xbf16, #tpu.memory_space<vmem>>, %arg2: memref<1x64xf32, #tpu.memory_space<vmem>>, %arg3: memref<1x64xf32, #tpu.memory_space<vmem>>, %arg4: memref<1x64xf32, #tpu.memory_space<vmem>>, %arg5: memref<512x64xbf16, #tpu.memory_space<vmem>>) attributes {dimension_semantics = [], scalar_prefetch = 0 : i64, scratch_operands = 0 : i64, tpu.core_type = #tpu.core_type<tc>} {
    %c0 = arith.constant 0 : index
    %c0_0 = arith.constant 0 : index
    %0 = vector.load %arg0[%c0, %c0_0] : memref<512x32xbf16, #tpu.memory_space<vmem>>, vector<512x32xbf16>
    %c0_1 = arith.constant 0 : index
    %c0_2 = arith.constant 0 : index
    %1 = vector.load %arg1[%c0_1, %c0_2] : memref<32x64xbf16, #tpu.memory_space<vmem>>, vector<32x64xbf16>
    %cst = arith.constant dense<0.000000e+00> : vector<512x64xf32>
    %2 = tpu.matmul %0, %1, %cst {dimension_numbers = #tpu.dot_dimension_numbers<[1], [0], [0], [1], [0, 0, 1, 1], [], []>} : vector<512x32xbf16>, vector<32x64xbf16>, vector<512x64xf32> -> vector<512x64xf32>
    %c0_3 = arith.constant 0 : index
    %c0_4 = arith.constant 0 : index
    %3 = vector.load %arg2[%c0_3, %c0_4] : memref<1x64xf32, #tpu.memory_space<vmem>>, vector<1x64xf32>
    %4 = vector.broadcast %3 : vector<1x64xf32> to vector<512x64xf32>
    %5 = arith.addf %2, %4 : vector<512x64xf32>
    %c0_5 = arith.constant 0 : index
    %c0_6 = arith.constant 0 : index
    %6 = vector.load %arg3[%c0_5, %c0_6] : memref<1x64xf32, #tpu.memory_space<vmem>>, vector<1x64xf32>
    %c0_7 = arith.constant 0 : index
    %c0_8 = arith.constant 0 : index
    %7 = vector.load %arg4[%c0_7, %c0_8] : memref<1x64xf32, #tpu.memory_space<vmem>>, vector<1x64xf32>
    %cst_9 = arith.constant dense<0.000000e+00> : vector<64xf32>
    %8 = vector.multi_reduction <add>, %5, %cst_9 [0] : vector<512x64xf32> to vector<64xf32>
    %9 = vector.shape_cast %8 : vector<64xf32> to vector<1x64xf32>
    %10 = arith.mulf %5, %5 : vector<512x64xf32>
    %cst_10 = arith.constant dense<0.000000e+00> : vector<64xf32>
    %11 = vector.multi_reduction <add>, %10, %cst_10 [0] : vector<512x64xf32> to vector<64xf32>
    %12 = vector.shape_cast %11 : vector<64xf32> to vector<1x64xf32>
    %cst_11 = arith.constant 0.001953125 : f32
    %13 = vector.broadcast %cst_11 : f32 to vector<1x64xf32>
    %14 = arith.mulf %9, %13 : vector<1x64xf32>
    %cst_12 = arith.constant 0.001953125 : f32
    %15 = vector.broadcast %cst_12 : f32 to vector<1x64xf32>
    %16 = arith.mulf %12, %15 : vector<1x64xf32>
    %17 = arith.mulf %14, %14 : vector<1x64xf32>
    %18 = arith.subf %16, %17 : vector<1x64xf32>
    %cst_13 = arith.constant 0.000000e+00 : f32
    %19 = vector.broadcast %cst_13 : f32 to vector<1x64xf32>
    %20 = arith.maximumf %18, %19 : vector<1x64xf32>
    %cst_14 = arith.constant 9.99999974E-6 : f32
    %21 = vector.broadcast %cst_14 : f32 to vector<1x64xf32>
    %22 = arith.addf %20, %21 : vector<1x64xf32>
    %23 = math.rsqrt %22 : vector<1x64xf32>
    %24 = arith.mulf %6, %23 : vector<1x64xf32>
    %25 = arith.mulf %14, %24 : vector<1x64xf32>
    %26 = arith.subf %7, %25 : vector<1x64xf32>
    %27 = vector.broadcast %24 : vector<1x64xf32> to vector<512x64xf32>
    %28 = arith.mulf %5, %27 : vector<512x64xf32>
    %29 = vector.broadcast %26 : vector<1x64xf32> to vector<512x64xf32>
    %30 = arith.addf %28, %29 : vector<512x64xf32>
    %cst_15 = arith.constant 0.000000e+00 : f32
    %31 = vector.broadcast %cst_15 : f32 to vector<512x64xf32>
    %32 = arith.cmpf oge, %30, %31 : vector<512x64xf32>
    %cst_16 = arith.constant 2.000000e-01 : f32
    %33 = vector.broadcast %cst_16 : f32 to vector<512x64xf32>
    %34 = arith.mulf %33, %30 : vector<512x64xf32>
    %35 = arith.select %32, %30, %34 : vector<512x64xi1>, vector<512x64xf32>
    %36 = arith.truncf %35 : vector<512x64xf32> to vector<512x64xbf16>
    %c0_17 = arith.constant 0 : index
    %c0_18 = arith.constant 0 : index
    %37 = vector.load %arg5[%c0_17, %c0_18] : memref<512x64xbf16, #tpu.memory_space<vmem>>, vector<512x64xbf16>
    tpu.vector_store %arg5[%c0_17, %c0_18], %36 {strides = array<i32>} : memref<512x64xbf16, #tpu.memory_space<vmem>>, vector<512x64xbf16>,
    return
  }
}

module attributes {stable_mosaic.version = 11 : i64} {
  func.func @_encoder_block_kernel(%arg0: memref<128x1024xbf16, #tpu.memory_space<vmem>>, %arg1: memref<1024x64xbf16, #tpu.memory_space<vmem>>, %arg2: memref<1x64xf32, #tpu.memory_space<vmem>>, %arg3: memref<1x64xf32, #tpu.memory_space<vmem>>, %arg4: memref<1x64xf32, #tpu.memory_space<vmem>>, %arg5: memref<128x64xbf16, #tpu.memory_space<vmem>>) attributes {dimension_semantics = [], scalar_prefetch = 0 : i64, scratch_operands = 0 : i64, tpu.core_type = #tpu.core_type<tc>} {
    %c0 = arith.constant 0 : index
    %c0_0 = arith.constant 0 : index
    %0 = vector.load %arg0[%c0, %c0_0] : memref<128x1024xbf16, #tpu.memory_space<vmem>>, vector<128x1024xbf16>
    %c0_1 = arith.constant 0 : index
    %c0_2 = arith.constant 0 : index
    %1 = vector.load %arg1[%c0_1, %c0_2] : memref<1024x64xbf16, #tpu.memory_space<vmem>>, vector<1024x64xbf16>
    %cst = arith.constant dense<0.000000e+00> : vector<128x64xf32>
    %2 = tpu.matmul %0, %1, %cst {dimension_numbers = #tpu.dot_dimension_numbers<[1], [0], [0], [1], [0, 0, 1, 1], [], []>} : vector<128x1024xbf16>, vector<1024x64xbf16>, vector<128x64xf32> -> vector<128x64xf32>
    %c0_3 = arith.constant 0 : index
    %c0_4 = arith.constant 0 : index
    %3 = vector.load %arg2[%c0_3, %c0_4] : memref<1x64xf32, #tpu.memory_space<vmem>>, vector<1x64xf32>
    %4 = vector.broadcast %3 : vector<1x64xf32> to vector<128x64xf32>
    %5 = arith.addf %2, %4 : vector<128x64xf32>
    %c0_5 = arith.constant 0 : index
    %c0_6 = arith.constant 0 : index
    %6 = vector.load %arg3[%c0_5, %c0_6] : memref<1x64xf32, #tpu.memory_space<vmem>>, vector<1x64xf32>
    %c0_7 = arith.constant 0 : index
    %c0_8 = arith.constant 0 : index
    %7 = vector.load %arg4[%c0_7, %c0_8] : memref<1x64xf32, #tpu.memory_space<vmem>>, vector<1x64xf32>
    %cst_9 = arith.constant dense<0.000000e+00> : vector<64xf32>
    %8 = vector.multi_reduction <add>, %5, %cst_9 [0] : vector<128x64xf32> to vector<64xf32>
    %9 = vector.shape_cast %8 : vector<64xf32> to vector<1x64xf32>
    %10 = arith.mulf %5, %5 : vector<128x64xf32>
    %cst_10 = arith.constant dense<0.000000e+00> : vector<64xf32>
    %11 = vector.multi_reduction <add>, %10, %cst_10 [0] : vector<128x64xf32> to vector<64xf32>
    %12 = vector.shape_cast %11 : vector<64xf32> to vector<1x64xf32>
    %cst_11 = arith.constant 7.812500e-03 : f32
    %13 = vector.broadcast %cst_11 : f32 to vector<1x64xf32>
    %14 = arith.mulf %9, %13 : vector<1x64xf32>
    %cst_12 = arith.constant 7.812500e-03 : f32
    %15 = vector.broadcast %cst_12 : f32 to vector<1x64xf32>
    %16 = arith.mulf %12, %15 : vector<1x64xf32>
    %17 = arith.mulf %14, %14 : vector<1x64xf32>
    %18 = arith.subf %16, %17 : vector<1x64xf32>
    %cst_13 = arith.constant 0.000000e+00 : f32
    %19 = vector.broadcast %cst_13 : f32 to vector<1x64xf32>
    %20 = arith.maximumf %18, %19 : vector<1x64xf32>
    %cst_14 = arith.constant 9.99999974E-6 : f32
    %21 = vector.broadcast %cst_14 : f32 to vector<1x64xf32>
    %22 = arith.addf %20, %21 : vector<1x64xf32>
    %23 = math.rsqrt %22 : vector<1x64xf32>
    %24 = arith.mulf %6, %23 : vector<1x64xf32>
    %25 = arith.mulf %14, %24 : vector<1x64xf32>
    %26 = arith.subf %7, %25 : vector<1x64xf32>
    %27 = vector.broadcast %24 : vector<1x64xf32> to vector<128x64xf32>
    %28 = arith.mulf %5, %27 : vector<128x64xf32>
    %29 = vector.broadcast %26 : vector<1x64xf32> to vector<128x64xf32>
    %30 = arith.addf %28, %29 : vector<128x64xf32>
    %cst_15 = arith.constant 0.000000e+00 : f32
    %31 = vector.broadcast %cst_15 : f32 to vector<128x64xf32>
    %32 = arith.cmpf oge, %30, %31 : vector<128x64xf32>
    %cst_16 = arith.constant 2.000000e-01 : f32
    %33 = vector.broadcast %cst_16 : f32 to vector<128x64xf32>
    %34 = arith.mulf %33, %30 : vector<128x64xf32>
    %35 = arith.select %32, %30, %34 : vector<128x64xi1>, vector<128x64xf32>
    %36 = arith.truncf %35 : vector<128x64xf32> to vector<128x64xbf16>
    %c0_17 = arith.constant 0 : index
    %c0_18 = arith.constant 0 : index
    %37 = vector.load %arg5[%c0_17, %c0_18] : memref<128x64xbf16, #tpu.memory_space<vmem>>, vector<128x64xbf16>
    tpu.vector_store %arg5[%c0_17, %c0_18], %36 {strides = array<i32>} : memref<128x64xbf16, #tpu.memory_space<vmem>>, vector<128x64xbf16>,
    return
  }
}

module attributes {stable_mosaic.version = 11 : i64} {
  func.func @_encoder_block_kernel(%arg0: memref<32x1024xbf16, #tpu.memory_space<vmem>>, %arg1: memref<1024x128xbf16, #tpu.memory_space<vmem>>, %arg2: memref<1x128xf32, #tpu.memory_space<vmem>>, %arg3: memref<1x128xf32, #tpu.memory_space<vmem>>, %arg4: memref<1x128xf32, #tpu.memory_space<vmem>>, %arg5: memref<32x128xbf16, #tpu.memory_space<vmem>>) attributes {dimension_semantics = [], scalar_prefetch = 0 : i64, scratch_operands = 0 : i64, tpu.core_type = #tpu.core_type<tc>} {
    %c0 = arith.constant 0 : index
    %c0_0 = arith.constant 0 : index
    %0 = vector.load %arg0[%c0, %c0_0] : memref<32x1024xbf16, #tpu.memory_space<vmem>>, vector<32x1024xbf16>
    %c0_1 = arith.constant 0 : index
    %c0_2 = arith.constant 0 : index
    %1 = vector.load %arg1[%c0_1, %c0_2] : memref<1024x128xbf16, #tpu.memory_space<vmem>>, vector<1024x128xbf16>
    %cst = arith.constant dense<0.000000e+00> : vector<32x128xf32>
    %2 = tpu.matmul %0, %1, %cst {dimension_numbers = #tpu.dot_dimension_numbers<[1], [0], [0], [1], [0, 0, 1, 1], [], []>} : vector<32x1024xbf16>, vector<1024x128xbf16>, vector<32x128xf32> -> vector<32x128xf32>
    %c0_3 = arith.constant 0 : index
    %c0_4 = arith.constant 0 : index
    %3 = vector.load %arg2[%c0_3, %c0_4] : memref<1x128xf32, #tpu.memory_space<vmem>>, vector<1x128xf32>
    %4 = vector.broadcast %3 : vector<1x128xf32> to vector<32x128xf32>
    %5 = arith.addf %2, %4 : vector<32x128xf32>
    %c0_5 = arith.constant 0 : index
    %c0_6 = arith.constant 0 : index
    %6 = vector.load %arg3[%c0_5, %c0_6] : memref<1x128xf32, #tpu.memory_space<vmem>>, vector<1x128xf32>
    %c0_7 = arith.constant 0 : index
    %c0_8 = arith.constant 0 : index
    %7 = vector.load %arg4[%c0_7, %c0_8] : memref<1x128xf32, #tpu.memory_space<vmem>>, vector<1x128xf32>
    %cst_9 = arith.constant dense<0.000000e+00> : vector<128xf32>
    %8 = vector.multi_reduction <add>, %5, %cst_9 [0] : vector<32x128xf32> to vector<128xf32>
    %9 = vector.shape_cast %8 : vector<128xf32> to vector<1x128xf32>
    %10 = arith.mulf %5, %5 : vector<32x128xf32>
    %cst_10 = arith.constant dense<0.000000e+00> : vector<128xf32>
    %11 = vector.multi_reduction <add>, %10, %cst_10 [0] : vector<32x128xf32> to vector<128xf32>
    %12 = vector.shape_cast %11 : vector<128xf32> to vector<1x128xf32>
    %cst_11 = arith.constant 3.125000e-02 : f32
    %13 = vector.broadcast %cst_11 : f32 to vector<1x128xf32>
    %14 = arith.mulf %9, %13 : vector<1x128xf32>
    %cst_12 = arith.constant 3.125000e-02 : f32
    %15 = vector.broadcast %cst_12 : f32 to vector<1x128xf32>
    %16 = arith.mulf %12, %15 : vector<1x128xf32>
    %17 = arith.mulf %14, %14 : vector<1x128xf32>
    %18 = arith.subf %16, %17 : vector<1x128xf32>
    %cst_13 = arith.constant 0.000000e+00 : f32
    %19 = vector.broadcast %cst_13 : f32 to vector<1x128xf32>
    %20 = arith.maximumf %18, %19 : vector<1x128xf32>
    %cst_14 = arith.constant 9.99999974E-6 : f32
    %21 = vector.broadcast %cst_14 : f32 to vector<1x128xf32>
    %22 = arith.addf %20, %21 : vector<1x128xf32>
    %23 = math.rsqrt %22 : vector<1x128xf32>
    %24 = arith.mulf %6, %23 : vector<1x128xf32>
    %25 = arith.mulf %14, %24 : vector<1x128xf32>
    %26 = arith.subf %7, %25 : vector<1x128xf32>
    %27 = vector.broadcast %24 : vector<1x128xf32> to vector<32x128xf32>
    %28 = arith.mulf %5, %27 : vector<32x128xf32>
    %29 = vector.broadcast %26 : vector<1x128xf32> to vector<32x128xf32>
    %30 = arith.addf %28, %29 : vector<32x128xf32>
    %cst_15 = arith.constant 0.000000e+00 : f32
    %31 = vector.broadcast %cst_15 : f32 to vector<32x128xf32>
    %32 = arith.cmpf oge, %30, %31 : vector<32x128xf32>
    %cst_16 = arith.constant 2.000000e-01 : f32
    %33 = vector.broadcast %cst_16 : f32 to vector<32x128xf32>
    %34 = arith.mulf %33, %30 : vector<32x128xf32>
    %35 = arith.select %32, %30, %34 : vector<32x128xi1>, vector<32x128xf32>
    %36 = arith.truncf %35 : vector<32x128xf32> to vector<32x128xbf16>
    %c0_17 = arith.constant 0 : index
    %c0_18 = arith.constant 0 : index
    %37 = vector.load %arg5[%c0_17, %c0_18] : memref<32x128xbf16, #tpu.memory_space<vmem>>, vector<32x128xbf16>
    tpu.vector_store %arg5[%c0_17, %c0_18], %36 {strides = array<i32>} : memref<32x128xbf16, #tpu.memory_space<vmem>>, vector<32x128xbf16>,
    return
  }
}

module attributes {stable_mosaic.version = 11 : i64} {
  func.func @_encoder_block_kernel(%arg0: memref<8x2048xbf16, #tpu.memory_space<vmem>>, %arg1: memref<2048x256xbf16, #tpu.memory_space<vmem>>, %arg2: memref<1x256xf32, #tpu.memory_space<vmem>>, %arg3: memref<1x256xf32, #tpu.memory_space<vmem>>, %arg4: memref<1x256xf32, #tpu.memory_space<vmem>>, %arg5: memref<8x256xbf16, #tpu.memory_space<vmem>>) attributes {dimension_semantics = [], scalar_prefetch = 0 : i64, scratch_operands = 0 : i64, tpu.core_type = #tpu.core_type<tc>} {
    %c0 = arith.constant 0 : index
    %c0_0 = arith.constant 0 : index
    %0 = vector.load %arg0[%c0, %c0_0] : memref<8x2048xbf16, #tpu.memory_space<vmem>>, vector<8x2048xbf16>
    %c0_1 = arith.constant 0 : index
    %c0_2 = arith.constant 0 : index
    %1 = vector.load %arg1[%c0_1, %c0_2] : memref<2048x256xbf16, #tpu.memory_space<vmem>>, vector<2048x256xbf16>
    %cst = arith.constant dense<0.000000e+00> : vector<8x256xf32>
    %2 = tpu.matmul %0, %1, %cst {dimension_numbers = #tpu.dot_dimension_numbers<[1], [0], [0], [1], [0, 0, 1, 1], [], []>} : vector<8x2048xbf16>, vector<2048x256xbf16>, vector<8x256xf32> -> vector<8x256xf32>
    %c0_3 = arith.constant 0 : index
    %c0_4 = arith.constant 0 : index
    %3 = vector.load %arg2[%c0_3, %c0_4] : memref<1x256xf32, #tpu.memory_space<vmem>>, vector<1x256xf32>
    %4 = vector.broadcast %3 : vector<1x256xf32> to vector<8x256xf32>
    %5 = arith.addf %2, %4 : vector<8x256xf32>
    %c0_5 = arith.constant 0 : index
    %c0_6 = arith.constant 0 : index
    %6 = vector.load %arg3[%c0_5, %c0_6] : memref<1x256xf32, #tpu.memory_space<vmem>>, vector<1x256xf32>
    %c0_7 = arith.constant 0 : index
    %c0_8 = arith.constant 0 : index
    %7 = vector.load %arg4[%c0_7, %c0_8] : memref<1x256xf32, #tpu.memory_space<vmem>>, vector<1x256xf32>
    %cst_9 = arith.constant dense<0.000000e+00> : vector<256xf32>
    %8 = vector.multi_reduction <add>, %5, %cst_9 [0] : vector<8x256xf32> to vector<256xf32>
    %9 = vector.shape_cast %8 : vector<256xf32> to vector<1x256xf32>
    %10 = arith.mulf %5, %5 : vector<8x256xf32>
    %cst_10 = arith.constant dense<0.000000e+00> : vector<256xf32>
    %11 = vector.multi_reduction <add>, %10, %cst_10 [0] : vector<8x256xf32> to vector<256xf32>
    %12 = vector.shape_cast %11 : vector<256xf32> to vector<1x256xf32>
    %cst_11 = arith.constant 1.250000e-01 : f32
    %13 = vector.broadcast %cst_11 : f32 to vector<1x256xf32>
    %14 = arith.mulf %9, %13 : vector<1x256xf32>
    %cst_12 = arith.constant 1.250000e-01 : f32
    %15 = vector.broadcast %cst_12 : f32 to vector<1x256xf32>
    %16 = arith.mulf %12, %15 : vector<1x256xf32>
    %17 = arith.mulf %14, %14 : vector<1x256xf32>
    %18 = arith.subf %16, %17 : vector<1x256xf32>
    %cst_13 = arith.constant 0.000000e+00 : f32
    %19 = vector.broadcast %cst_13 : f32 to vector<1x256xf32>
    %20 = arith.maximumf %18, %19 : vector<1x256xf32>
    %cst_14 = arith.constant 9.99999974E-6 : f32
    %21 = vector.broadcast %cst_14 : f32 to vector<1x256xf32>
    %22 = arith.addf %20, %21 : vector<1x256xf32>
    %23 = math.rsqrt %22 : vector<1x256xf32>
    %24 = arith.mulf %6, %23 : vector<1x256xf32>
    %25 = arith.mulf %14, %24 : vector<1x256xf32>
    %26 = arith.subf %7, %25 : vector<1x256xf32>
    %27 = vector.broadcast %24 : vector<1x256xf32> to vector<8x256xf32>
    %28 = arith.mulf %5, %27 : vector<8x256xf32>
    %29 = vector.broadcast %26 : vector<1x256xf32> to vector<8x256xf32>
    %30 = arith.addf %28, %29 : vector<8x256xf32>
    %cst_15 = arith.constant 0.000000e+00 : f32
    %31 = vector.broadcast %cst_15 : f32 to vector<8x256xf32>
    %32 = arith.cmpf oge, %30, %31 : vector<8x256xf32>
    %cst_16 = arith.constant 2.000000e-01 : f32
    %33 = vector.broadcast %cst_16 : f32 to vector<8x256xf32>
    %34 = arith.mulf %33, %30 : vector<8x256xf32>
    %35 = arith.select %32, %30, %34 : vector<8x256xi1>, vector<8x256xf32>
    %36 = arith.truncf %35 : vector<8x256xf32> to vector<8x256xbf16>
    %c0_17 = arith.constant 0 : index
    %c0_18 = arith.constant 0 : index
    %37 = vector.load %arg5[%c0_17, %c0_18] : memref<8x256xbf16, #tpu.memory_space<vmem>>, vector<8x256xbf16>
    tpu.vector_store %arg5[%c0_17, %c0_18], %36 {strides = array<i32>} : memref<8x256xbf16, #tpu.memory_space<vmem>>, vector<8x256xbf16>,
    return
  }
}

module attributes {stable_mosaic.version = 11 : i64} {
  func.func @_tail_kernel(%arg0: memref<2x1024xbf16, #tpu.memory_space<vmem>>, %arg1: memref<1024x512xbf16, #tpu.memory_space<vmem>>, %arg2: memref<512x512xbf16, #tpu.memory_space<vmem>>, %arg3: memref<512x512xbf16, #tpu.memory_space<vmem>>, %arg4: memref<512x1xbf16, #tpu.memory_space<vmem>>, %arg5: memref<1x512xf32, #tpu.memory_space<vmem>>, %arg6: memref<1x512xf32, #tpu.memory_space<vmem>>, %arg7: memref<1x512xf32, #tpu.memory_space<vmem>>, %arg8: memref<1x1xf32, #tpu.memory_space<vmem>>, %arg9: memref<1x512xf32, #tpu.memory_space<vmem>>, %arg10: memref<1x512xf32, #tpu.memory_space<vmem>>, %arg11: memref<1x512xf32, #tpu.memory_space<vmem>>, %arg12: memref<1x1xf32, #tpu.memory_space<vmem>>, %arg13: memref<1x512xf32, #tpu.memory_space<vmem>>, %arg14: memref<1x512xf32, #tpu.memory_space<vmem>>, %arg15: memref<1x512xf32, #tpu.memory_space<vmem>>, %arg16: memref<1x1xf32, #tpu.memory_space<vmem>>, %arg17: memref<2x1xf32, #tpu.memory_space<vmem>>) attributes {dimension_semantics = [], scalar_prefetch = 0 : i64, scratch_operands = 0 : i64, tpu.core_type = #tpu.core_type<tc>} {
    %c0 = arith.constant 0 : index
    %c0_0 = arith.constant 0 : index
    %0 = vector.load %arg0[%c0, %c0_0] : memref<2x1024xbf16, #tpu.memory_space<vmem>>, vector<2x1024xbf16>
    %c0_1 = arith.constant 0 : index
    %c0_2 = arith.constant 0 : index
    %1 = vector.load %arg1[%c0_1, %c0_2] : memref<1024x512xbf16, #tpu.memory_space<vmem>>, vector<1024x512xbf16>
    %cst = arith.constant dense<0.000000e+00> : vector<2x512xf32>
    %2 = tpu.matmul %0, %1, %cst {dimension_numbers = #tpu.dot_dimension_numbers<[1], [0], [0], [1], [0, 0, 1, 1], [], []>} : vector<2x1024xbf16>, vector<1024x512xbf16>, vector<2x512xf32> -> vector<2x512xf32>
    %c0_3 = arith.constant 0 : index
    %c0_4 = arith.constant 0 : index
    %3 = vector.load %arg5[%c0_3, %c0_4] : memref<1x512xf32, #tpu.memory_space<vmem>>, vector<1x512xf32>
    %4 = vector.broadcast %3 : vector<1x512xf32> to vector<2x512xf32>
    %5 = arith.addf %2, %4 : vector<2x512xf32>
    %c0_5 = arith.constant 0 : index
    %c0_6 = arith.constant 0 : index
    %6 = vector.load %arg9[%c0_5, %c0_6] : memref<1x512xf32, #tpu.memory_space<vmem>>, vector<1x512xf32>
    %c0_7 = arith.constant 0 : index
    %c0_8 = arith.constant 0 : index
    %7 = vector.load %arg13[%c0_7, %c0_8] : memref<1x512xf32, #tpu.memory_space<vmem>>, vector<1x512xf32>
    %cst_9 = arith.constant dense<0.000000e+00> : vector<512xf32>
    %8 = vector.multi_reduction <add>, %5, %cst_9 [0] : vector<2x512xf32> to vector<512xf32>
    %9 = vector.shape_cast %8 : vector<512xf32> to vector<1x512xf32>
    %10 = arith.mulf %5, %5 : vector<2x512xf32>
    %cst_10 = arith.constant dense<0.000000e+00> : vector<512xf32>
    %11 = vector.multi_reduction <add>, %10, %cst_10 [0] : vector<2x512xf32> to vector<512xf32>
    %12 = vector.shape_cast %11 : vector<512xf32> to vector<1x512xf32>
    %cst_11 = arith.constant 5.000000e-01 : f32
    %13 = vector.broadcast %cst_11 : f32 to vector<1x512xf32>
    %14 = arith.mulf %9, %13 : vector<1x512xf32>
    %cst_12 = arith.constant 5.000000e-01 : f32
    %15 = vector.broadcast %cst_12 : f32 to vector<1x512xf32>
    %16 = arith.mulf %12, %15 : vector<1x512xf32>
    %17 = arith.mulf %14, %14 : vector<1x512xf32>
    %18 = arith.subf %16, %17 : vector<1x512xf32>
    %cst_13 = arith.constant 0.000000e+00 : f32
    %19 = vector.broadcast %cst_13 : f32 to vector<1x512xf32>
    %20 = arith.maximumf %18, %19 : vector<1x512xf32>
    %cst_14 = arith.constant 9.99999974E-6 : f32
    %21 = vector.broadcast %cst_14 : f32 to vector<1x512xf32>
    %22 = arith.addf %20, %21 : vector<1x512xf32>
    %23 = math.rsqrt %22 : vector<1x512xf32>
    %24 = arith.mulf %6, %23 : vector<1x512xf32>
    %25 = arith.mulf %14, %24 : vector<1x512xf32>
    %26 = arith.subf %7, %25 : vector<1x512xf32>
    %27 = vector.broadcast %24 : vector<1x512xf32> to vector<2x512xf32>
    %28 = arith.mulf %5, %27 : vector<2x512xf32>
    %29 = vector.broadcast %26 : vector<1x512xf32> to vector<2x512xf32>
    %30 = arith.addf %28, %29 : vector<2x512xf32>
    %cst_15 = arith.constant 0.000000e+00 : f32
    %31 = vector.broadcast %cst_15 : f32 to vector<2x512xf32>
    %32 = arith.cmpf oge, %30, %31 : vector<2x512xf32>
    %cst_16 = arith.constant 2.000000e-01 : f32
    %33 = vector.broadcast %cst_16 : f32 to vector<2x512xf32>
    %34 = arith.mulf %33, %30 : vector<2x512xf32>
    %35 = arith.select %32, %30, %34 : vector<2x512xi1>, vector<2x512xf32>
    %36 = arith.truncf %35 : vector<2x512xf32> to vector<2x512xbf16>
    %c0_17 = arith.constant 0 : index
    %c0_18 = arith.constant 0 : index
    %37 = vector.load %arg2[%c0_17, %c0_18] : memref<512x512xbf16, #tpu.memory_space<vmem>>, vector<512x512xbf16>
    %cst_19 = arith.constant dense<0.000000e+00> : vector<2x512xf32>
    %38 = tpu.matmul %36, %37, %cst_19 {dimension_numbers = #tpu.dot_dimension_numbers<[1], [0], [0], [1], [0, 0, 1, 1], [], []>} : vector<2x512xbf16>, vector<512x512xbf16>, vector<2x512xf32> -> vector<2x512xf32>
    %c0_20 = arith.constant 0 : index
    %c0_21 = arith.constant 0 : index
    %39 = vector.load %arg6[%c0_20, %c0_21] : memref<1x512xf32, #tpu.memory_space<vmem>>, vector<1x512xf32>
    %40 = vector.broadcast %39 : vector<1x512xf32> to vector<2x512xf32>
    %41 = arith.addf %38, %40 : vector<2x512xf32>
    %c0_22 = arith.constant 0 : index
    %c0_23 = arith.constant 0 : index
    %42 = vector.load %arg10[%c0_22, %c0_23] : memref<1x512xf32, #tpu.memory_space<vmem>>, vector<1x512xf32>
    %c0_24 = arith.constant 0 : index
    %c0_25 = arith.constant 0 : index
    %43 = vector.load %arg14[%c0_24, %c0_25] : memref<1x512xf32, #tpu.memory_space<vmem>>, vector<1x512xf32>
    %cst_26 = arith.constant dense<0.000000e+00> : vector<512xf32>
    %44 = vector.multi_reduction <add>, %41, %cst_26 [0] : vector<2x512xf32> to vector<512xf32>
    %45 = vector.shape_cast %44 : vector<512xf32> to vector<1x512xf32>
    %46 = arith.mulf %41, %41 : vector<2x512xf32>
    %cst_27 = arith.constant dense<0.000000e+00> : vector<512xf32>
    %47 = vector.multi_reduction <add>, %46, %cst_27 [0] : vector<2x512xf32> to vector<512xf32>
    %48 = vector.shape_cast %47 : vector<512xf32> to vector<1x512xf32>
    %cst_28 = arith.constant 5.000000e-01 : f32
    %49 = vector.broadcast %cst_28 : f32 to vector<1x512xf32>
    %50 = arith.mulf %45, %49 : vector<1x512xf32>
    %cst_29 = arith.constant 5.000000e-01 : f32
    %51 = vector.broadcast %cst_29 : f32 to vector<1x512xf32>
    %52 = arith.mulf %48, %51 : vector<1x512xf32>
    %53 = arith.mulf %50, %50 : vector<1x512xf32>
    %54 = arith.subf %52, %53 : vector<1x512xf32>
    %cst_30 = arith.constant 0.000000e+00 : f32
    %55 = vector.broadcast %cst_30 : f32 to vector<1x512xf32>
    %56 = arith.maximumf %54, %55 : vector<1x512xf32>
    %cst_31 = arith.constant 9.99999974E-6 : f32
    %57 = vector.broadcast %cst_31 : f32 to vector<1x512xf32>
    %58 = arith.addf %56, %57 : vector<1x512xf32>
    %59 = math.rsqrt %58 : vector<1x512xf32>
    %60 = arith.mulf %42, %59 : vector<1x512xf32>
    %61 = arith.mulf %50, %60 : vector<1x512xf32>
    %62 = arith.subf %43, %61 : vector<1x512xf32>
    %63 = vector.broadcast %60 : vector<1x512xf32> to vector<2x512xf32>
    %64 = arith.mulf %41, %63 : vector<2x512xf32>
    %65 = vector.broadcast %62 : vector<1x512xf32> to vector<2x512xf32>
    %66 = arith.addf %64, %65 : vector<2x512xf32>
    %cst_32 = arith.constant 0.000000e+00 : f32
    %67 = vector.broadcast %cst_32 : f32 to vector<2x512xf32>
    %68 = arith.cmpf oge, %66, %67 : vector<2x512xf32>
    %cst_33 = arith.constant 2.000000e-01 : f32
    %69 = vector.broadcast %cst_33 : f32 to vector<2x512xf32>
    %70 = arith.mulf %69, %66 : vector<2x512xf32>
    %71 = arith.select %68, %66, %70 : vector<2x512xi1>, vector<2x512xf32>
    %72 = arith.truncf %71 : vector<2x512xf32> to vector<2x512xbf16>
    %c0_34 = arith.constant 0 : index
    %c0_35 = arith.constant 0 : index
    %73 = vector.load %arg3[%c0_34, %c0_35] : memref<512x512xbf16, #tpu.memory_space<vmem>>, vector<512x512xbf16>
    %cst_36 = arith.constant dense<0.000000e+00> : vector<2x512xf32>
    %74 = tpu.matmul %72, %73, %cst_36 {dimension_numbers = #tpu.dot_dimension_numbers<[1], [0], [0], [1], [0, 0, 1, 1], [], []>} : vector<2x512xbf16>, vector<512x512xbf16>, vector<2x512xf32> -> vector<2x512xf32>
    %c0_37 = arith.constant 0 : index
    %c0_38 = arith.constant 0 : index
    %75 = vector.load %arg7[%c0_37, %c0_38] : memref<1x512xf32, #tpu.memory_space<vmem>>, vector<1x512xf32>
    %76 = vector.broadcast %75 : vector<1x512xf32> to vector<2x512xf32>
    %77 = arith.addf %74, %76 : vector<2x512xf32>
    %c0_39 = arith.constant 0 : index
    %c0_40 = arith.constant 0 : index
    %78 = vector.load %arg11[%c0_39, %c0_40] : memref<1x512xf32, #tpu.memory_space<vmem>>, vector<1x512xf32>
    %c0_41 = arith.constant 0 : index
    %c0_42 = arith.constant 0 : index
    %79 = vector.load %arg15[%c0_41, %c0_42] : memref<1x512xf32, #tpu.memory_space<vmem>>, vector<1x512xf32>
    %cst_43 = arith.constant dense<0.000000e+00> : vector<512xf32>
    %80 = vector.multi_reduction <add>, %77, %cst_43 [0] : vector<2x512xf32> to vector<512xf32>
    %81 = vector.shape_cast %80 : vector<512xf32> to vector<1x512xf32>
    %82 = arith.mulf %77, %77 : vector<2x512xf32>
    %cst_44 = arith.constant dense<0.000000e+00> : vector<512xf32>
    %83 = vector.multi_reduction <add>, %82, %cst_44 [0] : vector<2x512xf32> to vector<512xf32>
    %84 = vector.shape_cast %83 : vector<512xf32> to vector<1x512xf32>
    %cst_45 = arith.constant 5.000000e-01 : f32
    %85 = vector.broadcast %cst_45 : f32 to vector<1x512xf32>
    %86 = arith.mulf %81, %85 : vector<1x512xf32>
    %cst_46 = arith.constant 5.000000e-01 : f32
    %87 = vector.broadcast %cst_46 : f32 to vector<1x512xf32>
    %88 = arith.mulf %84, %87 : vector<1x512xf32>
    %89 = arith.mulf %86, %86 : vector<1x512xf32>
    %90 = arith.subf %88, %89 : vector<1x512xf32>
    %cst_47 = arith.constant 0.000000e+00 : f32
    %91 = vector.broadcast %cst_47 : f32 to vector<1x512xf32>
    %92 = arith.maximumf %90, %91 : vector<1x512xf32>
    %cst_48 = arith.constant 9.99999974E-6 : f32
    %93 = vector.broadcast %cst_48 : f32 to vector<1x512xf32>
    %94 = arith.addf %92, %93 : vector<1x512xf32>
    %95 = math.rsqrt %94 : vector<1x512xf32>
    %96 = arith.mulf %78, %95 : vector<1x512xf32>
    %97 = arith.mulf %86, %96 : vector<1x512xf32>
    %98 = arith.subf %79, %97 : vector<1x512xf32>
    %99 = vector.broadcast %96 : vector<1x512xf32> to vector<2x512xf32>
    %100 = arith.mulf %77, %99 : vector<2x512xf32>
    %101 = vector.broadcast %98 : vector<1x512xf32> to vector<2x512xf32>
    %102 = arith.addf %100, %101 : vector<2x512xf32>
    %cst_49 = arith.constant 0.000000e+00 : f32
    %103 = vector.broadcast %cst_49 : f32 to vector<2x512xf32>
    %104 = arith.cmpf oge, %102, %103 : vector<2x512xf32>
    %cst_50 = arith.constant 2.000000e-01 : f32
    %105 = vector.broadcast %cst_50 : f32 to vector<2x512xf32>
    %106 = arith.mulf %105, %102 : vector<2x512xf32>
    %107 = arith.select %104, %102, %106 : vector<2x512xi1>, vector<2x512xf32>
    %108 = arith.truncf %107 : vector<2x512xf32> to vector<2x512xbf16>
    %c0_51 = arith.constant 0 : index
    %c0_52 = arith.constant 0 : index
    %109 = vector.load %arg4[%c0_51, %c0_52] : memref<512x1xbf16, #tpu.memory_space<vmem>>, vector<512x1xbf16>
    %cst_53 = arith.constant dense<0.000000e+00> : vector<2x1xf32>
    %110 = tpu.matmul %108, %109, %cst_53 {dimension_numbers = #tpu.dot_dimension_numbers<[1], [0], [0], [1], [0, 0, 1, 1], [], []>} : vector<2x512xbf16>, vector<512x1xbf16>, vector<2x1xf32> -> vector<2x1xf32>
    %c0_54 = arith.constant 0 : index
    %c0_55 = arith.constant 0 : index
    %111 = vector.load %arg8[%c0_54, %c0_55] : memref<1x1xf32, #tpu.memory_space<vmem>>, vector<1x1xf32>
    %112 = vector.broadcast %111 : vector<1x1xf32> to vector<2x1xf32>
    %113 = arith.addf %110, %112 : vector<2x1xf32>
    %c0_56 = arith.constant 0 : index
    %c0_57 = arith.constant 0 : index
    %114 = vector.load %arg12[%c0_56, %c0_57] : memref<1x1xf32, #tpu.memory_space<vmem>>, vector<1x1xf32>
    %c0_58 = arith.constant 0 : index
    %c0_59 = arith.constant 0 : index
    %115 = vector.load %arg16[%c0_58, %c0_59] : memref<1x1xf32, #tpu.memory_space<vmem>>, vector<1x1xf32>
    %cst_60 = arith.constant dense<0.000000e+00> : vector<1xf32>
    %116 = vector.multi_reduction <add>, %113, %cst_60 [0] : vector<2x1xf32> to vector<1xf32>
    %117 = vector.shape_cast %116 : vector<1xf32> to vector<1x1xf32>
    %118 = arith.mulf %113, %113 : vector<2x1xf32>
    %cst_61 = arith.constant dense<0.000000e+00> : vector<1xf32>
    %119 = vector.multi_reduction <add>, %118, %cst_61 [0] : vector<2x1xf32> to vector<1xf32>
    %120 = vector.shape_cast %119 : vector<1xf32> to vector<1x1xf32>
    %cst_62 = arith.constant 5.000000e-01 : f32
    %121 = vector.broadcast %cst_62 : f32 to vector<1x1xf32>
    %122 = arith.mulf %117, %121 : vector<1x1xf32>
    %cst_63 = arith.constant 5.000000e-01 : f32
    %123 = vector.broadcast %cst_63 : f32 to vector<1x1xf32>
    %124 = arith.mulf %120, %123 : vector<1x1xf32>
    %125 = arith.mulf %122, %122 : vector<1x1xf32>
    %126 = arith.subf %124, %125 : vector<1x1xf32>
    %cst_64 = arith.constant 0.000000e+00 : f32
    %127 = vector.broadcast %cst_64 : f32 to vector<1x1xf32>
    %128 = arith.maximumf %126, %127 : vector<1x1xf32>
    %cst_65 = arith.constant 9.99999974E-6 : f32
    %129 = vector.broadcast %cst_65 : f32 to vector<1x1xf32>
    %130 = arith.addf %128, %129 : vector<1x1xf32>
    %131 = math.rsqrt %130 : vector<1x1xf32>
    %132 = arith.mulf %114, %131 : vector<1x1xf32>
    %133 = arith.mulf %122, %132 : vector<1x1xf32>
    %134 = arith.subf %115, %133 : vector<1x1xf32>
    %135 = vector.broadcast %132 : vector<1x1xf32> to vector<2x1xf32>
    %136 = arith.mulf %113, %135 : vector<2x1xf32>
    %137 = vector.broadcast %134 : vector<1x1xf32> to vector<2x1xf32>
    %138 = arith.addf %136, %137 : vector<2x1xf32>
    %cst_66 = arith.constant 0.000000e+00 : f32
    %139 = vector.broadcast %cst_66 : f32 to vector<2x1xf32>
    %140 = arith.cmpf oge, %138, %139 : vector<2x1xf32>
    %cst_67 = arith.constant 2.000000e-01 : f32
    %141 = vector.broadcast %cst_67 : f32 to vector<2x1xf32>
    %142 = arith.mulf %141, %138 : vector<2x1xf32>
    %143 = arith.select %140, %138, %142 : vector<2x1xi1>, vector<2x1xf32>
    %cst_68 = arith.constant 0.000000e+00 : f32
    %144 = vector.broadcast %cst_68 : f32 to vector<2x1xf32>
    %145 = arith.subf %144, %143 : vector<2x1xf32>
    %146 = math.exp %145 : vector<2x1xf32>
    %cst_69 = arith.constant 1.000000e+00 : f32
    %147 = vector.broadcast %cst_69 : f32 to vector<2x1xf32>
    %148 = arith.addf %147, %146 : vector<2x1xf32>
    %cst_70 = arith.constant 1.000000e+00 : f32
    %149 = vector.broadcast %cst_70 : f32 to vector<2x1xf32>
    %150 = arith.divf %149, %148 : vector<2x1xf32>
    %c0_71 = arith.constant 0 : index
    %c0_72 = arith.constant 0 : index
    %151 = vector.load %arg17[%c0_71, %c0_72] : memref<2x1xf32, #tpu.memory_space<vmem>>, vector<2x1xf32>
    tpu.vector_store %arg17[%c0_71, %c0_72], %150 {strides = array<i32>} : memref<2x1xf32, #tpu.memory_space<vmem>>, vector<2x1xf32>,
    return
  }
}

</mosaic_0001>

<llo_original>
// kernel: discriminator_forward.5
$region0: #{discriminator_forward.5}
  #allocation0 [shape = 'u32[]', space=smem, size = 0x4, offset = 0x4, fixed_abs, tag = 'smem constant byte address 0x4 - core index']
  #allocation1 [shape = 'u32[144,128]{1,0:T(1,128)}', space=vmem, size = 0x12000, scoped, tag = 'internal scratch']
  %s0 = inlined_call_operand.vmem [shape: bf16[512,32], index: 0, kind: input, shape index: {}]
  %s1 = inlined_call_operand.hbm [shape: bf16[32,64], index: 1, kind: input, shape index: {}]
  %s2 = inlined_call_operand.hbm [shape: f32[1,64], index: 2, kind: input, shape index: {}]
  %s3 = inlined_call_operand.hbm [shape: f32[1,64], index: 3, kind: input, shape index: {}]
  %s4 = inlined_call_operand.hbm [shape: f32[1,64], index: 4, kind: input, shape index: {}]
  %s5 = inlined_call_operand.vmem [shape: bf16[512,64], index: 5, kind: output, shape index: {}]
  %s6 = sld [smem:[#allocation0]]
  $region46: #{discriminator_forward.5} parent=0
    _
  %s8 = ssub.s32 1, %s6
  %s9 = scalar_select 0, %s8, %s6
  $region1: #{discriminator_forward.5} parent=0
    #allocation2 [shape = 'u8[8192]{0}', space=vmem, size = 0x2000, scoped, tag = 'input window, operand 1, single buffered']
    #allocation3 [shape = 's32[1]{0}', space=sflag, size = 0x4, scoped, tag = 'scoped memory for discriminator_forward.5']
    #allocation4 [shape = 'u8[512]{0}', space=vmem, size = 0x400, scoped, tag = 'input window, operand 2, single buffered']
    #allocation5 [shape = 's32[1]{0}', space=sflag, size = 0x4, scoped, tag = 'scoped memory for discriminator_forward.5']
    #allocation6 [shape = 'u8[512]{0}', space=vmem, size = 0x400, scoped, tag = 'input window, operand 3, single buffered']
    #allocation7 [shape = 'u8[512]{0}', space=vmem, size = 0x400, scoped, tag = 'input window, operand 4, single buffered']
    #allocation8 [shape = 's32[1]{0}', space=sflag, size = 0x4, scoped, tag = 'scoped memory for discriminator_forward.5']
    %10 = vsyncpa [#allocation3], 0
    %11 = vsyncpa [#allocation5], 0
    %12 = vsyncpa [#allocation8], 0
    // Predicated region
    $region2: #{discriminator_forward.5} parent=1 // pred_check
      _
    $region3: #{discriminator_forward.5} parent=1 // pred_check_branch
      %14 = sbr.rel (0) target = $region5
    $region4: #{discriminator_forward.5} parent=1 // pred_region
      _
    $region5: #{discriminator_forward.5} parent=1 // pred_fallthru
      _
    // Predicated region
    $region6: #{discriminator_forward.5} parent=1 // pred_check
      _
    $region7: #{discriminator_forward.5} parent=1 // pred_check_branch
      %16 = sbr.rel (0) target = $region9
    $region8: #{discriminator_forward.5} parent=1 // pred_region
      %s18 = ssub.s32 256, 256
      %19 = vsyncadd [#allocation3], %s18
      %s20 = sshll.u32 [#allocation2], 4
      %s21 = int_to_ptr.vmem [resolvable:$true] %s20
      %26 = dma.hbm_to_vmem [thread:$0]  %s1, 256, %s21, [#allocation3], 64, 64, 4
    $region9: #{discriminator_forward.5} parent=1 // pred_fallthru
      _
    // Predicated region
    $region10: #{discriminator_forward.5} parent=1 // pred_check
      _
    $region11: #{discriminator_forward.5} parent=1 // pred_check_branch
      %28 = sbr.rel (0) target = $region13
    $region12: #{discriminator_forward.5} parent=1 // pred_region
      %s30 = ssub.s32 16, 16
      %31 = vsyncadd [#allocation5], %s30
      %s33 = sshll.u32 [#allocation4], 4
      %s34 = int_to_ptr.vmem [resolvable:$true] %s33
      %36 = dma.hbm_to_vmem [thread:$0]  %s2, 16, %s34, [#allocation5]
    $region13: #{discriminator_forward.5} parent=1 // pred_fallthru
      _
    // Predicated region
    $region14: #{discriminator_forward.5} parent=1 // pred_check
      _
    $region15: #{discriminator_forward.5} parent=1 // pred_check_branch
      %38 = sbr.rel (0) target = $region17
    $region16: #{discriminator_forward.5} parent=1 // pred_region
      %s40 = ssub.s32 16, 16
      %41 = vsyncadd [#allocation5], %s40
      %s43 = sshll.u32 [#allocation6], 4
      %s44 = int_to_ptr.vmem [resolvable:$true] %s43
      %46 = dma.hbm_to_vmem [thread:$0]  %s3, 16, %s44, [#allocation5]
    $region17: #{discriminator_forward.5} parent=1 // pred_fallthru
      _
    // Predicated region
    $region18: #{discriminator_forward.5} parent=1 // pred_check
      _
    $region19: #{discriminator_forward.5} parent=1 // pred_check_branch
      %48 = sbr.rel (0) target = $region21
    $region20: #{discriminator_forward.5} parent=1 // pred_region
      %s50 = ssub.s32 16, 16
      %51 = vsyncadd [#allocation8], %s50
      %s53 = sshll.u32 [#allocation7], 4
      %s54 = int_to_ptr.vmem [resolvable:$true] %s53
      %56 = dma.hbm_to_vmem [thread:$0]  %s4, 16, %s54, [#allocation8]
    $region21: #{discriminator_forward.5} parent=1 // pred_fallthru
      _
    // Predicated region
    $region22: #{discriminator_forward.5} parent=1 // pred_check
      _
    $region23: #{discriminator_forward.5} parent=1 // pred_check_branch
      %58 = sbr.rel (0) target = $region25
    $region24: #{discriminator_forward.5} parent=1 // pred_region
      %59 = dma.done [#allocation3], 256
    $region25: #{discriminator_forward.5} parent=1 // pred_fallthru
      _
    // Predicated region
    $region26: #{discriminator_forward.5} parent=1 // pred_check
      _
    $region27: #{discriminator_forward.5} parent=1 // pred_check_branch
      %61 = sbr.rel (0) target = $region29
    $region28: #{discriminator_forward.5} parent=1 // pred_region
      %62 = dma.done [#allocation5], 16
    $region29: #{discriminator_forward.5} parent=1 // pred_fallthru
      _
    // Predicated region
    $region30: #{discriminator_forward.5} parent=1 // pred_check
      _
    $region31: #{discriminator_forward.5} parent=1 // pred_check_branch
      %64 = sbr.rel (0) target = $region33
    $region32: #{discriminator_forward.5} parent=1 // pred_region
      %65 = dma.done [#allocation5], 16
    $region33: #{discriminator_forward.5} parent=1 // pred_fallthru
      _
    // Predicated region
    $region34: #{discriminator_forward.5} parent=1 // pred_check
      _
    $region35: #{discriminator_forward.5} parent=1 // pred_check_branch
      %67 = sbr.rel (0) target = $region37
    $region36: #{discriminator_forward.5} parent=1 // pred_region
      %68 = dma.done [#allocation8], 16
    $region37: #{discriminator_forward.5} parent=1 // pred_fallthru
      _
    %v70 = vld [vmem:[%s0] sm:$0xf]
    %v71 = vld [vmem:[%s0 + $0x4] sm:$0xf]
    %v72 = vld [vmem:[%s0 + $0x8] sm:$0xf]
    %v73 = vld [vmem:[%s0 + $0xc] sm:$0xf]
    %v74 = vld [vmem:[%s0 + $0x10] sm:$0xf]
    %v75 = vld [vmem:[%s0 + $0x14] sm:$0xf]
    %v76 = vld [vmem:[%s0 + $0x18] sm:$0xf]
    %v77 = vld [vmem:[%s0 + $0x1c] sm:$0xf]
    %v78 = vld [vmem:[%s0 + $0x20] sm:$0xf]
    %v79 = vld [vmem:[%s0 + $0x24] sm:$0xf]
    %v80 = vld [vmem:[%s0 + $0x28] sm:$0xf]
    %v81 = vld [vmem:[%s0 + $0x2c] sm:$0xf]
    %v82 = vld [vmem:[%s0 + $0x30] sm:$0xf]
    %v83 = vld [vmem:[%s0 + $0x34] sm:$0xf]
    %v84 = vld [vmem:[%s0 + $0x38] sm:$0xf]
    %v85 = vld [vmem:[%s0 + $0x3c] sm:$0xf]
    %v86 = vld [vmem:[%s0 + $0x40] sm:$0xf]
    %v87 = vld [vmem:[%s0 + $0x44] sm:$0xf]
    %v88 = vld [vmem:[%s0 + $0x48] sm:$0xf]
    %v89 = vld [vmem:[%s0 + $0x4c] sm:$0xf]
    %v90 = vld [vmem:[%s0 + $0x50] sm:$0xf]
    %v91 = vld [vmem:[%s0 + $0x54] sm:$0xf]
    %v92 = vld [vmem:[%s0 + $0x58] sm:$0xf]
    %v93 = vld [vmem:[%s0 + $0x5c] sm:$0xf]
    %v94 = vld [vmem:[%s0 + $0x60] sm:$0xf]
    %v95 = vld [vmem:[%s0 + $0x64] sm:$0xf]
    %v96 = vld [vmem:[%s0 + $0x68] sm:$0xf]
    %v97 = vld [vmem:[%s0 + $0x6c] sm:$0xf]
    %v98 = vld [vmem:[%s0 + $0x70] sm:$0xf]
    %v99 = vld [vmem:[%s0 + $0x74] sm:$0xf]
    %v100 = vld [vmem:[%s0 + $0x78] sm:$0xf]
    %v101 = vld [vmem:[%s0 + $0x7c] sm:$0xf]
    %v102 = vld [vmem:[%s0 + $0x80] sm:$0xf]
    %v103 = vld [vmem:[%s0 + $0x84] sm:$0xf]
    %v104 = vld [vmem:[%s0 + $0x88] sm:$0xf]
    %v105 = vld [vmem:[%s0 + $0x8c] sm:$0xf]
    %v106 = vld [vmem:[%s0 + $0x90] sm:$0xf]
    %v107 = vld [vmem:[%s0 + $0x94] sm:$0xf]
    %v108 = vld [vmem:[%s0 + $0x98] sm:$0xf]
    %v109 = vld [vmem:[%s0 + $0x9c] sm:$0xf]
    %v110 = vld [vmem:[%s0 + $0xa0] sm:$0xf]
    %v111 = vld [vmem:[%s0 + $0xa4] sm:$0xf]
    %v112 = vld [vmem:[%s0 + $0xa8] sm:$0xf]
    %v113 = vld [vmem:[%s0 + $0xac] sm:$0xf]
    %v114 = vld [vmem:[%s0 + $0xb0] sm:$0xf]
    %v115 = vld [vmem:[%s0 + $0xb4] sm:$0xf]
    %v116 = vld [vmem:[%s0 + $0xb8] sm:$0xf]
    %v117 = vld [vmem:[%s0 + $0xbc] sm:$0xf]
    %v118 = vld [vmem:[%s0 + $0xc0] sm:$0xf]
    %v119 = vld [vmem:[%s0 + $0xc4] sm:$0xf]
    %v120 = vld [vmem:[%s0 + $0xc8] sm:$0xf]
    %v121 = vld [vmem:[%s0 + $0xcc] sm:$0xf]
    %v122 = vld [vmem:[%s0 + $0xd0] sm:$0xf]
    %v123 = vld [vmem:[%s0 + $0xd4] sm:$0xf]
    %v124 = vld [vmem:[%s0 + $0xd8] sm:$0xf]
    %v125 = vld [vmem:[%s0 + $0xdc] sm:$0xf]
    %v126 = vld [vmem:[%s0 + $0xe0] sm:$0xf]
    %v127 = vld [vmem:[%s0 + $0xe4] sm:$0xf]
    %v128 = vld [vmem:[%s0 + $0xe8] sm:$0xf]
    %v129 = vld [vmem:[%s0 + $0xec] sm:$0xf]
    %v130 = vld [vmem:[%s0 + $0xf0] sm:$0xf]
    %v131 = vld [vmem:[%s0 + $0xf4] sm:$0xf]
    %v132 = vld [vmem:[%s0 + $0xf8] sm:$0xf]
    %v133 = vld [vmem:[%s0 + $0xfc] sm:$0xf]
    %v134 = vld [vmem:[#allocation2] sm:$0xf]
    %v135 = vld [vmem:[#allocation2 + $0x4] sm:$0xf]
    %v136 = vld [vmem:[#allocation2 + $0x8] sm:$0xf]
    %v137 = vld [vmem:[#allocation2 + $0xc] sm:$0xf]
    %v138 = vld [vmem:[#allocation4] sm:$0x1]
    %v140 = vlaneseq
    %v141 = vshrl.u32 %v140, 7
    %v142 = vsub.s32 0, %v141
    %v143 = vrot.slane %v138, %v142
    %v209 = vunpack.c.l.b16 %v70
    %v210 = vunpack.c.l.b16 %v71
    %v211 = vunpack.c.l.b16 %v72
    %v212 = vunpack.c.l.b16 %v73
    %v213 = vunpack.c.l.b16 %v74
    %v214 = vunpack.c.l.b16 %v75
    %v215 = vunpack.c.l.b16 %v76
    %v216 = vunpack.c.l.b16 %v77
    %v217 = vunpack.c.l.b16 %v78
    %v218 = vunpack.c.l.b16 %v79
    %v219 = vunpack.c.l.b16 %v80
    %v220 = vunpack.c.l.b16 %v81
    %v221 = vunpack.c.l.b16 %v82
    %v222 = vunpack.c.l.b16 %v83
    %v223 = vunpack.c.l.b16 %v84
    %v224 = vunpack.c.l.b16 %v85
    %v225 = vunpack.c.l.b16 %v86
    %v226 = vunpack.c.l.b16 %v87
    %v227 = vunpack.c.l.b16 %v88
    %v228 = vunpack.c.l.b16 %v89
    %v229 = vunpack.c.l.b16 %v90
    %v230 = vunpack.c.l.b16 %v91
    %v231 = vunpack.c.l.b16 %v92
    %v232 = vunpack.c.l.b16 %v93
    %v233 = vunpack.c.l.b16 %v94
    %v234 = vunpack.c.l.b16 %v95
    %v235 = vunpack.c.l.b16 %v96
    %v236 = vunpack.c.l.b16 %v97
    %v237 = vunpack.c.l.b16 %v98
    %v238 = vunpack.c.l.b16 %v99
    %v239 = vunpack.c.l.b16 %v100
    %v240 = vunpack.c.l.b16 %v101
    %v241 = vunpack.c.l.b16 %v102
    %v242 = vunpack.c.l.b16 %v103
    %v243 = vunpack.c.l.b16 %v104
    %v244 = vunpack.c.l.b16 %v105
    %v245 = vunpack.c.l.b16 %v106
    %v246 = vunpack.c.l.b16 %v107
    %v247 = vunpack.c.l.b16 %v108
    %v248 = vunpack.c.l.b16 %v109
    %v249 = vunpack.c.l.b16 %v110
    %v250 = vunpack.c.l.b16 %v111
    %v251 = vunpack.c.l.b16 %v112
    %v252 = vunpack.c.l.b16 %v113
    %v253 = vunpack.c.l.b16 %v114
    %v254 = vunpack.c.l.b16 %v115
    %v255 = vunpack.c.l.b16 %v116
    %v256 = vunpack.c.l.b16 %v117
    %v257 = vunpack.c.l.b16 %v118
    %v258 = vunpack.c.l.b16 %v119
    %v259 = vunpack.c.l.b16 %v120
    %v260 = vunpack.c.l.b16 %v121
    %v261 = vunpack.c.l.b16 %v122
    %v262 = vunpack.c.l.b16 %v123
    %v263 = vunpack.c.l.b16 %v124
    %v264 = vunpack.c.l.b16 %v125
    %v265 = vunpack.c.l.b16 %v126
    %v266 = vunpack.c.l.b16 %v127
    %v267 = vunpack.c.l.b16 %v128
    %v268 = vunpack.c.l.b16 %v129
    %v269 = vunpack.c.l.b16 %v130
    %v270 = vunpack.c.l.b16 %v131
    %v271 = vunpack.c.l.b16 %v132
    %v272 = vunpack.c.l.b16 %v133
    %v273 = vpack.c.b16 %v210, %v209
    %v274 = vpack.c.b16 %v212, %v211
    %v275 = vpack.c.b16 %v214, %v213
    %v276 = vpack.c.b16 %v216, %v215
    %v277 = vpack.c.b16 %v218, %v217
    %v278 = vpack.c.b16 %v220, %v219
    %v279 = vpack.c.b16 %v222, %v221
    %v280 = vpack.c.b16 %v224, %v223
    %v281 = vpack.c.b16 %v226, %v225
    %v282 = vpack.c.b16 %v228, %v227
    %v283 = vpack.c.b16 %v230, %v229
    %v284 = vpack.c.b16 %v232, %v231
    %v285 = vpack.c.b16 %v234, %v233
    %v286 = vpack.c.b16 %v236, %v235
    %v287 = vpack.c.b16 %v238, %v237
    %v288 = vpack.c.b16 %v240, %v239
    %v289 = vpack.c.b16 %v242, %v241
    %v290 = vpack.c.b16 %v244, %v243
    %v291 = vpack.c.b16 %v246, %v245
    %v292 = vpack.c.b16 %v248, %v247
    %v293 = vpack.c.b16 %v250, %v249
    %v294 = vpack.c.b16 %v252, %v251
    %v295 = vpack.c.b16 %v254, %v253
    %v296 = vpack.c.b16 %v256, %v255
    %v297 = vpack.c.b16 %v258, %v257
    %v298 = vpack.c.b16 %v260, %v259
    %v299 = vpack.c.b16 %v262, %v261
    %v300 = vpack.c.b16 %v264, %v263
    %v301 = vpack.c.b16 %v266, %v265
    %v302 = vpack.c.b16 %v268, %v267
    %v303 = vpack.c.b16 %v270, %v269
    %v304 = vpack.c.b16 %v272, %v271
    %v309 = vunpack.c.l.b16 %v134
    %v310 = vunpack.c.l.b16 %v135
    %v311 = vunpack.c.l.b16 %v136
    %v312 = vunpack.c.l.b16 %v137
    %v313 = vpack.c.b16 %v310, %v309
    %v314 = vpack.c.b16 %v312, %v311
    %vm317 = vcmask 261120
    %v319 = vsel %vm317, %v273, 0
    %v322 = vsel %vm317, %v274, 0
    %v325 = vsel %vm317, %v275, 0
    %v328 = vsel %vm317, %v276, 0
    %v331 = vsel %vm317, %v277, 0
    %v334 = vsel %vm317, %v278, 0
    %v337 = vsel %vm317, %v279, 0
    %v340 = vsel %vm317, %v280, 0
    %v343 = vsel %vm317, %v281, 0
    %v346 = vsel %vm317, %v282, 0
    %v349 = vsel %vm317, %v283, 0
    %v352 = vsel %vm317, %v284, 0
    %v355 = vsel %vm317, %v285, 0
    %v358 = vsel %vm317, %v286, 0
    %v361 = vsel %vm317, %v287, 0
    %v364 = vsel %vm317, %v288, 0
    %v367 = vsel %vm317, %v289, 0
    %v370 = vsel %vm317, %v290, 0
    %v373 = vsel %vm317, %v291, 0
    %v376 = vsel %vm317, %v292, 0
    %v379 = vsel %vm317, %v293, 0
    %v382 = vsel %vm317, %v294, 0
    %v385 = vsel %vm317, %v295, 0
    %v388 = vsel %vm317, %v296, 0
    %v391 = vsel %vm317, %v297, 0
    %v394 = vsel %vm317, %v298, 0
    %v397 = vsel %vm317, %v299, 0
    %v400 = vsel %vm317, %v300, 0
    %v403 = vsel %vm317, %v301, 0
    %v406 = vsel %vm317, %v302, 0
    %v409 = vsel %vm317, %v303, 0
    %v412 = vsel %vm317, %v304, 0
    %414 = vmatprep.subr.bf16.mxu0 0
    %415 = vmatpush1.bf16.msra.mxu0 %v313
    %416 = vmatprep.subr.bf16.mxu0 0
    %417 = vmatpush1.bf16.msra.mxu0 %v314
    %418 = vmatprep.subr.bf16.mxu0 0
    %419 = vmatpush1.bf16.msra.mxu0 0
    %420 = vmatprep.subr.bf16.mxu0 0
    %421 = vmatpush1.bf16.msra.mxu0 0
    %422 = vmatprep.subr.bf16.mxu0 0
    %423 = vmatpush1.bf16.msra.mxu0 0
    %424 = vmatprep.subr.bf16.mxu0 0
    %425 = vmatpush1.bf16.msra.mxu0 0
    %426 = vmatprep.subr.bf16.mxu0 0
    %427 = vmatpush1.bf16.msra.mxu0 0
    %428 = vmatprep.subr.bf16.mxu0 0
    %429 = vmatpush1.bf16.msra.mxu0 0
    %430 = vmatprep.subr.bf16.mxu0 0
    %431 = vmatpush1.bf16.msra.mxu0 0
    %432 = vmatprep.subr.bf16.mxu0 0
    %433 = vmatpush1.bf16.msra.mxu0 0
    %434 = vmatprep.subr.bf16.mxu0 0
    %435 = vmatpush1.bf16.msra.mxu0 0
    %436 = vmatprep.subr.bf16.mxu0 0
    %437 = vmatpush1.bf16.msra.mxu0 0
    %438 = vmatprep.subr.bf16.mxu0 0
    %439 = vmatpush1.bf16.msra.mxu0 0
    %440 = vmatprep.subr.bf16.mxu0 0
    %441 = vmatpush1.bf16.msra.mxu0 0
    %442 = vmatprep.subr.bf16.mxu0 0
    %443 = vmatpush1.bf16.msra.mxu0 0
    %444 = vmatprep.subr.bf16.mxu0 0
    %445 = vmatpush1.bf16.msra.mxu0 0
    %446 = vmatprep.mubr.bf16.mxu0 0
    %447 = vmatmul.mubr.bf16.gmra.mrb[0].mxu0 %v319
    %v448 = vpop.f32.mrb[0].mxu0
    %v449 = vadd.f32 %v143, %v448
    %v450 = vpop.f32.mrb[0].mxu0
    %v451 = vpop.f32.mrb[0].mxu0
    %v452 = vadd.f32 %v143, %v451
    %v453 = vpop.f32.mrb[0].mxu0
    %454 = vmatprep.mubr.bf16.mxu0 0
    %455 = vmatmul.mubr.bf16.gmra.mrb[0].mxu0 %v322
    %v456 = vpop.f32.mrb[0].mxu0
    %v457 = vadd.f32 %v143, %v456
    %v458 = vpop.f32.mrb[0].mxu0
    %v459 = vpop.f32.mrb[0].mxu0
    %v460 = vadd.f32 %v143, %v459
    %v461 = vpop.f32.mrb[0].mxu0
    %462 = vmatprep.mubr.bf16.mxu0 0
    %463 = vmatmul.mubr.bf16.gmra.mrb[0].mxu0 %v325
    %v464 = vpop.f32.mrb[0].mxu0
    %v465 = vadd.f32 %v143, %v464
    %v466 = vpop.f32.mrb[0].mxu0
    %v467 = vpop.f32.mrb[0].mxu0
    %v468 = vadd.f32 %v143, %v467
    %v469 = vpop.f32.mrb[0].mxu0
    %470 = vmatprep.mubr.bf16.mxu0 0
    %471 = vmatmul.mubr.bf16.gmra.mrb[0].mxu0 %v328
    %v472 = vpop.f32.mrb[0].mxu0
    %v473 = vadd.f32 %v143, %v472
    %v474 = vpop.f32.mrb[0].mxu0
    %v475 = vpop.f32.mrb[0].mxu0
    %v476 = vadd.f32 %v143, %v475
    %v477 = vpop.f32.mrb[0].mxu0
    %478 = vmatprep.mubr.bf16.mxu0 0
    %479 = vmatmul.mubr.bf16.gmra.mrb[0].mxu0 %v331
    %v480 = vpop.f32.mrb[0].mxu0
    %v481 = vadd.f32 %v143, %v480
    %v482 = vpop.f32.mrb[0].mxu0
    %v483 = vpop.f32.mrb[0].mxu0
    %v484 = vadd.f32 %v143, %v483
    %v485 = vpop.f32.mrb[0].mxu0
    %486 = vmatprep.mubr.bf16.mxu0 0
    %487 = vmatmul.mubr.bf16.gmra.mrb[0].mxu0 %v334
    %v488 = vpop.f32.mrb[0].mxu0
    %v489 = vadd.f32 %v143, %v488
    %v490 = vpop.f32.mrb[0].mxu0
    %v491 = vpop.f32.mrb[0].mxu0
    %v492 = vadd.f32 %v143, %v491
    %v493 = vpop.f32.mrb[0].mxu0
    %494 = vmatprep.mubr.bf16.mxu0 0
    %495 = vmatmul.mubr.bf16.gmra.mrb[0].mxu0 %v337
    %v496 = vpop.f32.mrb[0].mxu0
    %v497 = vadd.f32 %v143, %v496
    %v498 = vpop.f32.mrb[0].mxu0
    %v499 = vpop.f32.mrb[0].mxu0
    %v500 = vadd.f32 %v143, %v499
    %v501 = vpop.f32.mrb[0].mxu0
    %502 = vmatprep.mubr.bf16.mxu0 0
    %503 = vmatmul.mubr.bf16.gmra.mrb[0].mxu0 %v340
    %v504 = vpop.f32.mrb[0].mxu0
    %v505 = vadd.f32 %v143, %v504
    %v506 = vpop.f32.mrb[0].mxu0
    %v507 = vpop.f32.mrb[0].mxu0
    %v508 = vadd.f32 %v143, %v507
    %v509 = vpop.f32.mrb[0].mxu0
    %510 = vmatprep.mubr.bf16.mxu0 0
    %511 = vmatmul.mubr.bf16.gmra.mrb[0].mxu0 %v343
    %v512 = vpop.f32.mrb[0].mxu0
    %v513 = vadd.f32 %v143, %v512
    %v514 = vpop.f32.mrb[0].mxu0
    %v515 = vpop.f32.mrb[0].mxu0
    %v516 = vadd.f32 %v143, %v515
    %v517 = vpop.f32.mrb[0].mxu0
    %518 = vmatprep.mubr.bf16.mxu0 0
    %519 = vmatmul.mubr.bf16.gmra.mrb[0].mxu0 %v346
    %v520 = vpop.f32.mrb[0].mxu0
    %v521 = vadd.f32 %v143, %v520
    %v522 = vpop.f32.mrb[0].mxu0
    %v523 = vpop.f32.mrb[0].mxu0
    %v524 = vadd.f32 %v143, %v523
    %v525 = vpop.f32.mrb[0].mxu0
    %526 = vmatprep.mubr.bf16.mxu0 0
    %527 = vmatmul.mubr.bf16.gmra.mrb[0].mxu0 %v349
    %v528 = vpop.f32.mrb[0].mxu0
    %v529 = vadd.f32 %v143, %v528
    %v530 = vpop.f32.mrb[0].mxu0
    %v531 = vpop.f32.mrb[0].mxu0
    %v532 = vadd.f32 %v143, %v531
    %v533 = vpop.f32.mrb[0].mxu0
    %534 = vmatprep.mubr.bf16.mxu0 0
    %535 = vmatmul.mubr.bf16.gmra.mrb[0].mxu0 %v352
    %v536 = vpop.f32.mrb[0].mxu0
    %v537 = vadd.f32 %v143, %v536
    %v538 = vpop.f32.mrb[0].mxu0
    %v539 = vpop.f32.mrb[0].mxu0
    %v540 = vadd.f32 %v143, %v539
    %v541 = vpop.f32.mrb[0].mxu0
    %542 = vmatprep.mubr.bf16.mxu0 0
    %543 = vmatmul.mubr.bf16.gmra.mrb[0].mxu0 %v355
    %v544 = vpop.f32.mrb[0].mxu0
    %v545 = vadd.f32 %v143, %v544
    %v546 = vpop.f32.mrb[0].mxu0
    %v547 = vpop.f32.mrb[0].mxu0
    %v548 = vadd.f32 %v143, %v547
    %v549 = vpop.f32.mrb[0].mxu0
    %550 = vmatprep.mubr.bf16.mxu0 0
    %551 = vmatmul.mubr.bf16.gmra.mrb[0].mxu0 %v358
    %v552 = vpop.f32.mrb[0].mxu0
    %v553 = vadd.f32 %v143, %v552
    %v554 = vpop.f32.mrb[0].mxu0
    %v555 = vpop.f32.mrb[0].mxu0
    %v556 = vadd.f32 %v143, %v555
    %v557 = vpop.f32.mrb[0].mxu0
    %558 = vmatprep.mubr.bf16.mxu0 0
    %559 = vmatmul.mubr.bf16.gmra.mrb[0].mxu0 %v361
    %v560 = vpop.f32.mrb[0].mxu0
    %v561 = vadd.f32 %v143, %v560
    %v562 = vpop.f32.mrb[0].mxu0
    %v563 = vpop.f32.mrb[0].mxu0
    %v564 = vadd.f32 %v143, %v563
    %v565 = vpop.f32.mrb[0].mxu0
    %566 = vmatprep.mubr.bf16.mxu0 0
    %567 = vmatmul.mubr.bf16.gmra.mrb[0].mxu0 %v364
    %v568 = vpop.f32.mrb[0].mxu0
    %v569 = vadd.f32 %v143, %v568
    %v570 = vpop.f32.mrb[0].mxu0
    %v571 = vpop.f32.mrb[0].mxu0
    %v572 = vadd.f32 %v143, %v571
    %v573 = vpop.f32.mrb[0].mxu0
    %574 = vmatprep.mubr.bf16.mxu0 0
    %575 = vmatmul.mubr.bf16.gmra.mrb[0].mxu0 %v367
    %v576 = vpop.f32.mrb[0].mxu0
    %v577 = vadd.f32 %v143, %v576
    %v578 = vpop.f32.mrb[0].mxu0
    %v579 = vpop.f32.mrb[0].mxu0
    %v580 = vadd.f32 %v143, %v579
    %v581 = vpop.f32.mrb[0].mxu0
    %582 = vmatprep.mubr.bf16.mxu0 0
    %583 = vmatmul.mubr.bf16.gmra.mrb[0].mxu0 %v370
    %v584 = vpop.f32.mrb[0].mxu0
    %v585 = vadd.f32 %v143, %v584
    %v586 = vpop.f32.mrb[0].mxu0
    %v587 = vpop.f32.mrb[0].mxu0
    %v588 = vadd.f32 %v143, %v587
    %v589 = vpop.f32.mrb[0].mxu0
    %590 = vmatprep.mubr.bf16.mxu0 0
    %591 = vmatmul.mubr.bf16.gmra.mrb[0].mxu0 %v373
    %v592 = vpop.f32.mrb[0].mxu0
    %v593 = vadd.f32 %v143, %v592
    %v594 = vpop.f32.mrb[0].mxu0
    %v595 = vpop.f32.mrb[0].mxu0
    %v596 = vadd.f32 %v143, %v595
    %v597 = vpop.f32.mrb[0].mxu0
    %598 = vmatprep.mubr.bf16.mxu0 0
    %599 = vmatmul.mubr.bf16.gmra.mrb[0].mxu0 %v376
    %v600 = vpop.f32.mrb[0].mxu0
    %v601 = vadd.f32 %v143, %v600
    %v602 = vpop.f32.mrb[0].mxu0
    %v603 = vpop.f32.mrb[0].mxu0
    %v604 = vadd.f32 %v143, %v603
    %v605 = vpop.f32.mrb[0].mxu0
    %606 = vmatprep.mubr.bf16.mxu0 0
    %607 = vmatmul.mubr.bf16.gmra.mrb[0].mxu0 %v379
    %v608 = vpop.f32.mrb[0].mxu0
    %v609 = vadd.f32 %v143, %v608
    %v610 = vpop.f32.mrb[0].mxu0
    %v611 = vpop.f32.mrb[0].mxu0
    %v612 = vadd.f32 %v143, %v611
    %v613 = vpop.f32.mrb[0].mxu0
    %614 = vmatprep.mubr.bf16.mxu0 0
    %615 = vmatmul.mubr.bf16.gmra.mrb[0].mxu0 %v382
    %v616 = vpop.f32.mrb[0].mxu0
    %v617 = vadd.f32 %v143, %v616
    %v618 = vpop.f32.mrb[0].mxu0
    %v619 = vpop.f32.mrb[0].mxu0
    %v620 = vadd.f32 %v143, %v619
    %v621 = vpop.f32.mrb[0].mxu0
    %622 = vmatprep.mubr.bf16.mxu0 0
    %623 = vmatmul.mubr.bf16.gmra.mrb[0].mxu0 %v385
    %v624 = vpop.f32.mrb[0].mxu0
    %v625 = vadd.f32 %v143, %v624
    %v626 = vpop.f32.mrb[0].mxu0
    %v627 = vpop.f32.mrb[0].mxu0
    %v628 = vadd.f32 %v143, %v627
    %v629 = vpop.f32.mrb[0].mxu0
    %630 = vmatprep.mubr.bf16.mxu0 0
    %631 = vmatmul.mubr.bf16.gmra.mrb[0].mxu0 %v388
    %v632 = vpop.f32.mrb[0].mxu0
    %v633 = vadd.f32 %v143, %v632
    %v634 = vpop.f32.mrb[0].mxu0
    %v635 = vpop.f32.mrb[0].mxu0
    %v636 = vadd.f32 %v143, %v635
    %v637 = vpop.f32.mrb[0].mxu0
    %638 = vmatprep.mubr.bf16.mxu0 0
    %639 = vmatmul.mubr.bf16.gmra.mrb[0].mxu0 %v391
    %v640 = vpop.f32.mrb[0].mxu0
    %v641 = vadd.f32 %v143, %v640
    %v642 = vpop.f32.mrb[0].mxu0
    %v643 = vpop.f32.mrb[0].mxu0
    %v644 = vadd.f32 %v143, %v643
    %v645 = vpop.f32.mrb[0].mxu0
    %646 = vmatprep.mubr.bf16.mxu0 0
    %647 = vmatmul.mubr.bf16.gmra.mrb[0].mxu0 %v394
    %v648 = vpop.f32.mrb[0].mxu0
    %v649 = vadd.f32 %v143, %v648
    %v650 = vpop.f32.mrb[0].mxu0
    %v651 = vpop.f32.mrb[0].mxu0
    %v652 = vadd.f32 %v143, %v651
    %v653 = vpop.f32.mrb[0].mxu0
    %654 = vmatprep.mubr.bf16.mxu0 0
    %655 = vmatmul.mubr.bf16.gmra.mrb[0].mxu0 %v397
    %v656 = vpop.f32.mrb[0].mxu0
    %v657 = vadd.f32 %v143, %v656
    %v658 = vpop.f32.mrb[0].mxu0
    %v659 = vpop.f32.mrb[0].mxu0
    %v660 = vadd.f32 %v143, %v659
    %v661 = vpop.f32.mrb[0].mxu0
    %662 = vmatprep.mubr.bf16.mxu0 0
    %663 = vmatmul.mubr.bf16.gmra.mrb[0].mxu0 %v400
    %v664 = vpop.f32.mrb[0].mxu0
    %v665 = vadd.f32 %v143, %v664
    %v666 = vpop.f32.mrb[0].mxu0
    %v667 = vpop.f32.mrb[0].mxu0
    %v668 = vadd.f32 %v143, %v667
    %v669 = vpop.f32.mrb[0].mxu0
    %670 = vmatprep.mubr.bf16.mxu0 0
    %671 = vmatmul.mubr.bf16.gmra.mrb[0].mxu0 %v403
    %v672 = vpop.f32.mrb[0].mxu0
    %v673 = vadd.f32 %v143, %v672
    %v674 = vpop.f32.mrb[0].mxu0
    %v675 = vpop.f32.mrb[0].mxu0
    %v676 = vadd.f32 %v143, %v675
    %v677 = vpop.f32.mrb[0].mxu0
    %678 = vmatprep.mubr.bf16.mxu0 0
    %679 = vmatmul.mubr.bf16.gmra.mrb[0].mxu0 %v406
    %v680 = vpop.f32.mrb[0].mxu0
    %v681 = vadd.f32 %v143, %v680
    %v682 = vpop.f32.mrb[0].mxu0
    %v683 = vpop.f32.mrb[0].mxu0
    %v684 = vadd.f32 %v143, %v683
    %v685 = vpop.f32.mrb[0].mxu0
    %686 = vmatprep.mubr.bf16.mxu0 0
    %687 = vmatmul.mubr.bf16.gmra.mrb[0].mxu0 %v409
    %v688 = vpop.f32.mrb[0].mxu0
    %v689 = vadd.f32 %v143, %v688
    %v690 = vpop.f32.mrb[0].mxu0
    %v691 = vpop.f32.mrb[0].mxu0
    %v692 = vadd.f32 %v143, %v691
    %v693 = vpop.f32.mrb[0].mxu0
    %694 = vmatprep.mubr.bf16.mxu0 0
    %695 = vmatmul.mubr.bf16.gmra.mrb[0].mxu0 %v412
    %v696 = vpop.f32.mrb[0].mxu0
    %v697 = vadd.f32 %v143, %v696
    %v698 = vpop.f32.mrb[0].mxu0
    %v699 = vpop.f32.mrb[0].mxu0
    %v700 = vadd.f32 %v143, %v699
    %v701 = vpop.f32.mrb[0].mxu0
    %702 = vdwg.mxu0
    %v703 = vld [vmem:[#allocation6] sm:$0x1]
    %v704 = vld [vmem:[#allocation7] sm:$0x1]
    %vm705 = vcmask 523264
    %v706 = vsel %vm705, %v449, 0.0
    %v707 = vsel %vm705, %v452, 0.0
    %v708 = vadd.f32 %v706, %v707
    %v709 = vsel %vm705, %v457, 0.0
    %v710 = vadd.f32 %v708, %v709
    %v711 = vsel %vm705, %v460, 0.0
    %v712 = vadd.f32 %v710, %v711
    %v713 = vsel %vm705, %v465, 0.0
    %v714 = vadd.f32 %v712, %v713
    %v715 = vsel %vm705, %v468, 0.0
    %v716 = vadd.f32 %v714, %v715
    %v717 = vsel %vm705, %v473, 0.0
    %v718 = vadd.f32 %v716, %v717
    %v719 = vsel %vm705, %v476, 0.0
    %v720 = vadd.f32 %v718, %v719
    %v721 = vsel %vm705, %v481, 0.0
    %v722 = vadd.f32 %v720, %v721
    %v723 = vsel %vm705, %v484, 0.0
    %v724 = vadd.f32 %v722, %v723
    %v725 = vsel %vm705, %v489, 0.0
    %v726 = vadd.f32 %v724, %v725
    %v727 = vsel %vm705, %v492, 0.0
    %v728 = vadd.f32 %v726, %v727
    %v729 = vsel %vm705, %v497, 0.0
    %v730 = vadd.f32 %v728, %v729
    %v731 = vsel %vm705, %v500, 0.0
    %v732 = vadd.f32 %v730, %v731
    %v733 = vsel %vm705, %v505, 0.0
    %v734 = vadd.f32 %v732, %v733
    %v735 = vsel %vm705, %v508, 0.0
    %v736 = vadd.f32 %v734, %v735
    %v737 = vsel %vm705, %v513, 0.0
    %v738 = vadd.f32 %v736, %v737
    %v739 = vsel %vm705, %v516, 0.0
    %v740 = vadd.f32 %v738, %v739
    %v741 = vsel %vm705, %v521, 0.0
    %v742 = vadd.f32 %v740, %v741
    %v743 = vsel %vm705, %v524, 0.0
    %v744 = vadd.f32 %v742, %v743
    %v745 = vsel %vm705, %v529, 0.0
    %v746 = vadd.f32 %v744, %v745
    %v747 = vsel %vm705, %v532, 0.0
    %v748 = vadd.f32 %v746, %v747
    %v749 = vsel %vm705, %v537, 0.0
    %v750 = vadd.f32 %v748, %v749
    %v751 = vsel %vm705, %v540, 0.0
    %v752 = vadd.f32 %v750, %v751
    %v753 = vsel %vm705, %v545, 0.0
    %v754 = vadd.f32 %v752, %v753
    %v755 = vsel %vm705, %v548, 0.0
    %v756 = vadd.f32 %v754, %v755
    %v757 = vsel %vm705, %v553, 0.0
    %v758 = vadd.f32 %v756, %v757
    %v759 = vsel %vm705, %v556, 0.0
    %v760 = vadd.f32 %v758, %v759
    %v761 = vsel %vm705, %v561, 0.0
    %v762 = vadd.f32 %v760, %v761
    %v763 = vsel %vm705, %v564, 0.0
    %v764 = vadd.f32 %v762, %v763
    %v765 = vsel %vm705, %v569, 0.0
    %v766 = vadd.f32 %v764, %v765
    %v767 = vsel %vm705, %v572, 0.0
    %v768 = vadd.f32 %v766, %v767
    %v769 = vsel %vm705, %v577, 0.0
    %v770 = vadd.f32 %v768, %v769
    %v771 = vsel %vm705, %v580, 0.0
    %v772 = vadd.f32 %v770, %v771
    %v773 = vsel %vm705, %v585, 0.0
    %v774 = vadd.f32 %v772, %v773
    %v775 = vsel %vm705, %v588, 0.0
    %v776 = vadd.f32 %v774, %v775
    %v777 = vsel %vm705, %v593, 0.0
    %v778 = vadd.f32 %v776, %v777
    %v779 = vsel %vm705, %v596, 0.0
    %v780 = vadd.f32 %v778, %v779
    %v781 = vsel %vm705, %v601, 0.0
    %v782 = vadd.f32 %v780, %v781
    %v783 = vsel %vm705, %v604, 0.0
    %v784 = vadd.f32 %v782, %v783
    %v785 = vsel %vm705, %v609, 0.0
    %v786 = vadd.f32 %v784, %v785
    %v787 = vsel %vm705, %v612, 0.0
    %v788 = vadd.f32 %v786, %v787
    %v789 = vsel %vm705, %v617, 0.0
    %v790 = vadd.f32 %v788, %v789
    %v791 = vsel %vm705, %v620, 0.0
    %v792 = vadd.f32 %v790, %v791
    %v793 = vsel %vm705, %v625, 0.0
    %v794 = vadd.f32 %v792, %v793
    %v795 = vsel %vm705, %v628, 0.0
    %v796 = vadd.f32 %v794, %v795
    %v797 = vsel %vm705, %v633, 0.0
    %v798 = vadd.f32 %v796, %v797
    %v799 = vsel %vm705, %v636, 0.0
    %v800 = vadd.f32 %v798, %v799
    %v801 = vsel %vm705, %v641, 0.0
    %v802 = vadd.f32 %v800, %v801
    %v803 = vsel %vm705, %v644, 0.0
    %v804 = vadd.f32 %v802, %v803
    %v805 = vsel %vm705, %v649, 0.0
    %v806 = vadd.f32 %v804, %v805
    %v807 = vsel %vm705, %v652, 0.0
    %v808 = vadd.f32 %v806, %v807
    %v809 = vsel %vm705, %v657, 0.0
    %v810 = vadd.f32 %v808, %v809
    %v811 = vsel %vm705, %v660, 0.0
    %v812 = vadd.f32 %v810, %v811
    %v813 = vsel %vm705, %v665, 0.0
    %v814 = vadd.f32 %v812, %v813
    %v815 = vsel %vm705, %v668, 0.0
    %v816 = vadd.f32 %v814, %v815
    %v817 = vsel %vm705, %v673, 0.0
    %v818 = vadd.f32 %v816, %v817
    %v819 = vsel %vm705, %v676, 0.0
    %v820 = vadd.f32 %v818, %v819
    %v821 = vsel %vm705, %v681, 0.0
    %v822 = vadd.f32 %v820, %v821
    %v823 = vsel %vm705, %v684, 0.0
    %v824 = vadd.f32 %v822, %v823
    %v825 = vsel %vm705, %v689, 0.0
    %v826 = vadd.f32 %v824, %v825
    %v827 = vsel %vm705, %v692, 0.0
    %v828 = vadd.f32 %v826, %v827
    %v829 = vsel %vm705, %v697, 0.0
    %v830 = vadd.f32 %v828, %v829
    %v831 = vsel %vm705, %v700, 0.0
    %v832 = vadd.f32 %v830, %v831
    %v833 = vrot.slane %v832, 4
    %v834 = vadd.f32 %v832, %v833
    %v835 = vrot.slane %v834, 2
    %v836 = vadd.f32 %v834, %v835
    %v837 = vrot.slane %v836, 1
    %v838 = vadd.f32 %v836, %v837
    %v839 = vmul.f32 %v449, %v449
    %v840 = vmul.f32 %v452, %v452
    %v841 = vmul.f32 %v457, %v457
    %v842 = vmul.f32 %v460, %v460
    %v843 = vmul.f32 %v465, %v465
    %v844 = vmul.f32 %v468, %v468
    %v845 = vmul.f32 %v473, %v473
    %v846 = vmul.f32 %v476, %v476
    %v847 = vmul.f32 %v481, %v481
    %v848 = vmul.f32 %v484, %v484
    %v849 = vmul.f32 %v489, %v489
    %v850 = vmul.f32 %v492, %v492
    %v851 = vmul.f32 %v497, %v497
    %v852 = vmul.f32 %v500, %v500
    %v853 = vmul.f32 %v505, %v505
    %v854 = vmul.f32 %v508, %v508
    %v855 = vmul.f32 %v513, %v513
    %v856 = vmul.f32 %v516, %v516
    %v857 = vmul.f32 %v521, %v521
    %v858 = vmul.f32 %v524, %v524
    %v859 = vmul.f32 %v529, %v529
    %v860 = vmul.f32 %v532, %v532
    %v861 = vmul.f32 %v537, %v537
    %v862 = vmul.f32 %v540, %v540
    %v863 = vmul.f32 %v545, %v545
    %v864 = vmul.f32 %v548, %v548
    %v865 = vmul.f32 %v553, %v553
    %v866 = vmul.f32 %v556, %v556
    %v867 = vmul.f32 %v561, %v561
    %v868 = vmul.f32 %v564, %v564
    %v869 = vmul.f32 %v569, %v569
    %v870 = vmul.f32 %v572, %v572
    %v871 = vmul.f32 %v577, %v577
    %v872 = vmul.f32 %v580, %v580
    %v873 = vmul.f32 %v585, %v585
    %v874 = vmul.f32 %v588, %v588
    %v875 = vmul.f32 %v593, %v593
    %v876 = vmul.f32 %v596, %v596
    %v877 = vmul.f32 %v601, %v601
    %v878 = vmul.f32 %v604, %v604
    %v879 = vmul.f32 %v609, %v609
    %v880 = vmul.f32 %v612, %v612
    %v881 = vmul.f32 %v617, %v617
    %v882 = vmul.f32 %v620, %v620
    %v883 = vmul.f32 %v625, %v625
    %v884 = vmul.f32 %v628, %v628
    %v885 = vmul.f32 %v633, %v633
    %v886 = vmul.f32 %v636, %v636
    %v887 = vmul.f32 %v641, %v641
    %v888 = vmul.f32 %v644, %v644
    %v889 = vmul.f32 %v649, %v649
    %v890 = vmul.f32 %v652, %v652
    %v891 = vmul.f32 %v657, %v657
    %v892 = vmul.f32 %v660, %v660
    %v893 = vmul.f32 %v665, %v665
    %v894 = vmul.f32 %v668, %v668
    %v895 = vmul.f32 %v673, %v673
    %v896 = vmul.f32 %v676, %v676
    %v897 = vmul.f32 %v681, %v681
    %v898 = vmul.f32 %v684, %v684
    %v899 = vmul.f32 %v689, %v689
    %v900 = vmul.f32 %v692, %v692
    %v901 = vmul.f32 %v697, %v697
    %v902 = vmul.f32 %v700, %v700
    %v903 = vsel %vm705, %v839, 0.0
    %v904 = vsel %vm705, %v840, 0.0
    %v905 = vadd.f32 %v903, %v904
    %v906 = vsel %vm705, %v841, 0.0
    %v907 = vadd.f32 %v905, %v906
    %v908 = vsel %vm705, %v842, 0.0
    %v909 = vadd.f32 %v907, %v908
    %v910 = vsel %vm705, %v843, 0.0
    %v911 = vadd.f32 %v909, %v910
    %v912 = vsel %vm705, %v844, 0.0
    %v913 = vadd.f32 %v911, %v912
    %v914 = vsel %vm705, %v845, 0.0
    %v915 = vadd.f32 %v913, %v914
    %v916 = vsel %vm705, %v846, 0.0
    %v917 = vadd.f32 %v915, %v916
    %v918 = vsel %vm705, %v847, 0.0
    %v919 = vadd.f32 %v917, %v918
    %v920 = vsel %vm705, %v848, 0.0
    %v921 = vadd.f32 %v919, %v920
    %v922 = vsel %vm705, %v849, 0.0
    %v923 = vadd.f32 %v921, %v922
    %v924 = vsel %vm705, %v850, 0.0
    %v925 = vadd.f32 %v923, %v924
    %v926 = vsel %vm705, %v851, 0.0
    %v927 = vadd.f32 %v925, %v926
    %v928 = vsel %vm705, %v852, 0.0
    %v929 = vadd.f32 %v927, %v928
    %v930 = vsel %vm705, %v853, 0.0
    %v931 = vadd.f32 %v929, %v930
    %v932 = vsel %vm705, %v854, 0.0
    %v933 = vadd.f32 %v931, %v932
    %v934 = vsel %vm705, %v855, 0.0
    %v935 = vadd.f32 %v933, %v934
    %v936 = vsel %vm705, %v856, 0.0
    %v937 = vadd.f32 %v935, %v936
    %v938 = vsel %vm705, %v857, 0.0
    %v939 = vadd.f32 %v937, %v938
    %v940 = vsel %vm705, %v858, 0.0
    %v941 = vadd.f32 %v939, %v940
    %v942 = vsel %vm705, %v859, 0.0
    %v943 = vadd.f32 %v941, %v942
    %v944 = vsel %vm705, %v860, 0.0
    %v945 = vadd.f32 %v943, %v944
    %v946 = vsel %vm705, %v861, 0.0
    %v947 = vadd.f32 %v945, %v946
    %v948 = vsel %vm705, %v862, 0.0
    %v949 = vadd.f32 %v947, %v948
    %v950 = vsel %vm705, %v863, 0.0
    %v951 = vadd.f32 %v949, %v950
    %v952 = vsel %vm705, %v864, 0.0
    %v953 = vadd.f32 %v951, %v952
    %v954 = vsel %vm705, %v865, 0.0
    %v955 = vadd.f32 %v953, %v954
    %v956 = vsel %vm705, %v866, 0.0
    %v957 = vadd.f32 %v955, %v956
    %v958 = vsel %vm705, %v867, 0.0
    %v959 = vadd.f32 %v957, %v958
    %v960 = vsel %vm705, %v868, 0.0
    %v961 = vadd.f32 %v959, %v960
    %v962 = vsel %vm705, %v869, 0.0
    %v963 = vadd.f32 %v961, %v962
    %v964 = vsel %vm705, %v870, 0.0
    %v965 = vadd.f32 %v963, %v964
    %v966 = vsel %vm705, %v871, 0.0
    %v967 = vadd.f32 %v965, %v966
    %v968 = vsel %vm705, %v872, 0.0
    %v969 = vadd.f32 %v967, %v968
    %v970 = vsel %vm705, %v873, 0.0
    %v971 = vadd.f32 %v969, %v970
    %v972 = vsel %vm705, %v874, 0.0
    %v973 = vadd.f32 %v971, %v972
    %v974 = vsel %vm705, %v875, 0.0
    %v975 = vadd.f32 %v973, %v974
    %v976 = vsel %vm705, %v876, 0.0
    %v977 = vadd.f32 %v975, %v976
    %v978 = vsel %vm705, %v877, 0.0
    %v979 = vadd.f32 %v977, %v978
    %v980 = vsel %vm705, %v878, 0.0
    %v981 = vadd.f32 %v979, %v980
    %v982 = vsel %vm705, %v879, 0.0
    %v983 = vadd.f32 %v981, %v982
    %v984 = vsel %vm705, %v880, 0.0
    %v985 = vadd.f32 %v983, %v984
    %v986 = vsel %vm705, %v881, 0.0
    %v987 = vadd.f32 %v985, %v986
    %v988 = vsel %vm705, %v882, 0.0
    %v989 = vadd.f32 %v987, %v988
    %v990 = vsel %vm705, %v883, 0.0
    %v991 = vadd.f32 %v989, %v990
    %v992 = vsel %vm705, %v884, 0.0
    %v993 = vadd.f32 %v991, %v992
    %v994 = vsel %vm705, %v885, 0.0
    %v995 = vadd.f32 %v993, %v994
    %v996 = vsel %vm705, %v886, 0.0
    %v997 = vadd.f32 %v995, %v996
    %v998 = vsel %vm705, %v887, 0.0
    %v999 = vadd.f32 %v997, %v998
    %v1000 = vsel %vm705, %v888, 0.0
    %v1001 = vadd.f32 %v999, %v1000
    %v1002 = vsel %vm705, %v889, 0.0
    %v1003 = vadd.f32 %v1001, %v1002
    %v1004 = vsel %vm705, %v890, 0.0
    %v1005 = vadd.f32 %v1003, %v1004
    %v1006 = vsel %vm705, %v891, 0.0
    %v1007 = vadd.f32 %v1005, %v1006
    %v1008 = vsel %vm705, %v892, 0.0
    %v1009 = vadd.f32 %v1007, %v1008
    %v1010 = vsel %vm705, %v893, 0.0
    %v1011 = vadd.f32 %v1009, %v1010
    %v1012 = vsel %vm705, %v894, 0.0
    %v1013 = vadd.f32 %v1011, %v1012
    %v1014 = vsel %vm705, %v895, 0.0
    %v1015 = vadd.f32 %v1013, %v1014
    %v1016 = vsel %vm705, %v896, 0.0
    %v1017 = vadd.f32 %v1015, %v1016
    %v1018 = vsel %vm705, %v897, 0.0
    %v1019 = vadd.f32 %v1017, %v1018
    %v1020 = vsel %vm705, %v898, 0.0
    %v1021 = vadd.f32 %v1019, %v1020
    %v1022 = vsel %vm705, %v899, 0.0
    %v1023 = vadd.f32 %v1021, %v1022
    %v1024 = vsel %vm705, %v900, 0.0
    %v1025 = vadd.f32 %v1023, %v1024
    %v1026 = vsel %vm705, %v901, 0.0
    %v1027 = vadd.f32 %v1025, %v1026
    %v1028 = vsel %vm705, %v902, 0.0
    %v1029 = vadd.f32 %v1027, %v1028
    %v1030 = vrot.slane %v1029, 4
    %v1031 = vadd.f32 %v1029, %v1030
    %v1032 = vrot.slane %v1031, 2
    %v1033 = vadd.f32 %v1031, %v1032
    %v1034 = vrot.slane %v1033, 1
    %v1035 = vadd.f32 %v1033, %v1034
    %v1036 = vmul.f32 %v838, 0.001953125
    %v1037 = vmul.f32 %v1035, 0.001953125
    %v1038 = vmul.f32 %v1036, %v1036
    %v1039 = vsub.f32 %v1037, %v1038
    %v1040 = vmax.f32 %v1039, 0.0
    %v1041 = vadd.f32 %v1040, 1e-05
    %v1042 = vrsqrt.pop %v1041
    %v1043 = vmul.f32 %v703, %v1042
    %v1044 = vmul.f32 %v1036, %v1043
    %v1045 = vsub.f32 %v704, %v1044
    %v1047 = vlaneseq
    %v1048 = vshrl.u32 %v1047, 7
    %v1049 = vsub.s32 0, %v1048
    %v1050 = vrot.slane %v1043, %v1049
    %v1052 = vmul.f32 %v449, %v1050
    %v1053 = vmul.f32 %v452, %v1050
    %v1054 = vmul.f32 %v457, %v1050
    %v1055 = vmul.f32 %v460, %v1050
    %v1056 = vmul.f32 %v465, %v1050
    %v1057 = vmul.f32 %v468, %v1050
    %v1058 = vmul.f32 %v473, %v1050
    %v1059 = vmul.f32 %v476, %v1050
    %v1060 = vmul.f32 %v481, %v1050
    %v1061 = vmul.f32 %v484, %v1050
    %v1062 = vmul.f32 %v489, %v1050
    %v1063 = vmul.f32 %v492, %v1050
    %v1064 = vmul.f32 %v497, %v1050
    %v1065 = vmul.f32 %v500, %v1050
    %v1066 = vmul.f32 %v505, %v1050
    %v1067 = vmul.f32 %v508, %v1050
    %v1068 = vmul.f32 %v513, %v1050
    %v1069 = vmul.f32 %v516, %v1050
    %v1070 = vmul.f32 %v521, %v1050
    %v1071 = vmul.f32 %v524, %v1050
    %v1072 = vmul.f32 %v529, %v1050
    %v1073 = vmul.f32 %v532, %v1050
    %v1074 = vmul.f32 %v537, %v1050
    %v1075 = vmul.f32 %v540, %v1050
    %v1076 = vmul.f32 %v545, %v1050
    %v1077 = vmul.f32 %v548, %v1050
    %v1078 = vmul.f32 %v553, %v1050
    %v1079 = vmul.f32 %v556, %v1050
    %v1080 = vmul.f32 %v561, %v1050
    %v1081 = vmul.f32 %v564, %v1050
    %v1082 = vmul.f32 %v569, %v1050
    %v1083 = vmul.f32 %v572, %v1050
    %v1084 = vmul.f32 %v577, %v1050
    %v1085 = vmul.f32 %v580, %v1050
    %v1086 = vmul.f32 %v585, %v1050
    %v1087 = vmul.f32 %v588, %v1050
    %v1088 = vmul.f32 %v593, %v1050
    %v1089 = vmul.f32 %v596, %v1050
    %v1090 = vmul.f32 %v601, %v1050
    %v1091 = vmul.f32 %v604, %v1050
    %v1092 = vmul.f32 %v609, %v1050
    %v1093 = vmul.f32 %v612, %v1050
    %v1094 = vmul.f32 %v617, %v1050
    %v1095 = vmul.f32 %v620, %v1050
    %v1096 = vmul.f32 %v625, %v1050
    %v1097 = vmul.f32 %v628, %v1050
    %v1098 = vmul.f32 %v633, %v1050
    %v1099 = vmul.f32 %v636, %v1050
    %v1100 = vmul.f32 %v641, %v1050
    %v1101 = vmul.f32 %v644, %v1050
    %v1102 = vmul.f32 %v649, %v1050
    %v1103 = vmul.f32 %v652, %v1050
    %v1104 = vmul.f32 %v657, %v1050
    %v1105 = vmul.f32 %v660, %v1050
    %v1106 = vmul.f32 %v665, %v1050
    %v1107 = vmul.f32 %v668, %v1050
    %v1108 = vmul.f32 %v673, %v1050
    %v1109 = vmul.f32 %v676, %v1050
    %v1110 = vmul.f32 %v681, %v1050
    %v1111 = vmul.f32 %v684, %v1050
    %v1112 = vmul.f32 %v689, %v1050
    %v1113 = vmul.f32 %v692, %v1050
    %v1114 = vmul.f32 %v697, %v1050
    %v1115 = vmul.f32 %v700, %v1050
    %v1117 = vlaneseq
    %v1118 = vshrl.u32 %v1117, 7
    %v1119 = vsub.s32 0, %v1118
    %v1120 = vrot.slane %v1045, %v1119
    %v1122 = vadd.f32 %v1052, %v1120
    %v1123 = vadd.f32 %v1053, %v1120
    %v1124 = vadd.f32 %v1054, %v1120
    %v1125 = vadd.f32 %v1055, %v1120
    %v1126 = vadd.f32 %v1056, %v1120
    %v1127 = vadd.f32 %v1057, %v1120
    %v1128 = vadd.f32 %v1058, %v1120
    %v1129 = vadd.f32 %v1059, %v1120
    %v1130 = vadd.f32 %v1060, %v1120
    %v1131 = vadd.f32 %v1061, %v1120
    %v1132 = vadd.f32 %v1062, %v1120
    %v1133 = vadd.f32 %v1063, %v1120
    %v1134 = vadd.f32 %v1064, %v1120
    %v1135 = vadd.f32 %v1065, %v1120
    %v1136 = vadd.f32 %v1066, %v1120
    %v1137 = vadd.f32 %v1067, %v1120
    %v1138 = vadd.f32 %v1068, %v1120
    %v1139 = vadd.f32 %v1069, %v1120
    %v1140 = vadd.f32 %v1070, %v1120
    %v1141 = vadd.f32 %v1071, %v1120
    %v1142 = vadd.f32 %v1072, %v1120
    %v1143 = vadd.f32 %v1073, %v1120
    %v1144 = vadd.f32 %v1074, %v1120
    %v1145 = vadd.f32 %v1075, %v1120
    %v1146 = vadd.f32 %v1076, %v1120
    %v1147 = vadd.f32 %v1077, %v1120
    %v1148 = vadd.f32 %v1078, %v1120
    %v1149 = vadd.f32 %v1079, %v1120
    %v1150 = vadd.f32 %v1080, %v1120
    %v1151 = vadd.f32 %v1081, %v1120
    %v1152 = vadd.f32 %v1082, %v1120
    %v1153 = vadd.f32 %v1083, %v1120
    %v1154 = vadd.f32 %v1084, %v1120
    %v1155 = vadd.f32 %v1085, %v1120
    %v1156 = vadd.f32 %v1086, %v1120
    %v1157 = vadd.f32 %v1087, %v1120
    %v1158 = vadd.f32 %v1088, %v1120
    %v1159 = vadd.f32 %v1089, %v1120
    %v1160 = vadd.f32 %v1090, %v1120
    %v1161 = vadd.f32 %v1091, %v1120
    %v1162 = vadd.f32 %v1092, %v1120
    %v1163 = vadd.f32 %v1093, %v1120
    %v1164 = vadd.f32 %v1094, %v1120
    %v1165 = vadd.f32 %v1095, %v1120
    %v1166 = vadd.f32 %v1096, %v1120
    %v1167 = vadd.f32 %v1097, %v1120
    %v1168 = vadd.f32 %v1098, %v1120
    %v1169 = vadd.f32 %v1099, %v1120
    %v1170 = vadd.f32 %v1100, %v1120
    %v1171 = vadd.f32 %v1101, %v1120
    %v1172 = vadd.f32 %v1102, %v1120
    %v1173 = vadd.f32 %v1103, %v1120
    %v1174 = vadd.f32 %v1104, %v1120
    %v1175 = vadd.f32 %v1105, %v1120
    %v1176 = vadd.f32 %v1106, %v1120
    %v1177 = vadd.f32 %v1107, %v1120
    %v1178 = vadd.f32 %v1108, %v1120
    %v1179 = vadd.f32 %v1109, %v1120
    %v1180 = vadd.f32 %v1110, %v1120
    %v1181 = vadd.f32 %v1111, %v1120
    %v1182 = vadd.f32 %v1112, %v1120
    %v1183 = vadd.f32 %v1113, %v1120
    %v1184 = vadd.f32 %v1114, %v1120
    %v1185 = vadd.f32 %v1115, %v1120
    %vm1186 = vcmp.ge.f32.partialorder %v1122, 0.0
    %vm1187 = vcmp.ge.f32.partialorder %v1123, 0.0
    %vm1188 = vcmp.ge.f32.partialorder %v1124, 0.0
    %vm1189 = vcmp.ge.f32.partialorder %v1125, 0.0
    %vm1190 = vcmp.ge.f32.partialorder %v1126, 0.0
    %vm1191 = vcmp.ge.f32.partialorder %v1127, 0.0
    %vm1192 = vcmp.ge.f32.partialorder %v1128, 0.0
    %vm1193 = vcmp.ge.f32.partialorder %v1129, 0.0
    %vm1194 = vcmp.ge.f32.partialorder %v1130, 0.0
    %vm1195 = vcmp.ge.f32.partialorder %v1131, 0.0
    %vm1196 = vcmp.ge.f32.partialorder %v1132, 0.0
    %vm1197 = vcmp.ge.f32.partialorder %v1133, 0.0
    %vm1198 = vcmp.ge.f32.partialorder %v1134, 0.0
    %vm1199 = vcmp.ge.f32.partialorder %v1135, 0.0
    %vm1200 = vcmp.ge.f32.partialorder %v1136, 0.0
    %vm1201 = vcmp.ge.f32.partialorder %v1137, 0.0
    %vm1202 = vcmp.ge.f32.partialorder %v1138, 0.0
    %vm1203 = vcmp.ge.f32.partialorder %v1139, 0.0
    %vm1204 = vcmp.ge.f32.partialorder %v1140, 0.0
    %vm1205 = vcmp.ge.f32.partialorder %v1141, 0.0
    %vm1206 = vcmp.ge.f32.partialorder %v1142, 0.0
    %vm1207 = vcmp.ge.f32.partialorder %v1143, 0.0
    %vm1208 = vcmp.ge.f32.partialorder %v1144, 0.0
    %vm1209 = vcmp.ge.f32.partialorder %v1145, 0.0
    %vm1210 = vcmp.ge.f32.partialorder %v1146, 0.0
    %vm1211 = vcmp.ge.f32.partialorder %v1147, 0.0
    %vm1212 = vcmp.ge.f32.partialorder %v1148, 0.0
    %vm1213 = vcmp.ge.f32.partialorder %v1149, 0.0
    %vm1214 = vcmp.ge.f32.partialorder %v1150, 0.0
    %vm1215 = vcmp.ge.f32.partialorder %v1151, 0.0
    %vm1216 = vcmp.ge.f32.partialorder %v1152, 0.0
    %vm1217 = vcmp.ge.f32.partialorder %v1153, 0.0
    %vm1218 = vcmp.ge.f32.partialorder %v1154, 0.0
    %vm1219 = vcmp.ge.f32.partialorder %v1155, 0.0
    %vm1220 = vcmp.ge.f32.partialorder %v1156, 0.0
    %vm1221 = vcmp.ge.f32.partialorder %v1157, 0.0
    %vm1222 = vcmp.ge.f32.partialorder %v1158, 0.0
    %vm1223 = vcmp.ge.f32.partialorder %v1159, 0.0
    %vm1224 = vcmp.ge.f32.partialorder %v1160, 0.0
    %vm1225 = vcmp.ge.f32.partialorder %v1161, 0.0
    %vm1226 = vcmp.ge.f32.partialorder %v1162, 0.0
    %vm1227 = vcmp.ge.f32.partialorder %v1163, 0.0
    %vm1228 = vcmp.ge.f32.partialorder %v1164, 0.0
    %vm1229 = vcmp.ge.f32.partialorder %v1165, 0.0
    %vm1230 = vcmp.ge.f32.partialorder %v1166, 0.0
    %vm1231 = vcmp.ge.f32.partialorder %v1167, 0.0
    %vm1232 = vcmp.ge.f32.partialorder %v1168, 0.0
    %vm1233 = vcmp.ge.f32.partialorder %v1169, 0.0
    %vm1234 = vcmp.ge.f32.partialorder %v1170, 0.0
    %vm1235 = vcmp.ge.f32.partialorder %v1171, 0.0
    %vm1236 = vcmp.ge.f32.partialorder %v1172, 0.0
    %vm1237 = vcmp.ge.f32.partialorder %v1173, 0.0
    %vm1238 = vcmp.ge.f32.partialorder %v1174, 0.0
    %vm1239 = vcmp.ge.f32.partialorder %v1175, 0.0
    %vm1240 = vcmp.ge.f32.partialorder %v1176, 0.0
    %vm1241 = vcmp.ge.f32.partialorder %v1177, 0.0
    %vm1242 = vcmp.ge.f32.partialorder %v1178, 0.0
    %vm1243 = vcmp.ge.f32.partialorder %v1179, 0.0
    %vm1244 = vcmp.ge.f32.partialorder %v1180, 0.0
    %vm1245 = vcmp.ge.f32.partialorder %v1181, 0.0
    %vm1246 = vcmp.ge.f32.partialorder %v1182, 0.0
    %vm1247 = vcmp.ge.f32.partialorder %v1183, 0.0
    %vm1248 = vcmp.ge.f32.partialorder %v1184, 0.0
    %vm1249 = vcmp.ge.f32.partialorder %v1185, 0.0
    %v1250 = vmul.f32 %v1122, 0.2
    %v1251 = vmul.f32 %v1123, 0.2
    %v1252 = vmul.f32 %v1124, 0.2
    %v1253 = vmul.f32 %v1125, 0.2
    %v1254 = vmul.f32 %v1126, 0.2
    %v1255 = vmul.f32 %v1127, 0.2
    %v1256 = vmul.f32 %v1128, 0.2
    %v1257 = vmul.f32 %v1129, 0.2
    %v1258 = vmul.f32 %v1130, 0.2
    %v1259 = vmul.f32 %v1131, 0.2
    %v1260 = vmul.f32 %v1132, 0.2
    %v1261 = vmul.f32 %v1133, 0.2
    %v1262 = vmul.f32 %v1134, 0.2
    %v1263 = vmul.f32 %v1135, 0.2
    %v1264 = vmul.f32 %v1136, 0.2
    %v1265 = vmul.f32 %v1137, 0.2
    %v1266 = vmul.f32 %v1138, 0.2
    %v1267 = vmul.f32 %v1139, 0.2
    %v1268 = vmul.f32 %v1140, 0.2
    %v1269 = vmul.f32 %v1141, 0.2
    %v1270 = vmul.f32 %v1142, 0.2
    %v1271 = vmul.f32 %v1143, 0.2
    %v1272 = vmul.f32 %v1144, 0.2
    %v1273 = vmul.f32 %v1145, 0.2
    %v1274 = vmul.f32 %v1146, 0.2
    %v1275 = vmul.f32 %v1147, 0.2
    %v1276 = vmul.f32 %v1148, 0.2
    %v1277 = vmul.f32 %v1149, 0.2
    %v1278 = vmul.f32 %v1150, 0.2
    %v1279 = vmul.f32 %v1151, 0.2
    %v1280 = vmul.f32 %v1152, 0.2
    %v1281 = vmul.f32 %v1153, 0.2
    %v1282 = vmul.f32 %v1154, 0.2
    %v1283 = vmul.f32 %v1155, 0.2
    %v1284 = vmul.f32 %v1156, 0.2
    %v1285 = vmul.f32 %v1157, 0.2
    %v1286 = vmul.f32 %v1158, 0.2
    %v1287 = vmul.f32 %v1159, 0.2
    %v1288 = vmul.f32 %v1160, 0.2
    %v1289 = vmul.f32 %v1161, 0.2
    %v1290 = vmul.f32 %v1162, 0.2
    %v1291 = vmul.f32 %v1163, 0.2
    %v1292 = vmul.f32 %v1164, 0.2
    %v1293 = vmul.f32 %v1165, 0.2
    %v1294 = vmul.f32 %v1166, 0.2
    %v1295 = vmul.f32 %v1167, 0.2
    %v1296 = vmul.f32 %v1168, 0.2
    %v1297 = vmul.f32 %v1169, 0.2
    %v1298 = vmul.f32 %v1170, 0.2
    %v1299 = vmul.f32 %v1171, 0.2
    %v1300 = vmul.f32 %v1172, 0.2
    %v1301 = vmul.f32 %v1173, 0.2
    %v1302 = vmul.f32 %v1174, 0.2
    %v1303 = vmul.f32 %v1175, 0.2
    %v1304 = vmul.f32 %v1176, 0.2
    %v1305 = vmul.f32 %v1177, 0.2
    %v1306 = vmul.f32 %v1178, 0.2
    %v1307 = vmul.f32 %v1179, 0.2
    %v1308 = vmul.f32 %v1180, 0.2
    %v1309 = vmul.f32 %v1181, 0.2
    %v1310 = vmul.f32 %v1182, 0.2
    %v1311 = vmul.f32 %v1183, 0.2
    %v1312 = vmul.f32 %v1184, 0.2
    %v1313 = vmul.f32 %v1185, 0.2
    %v1314 = vsel %vm1186, %v1122, %v1250
    %v1315 = vsel %vm1187, %v1123, %v1251
    %v1316 = vsel %vm1188, %v1124, %v1252
    %v1317 = vsel %vm1189, %v1125, %v1253
    %v1318 = vsel %vm1190, %v1126, %v1254
    %v1319 = vsel %vm1191, %v1127, %v1255
    %v1320 = vsel %vm1192, %v1128, %v1256
    %v1321 = vsel %vm1193, %v1129, %v1257
    %v1322 = vsel %vm1194, %v1130, %v1258
    %v1323 = vsel %vm1195, %v1131, %v1259
    %v1324 = vsel %vm1196, %v1132, %v1260
    %v1325 = vsel %vm1197, %v1133, %v1261
    %v1326 = vsel %vm1198, %v1134, %v1262
    %v1327 = vsel %vm1199, %v1135, %v1263
    %v1328 = vsel %vm1200, %v1136, %v1264
    %v1329 = vsel %vm1201, %v1137, %v1265
    %v1330 = vsel %vm1202, %v1138, %v1266
    %v1331 = vsel %vm1203, %v1139, %v1267
    %v1332 = vsel %vm1204, %v1140, %v1268
    %v1333 = vsel %vm1205, %v1141, %v1269
    %v1334 = vsel %vm1206, %v1142, %v1270
    %v1335 = vsel %vm1207, %v1143, %v1271
    %v1336 = vsel %vm1208, %v1144, %v1272
    %v1337 = vsel %vm1209, %v1145, %v1273
    %v1338 = vsel %vm1210, %v1146, %v1274
    %v1339 = vsel %vm1211, %v1147, %v1275
    %v1340 = vsel %vm1212, %v1148, %v1276
    %v1341 = vsel %vm1213, %v1149, %v1277
    %v1342 = vsel %vm1214, %v1150, %v1278
    %v1343 = vsel %vm1215, %v1151, %v1279
    %v1344 = vsel %vm1216, %v1152, %v1280
    %v1345 = vsel %vm1217, %v1153, %v1281
    %v1346 = vsel %vm1218, %v1154, %v1282
    %v1347 = vsel %vm1219, %v1155, %v1283
    %v1348 = vsel %vm1220, %v1156, %v1284
    %v1349 = vsel %vm1221, %v1157, %v1285
    %v1350 = vsel %vm1222, %v1158, %v1286
    %v1351 = vsel %vm1223, %v1159, %v1287
    %v1352 = vsel %vm1224, %v1160, %v1288
    %v1353 = vsel %vm1225, %v1161, %v1289
    %v1354 = vsel %vm1226, %v1162, %v1290
    %v1355 = vsel %vm1227, %v1163, %v1291
    %v1356 = vsel %vm1228, %v1164, %v1292
    %v1357 = vsel %vm1229, %v1165, %v1293
    %v1358 = vsel %vm1230, %v1166, %v1294
    %v1359 = vsel %vm1231, %v1167, %v1295
    %v1360 = vsel %vm1232, %v1168, %v1296
    %v1361 = vsel %vm1233, %v1169, %v1297
    %v1362 = vsel %vm1234, %v1170, %v1298
    %v1363 = vsel %vm1235, %v1171, %v1299
    %v1364 = vsel %vm1236, %v1172, %v1300
    %v1365 = vsel %vm1237, %v1173, %v1301
    %v1366 = vsel %vm1238, %v1174, %v1302
    %v1367 = vsel %vm1239, %v1175, %v1303
    %v1368 = vsel %vm1240, %v1176, %v1304
    %v1369 = vsel %vm1241, %v1177, %v1305
    %v1370 = vsel %vm1242, %v1178, %v1306
    %v1371 = vsel %vm1243, %v1179, %v1307
    %v1372 = vsel %vm1244, %v1180, %v1308
    %v1373 = vsel %vm1245, %v1181, %v1309
    %v1374 = vsel %vm1246, %v1182, %v1310
    %v1375 = vsel %vm1247, %v1183, %v1311
    %v1376 = vsel %vm1248, %v1184, %v1312
    %v1377 = vsel %vm1249, %v1185, %v1313
    %v1378 = vpack.c.bf16 %v1315, %v1314
    %v1379 = vpack.c.bf16 %v1317, %v1316
    %v1380 = vpack.c.bf16 %v1319, %v1318
    %v1381 = vpack.c.bf16 %v1321, %v1320
    %v1382 = vpack.c.bf16 %v1323, %v1322
    %v1383 = vpack.c.bf16 %v1325, %v1324
    %v1384 = vpack.c.bf16 %v1327, %v1326
    %v1385 = vpack.c.bf16 %v1329, %v1328
    %v1386 = vpack.c.bf16 %v1331, %v1330
    %v1387 = vpack.c.bf16 %v1333, %v1332
    %v1388 = vpack.c.bf16 %v1335, %v1334
    %v1389 = vpack.c.bf16 %v1337, %v1336
    %v1390 = vpack.c.bf16 %v1339, %v1338
    %v1391 = vpack.c.bf16 %v1341, %v1340
    %v1392 = vpack.c.bf16 %v1343, %v1342
    %v1393 = vpack.c.bf16 %v1345, %v1344
    %v1394 = vpack.c.bf16 %v1347, %v1346
    %v1395 = vpack.c.bf16 %v1349, %v1348
    %v1396 = vpack.c.bf16 %v1351, %v1350
    %v1397 = vpack.c.bf16 %v1353, %v1352
    %v1398 = vpack.c.bf16 %v1355, %v1354
    %v1399 = vpack.c.bf16 %v1357, %v1356
    %v1400 = vpack.c.bf16 %v1359, %v1358
    %v1401 = vpack.c.bf16 %v1361, %v1360
    %v1402 = vpack.c.bf16 %v1363, %v1362
    %v1403 = vpack.c.bf16 %v1365, %v1364
    %v1404 = vpack.c.bf16 %v1367, %v1366
    %v1405 = vpack.c.bf16 %v1369, %v1368
    %v1406 = vpack.c.bf16 %v1371, %v1370
    %v1407 = vpack.c.bf16 %v1373, %v1372
    %v1408 = vpack.c.bf16 %v1375, %v1374
    %v1409 = vpack.c.bf16 %v1377, %v1376
    %v1442 = vunpack.c.l.b16 %v1378
    %v1443 = vunpack.c.h.b16 %v1378
    %v1444 = vunpack.c.l.b16 %v1379
    %v1445 = vunpack.c.h.b16 %v1379
    %v1446 = vunpack.c.l.b16 %v1380
    %v1447 = vunpack.c.h.b16 %v1380
    %v1448 = vunpack.c.l.b16 %v1381
    %v1449 = vunpack.c.h.b16 %v1381
    %v1450 = vunpack.c.l.b16 %v1382
    %v1451 = vunpack.c.h.b16 %v1382
    %v1452 = vunpack.c.l.b16 %v1383
    %v1453 = vunpack.c.h.b16 %v1383
    %v1454 = vunpack.c.l.b16 %v1384
    %v1455 = vunpack.c.h.b16 %v1384
    %v1456 = vunpack.c.l.b16 %v1385
    %v1457 = vunpack.c.h.b16 %v1385
    %v1458 = vunpack.c.l.b16 %v1386
    %v1459 = vunpack.c.h.b16 %v1386
    %v1460 = vunpack.c.l.b16 %v1387
    %v1461 = vunpack.c.h.b16 %v1387
    %v1462 = vunpack.c.l.b16 %v1388
    %v1463 = vunpack.c.h.b16 %v1388
    %v1464 = vunpack.c.l.b16 %v1389
    %v1465 = vunpack.c.h.b16 %v1389
    %v1466 = vunpack.c.l.b16 %v1390
    %v1467 = vunpack.c.h.b16 %v1390
    %v1468 = vunpack.c.l.b16 %v1391
    %v1469 = vunpack.c.h.b16 %v1391
    %v1470 = vunpack.c.l.b16 %v1392
    %v1471 = vunpack.c.h.b16 %v1392
    %v1472 = vunpack.c.l.b16 %v1393
    %v1473 = vunpack.c.h.b16 %v1393
    %v1474 = vunpack.c.l.b16 %v1394
    %v1475 = vunpack.c.h.b16 %v1394
    %v1476 = vunpack.c.l.b16 %v1395
    %v1477 = vunpack.c.h.b16 %v1395
    %v1478 = vunpack.c.l.b16 %v1396
    %v1479 = vunpack.c.h.b16 %v1396
    %v1480 = vunpack.c.l.b16 %v1397
    %v1481 = vunpack.c.h.b16 %v1397
    %v1482 = vunpack.c.l.b16 %v1398
    %v1483 = vunpack.c.h.b16 %v1398
    %v1484 = vunpack.c.l.b16 %v1399
    %v1485 = vunpack.c.h.b16 %v1399
    %v1486 = vunpack.c.l.b16 %v1400
    %v1487 = vunpack.c.h.b16 %v1400
    %v1488 = vunpack.c.l.b16 %v1401
    %v1489 = vunpack.c.h.b16 %v1401
    %v1490 = vunpack.c.l.b16 %v1402
    %v1491 = vunpack.c.h.b16 %v1402
    %v1492 = vunpack.c.l.b16 %v1403
    %v1493 = vunpack.c.h.b16 %v1403
    %v1494 = vunpack.c.l.b16 %v1404
    %v1495 = vunpack.c.h.b16 %v1404
    %v1496 = vunpack.c.l.b16 %v1405
    %v1497 = vunpack.c.h.b16 %v1405
    %v1498 = vunpack.c.l.b16 %v1406
    %v1499 = vunpack.c.h.b16 %v1406
    %v1500 = vunpack.c.l.b16 %v1407
    %v1501 = vunpack.c.h.b16 %v1407
    %v1502 = vunpack.c.l.b16 %v1408
    %v1503 = vunpack.c.h.b16 %v1408
    %v1504 = vunpack.c.l.b16 %v1409
    %v1505 = vunpack.c.h.b16 %v1409
    %v1506 = vpack.c.b16 %v1442, %v1442
    %v1507 = vpack.c.b16 %v1443, %v1443
    %v1508 = vpack.c.b16 %v1444, %v1444
    %v1509 = vpack.c.b16 %v1445, %v1445
    %v1510 = vpack.c.b16 %v1446, %v1446
    %v1511 = vpack.c.b16 %v1447, %v1447
    %v1512 = vpack.c.b16 %v1448, %v1448
    %v1513 = vpack.c.b16 %v1449, %v1449
    %v1514 = vpack.c.b16 %v1450, %v1450
    %v1515 = vpack.c.b16 %v1451, %v1451
    %v1516 = vpack.c.b16 %v1452, %v1452
    %v1517 = vpack.c.b16 %v1453, %v1453
    %v1518 = vpack.c.b16 %v1454, %v1454
    %v1519 = vpack.c.b16 %v1455, %v1455
    %v1520 = vpack.c.b16 %v1456, %v1456
    %v1521 = vpack.c.b16 %v1457, %v1457
    %v1522 = vpack.c.b16 %v1458, %v1458
    %v1523 = vpack.c.b16 %v1459, %v1459
    %v1524 = vpack.c.b16 %v1460, %v1460
    %v1525 = vpack.c.b16 %v1461, %v1461
    %v1526 = vpack.c.b16 %v1462, %v1462
    %v1527 = vpack.c.b16 %v1463, %v1463
    %v1528 = vpack.c.b16 %v1464, %v1464
    %v1529 = vpack.c.b16 %v1465, %v1465
    %v1530 = vpack.c.b16 %v1466, %v1466
    %v1531 = vpack.c.b16 %v1467, %v1467
    %v1532 = vpack.c.b16 %v1468, %v1468
    %v1533 = vpack.c.b16 %v1469, %v1469
    %v1534 = vpack.c.b16 %v1470, %v1470
    %v1535 = vpack.c.b16 %v1471, %v1471
    %v1536 = vpack.c.b16 %v1472, %v1472
    %v1537 = vpack.c.b16 %v1473, %v1473
    %v1538 = vpack.c.b16 %v1474, %v1474
    %v1539 = vpack.c.b16 %v1475, %v1475
    %v1540 = vpack.c.b16 %v1476, %v1476
    %v1541 = vpack.c.b16 %v1477, %v1477
    %v1542 = vpack.c.b16 %v1478, %v1478
    %v1543 = vpack.c.b16 %v1479, %v1479
    %v1544 = vpack.c.b16 %v1480, %v1480
    %v1545 = vpack.c.b16 %v1481, %v1481
    %v1546 = vpack.c.b16 %v1482, %v1482
    %v1547 = vpack.c.b16 %v1483, %v1483
    %v1548 = vpack.c.b16 %v1484, %v1484
    %v1549 = vpack.c.b16 %v1485, %v1485
    %v1550 = vpack.c.b16 %v1486, %v1486
    %v1551 = vpack.c.b16 %v1487, %v1487
    %v1552 = vpack.c.b16 %v1488, %v1488
    %v1553 = vpack.c.b16 %v1489, %v1489
    %v1554 = vpack.c.b16 %v1490, %v1490
    %v1555 = vpack.c.b16 %v1491, %v1491
    %v1556 = vpack.c.b16 %v1492, %v1492
    %v1557 = vpack.c.b16 %v1493, %v1493
    %v1558 = vpack.c.b16 %v1494, %v1494
    %v1559 = vpack.c.b16 %v1495, %v1495
    %v1560 = vpack.c.b16 %v1496, %v1496
    %v1561 = vpack.c.b16 %v1497, %v1497
    %v1562 = vpack.c.b16 %v1498, %v1498
    %v1563 = vpack.c.b16 %v1499, %v1499
    %v1564 = vpack.c.b16 %v1500, %v1500
    %v1565 = vpack.c.b16 %v1501, %v1501
    %v1566 = vpack.c.b16 %v1502, %v1502
    %v1567 = vpack.c.b16 %v1503, %v1503
    %v1568 = vpack.c.b16 %v1504, %v1504
    %v1569 = vpack.c.b16 %v1505, %v1505
    %vm1634 = vcmask 519168
    %1635 = vst.msk [vmem:[%s5] sm:$0xf] %vm1634, %v1506
    %1636 = vst.msk [vmem:[%s5 + $0x4] sm:$0xf] %vm1634, %v1507
    %1637 = vst.msk [vmem:[%s5 + $0x8] sm:$0xf] %vm1634, %v1508
    %1638 = vst.msk [vmem:[%s5 + $0xc] sm:$0xf] %vm1634, %v1509
    %1639 = vst.msk [vmem:[%s5 + $0x10] sm:$0xf] %vm1634, %v1510
    %1640 = vst.msk [vmem:[%s5 + $0x14] sm:$0xf] %vm1634, %v1511
    %1641 = vst.msk [vmem:[%s5 + $0x18] sm:$0xf] %vm1634, %v1512
    %1642 = vst.msk [vmem:[%s5 + $0x1c] sm:$0xf] %vm1634, %v1513
    %1643 = vst.msk [vmem:[%s5 + $0x20] sm:$0xf] %vm1634, %v1514
    %1644 = vst.msk [vmem:[%s5 + $0x24] sm:$0xf] %vm1634, %v1515
    %1645 = vst.msk [vmem:[%s5 + $0x28] sm:$0xf] %vm1634, %v1516
    %1646 = vst.msk [vmem:[%s5 + $0x2c] sm:$0xf] %vm1634, %v1517
    %1647 = vst.msk [vmem:[%s5 + $0x30] sm:$0xf] %vm1634, %v1518
    %1648 = vst.msk [vmem:[%s5 + $0x34] sm:$0xf] %vm1634, %v1519
    %1649 = vst.msk [vmem:[%s5 + $0x38] sm:$0xf] %vm1634, %v1520
    %1650 = vst.msk [vmem:[%s5 + $0x3c] sm:$0xf] %vm1634, %v1521
    %1651 = vst.msk [vmem:[%s5 + $0x40] sm:$0xf] %vm1634, %v1522
    %1652 = vst.msk [vmem:[%s5 + $0x44] sm:$0xf] %vm1634, %v1523
    %1653 = vst.msk [vmem:[%s5 + $0x48] sm:$0xf] %vm1634, %v1524
    %1654 = vst.msk [vmem:[%s5 + $0x4c] sm:$0xf] %vm1634, %v1525
    %1655 = vst.msk [vmem:[%s5 + $0x50] sm:$0xf] %vm1634, %v1526
    %1656 = vst.msk [vmem:[%s5 + $0x54] sm:$0xf] %vm1634, %v1527
    %1657 = vst.msk [vmem:[%s5 + $0x58] sm:$0xf] %vm1634, %v1528
    %1658 = vst.msk [vmem:[%s5 + $0x5c] sm:$0xf] %vm1634, %v1529
    %1659 = vst.msk [vmem:[%s5 + $0x60] sm:$0xf] %vm1634, %v1530
    %1660 = vst.msk [vmem:[%s5 + $0x64] sm:$0xf] %vm1634, %v1531
    %1661 = vst.msk [vmem:[%s5 + $0x68] sm:$0xf] %vm1634, %v1532
    %1662 = vst.msk [vmem:[%s5 + $0x6c] sm:$0xf] %vm1634, %v1533
    %1663 = vst.msk [vmem:[%s5 + $0x70] sm:$0xf] %vm1634, %v1534
    %1664 = vst.msk [vmem:[%s5 + $0x74] sm:$0xf] %vm1634, %v1535
    %1665 = vst.msk [vmem:[%s5 + $0x78] sm:$0xf] %vm1634, %v1536
    %1666 = vst.msk [vmem:[%s5 + $0x7c] sm:$0xf] %vm1634, %v1537
    %1667 = vst.msk [vmem:[%s5 + $0x80] sm:$0xf] %vm1634, %v1538
    %1668 = vst.msk [vmem:[%s5 + $0x84] sm:$0xf] %vm1634, %v1539
    %1669 = vst.msk [vmem:[%s5 + $0x88] sm:$0xf] %vm1634, %v1540
    %1670 = vst.msk [vmem:[%s5 + $0x8c] sm:$0xf] %vm1634, %v1541
    %1671 = vst.msk [vmem:[%s5 + $0x90] sm:$0xf] %vm1634, %v1542
    %1672 = vst.msk [vmem:[%s5 + $0x94] sm:$0xf] %vm1634, %v1543
    %1673 = vst.msk [vmem:[%s5 + $0x98] sm:$0xf] %vm1634, %v1544
    %1674 = vst.msk [vmem:[%s5 + $0x9c] sm:$0xf] %vm1634, %v1545
    %1675 = vst.msk [vmem:[%s5 + $0xa0] sm:$0xf] %vm1634, %v1546
    %1676 = vst.msk [vmem:[%s5 + $0xa4] sm:$0xf] %vm1634, %v1547
    %1677 = vst.msk [vmem:[%s5 + $0xa8] sm:$0xf] %vm1634, %v1548
    %1678 = vst.msk [vmem:[%s5 + $0xac] sm:$0xf] %vm1634, %v1549
    %1679 = vst.msk [vmem:[%s5 + $0xb0] sm:$0xf] %vm1634, %v1550
    %1680 = vst.msk [vmem:[%s5 + $0xb4] sm:$0xf] %vm1634, %v1551
    %1681 = vst.msk [vmem:[%s5 + $0xb8] sm:$0xf] %vm1634, %v1552
    %1682 = vst.msk [vmem:[%s5 + $0xbc] sm:$0xf] %vm1634, %v1553
    %1683 = vst.msk [vmem:[%s5 + $0xc0] sm:$0xf] %vm1634, %v1554
    %1684 = vst.msk [vmem:[%s5 + $0xc4] sm:$0xf] %vm1634, %v1555
    %1685 = vst.msk [vmem:[%s5 + $0xc8] sm:$0xf] %vm1634, %v1556
    %1686 = vst.msk [vmem:[%s5 + $0xcc] sm:$0xf] %vm1634, %v1557
    %1687 = vst.msk [vmem:[%s5 + $0xd0] sm:$0xf] %vm1634, %v1558
    %1688 = vst.msk [vmem:[%s5 + $0xd4] sm:$0xf] %vm1634, %v1559
    %1689 = vst.msk [vmem:[%s5 + $0xd8] sm:$0xf] %vm1634, %v1560
    %1690 = vst.msk [vmem:[%s5 + $0xdc] sm:$0xf] %vm1634, %v1561
    %1691 = vst.msk [vmem:[%s5 + $0xe0] sm:$0xf] %vm1634, %v1562
    %1692 = vst.msk [vmem:[%s5 + $0xe4] sm:$0xf] %vm1634, %v1563
    %1693 = vst.msk [vmem:[%s5 + $0xe8] sm:$0xf] %vm1634, %v1564
    %1694 = vst.msk [vmem:[%s5 + $0xec] sm:$0xf] %vm1634, %v1565
    %1695 = vst.msk [vmem:[%s5 + $0xf0] sm:$0xf] %vm1634, %v1566
    %1696 = vst.msk [vmem:[%s5 + $0xf4] sm:$0xf] %vm1634, %v1567
    %1697 = vst.msk [vmem:[%s5 + $0xf8] sm:$0xf] %vm1634, %v1568
    %1698 = vst.msk [vmem:[%s5 + $0xfc] sm:$0xf] %vm1634, %v1569
    // Predicated region
    $region38: #{discriminator_forward.5} parent=1 // pred_check
      _
    $region39: #{discriminator_forward.5} parent=1 // pred_check_branch
      %1700 = sbr.rel (0) target = $region41
    $region40: #{discriminator_forward.5} parent=1 // pred_region
      _
    $region41: #{discriminator_forward.5} parent=1 // pred_fallthru
      _
    // Predicated region
    $region42: #{discriminator_forward.5} parent=1 // pred_check
      _
    $region43: #{discriminator_forward.5} parent=1 // pred_check_branch
      %1702 = sbr.rel (0) target = $region45
    $region44: #{discriminator_forward.5} parent=1 // pred_region
      _
    $region45: #{discriminator_forward.5} parent=1 // pred_fallthru
      _
    %1703 = vsyncpa [#allocation3], 1
    %1704 = vsyncpa [#allocation5], 1
    %1705 = vsyncpa [#allocation8], 1

// kernel: discriminator_forward.6
$region0: #{discriminator_forward.6}
  #allocation0 [shape = 'u32[]', space=smem, size = 0x4, offset = 0x4, fixed_abs, tag = 'smem constant byte address 0x4 - core index']
  #allocation1 [shape = 'u32[144,128]{1,0:T(1,128)}', space=vmem, size = 0x12000, scoped, tag = 'internal scratch']
  %s0 = inlined_call_operand.vmem [shape: bf16[128,1024], index: 0, kind: input, shape index: {}]
  %s1 = inlined_call_operand.vmem [shape: bf16[1024,64], index: 1, kind: input, shape index: {}]
  %s2 = inlined_call_operand.vmem [shape: f32[1,64], index: 2, kind: input, shape index: {}]
  %s3 = inlined_call_operand.vmem [shape: f32[1,64], index: 3, kind: input, shape index: {}]
  %s4 = inlined_call_operand.vmem [shape: f32[1,64], index: 4, kind: input, shape index: {}]
  %s5 = inlined_call_operand.vmem [shape: bf16[128,64], index: 5, kind: output, shape index: {}]
  %s6 = sld [smem:[#allocation0]]
  $region30: #{discriminator_forward.6} parent=0
    _
  %s8 = ssub.s32 1, %s6
  %s9 = scalar_select 0, %s8, %s6
  // Predicated region
  $region2: #{discriminator_forward.6} parent=0 // pred_check
    _
  $region3: #{discriminator_forward.6} parent=0 // pred_check_branch
    %11 = sbr.rel (0) target = $region5
  $region4: #{discriminator_forward.6} parent=0 // pred_region
    _
  $region5: #{discriminator_forward.6} parent=0 // pred_fallthru
    _
  // Predicated region
  $region6: #{discriminator_forward.6} parent=0 // pred_check
    _
  $region7: #{discriminator_forward.6} parent=0 // pred_check_branch
    %13 = sbr.rel (0) target = $region9
  $region8: #{discriminator_forward.6} parent=0 // pred_region
    _
  $region9: #{discriminator_forward.6} parent=0 // pred_fallthru
    _
  // Predicated region
  $region10: #{discriminator_forward.6} parent=0 // pred_check
    _
  $region11: #{discriminator_forward.6} parent=0 // pred_check_branch
    %15 = sbr.rel (0) target = $region13
  $region12: #{discriminator_forward.6} parent=0 // pred_region
    _
  $region13: #{discriminator_forward.6} parent=0 // pred_fallthru
    _
  // Predicated region
  $region14: #{discriminator_forward.6} parent=0 // pred_check
    _
  $region15: #{discriminator_forward.6} parent=0 // pred_check_branch
    %17 = sbr.rel (0) target = $region17
  $region16: #{discriminator_forward.6} parent=0 // pred_region
    _
  $region17: #{discriminator_forward.6} parent=0 // pred_fallthru
    _
  // Predicated region
  $region18: #{discriminator_forward.6} parent=0 // pred_check
    _
  $region19: #{discriminator_forward.6} parent=0 // pred_check_branch
    %19 = sbr.rel (0) target = $region21
  $region20: #{discriminator_forward.6} parent=0 // pred_region
    _
  $region21: #{discriminator_forward.6} parent=0 // pred_fallthru
    _
  %v21 = vld [vmem:[%s0] sm:$0xff]
  %v22 = vld [vmem:[%s0 + $0x8] sm:$0xff]
  %v23 = vld [vmem:[%s0 + $0x10] sm:$0xff]
  %v24 = vld [vmem:[%s0 + $0x18] sm:$0xff]
  %v25 = vld [vmem:[%s0 + $0x20] sm:$0xff]
  %v26 = vld [vmem:[%s0 + $0x28] sm:$0xff]
  %v27 = vld [vmem:[%s0 + $0x30] sm:$0xff]
  %v28 = vld [vmem:[%s0 + $0x38] sm:$0xff]
  %v29 = vld [vmem:[%s0 + $0x40] sm:$0xff]
  %v30 = vld [vmem:[%s0 + $0x48] sm:$0xff]
  %v31 = vld [vmem:[%s0 + $0x50] sm:$0xff]
  %v32 = vld [vmem:[%s0 + $0x58] sm:$0xff]
  %v33 = vld [vmem:[%s0 + $0x60] sm:$0xff]
  %v34 = vld [vmem:[%s0 + $0x68] sm:$0xff]
  %v35 = vld [vmem:[%s0 + $0x70] sm:$0xff]
  %v36 = vld [vmem:[%s0 + $0x78] sm:$0xff]
  %v37 = vld [vmem:[%s0 + $0x80] sm:$0xff]
  %v38 = vld [vmem:[%s0 + $0x88] sm:$0xff]
  %v39 = vld [vmem:[%s0 + $0x90] sm:$0xff]
  %v40 = vld [vmem:[%s0 + $0x98] sm:$0xff]
  %v41 = vld [vmem:[%s0 + $0xa0] sm:$0xff]
  %v42 = vld [vmem:[%s0 + $0xa8] sm:$0xff]
  %v43 = vld [vmem:[%s0 + $0xb0] sm:$0xff]
  %v44 = vld [vmem:[%s0 + $0xb8] sm:$0xff]
  %v45 = vld [vmem:[%s0 + $0xc0] sm:$0xff]
  %v46 = vld [vmem:[%s0 + $0xc8] sm:$0xff]
  %v47 = vld [vmem:[%s0 + $0xd0] sm:$0xff]
  %v48 = vld [vmem:[%s0 + $0xd8] sm:$0xff]
  %v49 = vld [vmem:[%s0 + $0xe0] sm:$0xff]
  %v50 = vld [vmem:[%s0 + $0xe8] sm:$0xff]
  %v51 = vld [vmem:[%s0 + $0xf0] sm:$0xff]
  %v52 = vld [vmem:[%s0 + $0xf8] sm:$0xff]
  %v53 = vld [vmem:[%s0 + $0x100] sm:$0xff]
  %v54 = vld [vmem:[%s0 + $0x108] sm:$0xff]
  %v55 = vld [vmem:[%s0 + $0x110] sm:$0xff]
  %v56 = vld [vmem:[%s0 + $0x118] sm:$0xff]
  %v57 = vld [vmem:[%s0 + $0x120] sm:$0xff]
  %v58 = vld [vmem:[%s0 + $0x128] sm:$0xff]
  %v59 = vld [vmem:[%s0 + $0x130] sm:$0xff]
  %v60 = vld [vmem:[%s0 + $0x138] sm:$0xff]
  %v61 = vld [vmem:[%s0 + $0x140] sm:$0xff]
  %v62 = vld [vmem:[%s0 + $0x148] sm:$0xff]
  %v63 = vld [vmem:[%s0 + $0x150] sm:$0xff]
  %v64 = vld [vmem:[%s0 + $0x158] sm:$0xff]
  %v65 = vld [vmem:[%s0 + $0x160] sm:$0xff]
  %v66 = vld [vmem:[%s0 + $0x168] sm:$0xff]
  %v67 = vld [vmem:[%s0 + $0x170] sm:$0xff]
  %v68 = vld [vmem:[%s0 + $0x178] sm:$0xff]
  %v69 = vld [vmem:[%s0 + $0x180] sm:$0xff]
  %v70 = vld [vmem:[%s0 + $0x188] sm:$0xff]
  %v71 = vld [vmem:[%s0 + $0x190] sm:$0xff]
  %v72 = vld [vmem:[%s0 + $0x198] sm:$0xff]
  %v73 = vld [vmem:[%s0 + $0x1a0] sm:$0xff]
  %v74 = vld [vmem:[%s0 + $0x1a8] sm:$0xff]
  %v75 = vld [vmem:[%s0 + $0x1b0] sm:$0xff]
  %v76 = vld [vmem:[%s0 + $0x1b8] sm:$0xff]
  %v77 = vld [vmem:[%s0 + $0x1c0] sm:$0xff]
  %v78 = vld [vmem:[%s0 + $0x1c8] sm:$0xff]
  %v79 = vld [vmem:[%s0 + $0x1d0] sm:$0xff]
  %v80 = vld [vmem:[%s0 + $0x1d8] sm:$0xff]
  %v81 = vld [vmem:[%s0 + $0x1e0] sm:$0xff]
  %v82 = vld [vmem:[%s0 + $0x1e8] sm:$0xff]
  %v83 = vld [vmem:[%s0 + $0x1f0] sm:$0xff]
  %v84 = vld [vmem:[%s0 + $0x1f8] sm:$0xff]
  %v85 = vld [vmem:[%s1] sm:$0xf]
  %v86 = vld [vmem:[%s1 + $0x4] sm:$0xf]
  %v87 = vld [vmem:[%s1 + $0x8] sm:$0xf]
  %v88 = vld [vmem:[%s1 + $0xc] sm:$0xf]
  %v89 = vld [vmem:[%s1 + $0x10] sm:$0xf]
  %v90 = vld [vmem:[%s1 + $0x14] sm:$0xf]
  %v91 = vld [vmem:[%s1 + $0x18] sm:$0xf]
  %v92 = vld [vmem:[%s1 + $0x1c] sm:$0xf]
  %v93 = vld [vmem:[%s1 + $0x20] sm:$0xf]
  %v94 = vld [vmem:[%s1 + $0x24] sm:$0xf]
  %v95 = vld [vmem:[%s1 + $0x28] sm:$0xf]
  %v96 = vld [vmem:[%s1 + $0x2c] sm:$0xf]
  %v97 = vld [vmem:[%s1 + $0x30] sm:$0xf]
  %v98 = vld [vmem:[%s1 + $0x34] sm:$0xf]
  %v99 = vld [vmem:[%s1 + $0x38] sm:$0xf]
  %v100 = vld [vmem:[%s1 + $0x3c] sm:$0xf]
  %v101 = vld [vmem:[%s1 + $0x40] sm:$0xf]
  %v102 = vld [vmem:[%s1 + $0x44] sm:$0xf]
  %v103 = vld [vmem:[%s1 + $0x48] sm:$0xf]
  %v104 = vld [vmem:[%s1 + $0x4c] sm:$0xf]
  %v105 = vld [vmem:[%s1 + $0x50] sm:$0xf]
  %v106 = vld [vmem:[%s1 + $0x54] sm:$0xf]
  %v107 = vld [vmem:[%s1 + $0x58] sm:$0xf]
  %v108 = vld [vmem:[%s1 + $0x5c] sm:$0xf]
  %v109 = vld [vmem:[%s1 + $0x60] sm:$0xf]
  %v110 = vld [vmem:[%s1 + $0x64] sm:$0xf]
  %v111 = vld [vmem:[%s1 + $0x68] sm:$0xf]
  %v112 = vld [vmem:[%s1 + $0x6c] sm:$0xf]
  %v113 = vld [vmem:[%s1 + $0x70] sm:$0xf]
  %v114 = vld [vmem:[%s1 + $0x74] sm:$0xf]
  %v115 = vld [vmem:[%s1 + $0x78] sm:$0xf]
  %v116 = vld [vmem:[%s1 + $0x7c] sm:$0xf]
  %v117 = vld [vmem:[%s1 + $0x80] sm:$0xf]
  %v118 = vld [vmem:[%s1 + $0x84] sm:$0xf]
  %v119 = vld [vmem:[%s1 + $0x88] sm:$0xf]
  %v120 = vld [vmem:[%s1 + $0x8c] sm:$0xf]
  %v121 = vld [vmem:[%s1 + $0x90] sm:$0xf]
  %v122 = vld [vmem:[%s1 + $0x94] sm:$0xf]
  %v123 = vld [vmem:[%s1 + $0x98] sm:$0xf]
  %v124 = vld [vmem:[%s1 + $0x9c] sm:$0xf]
  %v125 = vld [vmem:[%s1 + $0xa0] sm:$0xf]
  %v126 = vld [vmem:[%s1 + $0xa4] sm:$0xf]
  %v127 = vld [vmem:[%s1 + $0xa8] sm:$0xf]
  %v128 = vld [vmem:[%s1 + $0xac] sm:$0xf]
  %v129 = vld [vmem:[%s1 + $0xb0] sm:$0xf]
  %v130 = vld [vmem:[%s1 + $0xb4] sm:$0xf]
  %v131 = vld [vmem:[%s1 + $0xb8] sm:$0xf]
  %v132 = vld [vmem:[%s1 + $0xbc] sm:$0xf]
  %v133 = vld [vmem:[%s1 + $0xc0] sm:$0xf]
  %v134 = vld [vmem:[%s1 + $0xc4] sm:$0xf]
  %v135 = vld [vmem:[%s1 + $0xc8] sm:$0xf]
  %v136 = vld [vmem:[%s1 + $0xcc] sm:$0xf]
  %v137 = vld [vmem:[%s1 + $0xd0] sm:$0xf]
  %v138 = vld [vmem:[%s1 + $0xd4] sm:$0xf]
  %v139 = vld [vmem:[%s1 + $0xd8] sm:$0xf]
  %v140 = vld [vmem:[%s1 + $0xdc] sm:$0xf]
  %v141 = vld [vmem:[%s1 + $0xe0] sm:$0xf]
  %v142 = vld [vmem:[%s1 + $0xe4] sm:$0xf]
  %v143 = vld [vmem:[%s1 + $0xe8] sm:$0xf]
  %v144 = vld [vmem:[%s1 + $0xec] sm:$0xf]
  %v145 = vld [vmem:[%s1 + $0xf0] sm:$0xf]
  %v146 = vld [vmem:[%s1 + $0xf4] sm:$0xf]
  %v147 = vld [vmem:[%s1 + $0xf8] sm:$0xf]
  %v148 = vld [vmem:[%s1 + $0xfc] sm:$0xf]
  %v149 = vld [vmem:[%s1 + $0x100] sm:$0xf]
  %v150 = vld [vmem:[%s1 + $0x104] sm:$0xf]
  %v151 = vld [vmem:[%s1 + $0x108] sm:$0xf]
  %v152 = vld [vmem:[%s1 + $0x10c] sm:$0xf]
  %v153 = vld [vmem:[%s1 + $0x110] sm:$0xf]
  %v154 = vld [vmem:[%s1 + $0x114] sm:$0xf]
  %v155 = vld [vmem:[%s1 + $0x118] sm:$0xf]
  %v156 = vld [vmem:[%s1 + $0x11c] sm:$0xf]
  %v157 = vld [vmem:[%s1 + $0x120] sm:$0xf]
  %v158 = vld [vmem:[%s1 + $0x124] sm:$0xf]
  %v159 = vld [vmem:[%s1 + $0x128] sm:$0xf]
  %v160 = vld [vmem:[%s1 + $0x12c] sm:$0xf]
  %v161 = vld [vmem:[%s1 + $0x130] sm:$0xf]
  %v162 = vld [vmem:[%s1 + $0x134] sm:$0xf]
  %v163 = vld [vmem:[%s1 + $0x138] sm:$0xf]
  %v164 = vld [vmem:[%s1 + $0x13c] sm:$0xf]
  %v165 = vld [vmem:[%s1 + $0x140] sm:$0xf]
  %v166 = vld [vmem:[%s1 + $0x144] sm:$0xf]
  %v167 = vld [vmem:[%s1 + $0x148] sm:$0xf]
  %v168 = vld [vmem:[%s1 + $0x14c] sm:$0xf]
  %v169 = vld [vmem:[%s1 + $0x150] sm:$0xf]
  %v170 = vld [vmem:[%s1 + $0x154] sm:$0xf]
  %v171 = vld [vmem:[%s1 + $0x158] sm:$0xf]
  %v172 = vld [vmem:[%s1 + $0x15c] sm:$0xf]
  %v173 = vld [vmem:[%s1 + $0x160] sm:$0xf]
  %v174 = vld [vmem:[%s1 + $0x164] sm:$0xf]
  %v175 = vld [vmem:[%s1 + $0x168] sm:$0xf]
  %v176 = vld [vmem:[%s1 + $0x16c] sm:$0xf]
  %v177 = vld [vmem:[%s1 + $0x170] sm:$0xf]
  %v178 = vld [vmem:[%s1 + $0x174] sm:$0xf]
  %v179 = vld [vmem:[%s1 + $0x178] sm:$0xf]
  %v180 = vld [vmem:[%s1 + $0x17c] sm:$0xf]
  %v181 = vld [vmem:[%s1 + $0x180] sm:$0xf]
  %v182 = vld [vmem:[%s1 + $0x184] sm:$0xf]
  %v183 = vld [vmem:[%s1 + $0x188] sm:$0xf]
  %v184 = vld [vmem:[%s1 + $0x18c] sm:$0xf]
  %v185 = vld [vmem:[%s1 + $0x190] sm:$0xf]
  %v186 = vld [vmem:[%s1 + $0x194] sm:$0xf]
  %v187 = vld [vmem:[%s1 + $0x198] sm:$0xf]
  %v188 = vld [vmem:[%s1 + $0x19c] sm:$0xf]
  %v189 = vld [vmem:[%s1 + $0x1a0] sm:$0xf]
  %v190 = vld [vmem:[%s1 + $0x1a4] sm:$0xf]
  %v191 = vld [vmem:[%s1 + $0x1a8] sm:$0xf]
  %v192 = vld [vmem:[%s1 + $0x1ac] sm:$0xf]
  %v193 = vld [vmem:[%s1 + $0x1b0] sm:$0xf]
  %v194 = vld [vmem:[%s1 + $0x1b4] sm:$0xf]
  %v195 = vld [vmem:[%s1 + $0x1b8] sm:$0xf]
  %v196 = vld [vmem:[%s1 + $0x1bc] sm:$0xf]
  %v197 = vld [vmem:[%s1 + $0x1c0] sm:$0xf]
  %v198 = vld [vmem:[%s1 + $0x1c4] sm:$0xf]
  %v199 = vld [vmem:[%s1 + $0x1c8] sm:$0xf]
  %v200 = vld [vmem:[%s1 + $0x1cc] sm:$0xf]
  %v201 = vld [vmem:[%s1 + $0x1d0] sm:$0xf]
  %v202 = vld [vmem:[%s1 + $0x1d4] sm:$0xf]
  %v203 = vld [vmem:[%s1 + $0x1d8] sm:$0xf]
  %v204 = vld [vmem:[%s1 + $0x1dc] sm:$0xf]
  %v205 = vld [vmem:[%s1 + $0x1e0] sm:$0xf]
  %v206 = vld [vmem:[%s1 + $0x1e4] sm:$0xf]
  %v207 = vld [vmem:[%s1 + $0x1e8] sm:$0xf]
  %v208 = vld [vmem:[%s1 + $0x1ec] sm:$0xf]
  %v209 = vld [vmem:[%s1 + $0x1f0] sm:$0xf]
  %v210 = vld [vmem:[%s1 + $0x1f4] sm:$0xf]
  %v211 = vld [vmem:[%s1 + $0x1f8] sm:$0xf]
  %v212 = vld [vmem:[%s1 + $0x1fc] sm:$0xf]
  %v213 = vld [vmem:[%s2] sm:$0x1]
  %v215 = vlaneseq
  %v216 = vshrl.u32 %v215, 7
  %v217 = vsub.s32 0, %v216
  %v218 = vrot.slane %v213, %v217
  %v284 = vunpack.c.l.b16 %v21
  %v285 = vunpack.c.h.b16 %v21
  %v286 = vunpack.c.l.b16 %v22
  %v287 = vunpack.c.h.b16 %v22
  %v288 = vunpack.c.l.b16 %v23
  %v289 = vunpack.c.h.b16 %v23
  %v290 = vunpack.c.l.b16 %v24
  %v291 = vunpack.c.h.b16 %v24
  %v292 = vunpack.c.l.b16 %v25
  %v293 = vunpack.c.h.b16 %v25
  %v294 = vunpack.c.l.b16 %v26
  %v295 = vunpack.c.h.b16 %v26
  %v296 = vunpack.c.l.b16 %v27
  %v297 = vunpack.c.h.b16 %v27
  %v298 = vunpack.c.l.b16 %v28
  %v299 = vunpack.c.h.b16 %v28
  %v300 = vunpack.c.l.b16 %v29
  %v301 = vunpack.c.h.b16 %v29
  %v302 = vunpack.c.l.b16 %v30
  %v303 = vunpack.c.h.b16 %v30
  %v304 = vunpack.c.l.b16 %v31
  %v305 = vunpack.c.h.b16 %v31
  %v306 = vunpack.c.l.b16 %v32
  %v307 = vunpack.c.h.b16 %v32
  %v308 = vunpack.c.l.b16 %v33
  %v309 = vunpack.c.h.b16 %v33
  %v310 = vunpack.c.l.b16 %v34
  %v311 = vunpack.c.h.b16 %v34
  %v312 = vunpack.c.l.b16 %v35
  %v313 = vunpack.c.h.b16 %v35
  %v314 = vunpack.c.l.b16 %v36
  %v315 = vunpack.c.h.b16 %v36
  %v316 = vunpack.c.l.b16 %v37
  %v317 = vunpack.c.h.b16 %v37
  %v318 = vunpack.c.l.b16 %v38
  %v319 = vunpack.c.h.b16 %v38
  %v320 = vunpack.c.l.b16 %v39
  %v321 = vunpack.c.h.b16 %v39
  %v322 = vunpack.c.l.b16 %v40
  %v323 = vunpack.c.h.b16 %v40
  %v324 = vunpack.c.l.b16 %v41
  %v325 = vunpack.c.h.b16 %v41
  %v326 = vunpack.c.l.b16 %v42
  %v327 = vunpack.c.h.b16 %v42
  %v328 = vunpack.c.l.b16 %v43
  %v329 = vunpack.c.h.b16 %v43
  %v330 = vunpack.c.l.b16 %v44
  %v331 = vunpack.c.h.b16 %v44
  %v332 = vunpack.c.l.b16 %v45
  %v333 = vunpack.c.h.b16 %v45
  %v334 = vunpack.c.l.b16 %v46
  %v335 = vunpack.c.h.b16 %v46
  %v336 = vunpack.c.l.b16 %v47
  %v337 = vunpack.c.h.b16 %v47
  %v338 = vunpack.c.l.b16 %v48
  %v339 = vunpack.c.h.b16 %v48
  %v340 = vunpack.c.l.b16 %v49
  %v341 = vunpack.c.h.b16 %v49
  %v342 = vunpack.c.l.b16 %v50
  %v343 = vunpack.c.h.b16 %v50
  %v344 = vunpack.c.l.b16 %v51
  %v345 = vunpack.c.h.b16 %v51
  %v346 = vunpack.c.l.b16 %v52
  %v347 = vunpack.c.h.b16 %v52
  %v348 = vunpack.c.l.b16 %v53
  %v349 = vunpack.c.h.b16 %v53
  %v350 = vunpack.c.l.b16 %v54
  %v351 = vunpack.c.h.b16 %v54
  %v352 = vunpack.c.l.b16 %v55
  %v353 = vunpack.c.h.b16 %v55
  %v354 = vunpack.c.l.b16 %v56
  %v355 = vunpack.c.h.b16 %v56
  %v356 = vunpack.c.l.b16 %v57
  %v357 = vunpack.c.h.b16 %v57
  %v358 = vunpack.c.l.b16 %v58
  %v359 = vunpack.c.h.b16 %v58
  %v360 = vunpack.c.l.b16 %v59
  %v361 = vunpack.c.h.b16 %v59
  %v362 = vunpack.c.l.b16 %v60
  %v363 = vunpack.c.h.b16 %v60
  %v364 = vunpack.c.l.b16 %v61
  %v365 = vunpack.c.h.b16 %v61
  %v366 = vunpack.c.l.b16 %v62
  %v367 = vunpack.c.h.b16 %v62
  %v368 = vunpack.c.l.b16 %v63
  %v369 = vunpack.c.h.b16 %v63
  %v370 = vunpack.c.l.b16 %v64
  %v371 = vunpack.c.h.b16 %v64
  %v372 = vunpack.c.l.b16 %v65
  %v373 = vunpack.c.h.b16 %v65
  %v374 = vunpack.c.l.b16 %v66
  %v375 = vunpack.c.h.b16 %v66
  %v376 = vunpack.c.l.b16 %v67
  %v377 = vunpack.c.h.b16 %v67
  %v378 = vunpack.c.l.b16 %v68
  %v379 = vunpack.c.h.b16 %v68
  %v380 = vunpack.c.l.b16 %v69
  %v381 = vunpack.c.h.b16 %v69
  %v382 = vunpack.c.l.b16 %v70
  %v383 = vunpack.c.h.b16 %v70
  %v384 = vunpack.c.l.b16 %v71
  %v385 = vunpack.c.h.b16 %v71
  %v386 = vunpack.c.l.b16 %v72
  %v387 = vunpack.c.h.b16 %v72
  %v388 = vunpack.c.l.b16 %v73
  %v389 = vunpack.c.h.b16 %v73
  %v390 = vunpack.c.l.b16 %v74
  %v391 = vunpack.c.h.b16 %v74
  %v392 = vunpack.c.l.b16 %v75
  %v393 = vunpack.c.h.b16 %v75
  %v394 = vunpack.c.l.b16 %v76
  %v395 = vunpack.c.h.b16 %v76
  %v396 = vunpack.c.l.b16 %v77
  %v397 = vunpack.c.h.b16 %v77
  %v398 = vunpack.c.l.b16 %v78
  %v399 = vunpack.c.h.b16 %v78
  %v400 = vunpack.c.l.b16 %v79
  %v401 = vunpack.c.h.b16 %v79
  %v402 = vunpack.c.l.b16 %v80
  %v403 = vunpack.c.h.b16 %v80
  %v404 = vunpack.c.l.b16 %v81
  %v405 = vunpack.c.h.b16 %v81
  %v406 = vunpack.c.l.b16 %v82
  %v407 = vunpack.c.h.b16 %v82
  %v408 = vunpack.c.l.b16 %v83
  %v409 = vunpack.c.h.b16 %v83
  %v410 = vunpack.c.l.b16 %v84
  %v411 = vunpack.c.h.b16 %v84
  %v412 = vpack.c.b16 %v292, %v284
  %v413 = vpack.c.b16 %v293, %v285
  %v414 = vpack.c.b16 %v294, %v286
  %v415 = vpack.c.b16 %v295, %v287
  %v416 = vpack.c.b16 %v296, %v288
  %v417 = vpack.c.b16 %v297, %v289
  %v418 = vpack.c.b16 %v298, %v290
  %v419 = vpack.c.b16 %v299, %v291
  %v420 = vpack.c.b16 %v308, %v300
  %v421 = vpack.c.b16 %v309, %v301
  %v422 = vpack.c.b16 %v310, %v302
  %v423 = vpack.c.b16 %v311, %v303
  %v424 = vpack.c.b16 %v312, %v304
  %v425 = vpack.c.b16 %v313, %v305
  %v426 = vpack.c.b16 %v314, %v306
  %v427 = vpack.c.b16 %v315, %v307
  %v428 = vpack.c.b16 %v324, %v316
  %v429 = vpack.c.b16 %v325, %v317
  %v430 = vpack.c.b16 %v326, %v318
  %v431 = vpack.c.b16 %v327, %v319
  %v432 = vpack.c.b16 %v328, %v320
  %v433 = vpack.c.b16 %v329, %v321
  %v434 = vpack.c.b16 %v330, %v322
  %v435 = vpack.c.b16 %v331, %v323
  %v436 = vpack.c.b16 %v340, %v332
  %v437 = vpack.c.b16 %v341, %v333
  %v438 = vpack.c.b16 %v342, %v334
  %v439 = vpack.c.b16 %v343, %v335
  %v440 = vpack.c.b16 %v344, %v336
  %v441 = vpack.c.b16 %v345, %v337
  %v442 = vpack.c.b16 %v346, %v338
  %v443 = vpack.c.b16 %v347, %v339
  %v444 = vpack.c.b16 %v356, %v348
  %v445 = vpack.c.b16 %v357, %v349
  %v446 = vpack.c.b16 %v358, %v350
  %v447 = vpack.c.b16 %v359, %v351
  %v448 = vpack.c.b16 %v360, %v352
  %v449 = vpack.c.b16 %v361, %v353
  %v450 = vpack.c.b16 %v362, %v354
  %v451 = vpack.c.b16 %v363, %v355
  %v452 = vpack.c.b16 %v372, %v364
  %v453 = vpack.c.b16 %v373, %v365
  %v454 = vpack.c.b16 %v374, %v366
  %v455 = vpack.c.b16 %v375, %v367
  %v456 = vpack.c.b16 %v376, %v368
  %v457 = vpack.c.b16 %v377, %v369
  %v458 = vpack.c.b16 %v378, %v370
  %v459 = vpack.c.b16 %v379, %v371
  %v460 = vpack.c.b16 %v388, %v380
  %v461 = vpack.c.b16 %v389, %v381
  %v462 = vpack.c.b16 %v390, %v382
  %v463 = vpack.c.b16 %v391, %v383
  %v464 = vpack.c.b16 %v392, %v384
  %v465 = vpack.c.b16 %v393, %v385
  %v466 = vpack.c.b16 %v394, %v386
  %v467 = vpack.c.b16 %v395, %v387
  %v468 = vpack.c.b16 %v404, %v396
  %v469 = vpack.c.b16 %v405, %v397
  %v470 = vpack.c.b16 %v406, %v398
  %v471 = vpack.c.b16 %v407, %v399
  %v472 = vpack.c.b16 %v408, %v400
  %v473 = vpack.c.b16 %v409, %v401
  %v474 = vpack.c.b16 %v410, %v402
  %v475 = vpack.c.b16 %v411, %v403
  %v668 = vunpack.c.l.b16 %v85
  %v669 = vunpack.c.l.b16 %v86
  %v670 = vunpack.c.l.b16 %v87
  %v671 = vunpack.c.l.b16 %v88
  %v672 = vunpack.c.l.b16 %v89
  %v673 = vunpack.c.l.b16 %v90
  %v674 = vunpack.c.l.b16 %v91
  %v675 = vunpack.c.l.b16 %v92
  %v676 = vunpack.c.l.b16 %v93
  %v677 = vunpack.c.l.b16 %v94
  %v678 = vunpack.c.l.b16 %v95
  %v679 = vunpack.c.l.b16 %v96
  %v680 = vunpack.c.l.b16 %v97
  %v681 = vunpack.c.l.b16 %v98
  %v682 = vunpack.c.l.b16 %v99
  %v683 = vunpack.c.l.b16 %v100
  %v684 = vunpack.c.l.b16 %v101
  %v685 = vunpack.c.l.b16 %v102
  %v686 = vunpack.c.l.b16 %v103
  %v687 = vunpack.c.l.b16 %v104
  %v688 = vunpack.c.l.b16 %v105
  %v689 = vunpack.c.l.b16 %v106
  %v690 = vunpack.c.l.b16 %v107
  %v691 = vunpack.c.l.b16 %v108
  %v692 = vunpack.c.l.b16 %v109
  %v693 = vunpack.c.l.b16 %v110
  %v694 = vunpack.c.l.b16 %v111
  %v695 = vunpack.c.l.b16 %v112
  %v696 = vunpack.c.l.b16 %v113
  %v697 = vunpack.c.l.b16 %v114
  %v698 = vunpack.c.l.b16 %v115
  %v699 = vunpack.c.l.b16 %v116
  %v700 = vunpack.c.l.b16 %v117
  %v701 = vunpack.c.l.b16 %v118
  %v702 = vunpack.c.l.b16 %v119
  %v703 = vunpack.c.l.b16 %v120
  %v704 = vunpack.c.l.b16 %v121
  %v705 = vunpack.c.l.b16 %v122
  %v706 = vunpack.c.l.b16 %v123
  %v707 = vunpack.c.l.b16 %v124
  %v708 = vunpack.c.l.b16 %v125
  %v709 = vunpack.c.l.b16 %v126
  %v710 = vunpack.c.l.b16 %v127
  %v711 = vunpack.c.l.b16 %v128
  %v712 = vunpack.c.l.b16 %v129
  %v713 = vunpack.c.l.b16 %v130
  %v714 = vunpack.c.l.b16 %v131
  %v715 = vunpack.c.l.b16 %v132
  %v716 = vunpack.c.l.b16 %v133
  %v717 = vunpack.c.l.b16 %v134
  %v718 = vunpack.c.l.b16 %v135
  %v719 = vunpack.c.l.b16 %v136
  %v720 = vunpack.c.l.b16 %v137
  %v721 = vunpack.c.l.b16 %v138
  %v722 = vunpack.c.l.b16 %v139
  %v723 = vunpack.c.l.b16 %v140
  %v724 = vunpack.c.l.b16 %v141
  %v725 = vunpack.c.l.b16 %v142
  %v726 = vunpack.c.l.b16 %v143
  %v727 = vunpack.c.l.b16 %v144
  %v728 = vunpack.c.l.b16 %v145
  %v729 = vunpack.c.l.b16 %v146
  %v730 = vunpack.c.l.b16 %v147
  %v731 = vunpack.c.l.b16 %v148
  %v732 = vunpack.c.l.b16 %v149
  %v733 = vunpack.c.l.b16 %v150
  %v734 = vunpack.c.l.b16 %v151
  %v735 = vunpack.c.l.b16 %v152
  %v736 = vunpack.c.l.b16 %v153
  %v737 = vunpack.c.l.b16 %v154
  %v738 = vunpack.c.l.b16 %v155
  %v739 = vunpack.c.l.b16 %v156
  %v740 = vunpack.c.l.b16 %v157
  %v741 = vunpack.c.l.b16 %v158
  %v742 = vunpack.c.l.b16 %v159
  %v743 = vunpack.c.l.b16 %v160
  %v744 = vunpack.c.l.b16 %v161
  %v745 = vunpack.c.l.b16 %v162
  %v746 = vunpack.c.l.b16 %v163
  %v747 = vunpack.c.l.b16 %v164
  %v748 = vunpack.c.l.b16 %v165
  %v749 = vunpack.c.l.b16 %v166
  %v750 = vunpack.c.l.b16 %v167
  %v751 = vunpack.c.l.b16 %v168
  %v752 = vunpack.c.l.b16 %v169
  %v753 = vunpack.c.l.b16 %v170
  %v754 = vunpack.c.l.b16 %v171
  %v755 = vunpack.c.l.b16 %v172
  %v756 = vunpack.c.l.b16 %v173
  %v757 = vunpack.c.l.b16 %v174
  %v758 = vunpack.c.l.b16 %v175
  %v759 = vunpack.c.l.b16 %v176
  %v760 = vunpack.c.l.b16 %v177
  %v761 = vunpack.c.l.b16 %v178
  %v762 = vunpack.c.l.b16 %v179
  %v763 = vunpack.c.l.b16 %v180
  %v764 = vunpack.c.l.b16 %v181
  %v765 = vunpack.c.l.b16 %v182
  %v766 = vunpack.c.l.b16 %v183
  %v767 = vunpack.c.l.b16 %v184
  %v768 = vunpack.c.l.b16 %v185
  %v769 = vunpack.c.l.b16 %v186
  %v770 = vunpack.c.l.b16 %v187
  %v771 = vunpack.c.l.b16 %v188
  %v772 = vunpack.c.l.b16 %v189
  %v773 = vunpack.c.l.b16 %v190
  %v774 = vunpack.c.l.b16 %v191
  %v775 = vunpack.c.l.b16 %v192
  %v776 = vunpack.c.l.b16 %v193
  %v777 = vunpack.c.l.b16 %v194
  %v778 = vunpack.c.l.b16 %v195
  %v779 = vunpack.c.l.b16 %v196
  %v780 = vunpack.c.l.b16 %v197
  %v781 = vunpack.c.l.b16 %v198
  %v782 = vunpack.c.l.b16 %v199
  %v783 = vunpack.c.l.b16 %v200
  %v784 = vunpack.c.l.b16 %v201
  %v785 = vunpack.c.l.b16 %v202
  %v786 = vunpack.c.l.b16 %v203
  %v787 = vunpack.c.l.b16 %v204
  %v788 = vunpack.c.l.b16 %v205
  %v789 = vunpack.c.l.b16 %v206
  %v790 = vunpack.c.l.b16 %v207
  %v791 = vunpack.c.l.b16 %v208
  %v792 = vunpack.c.l.b16 %v209
  %v793 = vunpack.c.l.b16 %v210
  %v794 = vunpack.c.l.b16 %v211
  %v795 = vunpack.c.l.b16 %v212
  %v796 = vpack.c.b16 %v669, %v668
  %v797 = vpack.c.b16 %v671, %v670
  %v798 = vpack.c.b16 %v673, %v672
  %v799 = vpack.c.b16 %v675, %v674
  %v800 = vpack.c.b16 %v677, %v676
  %v801 = vpack.c.b16 %v679, %v678
  %v802 = vpack.c.b16 %v681, %v680
  %v803 = vpack.c.b16 %v683, %v682
  %v804 = vpack.c.b16 %v685, %v684
  %v805 = vpack.c.b16 %v687, %v686
  %v806 = vpack.c.b16 %v689, %v688
  %v807 = vpack.c.b16 %v691, %v690
  %v808 = vpack.c.b16 %v693, %v692
  %v809 = vpack.c.b16 %v695, %v694
  %v810 = vpack.c.b16 %v697, %v696
  %v811 = vpack.c.b16 %v699, %v698
  %v812 = vpack.c.b16 %v701, %v700
  %v813 = vpack.c.b16 %v703, %v702
  %v814 = vpack.c.b16 %v705, %v704
  %v815 = vpack.c.b16 %v707, %v706
  %v816 = vpack.c.b16 %v709, %v708
  %v817 = vpack.c.b16 %v711, %v710
  %v818 = vpack.c.b16 %v713, %v712
  %v819 = vpack.c.b16 %v715, %v714
  %v820 = vpack.c.b16 %v717, %v716
  %v821 = vpack.c.b16 %v719, %v718
  %v822 = vpack.c.b16 %v721, %v720
  %v823 = vpack.c.b16 %v723, %v722
  %v824 = vpack.c.b16 %v725, %v724
  %v825 = vpack.c.b16 %v727, %v726
  %v826 = vpack.c.b16 %v729, %v728
  %v827 = vpack.c.b16 %v731, %v730
  %v828 = vpack.c.b16 %v733, %v732
  %v829 = vpack.c.b16 %v735, %v734
  %v830 = vpack.c.b16 %v737, %v736
  %v831 = vpack.c.b16 %v739, %v738
  %v832 = vpack.c.b16 %v741, %v740
  %v833 = vpack.c.b16 %v743, %v742
  %v834 = vpack.c.b16 %v745, %v744
  %v835 = vpack.c.b16 %v747, %v746
  %v836 = vpack.c.b16 %v749, %v748
  %v837 = vpack.c.b16 %v751, %v750
  %v838 = vpack.c.b16 %v753, %v752
  %v839 = vpack.c.b16 %v755, %v754
  %v840 = vpack.c.b16 %v757, %v756
  %v841 = vpack.c.b16 %v759, %v758
  %v842 = vpack.c.b16 %v761, %v760
  %v843 = vpack.c.b16 %v763, %v762
  %v844 = vpack.c.b16 %v765, %v764
  %v845 = vpack.c.b16 %v767, %v766
  %v846 = vpack.c.b16 %v769, %v768
  %v847 = vpack.c.b16 %v771, %v770
  %v848 = vpack.c.b16 %v773, %v772
  %v849 = vpack.c.b16 %v775, %v774
  %v850 = vpack.c.b16 %v777, %v776
  %v851 = vpack.c.b16 %v779, %v778
  %v852 = vpack.c.b16 %v781, %v780
  %v853 = vpack.c.b16 %v783, %v782
  %v854 = vpack.c.b16 %v785, %v784
  %v855 = vpack.c.b16 %v787, %v786
  %v856 = vpack.c.b16 %v789, %v788
  %v857 = vpack.c.b16 %v791, %v790
  %v858 = vpack.c.b16 %v793, %v792
  %v859 = vpack.c.b16 %v795, %v794
  %924 = vmatprep.subr.bf16.mxu0 0
  %925 = vmatpush1.bf16.msra.mxu0 %v796
  %926 = vmatprep.subr.bf16.mxu0 0
  %927 = vmatpush1.bf16.msra.mxu0 %v797
  %928 = vmatprep.subr.bf16.mxu0 0
  %929 = vmatpush1.bf16.msra.mxu0 %v798
  %930 = vmatprep.subr.bf16.mxu0 0
  %931 = vmatpush1.bf16.msra.mxu0 %v799
  %932 = vmatprep.subr.bf16.mxu0 0
  %933 = vmatpush1.bf16.msra.mxu0 %v800
  %934 = vmatprep.subr.bf16.mxu0 0
  %935 = vmatpush1.bf16.msra.mxu0 %v801
  %936 = vmatprep.subr.bf16.mxu0 0
  %937 = vmatpush1.bf16.msra.mxu0 %v802
  %938 = vmatprep.subr.bf16.mxu0 0
  %939 = vmatpush1.bf16.msra.mxu0 %v803
  %940 = vmatprep.subr.bf16.mxu0 0
  %941 = vmatpush1.bf16.msra.mxu0 %v804
  %942 = vmatprep.subr.bf16.mxu0 0
  %943 = vmatpush1.bf16.msra.mxu0 %v805
  %944 = vmatprep.subr.bf16.mxu0 0
  %945 = vmatpush1.bf16.msra.mxu0 %v806
  %946 = vmatprep.subr.bf16.mxu0 0
  %947 = vmatpush1.bf16.msra.mxu0 %v807
  %948 = vmatprep.subr.bf16.mxu0 0
  %949 = vmatpush1.bf16.msra.mxu0 %v808
  %950 = vmatprep.subr.bf16.mxu0 0
  %951 = vmatpush1.bf16.msra.mxu0 %v809
  %952 = vmatprep.subr.bf16.mxu0 0
  %953 = vmatpush1.bf16.msra.mxu0 %v810
  %954 = vmatprep.subr.bf16.mxu0 0
  %955 = vmatpush1.bf16.msra.mxu0 %v811
  %956 = vmatprep.mubr.bf16.mxu0 %v413
  %957 = vmatmul.mubr.bf16.gmra.mrb[0].mxu0 %v412
  %v958 = vpop.f32.mrb[0].mxu0
  %v959 = vadd.f32 %v218, %v958
  %v960 = vpop.f32.mrb[0].mxu0
  %v961 = vpop.f32.mrb[0].mxu0
  %v962 = vadd.f32 %v218, %v961
  %v963 = vpop.f32.mrb[0].mxu0
  %964 = vmatprep.mubr.bf16.mxu0 %v421
  %965 = vmatmul.mubr.bf16.gmra.mrb[0].mxu0 %v420
  %v966 = vpop.f32.mrb[0].mxu0
  %v967 = vadd.f32 %v218, %v966
  %v968 = vpop.f32.mrb[0].mxu0
  %v969 = vpop.f32.mrb[0].mxu0
  %v970 = vadd.f32 %v218, %v969
  %v971 = vpop.f32.mrb[0].mxu0
  %972 = vmatprep.mubr.bf16.mxu0 %v429
  %973 = vmatmul.mubr.bf16.gmra.mrb[0].mxu0 %v428
  %v974 = vpop.f32.mrb[0].mxu0
  %v975 = vadd.f32 %v218, %v974
  %v976 = vpop.f32.mrb[0].mxu0
  %v977 = vpop.f32.mrb[0].mxu0
  %v978 = vadd.f32 %v218, %v977
  %v979 = vpop.f32.mrb[0].mxu0
  %980 = vmatprep.mubr.bf16.mxu0 %v437
  %981 = vmatmul.mubr.bf16.gmra.mrb[0].mxu0 %v436
  %v982 = vpop.f32.mrb[0].mxu0
  %v983 = vadd.f32 %v218, %v982
  %v984 = vpop.f32.mrb[0].mxu0
  %v985 = vpop.f32.mrb[0].mxu0
  %v986 = vadd.f32 %v218, %v985
  %v987 = vpop.f32.mrb[0].mxu0
  %988 = vmatprep.mubr.bf16.mxu0 %v445
  %989 = vmatmul.mubr.bf16.gmra.mrb[0].mxu0 %v444
  %v990 = vpop.f32.mrb[0].mxu0
  %v991 = vadd.f32 %v218, %v990
  %v992 = vpop.f32.mrb[0].mxu0
  %v993 = vpop.f32.mrb[0].mxu0
  %v994 = vadd.f32 %v218, %v993
  %v995 = vpop.f32.mrb[0].mxu0
  %996 = vmatprep.mubr.bf16.mxu0 %v453
  %997 = vmatmul.mubr.bf16.gmra.mrb[0].mxu0 %v452
  %v998 = vpop.f32.mrb[0].mxu0
  %v999 = vadd.f32 %v218, %v998
  %v1000 = vpop.f32.mrb[0].mxu0
  %v1001 = vpop.f32.mrb[0].mxu0
  %v1002 = vadd.f32 %v218, %v1001
  %v1003 = vpop.f32.mrb[0].mxu0
  %1004 = vmatprep.mubr.bf16.mxu0 %v461
  %1005 = vmatmul.mubr.bf16.gmra.mrb[0].mxu0 %v460
  %v1006 = vpop.f32.mrb[0].mxu0
  %v1007 = vadd.f32 %v218, %v1006
  %v1008 = vpop.f32.mrb[0].mxu0
  %v1009 = vpop.f32.mrb[0].mxu0
  %v1010 = vadd.f32 %v218, %v1009
  %v1011 = vpop.f32.mrb[0].mxu0
  %1012 = vmatprep.mubr.bf16.mxu0 %v469
  %1013 = vmatmul.mubr.bf16.gmra.mrb[0].mxu0 %v468
  %v1014 = vpop.f32.mrb[0].mxu0
  %v1015 = vadd.f32 %v218, %v1014
  %v1016 = vpop.f32.mrb[0].mxu0
  %v1017 = vpop.f32.mrb[0].mxu0
  %v1018 = vadd.f32 %v218, %v1017
  %v1019 = vpop.f32.mrb[0].mxu0
  %1020 = vdwg.mxu0
  %1021 = vmatprep.subr.bf16.mxu0 0
  %1022 = vmatpush1.bf16.msra.mxu0 %v812
  %1023 = vmatprep.subr.bf16.mxu0 0
  %1024 = vmatpush1.bf16.msra.mxu0 %v813
  %1025 = vmatprep.subr.bf16.mxu0 0
  %1026 = vmatpush1.bf16.msra.mxu0 %v814
  %1027 = vmatprep.subr.bf16.mxu0 0
  %1028 = vmatpush1.bf16.msra.mxu0 %v815
  %1029 = vmatprep.subr.bf16.mxu0 0
  %1030 = vmatpush1.bf16.msra.mxu0 %v816
  %1031 = vmatprep.subr.bf16.mxu0 0
  %1032 = vmatpush1.bf16.msra.mxu0 %v817
  %1033 = vmatprep.subr.bf16.mxu0 0
  %1034 = vmatpush1.bf16.msra.mxu0 %v818
  %1035 = vmatprep.subr.bf16.mxu0 0
  %1036 = vmatpush1.bf16.msra.mxu0 %v819
  %1037 = vmatprep.subr.bf16.mxu0 0
  %1038 = vmatpush1.bf16.msra.mxu0 %v820
  %1039 = vmatprep.subr.bf16.mxu0 0
  %1040 = vmatpush1.bf16.msra.mxu0 %v821
  %1041 = vmatprep.subr.bf16.mxu0 0
  %1042 = vmatpush1.bf16.msra.mxu0 %v822
  %1043 = vmatprep.subr.bf16.mxu0 0
  %1044 = vmatpush1.bf16.msra.mxu0 %v823
  %1045 = vmatprep.subr.bf16.mxu0 0
  %1046 = vmatpush1.bf16.msra.mxu0 %v824
  %1047 = vmatprep.subr.bf16.mxu0 0
  %1048 = vmatpush1.bf16.msra.mxu0 %v825
  %1049 = vmatprep.subr.bf16.mxu0 0
  %1050 = vmatpush1.bf16.msra.mxu0 %v826
  %1051 = vmatprep.subr.bf16.mxu0 0
  %1052 = vmatpush1.bf16.msra.mxu0 %v827
  %1053 = vmatprep.mubr.bf16.mxu0 %v415
  %1054 = vmatmul.mubr.bf16.gmra.mrb[0].mxu0 %v414
  %v1055 = vpop.f32.mrb[0].mxu0
  %v1056 = vadd.f32 %v959, %v1055
  %v1057 = vpop.f32.mrb[0].mxu0
  %v1058 = vpop.f32.mrb[0].mxu0
  %v1059 = vadd.f32 %v962, %v1058
  %v1060 = vpop.f32.mrb[0].mxu0
  %1061 = vmatprep.mubr.bf16.mxu0 %v423
  %1062 = vmatmul.mubr.bf16.gmra.mrb[0].mxu0 %v422
  %v1063 = vpop.f32.mrb[0].mxu0
  %v1064 = vadd.f32 %v967, %v1063
  %v1065 = vpop.f32.mrb[0].mxu0
  %v1066 = vpop.f32.mrb[0].mxu0
  %v1067 = vadd.f32 %v970, %v1066
  %v1068 = vpop.f32.mrb[0].mxu0
  %1069 = vmatprep.mubr.bf16.mxu0 %v431
  %1070 = vmatmul.mubr.bf16.gmra.mrb[0].mxu0 %v430
  %v1071 = vpop.f32.mrb[0].mxu0
  %v1072 = vadd.f32 %v975, %v1071
  %v1073 = vpop.f32.mrb[0].mxu0
  %v1074 = vpop.f32.mrb[0].mxu0
  %v1075 = vadd.f32 %v978, %v1074
  %v1076 = vpop.f32.mrb[0].mxu0
  %1077 = vmatprep.mubr.bf16.mxu0 %v439
  %1078 = vmatmul.mubr.bf16.gmra.mrb[0].mxu0 %v438
  %v1079 = vpop.f32.mrb[0].mxu0
  %v1080 = vadd.f32 %v983, %v1079
  %v1081 = vpop.f32.mrb[0].mxu0
  %v1082 = vpop.f32.mrb[0].mxu0
  %v1083 = vadd.f32 %v986, %v1082
  %v1084 = vpop.f32.mrb[0].mxu0
  %1085 = vmatprep.mubr.bf16.mxu0 %v447
  %1086 = vmatmul.mubr.bf16.gmra.mrb[0].mxu0 %v446
  %v1087 = vpop.f32.mrb[0].mxu0
  %v1088 = vadd.f32 %v991, %v1087
  %v1089 = vpop.f32.mrb[0].mxu0
  %v1090 = vpop.f32.mrb[0].mxu0
  %v1091 = vadd.f32 %v994, %v1090
  %v1092 = vpop.f32.mrb[0].mxu0
  %1093 = vmatprep.mubr.bf16.mxu0 %v455
  %1094 = vmatmul.mubr.bf16.gmra.mrb[0].mxu0 %v454
  %v1095 = vpop.f32.mrb[0].mxu0
  %v1096 = vadd.f32 %v999, %v1095
  %v1097 = vpop.f32.mrb[0].mxu0
  %v1098 = vpop.f32.mrb[0].mxu0
  %v1099 = vadd.f32 %v1002, %v1098
  %v1100 = vpop.f32.mrb[0].mxu0
  %1101 = vmatprep.mubr.bf16.mxu0 %v463
  %1102 = vmatmul.mubr.bf16.gmra.mrb[0].mxu0 %v462
  %v1103 = vpop.f32.mrb[0].mxu0
  %v1104 = vadd.f32 %v1007, %v1103
  %v1105 = vpop.f32.mrb[0].mxu0
  %v1106 = vpop.f32.mrb[0].mxu0
  %v1107 = vadd.f32 %v1010, %v1106
  %v1108 = vpop.f32.mrb[0].mxu0
  %1109 = vmatprep.mubr.bf16.mxu0 %v471
  %1110 = vmatmul.mubr.bf16.gmra.mrb[0].mxu0 %v470
  %v1111 = vpop.f32.mrb[0].mxu0
  %v1112 = vadd.f32 %v1015, %v1111
  %v1113 = vpop.f32.mrb[0].mxu0
  %v1114 = vpop.f32.mrb[0].mxu0
  %v1115 = vadd.f32 %v1018, %v1114
  %v1116 = vpop.f32.mrb[0].mxu0
  %1117 = vdwg.mxu0
  %1118 = vmatprep.subr.bf16.mxu0 0
  %1119 = vmatpush1.bf16.msra.mxu0 %v828
  %1120 = vmatprep.subr.bf16.mxu0 0
  %1121 = vmatpush1.bf16.msra.mxu0 %v829
  %1122 = vmatprep.subr.bf16.mxu0 0
  %1123 = vmatpush1.bf16.msra.mxu0 %v830
  %1124 = vmatprep.subr.bf16.mxu0 0
  %1125 = vmatpush1.bf16.msra.mxu0 %v831
  %1126 = vmatprep.subr.bf16.mxu0 0
  %1127 = vmatpush1.bf16.msra.mxu0 %v832
  %1128 = vmatprep.subr.bf16.mxu0 0
  %1129 = vmatpush1.bf16.msra.mxu0 %v833
  %1130 = vmatprep.subr.bf16.mxu0 0
  %1131 = vmatpush1.bf16.msra.mxu0 %v834
  %1132 = vmatprep.subr.bf16.mxu0 0
  %1133 = vmatpush1.bf16.msra.mxu0 %v835
  %1134 = vmatprep.subr.bf16.mxu0 0
  %1135 = vmatpush1.bf16.msra.mxu0 %v836
  %1136 = vmatprep.subr.bf16.mxu0 0
  %1137 = vmatpush1.bf16.msra.mxu0 %v837
  %1138 = vmatprep.subr.bf16.mxu0 0
  %1139 = vmatpush1.bf16.msra.mxu0 %v838
  %1140 = vmatprep.subr.bf16.mxu0 0
  %1141 = vmatpush1.bf16.msra.mxu0 %v839
  %1142 = vmatprep.subr.bf16.mxu0 0
  %1143 = vmatpush1.bf16.msra.mxu0 %v840
  %1144 = vmatprep.subr.bf16.mxu0 0
  %1145 = vmatpush1.bf16.msra.mxu0 %v841
  %1146 = vmatprep.subr.bf16.mxu0 0
  %1147 = vmatpush1.bf16.msra.mxu0 %v842
  %1148 = vmatprep.subr.bf16.mxu0 0
  %1149 = vmatpush1.bf16.msra.mxu0 %v843
  %1150 = vmatprep.mubr.bf16.mxu0 %v417
  %1151 = vmatmul.mubr.bf16.gmra.mrb[0].mxu0 %v416
  %v1152 = vpop.f32.mrb[0].mxu0
  %v1153 = vadd.f32 %v1056, %v1152
  %v1154 = vpop.f32.mrb[0].mxu0
  %v1155 = vpop.f32.mrb[0].mxu0
  %v1156 = vadd.f32 %v1059, %v1155
  %v1157 = vpop.f32.mrb[0].mxu0
  %1158 = vmatprep.mubr.bf16.mxu0 %v425
  %1159 = vmatmul.mubr.bf16.gmra.mrb[0].mxu0 %v424
  %v1160 = vpop.f32.mrb[0].mxu0
  %v1161 = vadd.f32 %v1064, %v1160
  %v1162 = vpop.f32.mrb[0].mxu0
  %v1163 = vpop.f32.mrb[0].mxu0
  %v1164 = vadd.f32 %v1067, %v1163
  %v1165 = vpop.f32.mrb[0].mxu0
  %1166 = vmatprep.mubr.bf16.mxu0 %v433
  %1167 = vmatmul.mubr.bf16.gmra.mrb[0].mxu0 %v432
  %v1168 = vpop.f32.mrb[0].mxu0
  %v1169 = vadd.f32 %v1072, %v1168
  %v1170 = vpop.f32.mrb[0].mxu0
  %v1171 = vpop.f32.mrb[0].mxu0
  %v1172 = vadd.f32 %v1075, %v1171
  %v1173 = vpop.f32.mrb[0].mxu0
  %1174 = vmatprep.mubr.bf16.mxu0 %v441
  %1175 = vmatmul.mubr.bf16.gmra.mrb[0].mxu0 %v440
  %v1176 = vpop.f32.mrb[0].mxu0
  %v1177 = vadd.f32 %v1080, %v1176
  %v1178 = vpop.f32.mrb[0].mxu0
  %v1179 = vpop.f32.mrb[0].mxu0
  %v1180 = vadd.f32 %v1083, %v1179
  %v1181 = vpop.f32.mrb[0].mxu0
  %1182 = vmatprep.mubr.bf16.mxu0 %v449
  %1183 = vmatmul.mubr.bf16.gmra.mrb[0].mxu0 %v448
  %v1184 = vpop.f32.mrb[0].mxu0
  %v1185 = vadd.f32 %v1088, %v1184
  %v1186 = vpop.f32.mrb[0].mxu0
  %v1187 = vpop.f32.mrb[0].mxu0
  %v1188 = vadd.f32 %v1091, %v1187
  %v1189 = vpop.f32.mrb[0].mxu0
  %1190 = vmatprep.mubr.bf16.mxu0 %v457
  %1191 = vmatmul.mubr.bf16.gmra.mrb[0].mxu0 %v456
  %v1192 = vpop.f32.mrb[0].mxu0
  %v1193 = vadd.f32 %v1096, %v1192
  %v1194 = vpop.f32.mrb[0].mxu0
  %v1195 = vpop.f32.mrb[0].mxu0
  %v1196 = vadd.f32 %v1099, %v1195
  %v1197 = vpop.f32.mrb[0].mxu0
  %1198 = vmatprep.mubr.bf16.mxu0 %v465
  %1199 = vmatmul.mubr.bf16.gmra.mrb[0].mxu0 %v464
  %v1200 = vpop.f32.mrb[0].mxu0
  %v1201 = vadd.f32 %v1104, %v1200
  %v1202 = vpop.f32.mrb[0].mxu0
  %v1203 = vpop.f32.mrb[0].mxu0
  %v1204 = vadd.f32 %v1107, %v1203
  %v1205 = vpop.f32.mrb[0].mxu0
  %1206 = vmatprep.mubr.bf16.mxu0 %v473
  %1207 = vmatmul.mubr.bf16.gmra.mrb[0].mxu0 %v472
  %v1208 = vpop.f32.mrb[0].mxu0
  %v1209 = vadd.f32 %v1112, %v1208
  %v1210 = vpop.f32.mrb[0].mxu0
  %v1211 = vpop.f32.mrb[0].mxu0
  %v1212 = vadd.f32 %v1115, %v1211
  %v1213 = vpop.f32.mrb[0].mxu0
  %1214 = vdwg.mxu0
  %1215 = vmatprep.subr.bf16.mxu0 0
  %1216 = vmatpush1.bf16.msra.mxu0 %v844
  %1217 = vmatprep.subr.bf16.mxu0 0
  %1218 = vmatpush1.bf16.msra.mxu0 %v845
  %1219 = vmatprep.subr.bf16.mxu0 0
  %1220 = vmatpush1.bf16.msra.mxu0 %v846
  %1221 = vmatprep.subr.bf16.mxu0 0
  %1222 = vmatpush1.bf16.msra.mxu0 %v847
  %1223 = vmatprep.subr.bf16.mxu0 0
  %1224 = vmatpush1.bf16.msra.mxu0 %v848
  %1225 = vmatprep.subr.bf16.mxu0 0
  %1226 = vmatpush1.bf16.msra.mxu0 %v849
  %1227 = vmatprep.subr.bf16.mxu0 0
  %1228 = vmatpush1.bf16.msra.mxu0 %v850
  %1229 = vmatprep.subr.bf16.mxu0 0
  %1230 = vmatpush1.bf16.msra.mxu0 %v851
  %1231 = vmatprep.subr.bf16.mxu0 0
  %1232 = vmatpush1.bf16.msra.mxu0 %v852
  %1233 = vmatprep.subr.bf16.mxu0 0
  %1234 = vmatpush1.bf16.msra.mxu0 %v853
  %1235 = vmatprep.subr.bf16.mxu0 0
  %1236 = vmatpush1.bf16.msra.mxu0 %v854
  %1237 = vmatprep.subr.bf16.mxu0 0
  %1238 = vmatpush1.bf16.msra.mxu0 %v855
  %1239 = vmatprep.subr.bf16.mxu0 0
  %1240 = vmatpush1.bf16.msra.mxu0 %v856
  %1241 = vmatprep.subr.bf16.mxu0 0
  %1242 = vmatpush1.bf16.msra.mxu0 %v857
  %1243 = vmatprep.subr.bf16.mxu0 0
  %1244 = vmatpush1.bf16.msra.mxu0 %v858
  %1245 = vmatprep.subr.bf16.mxu0 0
  %1246 = vmatpush1.bf16.msra.mxu0 %v859
  %1247 = vmatprep.mubr.bf16.mxu0 %v419
  %1248 = vmatmul.mubr.bf16.gmra.mrb[0].mxu0 %v418
  %v1249 = vpop.f32.mrb[0].mxu0
  %v1250 = vadd.f32 %v1153, %v1249
  %v1251 = vpop.f32.mrb[0].mxu0
  %v1252 = vpop.f32.mrb[0].mxu0
  %v1253 = vadd.f32 %v1156, %v1252
  %v1254 = vpop.f32.mrb[0].mxu0
  %1255 = vmatprep.mubr.bf16.mxu0 %v427
  %1256 = vmatmul.mubr.bf16.gmra.mrb[0].mxu0 %v426
  %v1257 = vpop.f32.mrb[0].mxu0
  %v1258 = vadd.f32 %v1161, %v1257
  %v1259 = vpop.f32.mrb[0].mxu0
  %v1260 = vpop.f32.mrb[0].mxu0
  %v1261 = vadd.f32 %v1164, %v1260
  %v1262 = vpop.f32.mrb[0].mxu0
  %1263 = vmatprep.mubr.bf16.mxu0 %v435
  %1264 = vmatmul.mubr.bf16.gmra.mrb[0].mxu0 %v434
  %v1265 = vpop.f32.mrb[0].mxu0
  %v1266 = vadd.f32 %v1169, %v1265
  %v1267 = vpop.f32.mrb[0].mxu0
  %v1268 = vpop.f32.mrb[0].mxu0
  %v1269 = vadd.f32 %v1172, %v1268
  %v1270 = vpop.f32.mrb[0].mxu0
  %1271 = vmatprep.mubr.bf16.mxu0 %v443
  %1272 = vmatmul.mubr.bf16.gmra.mrb[0].mxu0 %v442
  %v1273 = vpop.f32.mrb[0].mxu0
  %v1274 = vadd.f32 %v1177, %v1273
  %v1275 = vpop.f32.mrb[0].mxu0
  %v1276 = vpop.f32.mrb[0].mxu0
  %v1277 = vadd.f32 %v1180, %v1276
  %v1278 = vpop.f32.mrb[0].mxu0
  %1279 = vmatprep.mubr.bf16.mxu0 %v451
  %1280 = vmatmul.mubr.bf16.gmra.mrb[0].mxu0 %v450
  %v1281 = vpop.f32.mrb[0].mxu0
  %v1282 = vadd.f32 %v1185, %v1281
  %v1283 = vpop.f32.mrb[0].mxu0
  %v1284 = vpop.f32.mrb[0].mxu0
  %v1285 = vadd.f32 %v1188, %v1284
  %v1286 = vpop.f32.mrb[0].mxu0
  %1287 = vmatprep.mubr.bf16.mxu0 %v459
  %1288 = vmatmul.mubr.bf16.gmra.mrb[0].mxu0 %v458
  %v1289 = vpop.f32.mrb[0].mxu0
  %v1290 = vadd.f32 %v1193, %v1289
  %v1291 = vpop.f32.mrb[0].mxu0
  %v1292 = vpop.f32.mrb[0].mxu0
  %v1293 = vadd.f32 %v1196, %v1292
  %v1294 = vpop.f32.mrb[0].mxu0
  %1295 = vmatprep.mubr.bf16.mxu0 %v467
  %1296 = vmatmul.mubr.bf16.gmra.mrb[0].mxu0 %v466
  %v1297 = vpop.f32.mrb[0].mxu0
  %v1298 = vadd.f32 %v1201, %v1297
  %v1299 = vpop.f32.mrb[0].mxu0
  %v1300 = vpop.f32.mrb[0].mxu0
  %v1301 = vadd.f32 %v1204, %v1300
  %v1302 = vpop.f32.mrb[0].mxu0
  %1303 = vmatprep.mubr.bf16.mxu0 %v475
  %1304 = vmatmul.mubr.bf16.gmra.mrb[0].mxu0 %v474
  %v1305 = vpop.f32.mrb[0].mxu0
  %v1306 = vadd.f32 %v1209, %v1305
  %v1307 = vpop.f32.mrb[0].mxu0
  %v1308 = vpop.f32.mrb[0].mxu0
  %v1309 = vadd.f32 %v1212, %v1308
  %v1310 = vpop.f32.mrb[0].mxu0
  %1311 = vdwg.mxu0
  %v1312 = vld [vmem:[%s3] sm:$0x1]
  %v1313 = vld [vmem:[%s4] sm:$0x1]
  %vm1314 = vcmask 523264
  %v1315 = vsel %vm1314, %v1250, 0.0
  %v1316 = vsel %vm1314, %v1253, 0.0
  %v1317 = vadd.f32 %v1315, %v1316
  %v1318 = vsel %vm1314, %v1258, 0.0
  %v1319 = vadd.f32 %v1317, %v1318
  %v1320 = vsel %vm1314, %v1261, 0.0
  %v1321 = vadd.f32 %v1319, %v1320
  %v1322 = vsel %vm1314, %v1266, 0.0
  %v1323 = vadd.f32 %v1321, %v1322
  %v1324 = vsel %vm1314, %v1269, 0.0
  %v1325 = vadd.f32 %v1323, %v1324
  %v1326 = vsel %vm1314, %v1274, 0.0
  %v1327 = vadd.f32 %v1325, %v1326
  %v1328 = vsel %vm1314, %v1277, 0.0
  %v1329 = vadd.f32 %v1327, %v1328
  %v1330 = vsel %vm1314, %v1282, 0.0
  %v1331 = vadd.f32 %v1329, %v1330
  %v1332 = vsel %vm1314, %v1285, 0.0
  %v1333 = vadd.f32 %v1331, %v1332
  %v1334 = vsel %vm1314, %v1290, 0.0
  %v1335 = vadd.f32 %v1333, %v1334
  %v1336 = vsel %vm1314, %v1293, 0.0
  %v1337 = vadd.f32 %v1335, %v1336
  %v1338 = vsel %vm1314, %v1298, 0.0
  %v1339 = vadd.f32 %v1337, %v1338
  %v1340 = vsel %vm1314, %v1301, 0.0
  %v1341 = vadd.f32 %v1339, %v1340
  %v1342 = vsel %vm1314, %v1306, 0.0
  %v1343 = vadd.f32 %v1341, %v1342
  %v1344 = vsel %vm1314, %v1309, 0.0
  %v1345 = vadd.f32 %v1343, %v1344
  %v1346 = vrot.slane %v1345, 4
  %v1347 = vadd.f32 %v1345, %v1346
  %v1348 = vrot.slane %v1347, 2
  %v1349 = vadd.f32 %v1347, %v1348
  %v1350 = vrot.slane %v1349, 1
  %v1351 = vadd.f32 %v1349, %v1350
  %v1352 = vmul.f32 %v1250, %v1250
  %v1353 = vmul.f32 %v1253, %v1253
  %v1354 = vmul.f32 %v1258, %v1258
  %v1355 = vmul.f32 %v1261, %v1261
  %v1356 = vmul.f32 %v1266, %v1266
  %v1357 = vmul.f32 %v1269, %v1269
  %v1358 = vmul.f32 %v1274, %v1274
  %v1359 = vmul.f32 %v1277, %v1277
  %v1360 = vmul.f32 %v1282, %v1282
  %v1361 = vmul.f32 %v1285, %v1285
  %v1362 = vmul.f32 %v1290, %v1290
  %v1363 = vmul.f32 %v1293, %v1293
  %v1364 = vmul.f32 %v1298, %v1298
  %v1365 = vmul.f32 %v1301, %v1301
  %v1366 = vmul.f32 %v1306, %v1306
  %v1367 = vmul.f32 %v1309, %v1309
  %v1368 = vsel %vm1314, %v1352, 0.0
  %v1369 = vsel %vm1314, %v1353, 0.0
  %v1370 = vadd.f32 %v1368, %v1369
  %v1371 = vsel %vm1314, %v1354, 0.0
  %v1372 = vadd.f32 %v1370, %v1371
  %v1373 = vsel %vm1314, %v1355, 0.0
  %v1374 = vadd.f32 %v1372, %v1373
  %v1375 = vsel %vm1314, %v1356, 0.0
  %v1376 = vadd.f32 %v1374, %v1375
  %v1377 = vsel %vm1314, %v1357, 0.0
  %v1378 = vadd.f32 %v1376, %v1377
  %v1379 = vsel %vm1314, %v1358, 0.0
  %v1380 = vadd.f32 %v1378, %v1379
  %v1381 = vsel %vm1314, %v1359, 0.0
  %v1382 = vadd.f32 %v1380, %v1381
  %v1383 = vsel %vm1314, %v1360, 0.0
  %v1384 = vadd.f32 %v1382, %v1383
  %v1385 = vsel %vm1314, %v1361, 0.0
  %v1386 = vadd.f32 %v1384, %v1385
  %v1387 = vsel %vm1314, %v1362, 0.0
  %v1388 = vadd.f32 %v1386, %v1387
  %v1389 = vsel %vm1314, %v1363, 0.0
  %v1390 = vadd.f32 %v1388, %v1389
  %v1391 = vsel %vm1314, %v1364, 0.0
  %v1392 = vadd.f32 %v1390, %v1391
  %v1393 = vsel %vm1314, %v1365, 0.0
  %v1394 = vadd.f32 %v1392, %v1393
  %v1395 = vsel %vm1314, %v1366, 0.0
  %v1396 = vadd.f32 %v1394, %v1395
  %v1397 = vsel %vm1314, %v1367, 0.0
  %v1398 = vadd.f32 %v1396, %v1397
  %v1399 = vrot.slane %v1398, 4
  %v1400 = vadd.f32 %v1398, %v1399
  %v1401 = vrot.slane %v1400, 2
  %v1402 = vadd.f32 %v1400, %v1401
  %v1403 = vrot.slane %v1402, 1
  %v1404 = vadd.f32 %v1402, %v1403
  %v1405 = vmul.f32 %v1351, 0.0078125
  %v1406 = vmul.f32 %v1404, 0.0078125
  %v1407 = vmul.f32 %v1405, %v1405
  %v1408 = vsub.f32 %v1406, %v1407
  %v1409 = vmax.f32 %v1408, 0.0
  %v1410 = vadd.f32 %v1409, 1e-05
  %v1411 = vrsqrt.pop %v1410
  %v1412 = vmul.f32 %v1312, %v1411
  %v1413 = vmul.f32 %v1405, %v1412
  %v1414 = vsub.f32 %v1313, %v1413
  %v1416 = vlaneseq
  %v1417 = vshrl.u32 %v1416, 7
  %v1418 = vsub.s32 0, %v1417
  %v1419 = vrot.slane %v1412, %v1418
  %v1421 = vmul.f32 %v1250, %v1419
  %v1422 = vmul.f32 %v1253, %v1419
  %v1423 = vmul.f32 %v1258, %v1419
  %v1424 = vmul.f32 %v1261, %v1419
  %v1425 = vmul.f32 %v1266, %v1419
  %v1426 = vmul.f32 %v1269, %v1419
  %v1427 = vmul.f32 %v1274, %v1419
  %v1428 = vmul.f32 %v1277, %v1419
  %v1429 = vmul.f32 %v1282, %v1419
  %v1430 = vmul.f32 %v1285, %v1419
  %v1431 = vmul.f32 %v1290, %v1419
  %v1432 = vmul.f32 %v1293, %v1419
  %v1433 = vmul.f32 %v1298, %v1419
  %v1434 = vmul.f32 %v1301, %v1419
  %v1435 = vmul.f32 %v1306, %v1419
  %v1436 = vmul.f32 %v1309, %v1419
  %v1438 = vlaneseq
  %v1439 = vshrl.u32 %v1438, 7
  %v1440 = vsub.s32 0, %v1439
  %v1441 = vrot.slane %v1414, %v1440
  %v1443 = vadd.f32 %v1421, %v1441
  %v1444 = vadd.f32 %v1422, %v1441
  %v1445 = vadd.f32 %v1423, %v1441
  %v1446 = vadd.f32 %v1424, %v1441
  %v1447 = vadd.f32 %v1425, %v1441
  %v1448 = vadd.f32 %v1426, %v1441
  %v1449 = vadd.f32 %v1427, %v1441
  %v1450 = vadd.f32 %v1428, %v1441
  %v1451 = vadd.f32 %v1429, %v1441
  %v1452 = vadd.f32 %v1430, %v1441
  %v1453 = vadd.f32 %v1431, %v1441
  %v1454 = vadd.f32 %v1432, %v1441
  %v1455 = vadd.f32 %v1433, %v1441
  %v1456 = vadd.f32 %v1434, %v1441
  %v1457 = vadd.f32 %v1435, %v1441
  %v1458 = vadd.f32 %v1436, %v1441
  %vm1459 = vcmp.ge.f32.partialorder %v1443, 0.0
  %vm1460 = vcmp.ge.f32.partialorder %v1444, 0.0
  %vm1461 = vcmp.ge.f32.partialorder %v1445, 0.0
  %vm1462 = vcmp.ge.f32.partialorder %v1446, 0.0
  %vm1463 = vcmp.ge.f32.partialorder %v1447, 0.0
  %vm1464 = vcmp.ge.f32.partialorder %v1448, 0.0
  %vm1465 = vcmp.ge.f32.partialorder %v1449, 0.0
  %vm1466 = vcmp.ge.f32.partialorder %v1450, 0.0
  %vm1467 = vcmp.ge.f32.partialorder %v1451, 0.0
  %vm1468 = vcmp.ge.f32.partialorder %v1452, 0.0
  %vm1469 = vcmp.ge.f32.partialorder %v1453, 0.0
  %vm1470 = vcmp.ge.f32.partialorder %v1454, 0.0
  %vm1471 = vcmp.ge.f32.partialorder %v1455, 0.0
  %vm1472 = vcmp.ge.f32.partialorder %v1456, 0.0
  %vm1473 = vcmp.ge.f32.partialorder %v1457, 0.0
  %vm1474 = vcmp.ge.f32.partialorder %v1458, 0.0
  %v1475 = vmul.f32 %v1443, 0.2
  %v1476 = vmul.f32 %v1444, 0.2
  %v1477 = vmul.f32 %v1445, 0.2
  %v1478 = vmul.f32 %v1446, 0.2
  %v1479 = vmul.f32 %v1447, 0.2
  %v1480 = vmul.f32 %v1448, 0.2
  %v1481 = vmul.f32 %v1449, 0.2
  %v1482 = vmul.f32 %v1450, 0.2
  %v1483 = vmul.f32 %v1451, 0.2
  %v1484 = vmul.f32 %v1452, 0.2
  %v1485 = vmul.f32 %v1453, 0.2
  %v1486 = vmul.f32 %v1454, 0.2
  %v1487 = vmul.f32 %v1455, 0.2
  %v1488 = vmul.f32 %v1456, 0.2
  %v1489 = vmul.f32 %v1457, 0.2
  %v1490 = vmul.f32 %v1458, 0.2
  %v1491 = vsel %vm1459, %v1443, %v1475
  %v1492 = vsel %vm1460, %v1444, %v1476
  %v1493 = vsel %vm1461, %v1445, %v1477
  %v1494 = vsel %vm1462, %v1446, %v1478
  %v1495 = vsel %vm1463, %v1447, %v1479
  %v1496 = vsel %vm1464, %v1448, %v1480
  %v1497 = vsel %vm1465, %v1449, %v1481
  %v1498 = vsel %vm1466, %v1450, %v1482
  %v1499 = vsel %vm1467, %v1451, %v1483
  %v1500 = vsel %vm1468, %v1452, %v1484
  %v1501 = vsel %vm1469, %v1453, %v1485
  %v1502 = vsel %vm1470, %v1454, %v1486
  %v1503 = vsel %vm1471, %v1455, %v1487
  %v1504 = vsel %vm1472, %v1456, %v1488
  %v1505 = vsel %vm1473, %v1457, %v1489
  %v1506 = vsel %vm1474, %v1458, %v1490
  %v1507 = vpack.c.bf16 %v1492, %v1491
  %v1508 = vpack.c.bf16 %v1494, %v1493
  %v1509 = vpack.c.bf16 %v1496, %v1495
  %v1510 = vpack.c.bf16 %v1498, %v1497
  %v1511 = vpack.c.bf16 %v1500, %v1499
  %v1512 = vpack.c.bf16 %v1502, %v1501
  %v1513 = vpack.c.bf16 %v1504, %v1503
  %v1514 = vpack.c.bf16 %v1506, %v1505
  %v1523 = vunpack.c.l.b16 %v1507
  %v1524 = vunpack.c.h.b16 %v1507
  %v1525 = vunpack.c.l.b16 %v1508
  %v1526 = vunpack.c.h.b16 %v1508
  %v1527 = vunpack.c.l.b16 %v1509
  %v1528 = vunpack.c.h.b16 %v1509
  %v1529 = vunpack.c.l.b16 %v1510
  %v1530 = vunpack.c.h.b16 %v1510
  %v1531 = vunpack.c.l.b16 %v1511
  %v1532 = vunpack.c.h.b16 %v1511
  %v1533 = vunpack.c.l.b16 %v1512
  %v1534 = vunpack.c.h.b16 %v1512
  %v1535 = vunpack.c.l.b16 %v1513
  %v1536 = vunpack.c.h.b16 %v1513
  %v1537 = vunpack.c.l.b16 %v1514
  %v1538 = vunpack.c.h.b16 %v1514
  %v1539 = vpack.c.b16 %v1523, %v1523
  %v1540 = vpack.c.b16 %v1524, %v1524
  %v1541 = vpack.c.b16 %v1525, %v1525
  %v1542 = vpack.c.b16 %v1526, %v1526
  %v1543 = vpack.c.b16 %v1527, %v1527
  %v1544 = vpack.c.b16 %v1528, %v1528
  %v1545 = vpack.c.b16 %v1529, %v1529
  %v1546 = vpack.c.b16 %v1530, %v1530
  %v1547 = vpack.c.b16 %v1531, %v1531
  %v1548 = vpack.c.b16 %v1532, %v1532
  %v1549 = vpack.c.b16 %v1533, %v1533
  %v1550 = vpack.c.b16 %v1534, %v1534
  %v1551 = vpack.c.b16 %v1535, %v1535
  %v1552 = vpack.c.b16 %v1536, %v1536
  %v1553 = vpack.c.b16 %v1537, %v1537
  %v1554 = vpack.c.b16 %v1538, %v1538
  %vm1571 = vcmask 519168
  %1572 = vst.msk [vmem:[%s5] sm:$0xf] %vm1571, %v1539
  %1573 = vst.msk [vmem:[%s5 + $0x4] sm:$0xf] %vm1571, %v1540
  %1574 = vst.msk [vmem:[%s5 + $0x8] sm:$0xf] %vm1571, %v1541
  %1575 = vst.msk [vmem:[%s5 + $0xc] sm:$0xf] %vm1571, %v1542
  %1576 = vst.msk [vmem:[%s5 + $0x10] sm:$0xf] %vm1571, %v1543
  %1577 = vst.msk [vmem:[%s5 + $0x14] sm:$0xf] %vm1571, %v1544
  %1578 = vst.msk [vmem:[%s5 + $0x18] sm:$0xf] %vm1571, %v1545
  %1579 = vst.msk [vmem:[%s5 + $0x1c] sm:$0xf] %vm1571, %v1546
  %1580 = vst.msk [vmem:[%s5 + $0x20] sm:$0xf] %vm1571, %v1547
  %1581 = vst.msk [vmem:[%s5 + $0x24] sm:$0xf] %vm1571, %v1548
  %1582 = vst.msk [vmem:[%s5 + $0x28] sm:$0xf] %vm1571, %v1549
  %1583 = vst.msk [vmem:[%s5 + $0x2c] sm:$0xf] %vm1571, %v1550
  %1584 = vst.msk [vmem:[%s5 + $0x30] sm:$0xf] %vm1571, %v1551
  %1585 = vst.msk [vmem:[%s5 + $0x34] sm:$0xf] %vm1571, %v1552
  %1586 = vst.msk [vmem:[%s5 + $0x38] sm:$0xf] %vm1571, %v1553
  %1587 = vst.msk [vmem:[%s5 + $0x3c] sm:$0xf] %vm1571, %v1554
  // Predicated region
  $region22: #{discriminator_forward.6} parent=0 // pred_check
    _
  $region23: #{discriminator_forward.6} parent=0 // pred_check_branch
    %1589 = sbr.rel (0) target = $region25
  $region24: #{discriminator_forward.6} parent=0 // pred_region
    _
  $region25: #{discriminator_forward.6} parent=0 // pred_fallthru
    _
  // Predicated region
  $region26: #{discriminator_forward.6} parent=0 // pred_check
    _
  $region27: #{discriminator_forward.6} parent=0 // pred_check_branch
    %1591 = sbr.rel (0) target = $region29
  $region28: #{discriminator_forward.6} parent=0 // pred_region
    _
  $region29: #{discriminator_forward.6} parent=0 // pred_fallthru
    _

// kernel: discriminator_forward.7
$region0: #{discriminator_forward.7}
  #allocation0 [shape = 'u32[]', space=smem, size = 0x4, offset = 0x4, fixed_abs, tag = 'smem constant byte address 0x4 - core index']
  #allocation1 [shape = 'u32[144,128]{1,0:T(1,128)}', space=vmem, size = 0x12000, scoped, tag = 'internal scratch']
  %s0 = inlined_call_operand.vmem [shape: bf16[32,1024], index: 0, kind: input, shape index: {}]
  %s1 = inlined_call_operand.vmem [shape: bf16[1024,128], index: 1, kind: input, shape index: {}]
  %s2 = inlined_call_operand.vmem [shape: f32[1,128], index: 2, kind: input, shape index: {}]
  %s3 = inlined_call_operand.vmem [shape: f32[1,128], index: 3, kind: input, shape index: {}]
  %s4 = inlined_call_operand.vmem [shape: f32[1,128], index: 4, kind: input, shape index: {}]
  %s5 = inlined_call_operand.vmem [shape: bf16[32,128], index: 5, kind: output, shape index: {}]
  %s6 = sld [smem:[#allocation0]]
  $region30: #{discriminator_forward.7} parent=0
    _
  %s8 = ssub.s32 1, %s6
  %s9 = scalar_select 0, %s8, %s6
  // Predicated region
  $region2: #{discriminator_forward.7} parent=0 // pred_check
    _
  $region3: #{discriminator_forward.7} parent=0 // pred_check_branch
    %11 = sbr.rel (0) target = $region5
  $region4: #{discriminator_forward.7} parent=0 // pred_region
    _
  $region5: #{discriminator_forward.7} parent=0 // pred_fallthru
    _
  // Predicated region
  $region6: #{discriminator_forward.7} parent=0 // pred_check
    _
  $region7: #{discriminator_forward.7} parent=0 // pred_check_branch
    %13 = sbr.rel (0) target = $region9
  $region8: #{discriminator_forward.7} parent=0 // pred_region
    _
  $region9: #{discriminator_forward.7} parent=0 // pred_fallthru
    _
  // Predicated region
  $region10: #{discriminator_forward.7} parent=0 // pred_check
    _
  $region11: #{discriminator_forward.7} parent=0 // pred_check_branch
    %15 = sbr.rel (0) target = $region13
  $region12: #{discriminator_forward.7} parent=0 // pred_region
    _
  $region13: #{discriminator_forward.7} parent=0 // pred_fallthru
    _
  // Predicated region
  $region14: #{discriminator_forward.7} parent=0 // pred_check
    _
  $region15: #{discriminator_forward.7} parent=0 // pred_check_branch
    %17 = sbr.rel (0) target = $region17
  $region16: #{discriminator_forward.7} parent=0 // pred_region
    _
  $region17: #{discriminator_forward.7} parent=0 // pred_fallthru
    _
  // Predicated region
  $region18: #{discriminator_forward.7} parent=0 // pred_check
    _
  $region19: #{discriminator_forward.7} parent=0 // pred_check_branch
    %19 = sbr.rel (0) target = $region21
  $region20: #{discriminator_forward.7} parent=0 // pred_region
    _
  $region21: #{discriminator_forward.7} parent=0 // pred_fallthru
    _
  %v21 = vld [vmem:[%s0] sm:$0xff]
  %v22 = vld [vmem:[%s0 + $0x8] sm:$0xff]
  %v23 = vld [vmem:[%s0 + $0x10] sm:$0xff]
  %v24 = vld [vmem:[%s0 + $0x18] sm:$0xff]
  %v25 = vld [vmem:[%s0 + $0x20] sm:$0xff]
  %v26 = vld [vmem:[%s0 + $0x28] sm:$0xff]
  %v27 = vld [vmem:[%s0 + $0x30] sm:$0xff]
  %v28 = vld [vmem:[%s0 + $0x38] sm:$0xff]
  %v29 = vld [vmem:[%s0 + $0x40] sm:$0xff]
  %v30 = vld [vmem:[%s0 + $0x48] sm:$0xff]
  %v31 = vld [vmem:[%s0 + $0x50] sm:$0xff]
  %v32 = vld [vmem:[%s0 + $0x58] sm:$0xff]
  %v33 = vld [vmem:[%s0 + $0x60] sm:$0xff]
  %v34 = vld [vmem:[%s0 + $0x68] sm:$0xff]
  %v35 = vld [vmem:[%s0 + $0x70] sm:$0xff]
  %v36 = vld [vmem:[%s0 + $0x78] sm:$0xff]
  %v37 = vld [vmem:[%s1] sm:$0xf]
  %v38 = vld [vmem:[%s1 + $0x4] sm:$0xf]
  %v39 = vld [vmem:[%s1 + $0x8] sm:$0xf]
  %v40 = vld [vmem:[%s1 + $0xc] sm:$0xf]
  %v41 = vld [vmem:[%s1 + $0x10] sm:$0xf]
  %v42 = vld [vmem:[%s1 + $0x14] sm:$0xf]
  %v43 = vld [vmem:[%s1 + $0x18] sm:$0xf]
  %v44 = vld [vmem:[%s1 + $0x1c] sm:$0xf]
  %v45 = vld [vmem:[%s1 + $0x20] sm:$0xf]
  %v46 = vld [vmem:[%s1 + $0x24] sm:$0xf]
  %v47 = vld [vmem:[%s1 + $0x28] sm:$0xf]
  %v48 = vld [vmem:[%s1 + $0x2c] sm:$0xf]
  %v49 = vld [vmem:[%s1 + $0x30] sm:$0xf]
  %v50 = vld [vmem:[%s1 + $0x34] sm:$0xf]
  %v51 = vld [vmem:[%s1 + $0x38] sm:$0xf]
  %v52 = vld [vmem:[%s1 + $0x3c] sm:$0xf]
  %v53 = vld [vmem:[%s1 + $0x40] sm:$0xf]
  %v54 = vld [vmem:[%s1 + $0x44] sm:$0xf]
  %v55 = vld [vmem:[%s1 + $0x48] sm:$0xf]
  %v56 = vld [vmem:[%s1 + $0x4c] sm:$0xf]
  %v57 = vld [vmem:[%s1 + $0x50] sm:$0xf]
  %v58 = vld [vmem:[%s1 + $0x54] sm:$0xf]
  %v59 = vld [vmem:[%s1 + $0x58] sm:$0xf]
  %v60 = vld [vmem:[%s1 + $0x5c] sm:$0xf]
  %v61 = vld [vmem:[%s1 + $0x60] sm:$0xf]
  %v62 = vld [vmem:[%s1 + $0x64] sm:$0xf]
  %v63 = vld [vmem:[%s1 + $0x68] sm:$0xf]
  %v64 = vld [vmem:[%s1 + $0x6c] sm:$0xf]
  %v65 = vld [vmem:[%s1 + $0x70] sm:$0xf]
  %v66 = vld [vmem:[%s1 + $0x74] sm:$0xf]
  %v67 = vld [vmem:[%s1 + $0x78] sm:$0xf]
  %v68 = vld [vmem:[%s1 + $0x7c] sm:$0xf]
  %v69 = vld [vmem:[%s1 + $0x80] sm:$0xf]
  %v70 = vld [vmem:[%s1 + $0x84] sm:$0xf]
  %v71 = vld [vmem:[%s1 + $0x88] sm:$0xf]
  %v72 = vld [vmem:[%s1 + $0x8c] sm:$0xf]
  %v73 = vld [vmem:[%s1 + $0x90] sm:$0xf]
  %v74 = vld [vmem:[%s1 + $0x94] sm:$0xf]
  %v75 = vld [vmem:[%s1 + $0x98] sm:$0xf]
  %v76 = vld [vmem:[%s1 + $0x9c] sm:$0xf]
  %v77 = vld [vmem:[%s1 + $0xa0] sm:$0xf]
  %v78 = vld [vmem:[%s1 + $0xa4] sm:$0xf]
  %v79 = vld [vmem:[%s1 + $0xa8] sm:$0xf]
  %v80 = vld [vmem:[%s1 + $0xac] sm:$0xf]
  %v81 = vld [vmem:[%s1 + $0xb0] sm:$0xf]
  %v82 = vld [vmem:[%s1 + $0xb4] sm:$0xf]
  %v83 = vld [vmem:[%s1 + $0xb8] sm:$0xf]
  %v84 = vld [vmem:[%s1 + $0xbc] sm:$0xf]
  %v85 = vld [vmem:[%s1 + $0xc0] sm:$0xf]
  %v86 = vld [vmem:[%s1 + $0xc4] sm:$0xf]
  %v87 = vld [vmem:[%s1 + $0xc8] sm:$0xf]
  %v88 = vld [vmem:[%s1 + $0xcc] sm:$0xf]
  %v89 = vld [vmem:[%s1 + $0xd0] sm:$0xf]
  %v90 = vld [vmem:[%s1 + $0xd4] sm:$0xf]
  %v91 = vld [vmem:[%s1 + $0xd8] sm:$0xf]
  %v92 = vld [vmem:[%s1 + $0xdc] sm:$0xf]
  %v93 = vld [vmem:[%s1 + $0xe0] sm:$0xf]
  %v94 = vld [vmem:[%s1 + $0xe4] sm:$0xf]
  %v95 = vld [vmem:[%s1 + $0xe8] sm:$0xf]
  %v96 = vld [vmem:[%s1 + $0xec] sm:$0xf]
  %v97 = vld [vmem:[%s1 + $0xf0] sm:$0xf]
  %v98 = vld [vmem:[%s1 + $0xf4] sm:$0xf]
  %v99 = vld [vmem:[%s1 + $0xf8] sm:$0xf]
  %v100 = vld [vmem:[%s1 + $0xfc] sm:$0xf]
  %v101 = vld [vmem:[%s1 + $0x100] sm:$0xf]
  %v102 = vld [vmem:[%s1 + $0x104] sm:$0xf]
  %v103 = vld [vmem:[%s1 + $0x108] sm:$0xf]
  %v104 = vld [vmem:[%s1 + $0x10c] sm:$0xf]
  %v105 = vld [vmem:[%s1 + $0x110] sm:$0xf]
  %v106 = vld [vmem:[%s1 + $0x114] sm:$0xf]
  %v107 = vld [vmem:[%s1 + $0x118] sm:$0xf]
  %v108 = vld [vmem:[%s1 + $0x11c] sm:$0xf]
  %v109 = vld [vmem:[%s1 + $0x120] sm:$0xf]
  %v110 = vld [vmem:[%s1 + $0x124] sm:$0xf]
  %v111 = vld [vmem:[%s1 + $0x128] sm:$0xf]
  %v112 = vld [vmem:[%s1 + $0x12c] sm:$0xf]
  %v113 = vld [vmem:[%s1 + $0x130] sm:$0xf]
  %v114 = vld [vmem:[%s1 + $0x134] sm:$0xf]
  %v115 = vld [vmem:[%s1 + $0x138] sm:$0xf]
  %v116 = vld [vmem:[%s1 + $0x13c] sm:$0xf]
  %v117 = vld [vmem:[%s1 + $0x140] sm:$0xf]
  %v118 = vld [vmem:[%s1 + $0x144] sm:$0xf]
  %v119 = vld [vmem:[%s1 + $0x148] sm:$0xf]
  %v120 = vld [vmem:[%s1 + $0x14c] sm:$0xf]
  %v121 = vld [vmem:[%s1 + $0x150] sm:$0xf]
  %v122 = vld [vmem:[%s1 + $0x154] sm:$0xf]
  %v123 = vld [vmem:[%s1 + $0x158] sm:$0xf]
  %v124 = vld [vmem:[%s1 + $0x15c] sm:$0xf]
  %v125 = vld [vmem:[%s1 + $0x160] sm:$0xf]
  %v126 = vld [vmem:[%s1 + $0x164] sm:$0xf]
  %v127 = vld [vmem:[%s1 + $0x168] sm:$0xf]
  %v128 = vld [vmem:[%s1 + $0x16c] sm:$0xf]
  %v129 = vld [vmem:[%s1 + $0x170] sm:$0xf]
  %v130 = vld [vmem:[%s1 + $0x174] sm:$0xf]
  %v131 = vld [vmem:[%s1 + $0x178] sm:$0xf]
  %v132 = vld [vmem:[%s1 + $0x17c] sm:$0xf]
  %v133 = vld [vmem:[%s1 + $0x180] sm:$0xf]
  %v134 = vld [vmem:[%s1 + $0x184] sm:$0xf]
  %v135 = vld [vmem:[%s1 + $0x188] sm:$0xf]
  %v136 = vld [vmem:[%s1 + $0x18c] sm:$0xf]
  %v137 = vld [vmem:[%s1 + $0x190] sm:$0xf]
  %v138 = vld [vmem:[%s1 + $0x194] sm:$0xf]
  %v139 = vld [vmem:[%s1 + $0x198] sm:$0xf]
  %v140 = vld [vmem:[%s1 + $0x19c] sm:$0xf]
  %v141 = vld [vmem:[%s1 + $0x1a0] sm:$0xf]
  %v142 = vld [vmem:[%s1 + $0x1a4] sm:$0xf]
  %v143 = vld [vmem:[%s1 + $0x1a8] sm:$0xf]
  %v144 = vld [vmem:[%s1 + $0x1ac] sm:$0xf]
  %v145 = vld [vmem:[%s1 + $0x1b0] sm:$0xf]
  %v146 = vld [vmem:[%s1 + $0x1b4] sm:$0xf]
  %v147 = vld [vmem:[%s1 + $0x1b8] sm:$0xf]
  %v148 = vld [vmem:[%s1 + $0x1bc] sm:$0xf]
  %v149 = vld [vmem:[%s1 + $0x1c0] sm:$0xf]
  %v150 = vld [vmem:[%s1 + $0x1c4] sm:$0xf]
  %v151 = vld [vmem:[%s1 + $0x1c8] sm:$0xf]
  %v152 = vld [vmem:[%s1 + $0x1cc] sm:$0xf]
  %v153 = vld [vmem:[%s1 + $0x1d0] sm:$0xf]
  %v154 = vld [vmem:[%s1 + $0x1d4] sm:$0xf]
  %v155 = vld [vmem:[%s1 + $0x1d8] sm:$0xf]
  %v156 = vld [vmem:[%s1 + $0x1dc] sm:$0xf]
  %v157 = vld [vmem:[%s1 + $0x1e0] sm:$0xf]
  %v158 = vld [vmem:[%s1 + $0x1e4] sm:$0xf]
  %v159 = vld [vmem:[%s1 + $0x1e8] sm:$0xf]
  %v160 = vld [vmem:[%s1 + $0x1ec] sm:$0xf]
  %v161 = vld [vmem:[%s1 + $0x1f0] sm:$0xf]
  %v162 = vld [vmem:[%s1 + $0x1f4] sm:$0xf]
  %v163 = vld [vmem:[%s1 + $0x1f8] sm:$0xf]
  %v164 = vld [vmem:[%s1 + $0x1fc] sm:$0xf]
  %v165 = vld [vmem:[%s2] sm:$0x1]
  %v167 = vlaneseq
  %v168 = vshrl.u32 %v167, 7
  %v169 = vsub.s32 0, %v168
  %v170 = vrot.slane %v165, %v169
  %v188 = vunpack.c.l.b16 %v21
  %v189 = vunpack.c.h.b16 %v21
  %v190 = vunpack.c.l.b16 %v22
  %v191 = vunpack.c.h.b16 %v22
  %v192 = vunpack.c.l.b16 %v23
  %v193 = vunpack.c.h.b16 %v23
  %v194 = vunpack.c.l.b16 %v24
  %v195 = vunpack.c.h.b16 %v24
  %v196 = vunpack.c.l.b16 %v25
  %v197 = vunpack.c.h.b16 %v25
  %v198 = vunpack.c.l.b16 %v26
  %v199 = vunpack.c.h.b16 %v26
  %v200 = vunpack.c.l.b16 %v27
  %v201 = vunpack.c.h.b16 %v27
  %v202 = vunpack.c.l.b16 %v28
  %v203 = vunpack.c.h.b16 %v28
  %v204 = vunpack.c.l.b16 %v29
  %v205 = vunpack.c.h.b16 %v29
  %v206 = vunpack.c.l.b16 %v30
  %v207 = vunpack.c.h.b16 %v30
  %v208 = vunpack.c.l.b16 %v31
  %v209 = vunpack.c.h.b16 %v31
  %v210 = vunpack.c.l.b16 %v32
  %v211 = vunpack.c.h.b16 %v32
  %v212 = vunpack.c.l.b16 %v33
  %v213 = vunpack.c.h.b16 %v33
  %v214 = vunpack.c.l.b16 %v34
  %v215 = vunpack.c.h.b16 %v34
  %v216 = vunpack.c.l.b16 %v35
  %v217 = vunpack.c.h.b16 %v35
  %v218 = vunpack.c.l.b16 %v36
  %v219 = vunpack.c.h.b16 %v36
  %v220 = vpack.c.b16 %v196, %v188
  %v221 = vpack.c.b16 %v197, %v189
  %v222 = vpack.c.b16 %v198, %v190
  %v223 = vpack.c.b16 %v199, %v191
  %v224 = vpack.c.b16 %v200, %v192
  %v225 = vpack.c.b16 %v201, %v193
  %v226 = vpack.c.b16 %v202, %v194
  %v227 = vpack.c.b16 %v203, %v195
  %v228 = vpack.c.b16 %v212, %v204
  %v229 = vpack.c.b16 %v213, %v205
  %v230 = vpack.c.b16 %v214, %v206
  %v231 = vpack.c.b16 %v215, %v207
  %v232 = vpack.c.b16 %v216, %v208
  %v233 = vpack.c.b16 %v217, %v209
  %v234 = vpack.c.b16 %v218, %v210
  %v235 = vpack.c.b16 %v219, %v211
  %v380 = vunpack.c.l.b16 %v37
  %v381 = vunpack.c.l.b16 %v38
  %v382 = vunpack.c.l.b16 %v39
  %v383 = vunpack.c.l.b16 %v40
  %v384 = vunpack.c.l.b16 %v41
  %v385 = vunpack.c.l.b16 %v42
  %v386 = vunpack.c.l.b16 %v43
  %v387 = vunpack.c.l.b16 %v44
  %v388 = vunpack.c.l.b16 %v45
  %v389 = vunpack.c.l.b16 %v46
  %v390 = vunpack.c.l.b16 %v47
  %v391 = vunpack.c.l.b16 %v48
  %v392 = vunpack.c.l.b16 %v49
  %v393 = vunpack.c.l.b16 %v50
  %v394 = vunpack.c.l.b16 %v51
  %v395 = vunpack.c.l.b16 %v52
  %v396 = vunpack.c.l.b16 %v53
  %v397 = vunpack.c.l.b16 %v54
  %v398 = vunpack.c.l.b16 %v55
  %v399 = vunpack.c.l.b16 %v56
  %v400 = vunpack.c.l.b16 %v57
  %v401 = vunpack.c.l.b16 %v58
  %v402 = vunpack.c.l.b16 %v59
  %v403 = vunpack.c.l.b16 %v60
  %v404 = vunpack.c.l.b16 %v61
  %v405 = vunpack.c.l.b16 %v62
  %v406 = vunpack.c.l.b16 %v63
  %v407 = vunpack.c.l.b16 %v64
  %v408 = vunpack.c.l.b16 %v65
  %v409 = vunpack.c.l.b16 %v66
  %v410 = vunpack.c.l.b16 %v67
  %v411 = vunpack.c.l.b16 %v68
  %v412 = vunpack.c.l.b16 %v69
  %v413 = vunpack.c.l.b16 %v70
  %v414 = vunpack.c.l.b16 %v71
  %v415 = vunpack.c.l.b16 %v72
  %v416 = vunpack.c.l.b16 %v73
  %v417 = vunpack.c.l.b16 %v74
  %v418 = vunpack.c.l.b16 %v75
  %v419 = vunpack.c.l.b16 %v76
  %v420 = vunpack.c.l.b16 %v77
  %v421 = vunpack.c.l.b16 %v78
  %v422 = vunpack.c.l.b16 %v79
  %v423 = vunpack.c.l.b16 %v80
  %v424 = vunpack.c.l.b16 %v81
  %v425 = vunpack.c.l.b16 %v82
  %v426 = vunpack.c.l.b16 %v83
  %v427 = vunpack.c.l.b16 %v84
  %v428 = vunpack.c.l.b16 %v85
  %v429 = vunpack.c.l.b16 %v86
  %v430 = vunpack.c.l.b16 %v87
  %v431 = vunpack.c.l.b16 %v88
  %v432 = vunpack.c.l.b16 %v89
  %v433 = vunpack.c.l.b16 %v90
  %v434 = vunpack.c.l.b16 %v91
  %v435 = vunpack.c.l.b16 %v92
  %v436 = vunpack.c.l.b16 %v93
  %v437 = vunpack.c.l.b16 %v94
  %v438 = vunpack.c.l.b16 %v95
  %v439 = vunpack.c.l.b16 %v96
  %v440 = vunpack.c.l.b16 %v97
  %v441 = vunpack.c.l.b16 %v98
  %v442 = vunpack.c.l.b16 %v99
  %v443 = vunpack.c.l.b16 %v100
  %v444 = vunpack.c.l.b16 %v101
  %v445 = vunpack.c.l.b16 %v102
  %v446 = vunpack.c.l.b16 %v103
  %v447 = vunpack.c.l.b16 %v104
  %v448 = vunpack.c.l.b16 %v105
  %v449 = vunpack.c.l.b16 %v106
  %v450 = vunpack.c.l.b16 %v107
  %v451 = vunpack.c.l.b16 %v108
  %v452 = vunpack.c.l.b16 %v109
  %v453 = vunpack.c.l.b16 %v110
  %v454 = vunpack.c.l.b16 %v111
  %v455 = vunpack.c.l.b16 %v112
  %v456 = vunpack.c.l.b16 %v113
  %v457 = vunpack.c.l.b16 %v114
  %v458 = vunpack.c.l.b16 %v115
  %v459 = vunpack.c.l.b16 %v116
  %v460 = vunpack.c.l.b16 %v117
  %v461 = vunpack.c.l.b16 %v118
  %v462 = vunpack.c.l.b16 %v119
  %v463 = vunpack.c.l.b16 %v120
  %v464 = vunpack.c.l.b16 %v121
  %v465 = vunpack.c.l.b16 %v122
  %v466 = vunpack.c.l.b16 %v123
  %v467 = vunpack.c.l.b16 %v124
  %v468 = vunpack.c.l.b16 %v125
  %v469 = vunpack.c.l.b16 %v126
  %v470 = vunpack.c.l.b16 %v127
  %v471 = vunpack.c.l.b16 %v128
  %v472 = vunpack.c.l.b16 %v129
  %v473 = vunpack.c.l.b16 %v130
  %v474 = vunpack.c.l.b16 %v131
  %v475 = vunpack.c.l.b16 %v132
  %v476 = vunpack.c.l.b16 %v133
  %v477 = vunpack.c.l.b16 %v134
  %v478 = vunpack.c.l.b16 %v135
  %v479 = vunpack.c.l.b16 %v136
  %v480 = vunpack.c.l.b16 %v137
  %v481 = vunpack.c.l.b16 %v138
  %v482 = vunpack.c.l.b16 %v139
  %v483 = vunpack.c.l.b16 %v140
  %v484 = vunpack.c.l.b16 %v141
  %v485 = vunpack.c.l.b16 %v142
  %v486 = vunpack.c.l.b16 %v143
  %v487 = vunpack.c.l.b16 %v144
  %v488 = vunpack.c.l.b16 %v145
  %v489 = vunpack.c.l.b16 %v146
  %v490 = vunpack.c.l.b16 %v147
  %v491 = vunpack.c.l.b16 %v148
  %v492 = vunpack.c.l.b16 %v149
  %v493 = vunpack.c.l.b16 %v150
  %v494 = vunpack.c.l.b16 %v151
  %v495 = vunpack.c.l.b16 %v152
  %v496 = vunpack.c.l.b16 %v153
  %v497 = vunpack.c.l.b16 %v154
  %v498 = vunpack.c.l.b16 %v155
  %v499 = vunpack.c.l.b16 %v156
  %v500 = vunpack.c.l.b16 %v157
  %v501 = vunpack.c.l.b16 %v158
  %v502 = vunpack.c.l.b16 %v159
  %v503 = vunpack.c.l.b16 %v160
  %v504 = vunpack.c.l.b16 %v161
  %v505 = vunpack.c.l.b16 %v162
  %v506 = vunpack.c.l.b16 %v163
  %v507 = vunpack.c.l.b16 %v164
  %v508 = vpack.c.b16 %v381, %v380
  %v509 = vpack.c.b16 %v383, %v382
  %v510 = vpack.c.b16 %v385, %v384
  %v511 = vpack.c.b16 %v387, %v386
  %v512 = vpack.c.b16 %v389, %v388
  %v513 = vpack.c.b16 %v391, %v390
  %v514 = vpack.c.b16 %v393, %v392
  %v515 = vpack.c.b16 %v395, %v394
  %v516 = vpack.c.b16 %v397, %v396
  %v517 = vpack.c.b16 %v399, %v398
  %v518 = vpack.c.b16 %v401, %v400
  %v519 = vpack.c.b16 %v403, %v402
  %v520 = vpack.c.b16 %v405, %v404
  %v521 = vpack.c.b16 %v407, %v406
  %v522 = vpack.c.b16 %v409, %v408
  %v523 = vpack.c.b16 %v411, %v410
  %v524 = vpack.c.b16 %v413, %v412
  %v525 = vpack.c.b16 %v415, %v414
  %v526 = vpack.c.b16 %v417, %v416
  %v527 = vpack.c.b16 %v419, %v418
  %v528 = vpack.c.b16 %v421, %v420
  %v529 = vpack.c.b16 %v423, %v422
  %v530 = vpack.c.b16 %v425, %v424
  %v531 = vpack.c.b16 %v427, %v426
  %v532 = vpack.c.b16 %v429, %v428
  %v533 = vpack.c.b16 %v431, %v430
  %v534 = vpack.c.b16 %v433, %v432
  %v535 = vpack.c.b16 %v435, %v434
  %v536 = vpack.c.b16 %v437, %v436
  %v537 = vpack.c.b16 %v439, %v438
  %v538 = vpack.c.b16 %v441, %v440
  %v539 = vpack.c.b16 %v443, %v442
  %v540 = vpack.c.b16 %v445, %v444
  %v541 = vpack.c.b16 %v447, %v446
  %v542 = vpack.c.b16 %v449, %v448
  %v543 = vpack.c.b16 %v451, %v450
  %v544 = vpack.c.b16 %v453, %v452
  %v545 = vpack.c.b16 %v455, %v454
  %v546 = vpack.c.b16 %v457, %v456
  %v547 = vpack.c.b16 %v459, %v458
  %v548 = vpack.c.b16 %v461, %v460
  %v549 = vpack.c.b16 %v463, %v462
  %v550 = vpack.c.b16 %v465, %v464
  %v551 = vpack.c.b16 %v467, %v466
  %v552 = vpack.c.b16 %v469, %v468
  %v553 = vpack.c.b16 %v471, %v470
  %v554 = vpack.c.b16 %v473, %v472
  %v555 = vpack.c.b16 %v475, %v474
  %v556 = vpack.c.b16 %v477, %v476
  %v557 = vpack.c.b16 %v479, %v478
  %v558 = vpack.c.b16 %v481, %v480
  %v559 = vpack.c.b16 %v483, %v482
  %v560 = vpack.c.b16 %v485, %v484
  %v561 = vpack.c.b16 %v487, %v486
  %v562 = vpack.c.b16 %v489, %v488
  %v563 = vpack.c.b16 %v491, %v490
  %v564 = vpack.c.b16 %v493, %v492
  %v565 = vpack.c.b16 %v495, %v494
  %v566 = vpack.c.b16 %v497, %v496
  %v567 = vpack.c.b16 %v499, %v498
  %v568 = vpack.c.b16 %v501, %v500
  %v569 = vpack.c.b16 %v503, %v502
  %v570 = vpack.c.b16 %v505, %v504
  %v571 = vpack.c.b16 %v507, %v506
  %636 = vmatprep.subr.bf16.mxu0 0
  %637 = vmatpush1.bf16.msra.mxu0 %v508
  %638 = vmatprep.subr.bf16.mxu0 0
  %639 = vmatpush1.bf16.msra.mxu0 %v509
  %640 = vmatprep.subr.bf16.mxu0 0
  %641 = vmatpush1.bf16.msra.mxu0 %v510
  %642 = vmatprep.subr.bf16.mxu0 0
  %643 = vmatpush1.bf16.msra.mxu0 %v511
  %644 = vmatprep.subr.bf16.mxu0 0
  %645 = vmatpush1.bf16.msra.mxu0 %v512
  %646 = vmatprep.subr.bf16.mxu0 0
  %647 = vmatpush1.bf16.msra.mxu0 %v513
  %648 = vmatprep.subr.bf16.mxu0 0
  %649 = vmatpush1.bf16.msra.mxu0 %v514
  %650 = vmatprep.subr.bf16.mxu0 0
  %651 = vmatpush1.bf16.msra.mxu0 %v515
  %652 = vmatprep.subr.bf16.mxu0 0
  %653 = vmatpush1.bf16.msra.mxu0 %v516
  %654 = vmatprep.subr.bf16.mxu0 0
  %655 = vmatpush1.bf16.msra.mxu0 %v517
  %656 = vmatprep.subr.bf16.mxu0 0
  %657 = vmatpush1.bf16.msra.mxu0 %v518
  %658 = vmatprep.subr.bf16.mxu0 0
  %659 = vmatpush1.bf16.msra.mxu0 %v519
  %660 = vmatprep.subr.bf16.mxu0 0
  %661 = vmatpush1.bf16.msra.mxu0 %v520
  %662 = vmatprep.subr.bf16.mxu0 0
  %663 = vmatpush1.bf16.msra.mxu0 %v521
  %664 = vmatprep.subr.bf16.mxu0 0
  %665 = vmatpush1.bf16.msra.mxu0 %v522
  %666 = vmatprep.subr.bf16.mxu0 0
  %667 = vmatpush1.bf16.msra.mxu0 %v523
  %668 = vmatprep.mubr.bf16.mxu0 %v221
  %669 = vmatmul.mubr.bf16.gmra.mrb[0].mxu0 %v220
  %v670 = vpop.f32.mrb[0].mxu0
  %v671 = vadd.f32 %v170, %v670
  %v672 = vpop.f32.mrb[0].mxu0
  %v673 = vpop.f32.mrb[0].mxu0
  %v674 = vadd.f32 %v170, %v673
  %v675 = vpop.f32.mrb[0].mxu0
  %676 = vmatprep.mubr.bf16.mxu0 %v229
  %677 = vmatmul.mubr.bf16.gmra.mrb[0].mxu0 %v228
  %v678 = vpop.f32.mrb[0].mxu0
  %v679 = vadd.f32 %v170, %v678
  %v680 = vpop.f32.mrb[0].mxu0
  %v681 = vpop.f32.mrb[0].mxu0
  %v682 = vadd.f32 %v170, %v681
  %v683 = vpop.f32.mrb[0].mxu0
  %684 = vdwg.mxu0
  %685 = vmatprep.subr.bf16.mxu0 0
  %686 = vmatpush1.bf16.msra.mxu0 %v524
  %687 = vmatprep.subr.bf16.mxu0 0
  %688 = vmatpush1.bf16.msra.mxu0 %v525
  %689 = vmatprep.subr.bf16.mxu0 0
  %690 = vmatpush1.bf16.msra.mxu0 %v526
  %691 = vmatprep.subr.bf16.mxu0 0
  %692 = vmatpush1.bf16.msra.mxu0 %v527
  %693 = vmatprep.subr.bf16.mxu0 0
  %694 = vmatpush1.bf16.msra.mxu0 %v528
  %695 = vmatprep.subr.bf16.mxu0 0
  %696 = vmatpush1.bf16.msra.mxu0 %v529
  %697 = vmatprep.subr.bf16.mxu0 0
  %698 = vmatpush1.bf16.msra.mxu0 %v530
  %699 = vmatprep.subr.bf16.mxu0 0
  %700 = vmatpush1.bf16.msra.mxu0 %v531
  %701 = vmatprep.subr.bf16.mxu0 0
  %702 = vmatpush1.bf16.msra.mxu0 %v532
  %703 = vmatprep.subr.bf16.mxu0 0
  %704 = vmatpush1.bf16.msra.mxu0 %v533
  %705 = vmatprep.subr.bf16.mxu0 0
  %706 = vmatpush1.bf16.msra.mxu0 %v534
  %707 = vmatprep.subr.bf16.mxu0 0
  %708 = vmatpush1.bf16.msra.mxu0 %v535
  %709 = vmatprep.subr.bf16.mxu0 0
  %710 = vmatpush1.bf16.msra.mxu0 %v536
  %711 = vmatprep.subr.bf16.mxu0 0
  %712 = vmatpush1.bf16.msra.mxu0 %v537
  %713 = vmatprep.subr.bf16.mxu0 0
  %714 = vmatpush1.bf16.msra.mxu0 %v538
  %715 = vmatprep.subr.bf16.mxu0 0
  %716 = vmatpush1.bf16.msra.mxu0 %v539
  %717 = vmatprep.mubr.bf16.mxu0 %v223
  %718 = vmatmul.mubr.bf16.gmra.mrb[0].mxu0 %v222
  %v719 = vpop.f32.mrb[0].mxu0
  %v720 = vadd.f32 %v671, %v719
  %v721 = vpop.f32.mrb[0].mxu0
  %v722 = vpop.f32.mrb[0].mxu0
  %v723 = vadd.f32 %v674, %v722
  %v724 = vpop.f32.mrb[0].mxu0
  %725 = vmatprep.mubr.bf16.mxu0 %v231
  %726 = vmatmul.mubr.bf16.gmra.mrb[0].mxu0 %v230
  %v727 = vpop.f32.mrb[0].mxu0
  %v728 = vadd.f32 %v679, %v727
  %v729 = vpop.f32.mrb[0].mxu0
  %v730 = vpop.f32.mrb[0].mxu0
  %v731 = vadd.f32 %v682, %v730
  %v732 = vpop.f32.mrb[0].mxu0
  %733 = vdwg.mxu0
  %734 = vmatprep.subr.bf16.mxu0 0
  %735 = vmatpush1.bf16.msra.mxu0 %v540
  %736 = vmatprep.subr.bf16.mxu0 0
  %737 = vmatpush1.bf16.msra.mxu0 %v541
  %738 = vmatprep.subr.bf16.mxu0 0
  %739 = vmatpush1.bf16.msra.mxu0 %v542
  %740 = vmatprep.subr.bf16.mxu0 0
  %741 = vmatpush1.bf16.msra.mxu0 %v543
  %742 = vmatprep.subr.bf16.mxu0 0
  %743 = vmatpush1.bf16.msra.mxu0 %v544
  %744 = vmatprep.subr.bf16.mxu0 0
  %745 = vmatpush1.bf16.msra.mxu0 %v545
  %746 = vmatprep.subr.bf16.mxu0 0
  %747 = vmatpush1.bf16.msra.mxu0 %v546
  %748 = vmatprep.subr.bf16.mxu0 0
  %749 = vmatpush1.bf16.msra.mxu0 %v547
  %750 = vmatprep.subr.bf16.mxu0 0
  %751 = vmatpush1.bf16.msra.mxu0 %v548
  %752 = vmatprep.subr.bf16.mxu0 0
  %753 = vmatpush1.bf16.msra.mxu0 %v549
  %754 = vmatprep.subr.bf16.mxu0 0
  %755 = vmatpush1.bf16.msra.mxu0 %v550
  %756 = vmatprep.subr.bf16.mxu0 0
  %757 = vmatpush1.bf16.msra.mxu0 %v551
  %758 = vmatprep.subr.bf16.mxu0 0
  %759 = vmatpush1.bf16.msra.mxu0 %v552
  %760 = vmatprep.subr.bf16.mxu0 0
  %761 = vmatpush1.bf16.msra.mxu0 %v553
  %762 = vmatprep.subr.bf16.mxu0 0
  %763 = vmatpush1.bf16.msra.mxu0 %v554
  %764 = vmatprep.subr.bf16.mxu0 0
  %765 = vmatpush1.bf16.msra.mxu0 %v555
  %766 = vmatprep.mubr.bf16.mxu0 %v225
  %767 = vmatmul.mubr.bf16.gmra.mrb[0].mxu0 %v224
  %v768 = vpop.f32.mrb[0].mxu0
  %v769 = vadd.f32 %v720, %v768
  %v770 = vpop.f32.mrb[0].mxu0
  %v771 = vpop.f32.mrb[0].mxu0
  %v772 = vadd.f32 %v723, %v771
  %v773 = vpop.f32.mrb[0].mxu0
  %774 = vmatprep.mubr.bf16.mxu0 %v233
  %775 = vmatmul.mubr.bf16.gmra.mrb[0].mxu0 %v232
  %v776 = vpop.f32.mrb[0].mxu0
  %v777 = vadd.f32 %v728, %v776
  %v778 = vpop.f32.mrb[0].mxu0
  %v779 = vpop.f32.mrb[0].mxu0
  %v780 = vadd.f32 %v731, %v779
  %v781 = vpop.f32.mrb[0].mxu0
  %782 = vdwg.mxu0
  %783 = vmatprep.subr.bf16.mxu0 0
  %784 = vmatpush1.bf16.msra.mxu0 %v556
  %785 = vmatprep.subr.bf16.mxu0 0
  %786 = vmatpush1.bf16.msra.mxu0 %v557
  %787 = vmatprep.subr.bf16.mxu0 0
  %788 = vmatpush1.bf16.msra.mxu0 %v558
  %789 = vmatprep.subr.bf16.mxu0 0
  %790 = vmatpush1.bf16.msra.mxu0 %v559
  %791 = vmatprep.subr.bf16.mxu0 0
  %792 = vmatpush1.bf16.msra.mxu0 %v560
  %793 = vmatprep.subr.bf16.mxu0 0
  %794 = vmatpush1.bf16.msra.mxu0 %v561
  %795 = vmatprep.subr.bf16.mxu0 0
  %796 = vmatpush1.bf16.msra.mxu0 %v562
  %797 = vmatprep.subr.bf16.mxu0 0
  %798 = vmatpush1.bf16.msra.mxu0 %v563
  %799 = vmatprep.subr.bf16.mxu0 0
  %800 = vmatpush1.bf16.msra.mxu0 %v564
  %801 = vmatprep.subr.bf16.mxu0 0
  %802 = vmatpush1.bf16.msra.mxu0 %v565
  %803 = vmatprep.subr.bf16.mxu0 0
  %804 = vmatpush1.bf16.msra.mxu0 %v566
  %805 = vmatprep.subr.bf16.mxu0 0
  %806 = vmatpush1.bf16.msra.mxu0 %v567
  %807 = vmatprep.subr.bf16.mxu0 0
  %808 = vmatpush1.bf16.msra.mxu0 %v568
  %809 = vmatprep.subr.bf16.mxu0 0
  %810 = vmatpush1.bf16.msra.mxu0 %v569
  %811 = vmatprep.subr.bf16.mxu0 0
  %812 = vmatpush1.bf16.msra.mxu0 %v570
  %813 = vmatprep.subr.bf16.mxu0 0
  %814 = vmatpush1.bf16.msra.mxu0 %v571
  %815 = vmatprep.mubr.bf16.mxu0 %v227
  %816 = vmatmul.mubr.bf16.gmra.mrb[0].mxu0 %v226
  %v817 = vpop.f32.mrb[0].mxu0
  %v818 = vadd.f32 %v769, %v817
  %v819 = vpop.f32.mrb[0].mxu0
  %v820 = vpop.f32.mrb[0].mxu0
  %v821 = vadd.f32 %v772, %v820
  %v822 = vpop.f32.mrb[0].mxu0
  %823 = vmatprep.mubr.bf16.mxu0 %v235
  %824 = vmatmul.mubr.bf16.gmra.mrb[0].mxu0 %v234
  %v825 = vpop.f32.mrb[0].mxu0
  %v826 = vadd.f32 %v777, %v825
  %v827 = vpop.f32.mrb[0].mxu0
  %v828 = vpop.f32.mrb[0].mxu0
  %v829 = vadd.f32 %v780, %v828
  %v830 = vpop.f32.mrb[0].mxu0
  %831 = vdwg.mxu0
  %v832 = vld [vmem:[%s3] sm:$0x1]
  %v833 = vld [vmem:[%s4] sm:$0x1]
  %v834 = vadd.f32 %v818, %v821
  %v835 = vadd.f32 %v834, %v826
  %v836 = vadd.f32 %v835, %v829
  %v837 = vrot.slane %v836, 4
  %v838 = vadd.f32 %v836, %v837
  %v839 = vrot.slane %v838, 2
  %v840 = vadd.f32 %v838, %v839
  %v841 = vrot.slane %v840, 1
  %v842 = vadd.f32 %v840, %v841
  %v843 = vmul.f32 %v818, %v818
  %v844 = vmul.f32 %v821, %v821
  %v845 = vmul.f32 %v826, %v826
  %v846 = vmul.f32 %v829, %v829
  %v847 = vadd.f32 %v843, %v844
  %v848 = vadd.f32 %v847, %v845
  %v849 = vadd.f32 %v848, %v846
  %v850 = vrot.slane %v849, 4
  %v851 = vadd.f32 %v849, %v850
  %v852 = vrot.slane %v851, 2
  %v853 = vadd.f32 %v851, %v852
  %v854 = vrot.slane %v853, 1
  %v855 = vadd.f32 %v853, %v854
  %v856 = vmul.f32 %v842, 0.03125
  %v857 = vmul.f32 %v855, 0.03125
  %v858 = vmul.f32 %v856, %v856
  %v859 = vsub.f32 %v857, %v858
  %v860 = vmax.f32 %v859, 0.0
  %v861 = vadd.f32 %v860, 1e-05
  %v862 = vrsqrt.pop %v861
  %v863 = vmul.f32 %v832, %v862
  %v864 = vmul.f32 %v856, %v863
  %v865 = vsub.f32 %v833, %v864
  %v867 = vlaneseq
  %v868 = vshrl.u32 %v867, 7
  %v869 = vsub.s32 0, %v868
  %v870 = vrot.slane %v863, %v869
  %v872 = vmul.f32 %v818, %v870
  %v873 = vmul.f32 %v821, %v870
  %v874 = vmul.f32 %v826, %v870
  %v875 = vmul.f32 %v829, %v870
  %v877 = vlaneseq
  %v878 = vshrl.u32 %v877, 7
  %v879 = vsub.s32 0, %v878
  %v880 = vrot.slane %v865, %v879
  %v882 = vadd.f32 %v872, %v880
  %v883 = vadd.f32 %v873, %v880
  %v884 = vadd.f32 %v874, %v880
  %v885 = vadd.f32 %v875, %v880
  %vm886 = vcmp.ge.f32.partialorder %v882, 0.0
  %vm887 = vcmp.ge.f32.partialorder %v883, 0.0
  %vm888 = vcmp.ge.f32.partialorder %v884, 0.0
  %vm889 = vcmp.ge.f32.partialorder %v885, 0.0
  %v890 = vmul.f32 %v882, 0.2
  %v891 = vmul.f32 %v883, 0.2
  %v892 = vmul.f32 %v884, 0.2
  %v893 = vmul.f32 %v885, 0.2
  %v894 = vsel %vm886, %v882, %v890
  %v895 = vsel %vm887, %v883, %v891
  %v896 = vsel %vm888, %v884, %v892
  %v897 = vsel %vm889, %v885, %v893
  %v898 = vpack.c.bf16 %v895, %v894
  %v899 = vpack.c.bf16 %v897, %v896
  %v902 = vunpack.c.l.b16 %v898
  %v903 = vunpack.c.h.b16 %v898
  %v904 = vunpack.c.l.b16 %v899
  %v905 = vunpack.c.h.b16 %v899
  %v906 = vpack.c.b16 %v902, %v902
  %v907 = vpack.c.b16 %v903, %v903
  %v908 = vpack.c.b16 %v904, %v904
  %v909 = vpack.c.b16 %v905, %v905
  %914 = vst [vmem:[%s5] sm:$0xf] %v906
  %915 = vst [vmem:[%s5 + $0x4] sm:$0xf] %v907
  %916 = vst [vmem:[%s5 + $0x8] sm:$0xf] %v908
  %917 = vst [vmem:[%s5 + $0xc] sm:$0xf] %v909
  // Predicated region
  $region22: #{discriminator_forward.7} parent=0 // pred_check
    _
  $region23: #{discriminator_forward.7} parent=0 // pred_check_branch
    %919 = sbr.rel (0) target = $region25
  $region24: #{discriminator_forward.7} parent=0 // pred_region
    _
  $region25: #{discriminator_forward.7} parent=0 // pred_fallthru
    _
  // Predicated region
  $region26: #{discriminator_forward.7} parent=0 // pred_check
    _
  $region27: #{discriminator_forward.7} parent=0 // pred_check_branch
    %921 = sbr.rel (0) target = $region29
  $region28: #{discriminator_forward.7} parent=0 // pred_region
    _
  $region29: #{discriminator_forward.7} parent=0 // pred_fallthru
    _

// kernel: discriminator_forward.8
$region0: #{discriminator_forward.8}
  #allocation0 [shape = 'u32[]', space=smem, size = 0x4, offset = 0x4, fixed_abs, tag = 'smem constant byte address 0x4 - core index']
  #allocation1 [shape = 'u32[144,128]{1,0:T(1,128)}', space=vmem, size = 0x12000, scoped, tag = 'internal scratch']
  %s0 = inlined_call_operand.vmem [shape: bf16[8,2048], index: 0, kind: input, shape index: {}]
  %s1 = inlined_call_operand.vmem [shape: bf16[2048,256], index: 1, kind: input, shape index: {}]
  %s2 = inlined_call_operand.vmem [shape: f32[1,256], index: 2, kind: input, shape index: {}]
  %s3 = inlined_call_operand.vmem [shape: f32[1,256], index: 3, kind: input, shape index: {}]
  %s4 = inlined_call_operand.vmem [shape: f32[1,256], index: 4, kind: input, shape index: {}]
  %s5 = inlined_call_operand.vmem [shape: bf16[8,256], index: 5, kind: output, shape index: {}]
  %s6 = sld [smem:[#allocation0]]
  $region30: #{discriminator_forward.8} parent=0
    _
  %s8 = ssub.s32 1, %s6
  %s9 = scalar_select 0, %s8, %s6
  // Predicated region
  $region2: #{discriminator_forward.8} parent=0 // pred_check
    _
  $region3: #{discriminator_forward.8} parent=0 // pred_check_branch
    %11 = sbr.rel (0) target = $region5
  $region4: #{discriminator_forward.8} parent=0 // pred_region
    _
  $region5: #{discriminator_forward.8} parent=0 // pred_fallthru
    _
  // Predicated region
  $region6: #{discriminator_forward.8} parent=0 // pred_check
    _
  $region7: #{discriminator_forward.8} parent=0 // pred_check_branch
    %13 = sbr.rel (0) target = $region9
  $region8: #{discriminator_forward.8} parent=0 // pred_region
    _
  $region9: #{discriminator_forward.8} parent=0 // pred_fallthru
    _
  // Predicated region
  $region10: #{discriminator_forward.8} parent=0 // pred_check
    _
  $region11: #{discriminator_forward.8} parent=0 // pred_check_branch
    %15 = sbr.rel (0) target = $region13
  $region12: #{discriminator_forward.8} parent=0 // pred_region
    _
  $region13: #{discriminator_forward.8} parent=0 // pred_fallthru
    _
  // Predicated region
  $region14: #{discriminator_forward.8} parent=0 // pred_check
    _
  $region15: #{discriminator_forward.8} parent=0 // pred_check_branch
    %17 = sbr.rel (0) target = $region17
  $region16: #{discriminator_forward.8} parent=0 // pred_region
    _
  $region17: #{discriminator_forward.8} parent=0 // pred_fallthru
    _
  // Predicated region
  $region18: #{discriminator_forward.8} parent=0 // pred_check
    _
  $region19: #{discriminator_forward.8} parent=0 // pred_check_branch
    %19 = sbr.rel (0) target = $region21
  $region20: #{discriminator_forward.8} parent=0 // pred_region
    _
  $region21: #{discriminator_forward.8} parent=0 // pred_fallthru
    _
  %v20 = vld [vmem:[%s0] sm:$0xff]
  %v21 = vld [vmem:[%s0 + $0x8] sm:$0xff]
  %v22 = vld [vmem:[%s0 + $0x10] sm:$0xff]
  %v23 = vld [vmem:[%s0 + $0x18] sm:$0xff]
  %v24 = vld [vmem:[%s0 + $0x20] sm:$0xff]
  %v25 = vld [vmem:[%s0 + $0x28] sm:$0xff]
  %v26 = vld [vmem:[%s0 + $0x30] sm:$0xff]
  %v27 = vld [vmem:[%s0 + $0x38] sm:$0xff]
  %v28 = vld [vmem:[%s1] sm:$0xff]
  %v29 = vld [vmem:[%s1 + $0x8] sm:$0xff]
  %v30 = vld [vmem:[%s1 + $0x10] sm:$0xff]
  %v31 = vld [vmem:[%s1 + $0x18] sm:$0xff]
  %v32 = vld [vmem:[%s1 + $0x20] sm:$0xff]
  %v33 = vld [vmem:[%s1 + $0x28] sm:$0xff]
  %v34 = vld [vmem:[%s1 + $0x30] sm:$0xff]
  %v35 = vld [vmem:[%s1 + $0x38] sm:$0xff]
  %v36 = vld [vmem:[%s1 + $0x40] sm:$0xff]
  %v37 = vld [vmem:[%s1 + $0x48] sm:$0xff]
  %v38 = vld [vmem:[%s1 + $0x50] sm:$0xff]
  %v39 = vld [vmem:[%s1 + $0x58] sm:$0xff]
  %v40 = vld [vmem:[%s1 + $0x60] sm:$0xff]
  %v41 = vld [vmem:[%s1 + $0x68] sm:$0xff]
  %v42 = vld [vmem:[%s1 + $0x70] sm:$0xff]
  %v43 = vld [vmem:[%s1 + $0x78] sm:$0xff]
  %v44 = vld [vmem:[%s1 + $0x80] sm:$0xff]
  %v45 = vld [vmem:[%s1 + $0x88] sm:$0xff]
  %v46 = vld [vmem:[%s1 + $0x90] sm:$0xff]
  %v47 = vld [vmem:[%s1 + $0x98] sm:$0xff]
  %v48 = vld [vmem:[%s1 + $0xa0] sm:$0xff]
  %v49 = vld [vmem:[%s1 + $0xa8] sm:$0xff]
  %v50 = vld [vmem:[%s1 + $0xb0] sm:$0xff]
  %v51 = vld [vmem:[%s1 + $0xb8] sm:$0xff]
  %v52 = vld [vmem:[%s1 + $0xc0] sm:$0xff]
  %v53 = vld [vmem:[%s1 + $0xc8] sm:$0xff]
  %v54 = vld [vmem:[%s1 + $0xd0] sm:$0xff]
  %v55 = vld [vmem:[%s1 + $0xd8] sm:$0xff]
  %v56 = vld [vmem:[%s1 + $0xe0] sm:$0xff]
  %v57 = vld [vmem:[%s1 + $0xe8] sm:$0xff]
  %v58 = vld [vmem:[%s1 + $0xf0] sm:$0xff]
  %v59 = vld [vmem:[%s1 + $0xf8] sm:$0xff]
  %v60 = vld [vmem:[%s1 + $0x100] sm:$0xff]
  %v61 = vld [vmem:[%s1 + $0x108] sm:$0xff]
  %v62 = vld [vmem:[%s1 + $0x110] sm:$0xff]
  %v63 = vld [vmem:[%s1 + $0x118] sm:$0xff]
  %v64 = vld [vmem:[%s1 + $0x120] sm:$0xff]
  %v65 = vld [vmem:[%s1 + $0x128] sm:$0xff]
  %v66 = vld [vmem:[%s1 + $0x130] sm:$0xff]
  %v67 = vld [vmem:[%s1 + $0x138] sm:$0xff]
  %v68 = vld [vmem:[%s1 + $0x140] sm:$0xff]
  %v69 = vld [vmem:[%s1 + $0x148] sm:$0xff]
  %v70 = vld [vmem:[%s1 + $0x150] sm:$0xff]
  %v71 = vld [vmem:[%s1 + $0x158] sm:$0xff]
  %v72 = vld [vmem:[%s1 + $0x160] sm:$0xff]
  %v73 = vld [vmem:[%s1 + $0x168] sm:$0xff]
  %v74 = vld [vmem:[%s1 + $0x170] sm:$0xff]
  %v75 = vld [vmem:[%s1 + $0x178] sm:$0xff]
  %v76 = vld [vmem:[%s1 + $0x180] sm:$0xff]
  %v77 = vld [vmem:[%s1 + $0x188] sm:$0xff]
  %v78 = vld [vmem:[%s1 + $0x190] sm:$0xff]
  %v79 = vld [vmem:[%s1 + $0x198] sm:$0xff]
  %v80 = vld [vmem:[%s1 + $0x1a0] sm:$0xff]
  %v81 = vld [vmem:[%s1 + $0x1a8] sm:$0xff]
  %v82 = vld [vmem:[%s1 + $0x1b0] sm:$0xff]
  %v83 = vld [vmem:[%s1 + $0x1b8] sm:$0xff]
  %v84 = vld [vmem:[%s1 + $0x1c0] sm:$0xff]
  %v85 = vld [vmem:[%s1 + $0x1c8] sm:$0xff]
  %v86 = vld [vmem:[%s1 + $0x1d0] sm:$0xff]
  %v87 = vld [vmem:[%s1 + $0x1d8] sm:$0xff]
  %v88 = vld [vmem:[%s1 + $0x1e0] sm:$0xff]
  %v89 = vld [vmem:[%s1 + $0x1e8] sm:$0xff]
  %v90 = vld [vmem:[%s1 + $0x1f0] sm:$0xff]
  %v91 = vld [vmem:[%s1 + $0x1f8] sm:$0xff]
  %v92 = vld [vmem:[%s1 + $0x200] sm:$0xff]
  %v93 = vld [vmem:[%s1 + $0x208] sm:$0xff]
  %v94 = vld [vmem:[%s1 + $0x210] sm:$0xff]
  %v95 = vld [vmem:[%s1 + $0x218] sm:$0xff]
  %v96 = vld [vmem:[%s1 + $0x220] sm:$0xff]
  %v97 = vld [vmem:[%s1 + $0x228] sm:$0xff]
  %v98 = vld [vmem:[%s1 + $0x230] sm:$0xff]
  %v99 = vld [vmem:[%s1 + $0x238] sm:$0xff]
  %v100 = vld [vmem:[%s1 + $0x240] sm:$0xff]
  %v101 = vld [vmem:[%s1 + $0x248] sm:$0xff]
  %v102 = vld [vmem:[%s1 + $0x250] sm:$0xff]
  %v103 = vld [vmem:[%s1 + $0x258] sm:$0xff]
  %v104 = vld [vmem:[%s1 + $0x260] sm:$0xff]
  %v105 = vld [vmem:[%s1 + $0x268] sm:$0xff]
  %v106 = vld [vmem:[%s1 + $0x270] sm:$0xff]
  %v107 = vld [vmem:[%s1 + $0x278] sm:$0xff]
  %v108 = vld [vmem:[%s1 + $0x280] sm:$0xff]
  %v109 = vld [vmem:[%s1 + $0x288] sm:$0xff]
  %v110 = vld [vmem:[%s1 + $0x290] sm:$0xff]
  %v111 = vld [vmem:[%s1 + $0x298] sm:$0xff]
  %v112 = vld [vmem:[%s1 + $0x2a0] sm:$0xff]
  %v113 = vld [vmem:[%s1 + $0x2a8] sm:$0xff]
  %v114 = vld [vmem:[%s1 + $0x2b0] sm:$0xff]
  %v115 = vld [vmem:[%s1 + $0x2b8] sm:$0xff]
  %v116 = vld [vmem:[%s1 + $0x2c0] sm:$0xff]
  %v117 = vld [vmem:[%s1 + $0x2c8] sm:$0xff]
  %v118 = vld [vmem:[%s1 + $0x2d0] sm:$0xff]
  %v119 = vld [vmem:[%s1 + $0x2d8] sm:$0xff]
  %v120 = vld [vmem:[%s1 + $0x2e0] sm:$0xff]
  %v121 = vld [vmem:[%s1 + $0x2e8] sm:$0xff]
  %v122 = vld [vmem:[%s1 + $0x2f0] sm:$0xff]
  %v123 = vld [vmem:[%s1 + $0x2f8] sm:$0xff]
  %v124 = vld [vmem:[%s1 + $0x300] sm:$0xff]
  %v125 = vld [vmem:[%s1 + $0x308] sm:$0xff]
  %v126 = vld [vmem:[%s1 + $0x310] sm:$0xff]
  %v127 = vld [vmem:[%s1 + $0x318] sm:$0xff]
  %v128 = vld [vmem:[%s1 + $0x320] sm:$0xff]
  %v129 = vld [vmem:[%s1 + $0x328] sm:$0xff]
  %v130 = vld [vmem:[%s1 + $0x330] sm:$0xff]
  %v131 = vld [vmem:[%s1 + $0x338] sm:$0xff]
  %v132 = vld [vmem:[%s1 + $0x340] sm:$0xff]
  %v133 = vld [vmem:[%s1 + $0x348] sm:$0xff]
  %v134 = vld [vmem:[%s1 + $0x350] sm:$0xff]
  %v135 = vld [vmem:[%s1 + $0x358] sm:$0xff]
  %v136 = vld [vmem:[%s1 + $0x360] sm:$0xff]
  %v137 = vld [vmem:[%s1 + $0x368] sm:$0xff]
  %v138 = vld [vmem:[%s1 + $0x370] sm:$0xff]
  %v139 = vld [vmem:[%s1 + $0x378] sm:$0xff]
  %v140 = vld [vmem:[%s1 + $0x380] sm:$0xff]
  %v141 = vld [vmem:[%s1 + $0x388] sm:$0xff]
  %v142 = vld [vmem:[%s1 + $0x390] sm:$0xff]
  %v143 = vld [vmem:[%s1 + $0x398] sm:$0xff]
  %v144 = vld [vmem:[%s1 + $0x3a0] sm:$0xff]
  %v145 = vld [vmem:[%s1 + $0x3a8] sm:$0xff]
  %v146 = vld [vmem:[%s1 + $0x3b0] sm:$0xff]
  %v147 = vld [vmem:[%s1 + $0x3b8] sm:$0xff]
  %v148 = vld [vmem:[%s1 + $0x3c0] sm:$0xff]
  %v149 = vld [vmem:[%s1 + $0x3c8] sm:$0xff]
  %v150 = vld [vmem:[%s1 + $0x3d0] sm:$0xff]
  %v151 = vld [vmem:[%s1 + $0x3d8] sm:$0xff]
  %v152 = vld [vmem:[%s1 + $0x3e0] sm:$0xff]
  %v153 = vld [vmem:[%s1 + $0x3e8] sm:$0xff]
  %v154 = vld [vmem:[%s1 + $0x3f0] sm:$0xff]
  %v155 = vld [vmem:[%s1 + $0x3f8] sm:$0xff]
  %v156 = vld [vmem:[%s1 + $0x400] sm:$0xff]
  %v157 = vld [vmem:[%s1 + $0x408] sm:$0xff]
  %v158 = vld [vmem:[%s1 + $0x410] sm:$0xff]
  %v159 = vld [vmem:[%s1 + $0x418] sm:$0xff]
  %v160 = vld [vmem:[%s1 + $0x420] sm:$0xff]
  %v161 = vld [vmem:[%s1 + $0x428] sm:$0xff]
  %v162 = vld [vmem:[%s1 + $0x430] sm:$0xff]
  %v163 = vld [vmem:[%s1 + $0x438] sm:$0xff]
  %v164 = vld [vmem:[%s1 + $0x440] sm:$0xff]
  %v165 = vld [vmem:[%s1 + $0x448] sm:$0xff]
  %v166 = vld [vmem:[%s1 + $0x450] sm:$0xff]
  %v167 = vld [vmem:[%s1 + $0x458] sm:$0xff]
  %v168 = vld [vmem:[%s1 + $0x460] sm:$0xff]
  %v169 = vld [vmem:[%s1 + $0x468] sm:$0xff]
  %v170 = vld [vmem:[%s1 + $0x470] sm:$0xff]
  %v171 = vld [vmem:[%s1 + $0x478] sm:$0xff]
  %v172 = vld [vmem:[%s1 + $0x480] sm:$0xff]
  %v173 = vld [vmem:[%s1 + $0x488] sm:$0xff]
  %v174 = vld [vmem:[%s1 + $0x490] sm:$0xff]
  %v175 = vld [vmem:[%s1 + $0x498] sm:$0xff]
  %v176 = vld [vmem:[%s1 + $0x4a0] sm:$0xff]
  %v177 = vld [vmem:[%s1 + $0x4a8] sm:$0xff]
  %v178 = vld [vmem:[%s1 + $0x4b0] sm:$0xff]
  %v179 = vld [vmem:[%s1 + $0x4b8] sm:$0xff]
  %v180 = vld [vmem:[%s1 + $0x4c0] sm:$0xff]
  %v181 = vld [vmem:[%s1 + $0x4c8] sm:$0xff]
  %v182 = vld [vmem:[%s1 + $0x4d0] sm:$0xff]
  %v183 = vld [vmem:[%s1 + $0x4d8] sm:$0xff]
  %v184 = vld [vmem:[%s1 + $0x4e0] sm:$0xff]
  %v185 = vld [vmem:[%s1 + $0x4e8] sm:$0xff]
  %v186 = vld [vmem:[%s1 + $0x4f0] sm:$0xff]
  %v187 = vld [vmem:[%s1 + $0x4f8] sm:$0xff]
  %v188 = vld [vmem:[%s1 + $0x500] sm:$0xff]
  %v189 = vld [vmem:[%s1 + $0x508] sm:$0xff]
  %v190 = vld [vmem:[%s1 + $0x510] sm:$0xff]
  %v191 = vld [vmem:[%s1 + $0x518] sm:$0xff]
  %v192 = vld [vmem:[%s1 + $0x520] sm:$0xff]
  %v193 = vld [vmem:[%s1 + $0x528] sm:$0xff]
  %v194 = vld [vmem:[%s1 + $0x530] sm:$0xff]
  %v195 = vld [vmem:[%s1 + $0x538] sm:$0xff]
  %v196 = vld [vmem:[%s1 + $0x540] sm:$0xff]
  %v197 = vld [vmem:[%s1 + $0x548] sm:$0xff]
  %v198 = vld [vmem:[%s1 + $0x550] sm:$0xff]
  %v199 = vld [vmem:[%s1 + $0x558] sm:$0xff]
  %v200 = vld [vmem:[%s1 + $0x560] sm:$0xff]
  %v201 = vld [vmem:[%s1 + $0x568] sm:$0xff]
  %v202 = vld [vmem:[%s1 + $0x570] sm:$0xff]
  %v203 = vld [vmem:[%s1 + $0x578] sm:$0xff]
  %v204 = vld [vmem:[%s1 + $0x580] sm:$0xff]
  %v205 = vld [vmem:[%s1 + $0x588] sm:$0xff]
  %v206 = vld [vmem:[%s1 + $0x590] sm:$0xff]
  %v207 = vld [vmem:[%s1 + $0x598] sm:$0xff]
  %v208 = vld [vmem:[%s1 + $0x5a0] sm:$0xff]
  %v209 = vld [vmem:[%s1 + $0x5a8] sm:$0xff]
  %v210 = vld [vmem:[%s1 + $0x5b0] sm:$0xff]
  %v211 = vld [vmem:[%s1 + $0x5b8] sm:$0xff]
  %v212 = vld [vmem:[%s1 + $0x5c0] sm:$0xff]
  %v213 = vld [vmem:[%s1 + $0x5c8] sm:$0xff]
  %v214 = vld [vmem:[%s1 + $0x5d0] sm:$0xff]
  %v215 = vld [vmem:[%s1 + $0x5d8] sm:$0xff]
  %v216 = vld [vmem:[%s1 + $0x5e0] sm:$0xff]
  %v217 = vld [vmem:[%s1 + $0x5e8] sm:$0xff]
  %v218 = vld [vmem:[%s1 + $0x5f0] sm:$0xff]
  %v219 = vld [vmem:[%s1 + $0x5f8] sm:$0xff]
  %v220 = vld [vmem:[%s1 + $0x600] sm:$0xff]
  %v221 = vld [vmem:[%s1 + $0x608] sm:$0xff]
  %v222 = vld [vmem:[%s1 + $0x610] sm:$0xff]
  %v223 = vld [vmem:[%s1 + $0x618] sm:$0xff]
  %v224 = vld [vmem:[%s1 + $0x620] sm:$0xff]
  %v225 = vld [vmem:[%s1 + $0x628] sm:$0xff]
  %v226 = vld [vmem:[%s1 + $0x630] sm:$0xff]
  %v227 = vld [vmem:[%s1 + $0x638] sm:$0xff]
  %v228 = vld [vmem:[%s1 + $0x640] sm:$0xff]
  %v229 = vld [vmem:[%s1 + $0x648] sm:$0xff]
  %v230 = vld [vmem:[%s1 + $0x650] sm:$0xff]
  %v231 = vld [vmem:[%s1 + $0x658] sm:$0xff]
  %v232 = vld [vmem:[%s1 + $0x660] sm:$0xff]
  %v233 = vld [vmem:[%s1 + $0x668] sm:$0xff]
  %v234 = vld [vmem:[%s1 + $0x670] sm:$0xff]
  %v235 = vld [vmem:[%s1 + $0x678] sm:$0xff]
  %v236 = vld [vmem:[%s1 + $0x680] sm:$0xff]
  %v237 = vld [vmem:[%s1 + $0x688] sm:$0xff]
  %v238 = vld [vmem:[%s1 + $0x690] sm:$0xff]
  %v239 = vld [vmem:[%s1 + $0x698] sm:$0xff]
  %v240 = vld [vmem:[%s1 + $0x6a0] sm:$0xff]
  %v241 = vld [vmem:[%s1 + $0x6a8] sm:$0xff]
  %v242 = vld [vmem:[%s1 + $0x6b0] sm:$0xff]
  %v243 = vld [vmem:[%s1 + $0x6b8] sm:$0xff]
  %v244 = vld [vmem:[%s1 + $0x6c0] sm:$0xff]
  %v245 = vld [vmem:[%s1 + $0x6c8] sm:$0xff]
  %v246 = vld [vmem:[%s1 + $0x6d0] sm:$0xff]
  %v247 = vld [vmem:[%s1 + $0x6d8] sm:$0xff]
  %v248 = vld [vmem:[%s1 + $0x6e0] sm:$0xff]
  %v249 = vld [vmem:[%s1 + $0x6e8] sm:$0xff]
  %v250 = vld [vmem:[%s1 + $0x6f0] sm:$0xff]
  %v251 = vld [vmem:[%s1 + $0x6f8] sm:$0xff]
  %v252 = vld [vmem:[%s1 + $0x700] sm:$0xff]
  %v253 = vld [vmem:[%s1 + $0x708] sm:$0xff]
  %v254 = vld [vmem:[%s1 + $0x710] sm:$0xff]
  %v255 = vld [vmem:[%s1 + $0x718] sm:$0xff]
  %v256 = vld [vmem:[%s1 + $0x720] sm:$0xff]
  %v257 = vld [vmem:[%s1 + $0x728] sm:$0xff]
  %v258 = vld [vmem:[%s1 + $0x730] sm:$0xff]
  %v259 = vld [vmem:[%s1 + $0x738] sm:$0xff]
  %v260 = vld [vmem:[%s1 + $0x740] sm:$0xff]
  %v261 = vld [vmem:[%s1 + $0x748] sm:$0xff]
  %v262 = vld [vmem:[%s1 + $0x750] sm:$0xff]
  %v263 = vld [vmem:[%s1 + $0x758] sm:$0xff]
  %v264 = vld [vmem:[%s1 + $0x760] sm:$0xff]
  %v265 = vld [vmem:[%s1 + $0x768] sm:$0xff]
  %v266 = vld [vmem:[%s1 + $0x770] sm:$0xff]
  %v267 = vld [vmem:[%s1 + $0x778] sm:$0xff]
  %v268 = vld [vmem:[%s1 + $0x780] sm:$0xff]
  %v269 = vld [vmem:[%s1 + $0x788] sm:$0xff]
  %v270 = vld [vmem:[%s1 + $0x790] sm:$0xff]
  %v271 = vld [vmem:[%s1 + $0x798] sm:$0xff]
  %v272 = vld [vmem:[%s1 + $0x7a0] sm:$0xff]
  %v273 = vld [vmem:[%s1 + $0x7a8] sm:$0xff]
  %v274 = vld [vmem:[%s1 + $0x7b0] sm:$0xff]
  %v275 = vld [vmem:[%s1 + $0x7b8] sm:$0xff]
  %v276 = vld [vmem:[%s1 + $0x7c0] sm:$0xff]
  %v277 = vld [vmem:[%s1 + $0x7c8] sm:$0xff]
  %v278 = vld [vmem:[%s1 + $0x7d0] sm:$0xff]
  %v279 = vld [vmem:[%s1 + $0x7d8] sm:$0xff]
  %v280 = vld [vmem:[%s1 + $0x7e0] sm:$0xff]
  %v281 = vld [vmem:[%s1 + $0x7e8] sm:$0xff]
  %v282 = vld [vmem:[%s1 + $0x7f0] sm:$0xff]
  %v283 = vld [vmem:[%s1 + $0x7f8] sm:$0xff]
  %v284 = vld [vmem:[%s2] sm:$0x3]
  %v286 = vlaneseq
  %v287 = vshrl.u32 %v286, 7
  %v288 = vsub.s32 0, %v287
  %v289 = vrot.slane %v284, %v288
  %v290 = vlaneseq
  %v291 = vshrl.u32 %v290, 7
  %v292 = vsub.s32 1, %v291
  %v293 = vrot.slane %v284, %v292
  %v304 = vunpack.c.l.b16 %v20
  %v305 = vunpack.c.h.b16 %v20
  %v306 = vunpack.c.l.b16 %v21
  %v307 = vunpack.c.h.b16 %v21
  %v308 = vunpack.c.l.b16 %v22
  %v309 = vunpack.c.h.b16 %v22
  %v310 = vunpack.c.l.b16 %v23
  %v311 = vunpack.c.h.b16 %v23
  %v312 = vunpack.c.l.b16 %v24
  %v313 = vunpack.c.h.b16 %v24
  %v314 = vunpack.c.l.b16 %v25
  %v315 = vunpack.c.h.b16 %v25
  %v316 = vunpack.c.l.b16 %v26
  %v317 = vunpack.c.h.b16 %v26
  %v318 = vunpack.c.l.b16 %v27
  %v319 = vunpack.c.h.b16 %v27
  %v320 = vpack.c.b16 %v304, %v304
  %v321 = vpack.c.b16 %v305, %v305
  %v322 = vpack.c.b16 %v306, %v306
  %v323 = vpack.c.b16 %v307, %v307
  %v324 = vpack.c.b16 %v308, %v308
  %v325 = vpack.c.b16 %v309, %v309
  %v326 = vpack.c.b16 %v310, %v310
  %v327 = vpack.c.b16 %v311, %v311
  %v328 = vpack.c.b16 %v312, %v312
  %v329 = vpack.c.b16 %v313, %v313
  %v330 = vpack.c.b16 %v314, %v314
  %v331 = vpack.c.b16 %v315, %v315
  %v332 = vpack.c.b16 %v316, %v316
  %v333 = vpack.c.b16 %v317, %v317
  %v334 = vpack.c.b16 %v318, %v318
  %v335 = vpack.c.b16 %v319, %v319
  %v608 = vunpack.c.l.b16 %v28
  %v609 = vunpack.c.h.b16 %v28
  %v610 = vunpack.c.l.b16 %v29
  %v611 = vunpack.c.h.b16 %v29
  %v612 = vunpack.c.l.b16 %v30
  %v613 = vunpack.c.h.b16 %v30
  %v614 = vunpack.c.l.b16 %v31
  %v615 = vunpack.c.h.b16 %v31
  %v616 = vunpack.c.l.b16 %v32
  %v617 = vunpack.c.h.b16 %v32
  %v618 = vunpack.c.l.b16 %v33
  %v619 = vunpack.c.h.b16 %v33
  %v620 = vunpack.c.l.b16 %v34
  %v621 = vunpack.c.h.b16 %v34
  %v622 = vunpack.c.l.b16 %v35
  %v623 = vunpack.c.h.b16 %v35
  %v624 = vunpack.c.l.b16 %v36
  %v625 = vunpack.c.h.b16 %v36
  %v626 = vunpack.c.l.b16 %v37
  %v627 = vunpack.c.h.b16 %v37
  %v628 = vunpack.c.l.b16 %v38
  %v629 = vunpack.c.h.b16 %v38
  %v630 = vunpack.c.l.b16 %v39
  %v631 = vunpack.c.h.b16 %v39
  %v632 = vunpack.c.l.b16 %v40
  %v633 = vunpack.c.h.b16 %v40
  %v634 = vunpack.c.l.b16 %v41
  %v635 = vunpack.c.h.b16 %v41
  %v636 = vunpack.c.l.b16 %v42
  %v637 = vunpack.c.h.b16 %v42
  %v638 = vunpack.c.l.b16 %v43
  %v639 = vunpack.c.h.b16 %v43
  %v640 = vunpack.c.l.b16 %v44
  %v641 = vunpack.c.h.b16 %v44
  %v642 = vunpack.c.l.b16 %v45
  %v643 = vunpack.c.h.b16 %v45
  %v644 = vunpack.c.l.b16 %v46
  %v645 = vunpack.c.h.b16 %v46
  %v646 = vunpack.c.l.b16 %v47
  %v647 = vunpack.c.h.b16 %v47
  %v648 = vunpack.c.l.b16 %v48
  %v649 = vunpack.c.h.b16 %v48
  %v650 = vunpack.c.l.b16 %v49
  %v651 = vunpack.c.h.b16 %v49
  %v652 = vunpack.c.l.b16 %v50
  %v653 = vunpack.c.h.b16 %v50
  %v654 = vunpack.c.l.b16 %v51
  %v655 = vunpack.c.h.b16 %v51
  %v656 = vunpack.c.l.b16 %v52
  %v657 = vunpack.c.h.b16 %v52
  %v658 = vunpack.c.l.b16 %v53
  %v659 = vunpack.c.h.b16 %v53
  %v660 = vunpack.c.l.b16 %v54
  %v661 = vunpack.c.h.b16 %v54
  %v662 = vunpack.c.l.b16 %v55
  %v663 = vunpack.c.h.b16 %v55
  %v664 = vunpack.c.l.b16 %v56
  %v665 = vunpack.c.h.b16 %v56
  %v666 = vunpack.c.l.b16 %v57
  %v667 = vunpack.c.h.b16 %v57
  %v668 = vunpack.c.l.b16 %v58
  %v669 = vunpack.c.h.b16 %v58
  %v670 = vunpack.c.l.b16 %v59
  %v671 = vunpack.c.h.b16 %v59
  %v672 = vunpack.c.l.b16 %v60
  %v673 = vunpack.c.h.b16 %v60
  %v674 = vunpack.c.l.b16 %v61
  %v675 = vunpack.c.h.b16 %v61
  %v676 = vunpack.c.l.b16 %v62
  %v677 = vunpack.c.h.b16 %v62
  %v678 = vunpack.c.l.b16 %v63
  %v679 = vunpack.c.h.b16 %v63
  %v680 = vunpack.c.l.b16 %v64
  %v681 = vunpack.c.h.b16 %v64
  %v682 = vunpack.c.l.b16 %v65
  %v683 = vunpack.c.h.b16 %v65
  %v684 = vunpack.c.l.b16 %v66
  %v685 = vunpack.c.h.b16 %v66
  %v686 = vunpack.c.l.b16 %v67
  %v687 = vunpack.c.h.b16 %v67
  %v688 = vunpack.c.l.b16 %v68
  %v689 = vunpack.c.h.b16 %v68
  %v690 = vunpack.c.l.b16 %v69
  %v691 = vunpack.c.h.b16 %v69
  %v692 = vunpack.c.l.b16 %v70
  %v693 = vunpack.c.h.b16 %v70
  %v694 = vunpack.c.l.b16 %v71
  %v695 = vunpack.c.h.b16 %v71
  %v696 = vunpack.c.l.b16 %v72
  %v697 = vunpack.c.h.b16 %v72
  %v698 = vunpack.c.l.b16 %v73
  %v699 = vunpack.c.h.b16 %v73
  %v700 = vunpack.c.l.b16 %v74
  %v701 = vunpack.c.h.b16 %v74
  %v702 = vunpack.c.l.b16 %v75
  %v703 = vunpack.c.h.b16 %v75
  %v704 = vunpack.c.l.b16 %v76
  %v705 = vunpack.c.h.b16 %v76
  %v706 = vunpack.c.l.b16 %v77
  %v707 = vunpack.c.h.b16 %v77
  %v708 = vunpack.c.l.b16 %v78
  %v709 = vunpack.c.h.b16 %v78
  %v710 = vunpack.c.l.b16 %v79
  %v711 = vunpack.c.h.b16 %v79
  %v712 = vunpack.c.l.b16 %v80
  %v713 = vunpack.c.h.b16 %v80
  %v714 = vunpack.c.l.b16 %v81
  %v715 = vunpack.c.h.b16 %v81
  %v716 = vunpack.c.l.b16 %v82
  %v717 = vunpack.c.h.b16 %v82
  %v718 = vunpack.c.l.b16 %v83
  %v719 = vunpack.c.h.b16 %v83
  %v720 = vunpack.c.l.b16 %v84
  %v721 = vunpack.c.h.b16 %v84
  %v722 = vunpack.c.l.b16 %v85
  %v723 = vunpack.c.h.b16 %v85
  %v724 = vunpack.c.l.b16 %v86
  %v725 = vunpack.c.h.b16 %v86
  %v726 = vunpack.c.l.b16 %v87
  %v727 = vunpack.c.h.b16 %v87
  %v728 = vunpack.c.l.b16 %v88
  %v729 = vunpack.c.h.b16 %v88
  %v730 = vunpack.c.l.b16 %v89
  %v731 = vunpack.c.h.b16 %v89
  %v732 = vunpack.c.l.b16 %v90
  %v733 = vunpack.c.h.b16 %v90
  %v734 = vunpack.c.l.b16 %v91
  %v735 = vunpack.c.h.b16 %v91
  %v736 = vunpack.c.l.b16 %v92
  %v737 = vunpack.c.h.b16 %v92
  %v738 = vunpack.c.l.b16 %v93
  %v739 = vunpack.c.h.b16 %v93
  %v740 = vunpack.c.l.b16 %v94
  %v741 = vunpack.c.h.b16 %v94
  %v742 = vunpack.c.l.b16 %v95
  %v743 = vunpack.c.h.b16 %v95
  %v744 = vunpack.c.l.b16 %v96
  %v745 = vunpack.c.h.b16 %v96
  %v746 = vunpack.c.l.b16 %v97
  %v747 = vunpack.c.h.b16 %v97
  %v748 = vunpack.c.l.b16 %v98
  %v749 = vunpack.c.h.b16 %v98
  %v750 = vunpack.c.l.b16 %v99
  %v751 = vunpack.c.h.b16 %v99
  %v752 = vunpack.c.l.b16 %v100
  %v753 = vunpack.c.h.b16 %v100
  %v754 = vunpack.c.l.b16 %v101
  %v755 = vunpack.c.h.b16 %v101
  %v756 = vunpack.c.l.b16 %v102
  %v757 = vunpack.c.h.b16 %v102
  %v758 = vunpack.c.l.b16 %v103
  %v759 = vunpack.c.h.b16 %v103
  %v760 = vunpack.c.l.b16 %v104
  %v761 = vunpack.c.h.b16 %v104
  %v762 = vunpack.c.l.b16 %v105
  %v763 = vunpack.c.h.b16 %v105
  %v764 = vunpack.c.l.b16 %v106
  %v765 = vunpack.c.h.b16 %v106
  %v766 = vunpack.c.l.b16 %v107
  %v767 = vunpack.c.h.b16 %v107
  %v768 = vunpack.c.l.b16 %v108
  %v769 = vunpack.c.h.b16 %v108
  %v770 = vunpack.c.l.b16 %v109
  %v771 = vunpack.c.h.b16 %v109
  %v772 = vunpack.c.l.b16 %v110
  %v773 = vunpack.c.h.b16 %v110
  %v774 = vunpack.c.l.b16 %v111
  %v775 = vunpack.c.h.b16 %v111
  %v776 = vunpack.c.l.b16 %v112
  %v777 = vunpack.c.h.b16 %v112
  %v778 = vunpack.c.l.b16 %v113
  %v779 = vunpack.c.h.b16 %v113
  %v780 = vunpack.c.l.b16 %v114
  %v781 = vunpack.c.h.b16 %v114
  %v782 = vunpack.c.l.b16 %v115
  %v783 = vunpack.c.h.b16 %v115
  %v784 = vunpack.c.l.b16 %v116
  %v785 = vunpack.c.h.b16 %v116
  %v786 = vunpack.c.l.b16 %v117
  %v787 = vunpack.c.h.b16 %v117
  %v788 = vunpack.c.l.b16 %v118
  %v789 = vunpack.c.h.b16 %v118
  %v790 = vunpack.c.l.b16 %v119
  %v791 = vunpack.c.h.b16 %v119
  %v792 = vunpack.c.l.b16 %v120
  %v793 = vunpack.c.h.b16 %v120
  %v794 = vunpack.c.l.b16 %v121
  %v795 = vunpack.c.h.b16 %v121
  %v796 = vunpack.c.l.b16 %v122
  %v797 = vunpack.c.h.b16 %v122
  %v798 = vunpack.c.l.b16 %v123
  %v799 = vunpack.c.h.b16 %v123
  %v800 = vunpack.c.l.b16 %v124
  %v801 = vunpack.c.h.b16 %v124
  %v802 = vunpack.c.l.b16 %v125
  %v803 = vunpack.c.h.b16 %v125
  %v804 = vunpack.c.l.b16 %v126
  %v805 = vunpack.c.h.b16 %v126
  %v806 = vunpack.c.l.b16 %v127
  %v807 = vunpack.c.h.b16 %v127
  %v808 = vunpack.c.l.b16 %v128
  %v809 = vunpack.c.h.b16 %v128
  %v810 = vunpack.c.l.b16 %v129
  %v811 = vunpack.c.h.b16 %v129
  %v812 = vunpack.c.l.b16 %v130
  %v813 = vunpack.c.h.b16 %v130
  %v814 = vunpack.c.l.b16 %v131
  %v815 = vunpack.c.h.b16 %v131
  %v816 = vunpack.c.l.b16 %v132
  %v817 = vunpack.c.h.b16 %v132
  %v818 = vunpack.c.l.b16 %v133
  %v819 = vunpack.c.h.b16 %v133
  %v820 = vunpack.c.l.b16 %v134
  %v821 = vunpack.c.h.b16 %v134
  %v822 = vunpack.c.l.b16 %v135
  %v823 = vunpack.c.h.b16 %v135
  %v824 = vunpack.c.l.b16 %v136
  %v825 = vunpack.c.h.b16 %v136
  %v826 = vunpack.c.l.b16 %v137
  %v827 = vunpack.c.h.b16 %v137
  %v828 = vunpack.c.l.b16 %v138
  %v829 = vunpack.c.h.b16 %v138
  %v830 = vunpack.c.l.b16 %v139
  %v831 = vunpack.c.h.b16 %v139
  %v832 = vunpack.c.l.b16 %v140
  %v833 = vunpack.c.h.b16 %v140
  %v834 = vunpack.c.l.b16 %v141
  %v835 = vunpack.c.h.b16 %v141
  %v836 = vunpack.c.l.b16 %v142
  %v837 = vunpack.c.h.b16 %v142
  %v838 = vunpack.c.l.b16 %v143
  %v839 = vunpack.c.h.b16 %v143
  %v840 = vunpack.c.l.b16 %v144
  %v841 = vunpack.c.h.b16 %v144
  %v842 = vunpack.c.l.b16 %v145
  %v843 = vunpack.c.h.b16 %v145
  %v844 = vunpack.c.l.b16 %v146
  %v845 = vunpack.c.h.b16 %v146
  %v846 = vunpack.c.l.b16 %v147
  %v847 = vunpack.c.h.b16 %v147
  %v848 = vunpack.c.l.b16 %v148
  %v849 = vunpack.c.h.b16 %v148
  %v850 = vunpack.c.l.b16 %v149
  %v851 = vunpack.c.h.b16 %v149
  %v852 = vunpack.c.l.b16 %v150
  %v853 = vunpack.c.h.b16 %v150
  %v854 = vunpack.c.l.b16 %v151
  %v855 = vunpack.c.h.b16 %v151
  %v856 = vunpack.c.l.b16 %v152
  %v857 = vunpack.c.h.b16 %v152
  %v858 = vunpack.c.l.b16 %v153
  %v859 = vunpack.c.h.b16 %v153
  %v860 = vunpack.c.l.b16 %v154
  %v861 = vunpack.c.h.b16 %v154
  %v862 = vunpack.c.l.b16 %v155
  %v863 = vunpack.c.h.b16 %v155
  %v864 = vunpack.c.l.b16 %v156
  %v865 = vunpack.c.h.b16 %v156
  %v866 = vunpack.c.l.b16 %v157
  %v867 = vunpack.c.h.b16 %v157
  %v868 = vunpack.c.l.b16 %v158
  %v869 = vunpack.c.h.b16 %v158
  %v870 = vunpack.c.l.b16 %v159
  %v871 = vunpack.c.h.b16 %v159
  %v872 = vunpack.c.l.b16 %v160
  %v873 = vunpack.c.h.b16 %v160
  %v874 = vunpack.c.l.b16 %v161
  %v875 = vunpack.c.h.b16 %v161
  %v876 = vunpack.c.l.b16 %v162
  %v877 = vunpack.c.h.b16 %v162
  %v878 = vunpack.c.l.b16 %v163
  %v879 = vunpack.c.h.b16 %v163
  %v880 = vunpack.c.l.b16 %v164
  %v881 = vunpack.c.h.b16 %v164
  %v882 = vunpack.c.l.b16 %v165
  %v883 = vunpack.c.h.b16 %v165
  %v884 = vunpack.c.l.b16 %v166
  %v885 = vunpack.c.h.b16 %v166
  %v886 = vunpack.c.l.b16 %v167
  %v887 = vunpack.c.h.b16 %v167
  %v888 = vunpack.c.l.b16 %v168
  %v889 = vunpack.c.h.b16 %v168
  %v890 = vunpack.c.l.b16 %v169
  %v891 = vunpack.c.h.b16 %v169
  %v892 = vunpack.c.l.b16 %v170
  %v893 = vunpack.c.h.b16 %v170
  %v894 = vunpack.c.l.b16 %v171
  %v895 = vunpack.c.h.b16 %v171
  %v896 = vunpack.c.l.b16 %v172
  %v897 = vunpack.c.h.b16 %v172
  %v898 = vunpack.c.l.b16 %v173
  %v899 = vunpack.c.h.b16 %v173
  %v900 = vunpack.c.l.b16 %v174
  %v901 = vunpack.c.h.b16 %v174
  %v902 = vunpack.c.l.b16 %v175
  %v903 = vunpack.c.h.b16 %v175
  %v904 = vunpack.c.l.b16 %v176
  %v905 = vunpack.c.h.b16 %v176
  %v906 = vunpack.c.l.b16 %v177
  %v907 = vunpack.c.h.b16 %v177
  %v908 = vunpack.c.l.b16 %v178
  %v909 = vunpack.c.h.b16 %v178
  %v910 = vunpack.c.l.b16 %v179
  %v911 = vunpack.c.h.b16 %v179
  %v912 = vunpack.c.l.b16 %v180
  %v913 = vunpack.c.h.b16 %v180
  %v914 = vunpack.c.l.b16 %v181
  %v915 = vunpack.c.h.b16 %v181
  %v916 = vunpack.c.l.b16 %v182
  %v917 = vunpack.c.h.b16 %v182
  %v918 = vunpack.c.l.b16 %v183
  %v919 = vunpack.c.h.b16 %v183
  %v920 = vunpack.c.l.b16 %v184
  %v921 = vunpack.c.h.b16 %v184
  %v922 = vunpack.c.l.b16 %v185
  %v923 = vunpack.c.h.b16 %v185
  %v924 = vunpack.c.l.b16 %v186
  %v925 = vunpack.c.h.b16 %v186
  %v926 = vunpack.c.l.b16 %v187
  %v927 = vunpack.c.h.b16 %v187
  %v928 = vunpack.c.l.b16 %v188
  %v929 = vunpack.c.h.b16 %v188
  %v930 = vunpack.c.l.b16 %v189
  %v931 = vunpack.c.h.b16 %v189
  %v932 = vunpack.c.l.b16 %v190
  %v933 = vunpack.c.h.b16 %v190
  %v934 = vunpack.c.l.b16 %v191
  %v935 = vunpack.c.h.b16 %v191
  %v936 = vunpack.c.l.b16 %v192
  %v937 = vunpack.c.h.b16 %v192
  %v938 = vunpack.c.l.b16 %v193
  %v939 = vunpack.c.h.b16 %v193
  %v940 = vunpack.c.l.b16 %v194
  %v941 = vunpack.c.h.b16 %v194
  %v942 = vunpack.c.l.b16 %v195
  %v943 = vunpack.c.h.b16 %v195
  %v944 = vunpack.c.l.b16 %v196
  %v945 = vunpack.c.h.b16 %v196
  %v946 = vunpack.c.l.b16 %v197
  %v947 = vunpack.c.h.b16 %v197
  %v948 = vunpack.c.l.b16 %v198
  %v949 = vunpack.c.h.b16 %v198
  %v950 = vunpack.c.l.b16 %v199
  %v951 = vunpack.c.h.b16 %v199
  %v952 = vunpack.c.l.b16 %v200
  %v953 = vunpack.c.h.b16 %v200
  %v954 = vunpack.c.l.b16 %v201
  %v955 = vunpack.c.h.b16 %v201
  %v956 = vunpack.c.l.b16 %v202
  %v957 = vunpack.c.h.b16 %v202
  %v958 = vunpack.c.l.b16 %v203
  %v959 = vunpack.c.h.b16 %v203
  %v960 = vunpack.c.l.b16 %v204
  %v961 = vunpack.c.h.b16 %v204
  %v962 = vunpack.c.l.b16 %v205
  %v963 = vunpack.c.h.b16 %v205
  %v964 = vunpack.c.l.b16 %v206
  %v965 = vunpack.c.h.b16 %v206
  %v966 = vunpack.c.l.b16 %v207
  %v967 = vunpack.c.h.b16 %v207
  %v968 = vunpack.c.l.b16 %v208
  %v969 = vunpack.c.h.b16 %v208
  %v970 = vunpack.c.l.b16 %v209
  %v971 = vunpack.c.h.b16 %v209
  %v972 = vunpack.c.l.b16 %v210
  %v973 = vunpack.c.h.b16 %v210
  %v974 = vunpack.c.l.b16 %v211
  %v975 = vunpack.c.h.b16 %v211
  %v976 = vunpack.c.l.b16 %v212
  %v977 = vunpack.c.h.b16 %v212
  %v978 = vunpack.c.l.b16 %v213
  %v979 = vunpack.c.h.b16 %v213
  %v980 = vunpack.c.l.b16 %v214
  %v981 = vunpack.c.h.b16 %v214
  %v982 = vunpack.c.l.b16 %v215
  %v983 = vunpack.c.h.b16 %v215
  %v984 = vunpack.c.l.b16 %v216
  %v985 = vunpack.c.h.b16 %v216
  %v986 = vunpack.c.l.b16 %v217
  %v987 = vunpack.c.h.b16 %v217
  %v988 = vunpack.c.l.b16 %v218
  %v989 = vunpack.c.h.b16 %v218
  %v990 = vunpack.c.l.b16 %v219
  %v991 = vunpack.c.h.b16 %v219
  %v992 = vunpack.c.l.b16 %v220
  %v993 = vunpack.c.h.b16 %v220
  %v994 = vunpack.c.l.b16 %v221
  %v995 = vunpack.c.h.b16 %v221
  %v996 = vunpack.c.l.b16 %v222
  %v997 = vunpack.c.h.b16 %v222
  %v998 = vunpack.c.l.b16 %v223
  %v999 = vunpack.c.h.b16 %v223
  %v1000 = vunpack.c.l.b16 %v224
  %v1001 = vunpack.c.h.b16 %v224
  %v1002 = vunpack.c.l.b16 %v225
  %v1003 = vunpack.c.h.b16 %v225
  %v1004 = vunpack.c.l.b16 %v226
  %v1005 = vunpack.c.h.b16 %v226
  %v1006 = vunpack.c.l.b16 %v227
  %v1007 = vunpack.c.h.b16 %v227
  %v1008 = vunpack.c.l.b16 %v228
  %v1009 = vunpack.c.h.b16 %v228
  %v1010 = vunpack.c.l.b16 %v229
  %v1011 = vunpack.c.h.b16 %v229
  %v1012 = vunpack.c.l.b16 %v230
  %v1013 = vunpack.c.h.b16 %v230
  %v1014 = vunpack.c.l.b16 %v231
  %v1015 = vunpack.c.h.b16 %v231
  %v1016 = vunpack.c.l.b16 %v232
  %v1017 = vunpack.c.h.b16 %v232
  %v1018 = vunpack.c.l.b16 %v233
  %v1019 = vunpack.c.h.b16 %v233
  %v1020 = vunpack.c.l.b16 %v234
  %v1021 = vunpack.c.h.b16 %v234
  %v1022 = vunpack.c.l.b16 %v235
  %v1023 = vunpack.c.h.b16 %v235
  %v1024 = vunpack.c.l.b16 %v236
  %v1025 = vunpack.c.h.b16 %v236
  %v1026 = vunpack.c.l.b16 %v237
  %v1027 = vunpack.c.h.b16 %v237
  %v1028 = vunpack.c.l.b16 %v238
  %v1029 = vunpack.c.h.b16 %v238
  %v1030 = vunpack.c.l.b16 %v239
  %v1031 = vunpack.c.h.b16 %v239
  %v1032 = vunpack.c.l.b16 %v240
  %v1033 = vunpack.c.h.b16 %v240
  %v1034 = vunpack.c.l.b16 %v241
  %v1035 = vunpack.c.h.b16 %v241
  %v1036 = vunpack.c.l.b16 %v242
  %v1037 = vunpack.c.h.b16 %v242
  %v1038 = vunpack.c.l.b16 %v243
  %v1039 = vunpack.c.h.b16 %v243
  %v1040 = vunpack.c.l.b16 %v244
  %v1041 = vunpack.c.h.b16 %v244
  %v1042 = vunpack.c.l.b16 %v245
  %v1043 = vunpack.c.h.b16 %v245
  %v1044 = vunpack.c.l.b16 %v246
  %v1045 = vunpack.c.h.b16 %v246
  %v1046 = vunpack.c.l.b16 %v247
  %v1047 = vunpack.c.h.b16 %v247
  %v1048 = vunpack.c.l.b16 %v248
  %v1049 = vunpack.c.h.b16 %v248
  %v1050 = vunpack.c.l.b16 %v249
  %v1051 = vunpack.c.h.b16 %v249
  %v1052 = vunpack.c.l.b16 %v250
  %v1053 = vunpack.c.h.b16 %v250
  %v1054 = vunpack.c.l.b16 %v251
  %v1055 = vunpack.c.h.b16 %v251
  %v1056 = vunpack.c.l.b16 %v252
  %v1057 = vunpack.c.h.b16 %v252
  %v1058 = vunpack.c.l.b16 %v253
  %v1059 = vunpack.c.h.b16 %v253
  %v1060 = vunpack.c.l.b16 %v254
  %v1061 = vunpack.c.h.b16 %v254
  %v1062 = vunpack.c.l.b16 %v255
  %v1063 = vunpack.c.h.b16 %v255
  %v1064 = vunpack.c.l.b16 %v256
  %v1065 = vunpack.c.h.b16 %v256
  %v1066 = vunpack.c.l.b16 %v257
  %v1067 = vunpack.c.h.b16 %v257
  %v1068 = vunpack.c.l.b16 %v258
  %v1069 = vunpack.c.h.b16 %v258
  %v1070 = vunpack.c.l.b16 %v259
  %v1071 = vunpack.c.h.b16 %v259
  %v1072 = vunpack.c.l.b16 %v260
  %v1073 = vunpack.c.h.b16 %v260
  %v1074 = vunpack.c.l.b16 %v261
  %v1075 = vunpack.c.h.b16 %v261
  %v1076 = vunpack.c.l.b16 %v262
  %v1077 = vunpack.c.h.b16 %v262
  %v1078 = vunpack.c.l.b16 %v263
  %v1079 = vunpack.c.h.b16 %v263
  %v1080 = vunpack.c.l.b16 %v264
  %v1081 = vunpack.c.h.b16 %v264
  %v1082 = vunpack.c.l.b16 %v265
  %v1083 = vunpack.c.h.b16 %v265
  %v1084 = vunpack.c.l.b16 %v266
  %v1085 = vunpack.c.h.b16 %v266
  %v1086 = vunpack.c.l.b16 %v267
  %v1087 = vunpack.c.h.b16 %v267
  %v1088 = vunpack.c.l.b16 %v268
  %v1089 = vunpack.c.h.b16 %v268
  %v1090 = vunpack.c.l.b16 %v269
  %v1091 = vunpack.c.h.b16 %v269
  %v1092 = vunpack.c.l.b16 %v270
  %v1093 = vunpack.c.h.b16 %v270
  %v1094 = vunpack.c.l.b16 %v271
  %v1095 = vunpack.c.h.b16 %v271
  %v1096 = vunpack.c.l.b16 %v272
  %v1097 = vunpack.c.h.b16 %v272
  %v1098 = vunpack.c.l.b16 %v273
  %v1099 = vunpack.c.h.b16 %v273
  %v1100 = vunpack.c.l.b16 %v274
  %v1101 = vunpack.c.h.b16 %v274
  %v1102 = vunpack.c.l.b16 %v275
  %v1103 = vunpack.c.h.b16 %v275
  %v1104 = vunpack.c.l.b16 %v276
  %v1105 = vunpack.c.h.b16 %v276
  %v1106 = vunpack.c.l.b16 %v277
  %v1107 = vunpack.c.h.b16 %v277
  %v1108 = vunpack.c.l.b16 %v278
  %v1109 = vunpack.c.h.b16 %v278
  %v1110 = vunpack.c.l.b16 %v279
  %v1111 = vunpack.c.h.b16 %v279
  %v1112 = vunpack.c.l.b16 %v280
  %v1113 = vunpack.c.h.b16 %v280
  %v1114 = vunpack.c.l.b16 %v281
  %v1115 = vunpack.c.h.b16 %v281
  %v1116 = vunpack.c.l.b16 %v282
  %v1117 = vunpack.c.h.b16 %v282
  %v1118 = vunpack.c.l.b16 %v283
  %v1119 = vunpack.c.h.b16 %v283
  %v1120 = vpack.c.b16 %v610, %v608
  %v1121 = vpack.c.b16 %v611, %v609
  %v1122 = vpack.c.b16 %v614, %v612
  %v1123 = vpack.c.b16 %v615, %v613
  %v1124 = vpack.c.b16 %v618, %v616
  %v1125 = vpack.c.b16 %v619, %v617
  %v1126 = vpack.c.b16 %v622, %v620
  %v1127 = vpack.c.b16 %v623, %v621
  %v1128 = vpack.c.b16 %v626, %v624
  %v1129 = vpack.c.b16 %v627, %v625
  %v1130 = vpack.c.b16 %v630, %v628
  %v1131 = vpack.c.b16 %v631, %v629
  %v1132 = vpack.c.b16 %v634, %v632
  %v1133 = vpack.c.b16 %v635, %v633
  %v1134 = vpack.c.b16 %v638, %v636
  %v1135 = vpack.c.b16 %v639, %v637
  %v1136 = vpack.c.b16 %v642, %v640
  %v1137 = vpack.c.b16 %v643, %v641
  %v1138 = vpack.c.b16 %v646, %v644
  %v1139 = vpack.c.b16 %v647, %v645
  %v1140 = vpack.c.b16 %v650, %v648
  %v1141 = vpack.c.b16 %v651, %v649
  %v1142 = vpack.c.b16 %v654, %v652
  %v1143 = vpack.c.b16 %v655, %v653
  %v1144 = vpack.c.b16 %v658, %v656
  %v1145 = vpack.c.b16 %v659, %v657
  %v1146 = vpack.c.b16 %v662, %v660
  %v1147 = vpack.c.b16 %v663, %v661
  %v1148 = vpack.c.b16 %v666, %v664
  %v1149 = vpack.c.b16 %v667, %v665
  %v1150 = vpack.c.b16 %v670, %v668
  %v1151 = vpack.c.b16 %v671, %v669
  %v1152 = vpack.c.b16 %v674, %v672
  %v1153 = vpack.c.b16 %v675, %v673
  %v1154 = vpack.c.b16 %v678, %v676
  %v1155 = vpack.c.b16 %v679, %v677
  %v1156 = vpack.c.b16 %v682, %v680
  %v1157 = vpack.c.b16 %v683, %v681
  %v1158 = vpack.c.b16 %v686, %v684
  %v1159 = vpack.c.b16 %v687, %v685
  %v1160 = vpack.c.b16 %v690, %v688
  %v1161 = vpack.c.b16 %v691, %v689
  %v1162 = vpack.c.b16 %v694, %v692
  %v1163 = vpack.c.b16 %v695, %v693
  %v1164 = vpack.c.b16 %v698, %v696
  %v1165 = vpack.c.b16 %v699, %v697
  %v1166 = vpack.c.b16 %v702, %v700
  %v1167 = vpack.c.b16 %v703, %v701
  %v1168 = vpack.c.b16 %v706, %v704
  %v1169 = vpack.c.b16 %v707, %v705
  %v1170 = vpack.c.b16 %v710, %v708
  %v1171 = vpack.c.b16 %v711, %v709
  %v1172 = vpack.c.b16 %v714, %v712
  %v1173 = vpack.c.b16 %v715, %v713
  %v1174 = vpack.c.b16 %v718, %v716
  %v1175 = vpack.c.b16 %v719, %v717
  %v1176 = vpack.c.b16 %v722, %v720
  %v1177 = vpack.c.b16 %v723, %v721
  %v1178 = vpack.c.b16 %v726, %v724
  %v1179 = vpack.c.b16 %v727, %v725
  %v1180 = vpack.c.b16 %v730, %v728
  %v1181 = vpack.c.b16 %v731, %v729
  %v1182 = vpack.c.b16 %v734, %v732
  %v1183 = vpack.c.b16 %v735, %v733
  %v1184 = vpack.c.b16 %v738, %v736
  %v1185 = vpack.c.b16 %v739, %v737
  %v1186 = vpack.c.b16 %v742, %v740
  %v1187 = vpack.c.b16 %v743, %v741
  %v1188 = vpack.c.b16 %v746, %v744
  %v1189 = vpack.c.b16 %v747, %v745
  %v1190 = vpack.c.b16 %v750, %v748
  %v1191 = vpack.c.b16 %v751, %v749
  %v1192 = vpack.c.b16 %v754, %v752
  %v1193 = vpack.c.b16 %v755, %v753
  %v1194 = vpack.c.b16 %v758, %v756
  %v1195 = vpack.c.b16 %v759, %v757
  %v1196 = vpack.c.b16 %v762, %v760
  %v1197 = vpack.c.b16 %v763, %v761
  %v1198 = vpack.c.b16 %v766, %v764
  %v1199 = vpack.c.b16 %v767, %v765
  %v1200 = vpack.c.b16 %v770, %v768
  %v1201 = vpack.c.b16 %v771, %v769
  %v1202 = vpack.c.b16 %v774, %v772
  %v1203 = vpack.c.b16 %v775, %v773
  %v1204 = vpack.c.b16 %v778, %v776
  %v1205 = vpack.c.b16 %v779, %v777
  %v1206 = vpack.c.b16 %v782, %v780
  %v1207 = vpack.c.b16 %v783, %v781
  %v1208 = vpack.c.b16 %v786, %v784
  %v1209 = vpack.c.b16 %v787, %v785
  %v1210 = vpack.c.b16 %v790, %v788
  %v1211 = vpack.c.b16 %v791, %v789
  %v1212 = vpack.c.b16 %v794, %v792
  %v1213 = vpack.c.b16 %v795, %v793
  %v1214 = vpack.c.b16 %v798, %v796
  %v1215 = vpack.c.b16 %v799, %v797
  %v1216 = vpack.c.b16 %v802, %v800
  %v1217 = vpack.c.b16 %v803, %v801
  %v1218 = vpack.c.b16 %v806, %v804
  %v1219 = vpack.c.b16 %v807, %v805
  %v1220 = vpack.c.b16 %v810, %v808
  %v1221 = vpack.c.b16 %v811, %v809
  %v1222 = vpack.c.b16 %v814, %v812
  %v1223 = vpack.c.b16 %v815, %v813
  %v1224 = vpack.c.b16 %v818, %v816
  %v1225 = vpack.c.b16 %v819, %v817
  %v1226 = vpack.c.b16 %v822, %v820
  %v1227 = vpack.c.b16 %v823, %v821
  %v1228 = vpack.c.b16 %v826, %v824
  %v1229 = vpack.c.b16 %v827, %v825
  %v1230 = vpack.c.b16 %v830, %v828
  %v1231 = vpack.c.b16 %v831, %v829
  %v1232 = vpack.c.b16 %v834, %v832
  %v1233 = vpack.c.b16 %v835, %v833
  %v1234 = vpack.c.b16 %v838, %v836
  %v1235 = vpack.c.b16 %v839, %v837
  %v1236 = vpack.c.b16 %v842, %v840
  %v1237 = vpack.c.b16 %v843, %v841
  %v1238 = vpack.c.b16 %v846, %v844
  %v1239 = vpack.c.b16 %v847, %v845
  %v1240 = vpack.c.b16 %v850, %v848
  %v1241 = vpack.c.b16 %v851, %v849
  %v1242 = vpack.c.b16 %v854, %v852
  %v1243 = vpack.c.b16 %v855, %v853
  %v1244 = vpack.c.b16 %v858, %v856
  %v1245 = vpack.c.b16 %v859, %v857
  %v1246 = vpack.c.b16 %v862, %v860
  %v1247 = vpack.c.b16 %v863, %v861
  %v1248 = vpack.c.b16 %v866, %v864
  %v1249 = vpack.c.b16 %v867, %v865
  %v1250 = vpack.c.b16 %v870, %v868
  %v1251 = vpack.c.b16 %v871, %v869
  %v1252 = vpack.c.b16 %v874, %v872
  %v1253 = vpack.c.b16 %v875, %v873
  %v1254 = vpack.c.b16 %v878, %v876
  %v1255 = vpack.c.b16 %v879, %v877
  %v1256 = vpack.c.b16 %v882, %v880
  %v1257 = vpack.c.b16 %v883, %v881
  %v1258 = vpack.c.b16 %v886, %v884
  %v1259 = vpack.c.b16 %v887, %v885
  %v1260 = vpack.c.b16 %v890, %v888
  %v1261 = vpack.c.b16 %v891, %v889
  %v1262 = vpack.c.b16 %v894, %v892
  %v1263 = vpack.c.b16 %v895, %v893
  %v1264 = vpack.c.b16 %v898, %v896
  %v1265 = vpack.c.b16 %v899, %v897
  %v1266 = vpack.c.b16 %v902, %v900
  %v1267 = vpack.c.b16 %v903, %v901
  %v1268 = vpack.c.b16 %v906, %v904
  %v1269 = vpack.c.b16 %v907, %v905
  %v1270 = vpack.c.b16 %v910, %v908
  %v1271 = vpack.c.b16 %v911, %v909
  %v1272 = vpack.c.b16 %v914, %v912
  %v1273 = vpack.c.b16 %v915, %v913
  %v1274 = vpack.c.b16 %v918, %v916
  %v1275 = vpack.c.b16 %v919, %v917
  %v1276 = vpack.c.b16 %v922, %v920
  %v1277 = vpack.c.b16 %v923, %v921
  %v1278 = vpack.c.b16 %v926, %v924
  %v1279 = vpack.c.b16 %v927, %v925
  %v1280 = vpack.c.b16 %v930, %v928
  %v1281 = vpack.c.b16 %v931, %v929
  %v1282 = vpack.c.b16 %v934, %v932
  %v1283 = vpack.c.b16 %v935, %v933
  %v1284 = vpack.c.b16 %v938, %v936
  %v1285 = vpack.c.b16 %v939, %v937
  %v1286 = vpack.c.b16 %v942, %v940
  %v1287 = vpack.c.b16 %v943, %v941
  %v1288 = vpack.c.b16 %v946, %v944
  %v1289 = vpack.c.b16 %v947, %v945
  %v1290 = vpack.c.b16 %v950, %v948
  %v1291 = vpack.c.b16 %v951, %v949
  %v1292 = vpack.c.b16 %v954, %v952
  %v1293 = vpack.c.b16 %v955, %v953
  %v1294 = vpack.c.b16 %v958, %v956
  %v1295 = vpack.c.b16 %v959, %v957
  %v1296 = vpack.c.b16 %v962, %v960
  %v1297 = vpack.c.b16 %v963, %v961
  %v1298 = vpack.c.b16 %v966, %v964
  %v1299 = vpack.c.b16 %v967, %v965
  %v1300 = vpack.c.b16 %v970, %v968
  %v1301 = vpack.c.b16 %v971, %v969
  %v1302 = vpack.c.b16 %v974, %v972
  %v1303 = vpack.c.b16 %v975, %v973
  %v1304 = vpack.c.b16 %v978, %v976
  %v1305 = vpack.c.b16 %v979, %v977
  %v1306 = vpack.c.b16 %v982, %v980
  %v1307 = vpack.c.b16 %v983, %v981
  %v1308 = vpack.c.b16 %v986, %v984
  %v1309 = vpack.c.b16 %v987, %v985
  %v1310 = vpack.c.b16 %v990, %v988
  %v1311 = vpack.c.b16 %v991, %v989
  %v1312 = vpack.c.b16 %v994, %v992
  %v1313 = vpack.c.b16 %v995, %v993
  %v1314 = vpack.c.b16 %v998, %v996
  %v1315 = vpack.c.b16 %v999, %v997
  %v1316 = vpack.c.b16 %v1002, %v1000
  %v1317 = vpack.c.b16 %v1003, %v1001
  %v1318 = vpack.c.b16 %v1006, %v1004
  %v1319 = vpack.c.b16 %v1007, %v1005
  %v1320 = vpack.c.b16 %v1010, %v1008
  %v1321 = vpack.c.b16 %v1011, %v1009
  %v1322 = vpack.c.b16 %v1014, %v1012
  %v1323 = vpack.c.b16 %v1015, %v1013
  %v1324 = vpack.c.b16 %v1018, %v1016
  %v1325 = vpack.c.b16 %v1019, %v1017
  %v1326 = vpack.c.b16 %v1022, %v1020
  %v1327 = vpack.c.b16 %v1023, %v1021
  %v1328 = vpack.c.b16 %v1026, %v1024
  %v1329 = vpack.c.b16 %v1027, %v1025
  %v1330 = vpack.c.b16 %v1030, %v1028
  %v1331 = vpack.c.b16 %v1031, %v1029
  %v1332 = vpack.c.b16 %v1034, %v1032
  %v1333 = vpack.c.b16 %v1035, %v1033
  %v1334 = vpack.c.b16 %v1038, %v1036
  %v1335 = vpack.c.b16 %v1039, %v1037
  %v1336 = vpack.c.b16 %v1042, %v1040
  %v1337 = vpack.c.b16 %v1043, %v1041
  %v1338 = vpack.c.b16 %v1046, %v1044
  %v1339 = vpack.c.b16 %v1047, %v1045
  %v1340 = vpack.c.b16 %v1050, %v1048
  %v1341 = vpack.c.b16 %v1051, %v1049
  %v1342 = vpack.c.b16 %v1054, %v1052
  %v1343 = vpack.c.b16 %v1055, %v1053
  %v1344 = vpack.c.b16 %v1058, %v1056
  %v1345 = vpack.c.b16 %v1059, %v1057
  %v1346 = vpack.c.b16 %v1062, %v1060
  %v1347 = vpack.c.b16 %v1063, %v1061
  %v1348 = vpack.c.b16 %v1066, %v1064
  %v1349 = vpack.c.b16 %v1067, %v1065
  %v1350 = vpack.c.b16 %v1070, %v1068
  %v1351 = vpack.c.b16 %v1071, %v1069
  %v1352 = vpack.c.b16 %v1074, %v1072
  %v1353 = vpack.c.b16 %v1075, %v1073
  %v1354 = vpack.c.b16 %v1078, %v1076
  %v1355 = vpack.c.b16 %v1079, %v1077
  %v1356 = vpack.c.b16 %v1082, %v1080
  %v1357 = vpack.c.b16 %v1083, %v1081
  %v1358 = vpack.c.b16 %v1086, %v1084
  %v1359 = vpack.c.b16 %v1087, %v1085
  %v1360 = vpack.c.b16 %v1090, %v1088
  %v1361 = vpack.c.b16 %v1091, %v1089
  %v1362 = vpack.c.b16 %v1094, %v1092
  %v1363 = vpack.c.b16 %v1095, %v1093
  %v1364 = vpack.c.b16 %v1098, %v1096
  %v1365 = vpack.c.b16 %v1099, %v1097
  %v1366 = vpack.c.b16 %v1102, %v1100
  %v1367 = vpack.c.b16 %v1103, %v1101
  %v1368 = vpack.c.b16 %v1106, %v1104
  %v1369 = vpack.c.b16 %v1107, %v1105
  %v1370 = vpack.c.b16 %v1110, %v1108
  %v1371 = vpack.c.b16 %v1111, %v1109
  %v1372 = vpack.c.b16 %v1114, %v1112
  %v1373 = vpack.c.b16 %v1115, %v1113
  %v1374 = vpack.c.b16 %v1118, %v1116
  %v1375 = vpack.c.b16 %v1119, %v1117
  %1632 = vmatprep.subr.bf16.mxu0 %v1121
  %1633 = vmatpush1.bf16.msra.mxu0 %v1120
  %1634 = vmatprep.subr.bf16.mxu0 %v1123
  %1635 = vmatpush1.bf16.msra.mxu0 %v1122
  %1636 = vmatprep.subr.bf16.mxu0 %v1125
  %1637 = vmatpush1.bf16.msra.mxu0 %v1124
  %1638 = vmatprep.subr.bf16.mxu0 %v1127
  %1639 = vmatpush1.bf16.msra.mxu0 %v1126
  %1640 = vmatprep.subr.bf16.mxu0 %v1129
  %1641 = vmatpush1.bf16.msra.mxu0 %v1128
  %1642 = vmatprep.subr.bf16.mxu0 %v1131
  %1643 = vmatpush1.bf16.msra.mxu0 %v1130
  %1644 = vmatprep.subr.bf16.mxu0 %v1133
  %1645 = vmatpush1.bf16.msra.mxu0 %v1132
  %1646 = vmatprep.subr.bf16.mxu0 %v1135
  %1647 = vmatpush1.bf16.msra.mxu0 %v1134
  %1648 = vmatprep.subr.bf16.mxu0 %v1137
  %1649 = vmatpush1.bf16.msra.mxu0 %v1136
  %1650 = vmatprep.subr.bf16.mxu0 %v1139
  %1651 = vmatpush1.bf16.msra.mxu0 %v1138
  %1652 = vmatprep.subr.bf16.mxu0 %v1141
  %1653 = vmatpush1.bf16.msra.mxu0 %v1140
  %1654 = vmatprep.subr.bf16.mxu0 %v1143
  %1655 = vmatpush1.bf16.msra.mxu0 %v1142
  %1656 = vmatprep.subr.bf16.mxu0 %v1145
  %1657 = vmatpush1.bf16.msra.mxu0 %v1144
  %1658 = vmatprep.subr.bf16.mxu0 %v1147
  %1659 = vmatpush1.bf16.msra.mxu0 %v1146
  %1660 = vmatprep.subr.bf16.mxu0 %v1149
  %1661 = vmatpush1.bf16.msra.mxu0 %v1148
  %1662 = vmatprep.subr.bf16.mxu0 %v1151
  %1663 = vmatpush1.bf16.msra.mxu0 %v1150
  %1664 = vmatprep.mubr.bf16.mxu0 %v321
  %1665 = vmatmul.mubr.bf16.gmra.mrb[0].mxu0 %v320
  %v1666 = vpop.f32.mrb[0].mxu0
  %v1667 = vadd.f32 %v289, %v1666
  %v1668 = vpop.f32.mrb[0].mxu0
  %v1669 = vadd.f32 %v293, %v1668
  %v1670 = vpop.f32.mrb[0].mxu0
  %v1671 = vpop.f32.mrb[0].mxu0
  %1672 = vdwg.mxu0
  %1673 = vmatprep.subr.bf16.mxu0 %v1153
  %1674 = vmatpush1.bf16.msra.mxu0 %v1152
  %1675 = vmatprep.subr.bf16.mxu0 %v1155
  %1676 = vmatpush1.bf16.msra.mxu0 %v1154
  %1677 = vmatprep.subr.bf16.mxu0 %v1157
  %1678 = vmatpush1.bf16.msra.mxu0 %v1156
  %1679 = vmatprep.subr.bf16.mxu0 %v1159
  %1680 = vmatpush1.bf16.msra.mxu0 %v1158
  %1681 = vmatprep.subr.bf16.mxu0 %v1161
  %1682 = vmatpush1.bf16.msra.mxu0 %v1160
  %1683 = vmatprep.subr.bf16.mxu0 %v1163
  %1684 = vmatpush1.bf16.msra.mxu0 %v1162
  %1685 = vmatprep.subr.bf16.mxu0 %v1165
  %1686 = vmatpush1.bf16.msra.mxu0 %v1164
  %1687 = vmatprep.subr.bf16.mxu0 %v1167
  %1688 = vmatpush1.bf16.msra.mxu0 %v1166
  %1689 = vmatprep.subr.bf16.mxu0 %v1169
  %1690 = vmatpush1.bf16.msra.mxu0 %v1168
  %1691 = vmatprep.subr.bf16.mxu0 %v1171
  %1692 = vmatpush1.bf16.msra.mxu0 %v1170
  %1693 = vmatprep.subr.bf16.mxu0 %v1173
  %1694 = vmatpush1.bf16.msra.mxu0 %v1172
  %1695 = vmatprep.subr.bf16.mxu0 %v1175
  %1696 = vmatpush1.bf16.msra.mxu0 %v1174
  %1697 = vmatprep.subr.bf16.mxu0 %v1177
  %1698 = vmatpush1.bf16.msra.mxu0 %v1176
  %1699 = vmatprep.subr.bf16.mxu0 %v1179
  %1700 = vmatpush1.bf16.msra.mxu0 %v1178
  %1701 = vmatprep.subr.bf16.mxu0 %v1181
  %1702 = vmatpush1.bf16.msra.mxu0 %v1180
  %1703 = vmatprep.subr.bf16.mxu0 %v1183
  %1704 = vmatpush1.bf16.msra.mxu0 %v1182
  %1705 = vmatprep.mubr.bf16.mxu0 %v323
  %1706 = vmatmul.mubr.bf16.gmra.mrb[0].mxu0 %v322
  %v1707 = vpop.f32.mrb[0].mxu0
  %v1708 = vadd.f32 %v1667, %v1707
  %v1709 = vpop.f32.mrb[0].mxu0
  %v1710 = vadd.f32 %v1669, %v1709
  %v1711 = vpop.f32.mrb[0].mxu0
  %v1712 = vpop.f32.mrb[0].mxu0
  %1713 = vdwg.mxu0
  %1714 = vmatprep.subr.bf16.mxu0 %v1185
  %1715 = vmatpush1.bf16.msra.mxu0 %v1184
  %1716 = vmatprep.subr.bf16.mxu0 %v1187
  %1717 = vmatpush1.bf16.msra.mxu0 %v1186
  %1718 = vmatprep.subr.bf16.mxu0 %v1189
  %1719 = vmatpush1.bf16.msra.mxu0 %v1188
  %1720 = vmatprep.subr.bf16.mxu0 %v1191
  %1721 = vmatpush1.bf16.msra.mxu0 %v1190
  %1722 = vmatprep.subr.bf16.mxu0 %v1193
  %1723 = vmatpush1.bf16.msra.mxu0 %v1192
  %1724 = vmatprep.subr.bf16.mxu0 %v1195
  %1725 = vmatpush1.bf16.msra.mxu0 %v1194
  %1726 = vmatprep.subr.bf16.mxu0 %v1197
  %1727 = vmatpush1.bf16.msra.mxu0 %v1196
  %1728 = vmatprep.subr.bf16.mxu0 %v1199
  %1729 = vmatpush1.bf16.msra.mxu0 %v1198
  %1730 = vmatprep.subr.bf16.mxu0 %v1201
  %1731 = vmatpush1.bf16.msra.mxu0 %v1200
  %1732 = vmatprep.subr.bf16.mxu0 %v1203
  %1733 = vmatpush1.bf16.msra.mxu0 %v1202
  %1734 = vmatprep.subr.bf16.mxu0 %v1205
  %1735 = vmatpush1.bf16.msra.mxu0 %v1204
  %1736 = vmatprep.subr.bf16.mxu0 %v1207
  %1737 = vmatpush1.bf16.msra.mxu0 %v1206
  %1738 = vmatprep.subr.bf16.mxu0 %v1209
  %1739 = vmatpush1.bf16.msra.mxu0 %v1208
  %1740 = vmatprep.subr.bf16.mxu0 %v1211
  %1741 = vmatpush1.bf16.msra.mxu0 %v1210
  %1742 = vmatprep.subr.bf16.mxu0 %v1213
  %1743 = vmatpush1.bf16.msra.mxu0 %v1212
  %1744 = vmatprep.subr.bf16.mxu0 %v1215
  %1745 = vmatpush1.bf16.msra.mxu0 %v1214
  %1746 = vmatprep.mubr.bf16.mxu0 %v325
  %1747 = vmatmul.mubr.bf16.gmra.mrb[0].mxu0 %v324
  %v1748 = vpop.f32.mrb[0].mxu0
  %v1749 = vadd.f32 %v1708, %v1748
  %v1750 = vpop.f32.mrb[0].mxu0
  %v1751 = vadd.f32 %v1710, %v1750
  %v1752 = vpop.f32.mrb[0].mxu0
  %v1753 = vpop.f32.mrb[0].mxu0
  %1754 = vdwg.mxu0
  %1755 = vmatprep.subr.bf16.mxu0 %v1217
  %1756 = vmatpush1.bf16.msra.mxu0 %v1216
  %1757 = vmatprep.subr.bf16.mxu0 %v1219
  %1758 = vmatpush1.bf16.msra.mxu0 %v1218
  %1759 = vmatprep.subr.bf16.mxu0 %v1221
  %1760 = vmatpush1.bf16.msra.mxu0 %v1220
  %1761 = vmatprep.subr.bf16.mxu0 %v1223
  %1762 = vmatpush1.bf16.msra.mxu0 %v1222
  %1763 = vmatprep.subr.bf16.mxu0 %v1225
  %1764 = vmatpush1.bf16.msra.mxu0 %v1224
  %1765 = vmatprep.subr.bf16.mxu0 %v1227
  %1766 = vmatpush1.bf16.msra.mxu0 %v1226
  %1767 = vmatprep.subr.bf16.mxu0 %v1229
  %1768 = vmatpush1.bf16.msra.mxu0 %v1228
  %1769 = vmatprep.subr.bf16.mxu0 %v1231
  %1770 = vmatpush1.bf16.msra.mxu0 %v1230
  %1771 = vmatprep.subr.bf16.mxu0 %v1233
  %1772 = vmatpush1.bf16.msra.mxu0 %v1232
  %1773 = vmatprep.subr.bf16.mxu0 %v1235
  %1774 = vmatpush1.bf16.msra.mxu0 %v1234
  %1775 = vmatprep.subr.bf16.mxu0 %v1237
  %1776 = vmatpush1.bf16.msra.mxu0 %v1236
  %1777 = vmatprep.subr.bf16.mxu0 %v1239
  %1778 = vmatpush1.bf16.msra.mxu0 %v1238
  %1779 = vmatprep.subr.bf16.mxu0 %v1241
  %1780 = vmatpush1.bf16.msra.mxu0 %v1240
  %1781 = vmatprep.subr.bf16.mxu0 %v1243
  %1782 = vmatpush1.bf16.msra.mxu0 %v1242
  %1783 = vmatprep.subr.bf16.mxu0 %v1245
  %1784 = vmatpush1.bf16.msra.mxu0 %v1244
  %1785 = vmatprep.subr.bf16.mxu0 %v1247
  %1786 = vmatpush1.bf16.msra.mxu0 %v1246
  %1787 = vmatprep.mubr.bf16.mxu0 %v327
  %1788 = vmatmul.mubr.bf16.gmra.mrb[0].mxu0 %v326
  %v1789 = vpop.f32.mrb[0].mxu0
  %v1790 = vadd.f32 %v1749, %v1789
  %v1791 = vpop.f32.mrb[0].mxu0
  %v1792 = vadd.f32 %v1751, %v1791
  %v1793 = vpop.f32.mrb[0].mxu0
  %v1794 = vpop.f32.mrb[0].mxu0
  %1795 = vdwg.mxu0
  %1796 = vmatprep.subr.bf16.mxu0 %v1249
  %1797 = vmatpush1.bf16.msra.mxu0 %v1248
  %1798 = vmatprep.subr.bf16.mxu0 %v1251
  %1799 = vmatpush1.bf16.msra.mxu0 %v1250
  %1800 = vmatprep.subr.bf16.mxu0 %v1253
  %1801 = vmatpush1.bf16.msra.mxu0 %v1252
  %1802 = vmatprep.subr.bf16.mxu0 %v1255
  %1803 = vmatpush1.bf16.msra.mxu0 %v1254
  %1804 = vmatprep.subr.bf16.mxu0 %v1257
  %1805 = vmatpush1.bf16.msra.mxu0 %v1256
  %1806 = vmatprep.subr.bf16.mxu0 %v1259
  %1807 = vmatpush1.bf16.msra.mxu0 %v1258
  %1808 = vmatprep.subr.bf16.mxu0 %v1261
  %1809 = vmatpush1.bf16.msra.mxu0 %v1260
  %1810 = vmatprep.subr.bf16.mxu0 %v1263
  %1811 = vmatpush1.bf16.msra.mxu0 %v1262
  %1812 = vmatprep.subr.bf16.mxu0 %v1265
  %1813 = vmatpush1.bf16.msra.mxu0 %v1264
  %1814 = vmatprep.subr.bf16.mxu0 %v1267
  %1815 = vmatpush1.bf16.msra.mxu0 %v1266
  %1816 = vmatprep.subr.bf16.mxu0 %v1269
  %1817 = vmatpush1.bf16.msra.mxu0 %v1268
  %1818 = vmatprep.subr.bf16.mxu0 %v1271
  %1819 = vmatpush1.bf16.msra.mxu0 %v1270
  %1820 = vmatprep.subr.bf16.mxu0 %v1273
  %1821 = vmatpush1.bf16.msra.mxu0 %v1272
  %1822 = vmatprep.subr.bf16.mxu0 %v1275
  %1823 = vmatpush1.bf16.msra.mxu0 %v1274
  %1824 = vmatprep.subr.bf16.mxu0 %v1277
  %1825 = vmatpush1.bf16.msra.mxu0 %v1276
  %1826 = vmatprep.subr.bf16.mxu0 %v1279
  %1827 = vmatpush1.bf16.msra.mxu0 %v1278
  %1828 = vmatprep.mubr.bf16.mxu0 %v329
  %1829 = vmatmul.mubr.bf16.gmra.mrb[0].mxu0 %v328
  %v1830 = vpop.f32.mrb[0].mxu0
  %v1831 = vadd.f32 %v1790, %v1830
  %v1832 = vpop.f32.mrb[0].mxu0
  %v1833 = vadd.f32 %v1792, %v1832
  %v1834 = vpop.f32.mrb[0].mxu0
  %v1835 = vpop.f32.mrb[0].mxu0
  %1836 = vdwg.mxu0
  %1837 = vmatprep.subr.bf16.mxu0 %v1281
  %1838 = vmatpush1.bf16.msra.mxu0 %v1280
  %1839 = vmatprep.subr.bf16.mxu0 %v1283
  %1840 = vmatpush1.bf16.msra.mxu0 %v1282
  %1841 = vmatprep.subr.bf16.mxu0 %v1285
  %1842 = vmatpush1.bf16.msra.mxu0 %v1284
  %1843 = vmatprep.subr.bf16.mxu0 %v1287
  %1844 = vmatpush1.bf16.msra.mxu0 %v1286
  %1845 = vmatprep.subr.bf16.mxu0 %v1289
  %1846 = vmatpush1.bf16.msra.mxu0 %v1288
  %1847 = vmatprep.subr.bf16.mxu0 %v1291
  %1848 = vmatpush1.bf16.msra.mxu0 %v1290
  %1849 = vmatprep.subr.bf16.mxu0 %v1293
  %1850 = vmatpush1.bf16.msra.mxu0 %v1292
  %1851 = vmatprep.subr.bf16.mxu0 %v1295
  %1852 = vmatpush1.bf16.msra.mxu0 %v1294
  %1853 = vmatprep.subr.bf16.mxu0 %v1297
  %1854 = vmatpush1.bf16.msra.mxu0 %v1296
  %1855 = vmatprep.subr.bf16.mxu0 %v1299
  %1856 = vmatpush1.bf16.msra.mxu0 %v1298
  %1857 = vmatprep.subr.bf16.mxu0 %v1301
  %1858 = vmatpush1.bf16.msra.mxu0 %v1300
  %1859 = vmatprep.subr.bf16.mxu0 %v1303
  %1860 = vmatpush1.bf16.msra.mxu0 %v1302
  %1861 = vmatprep.subr.bf16.mxu0 %v1305
  %1862 = vmatpush1.bf16.msra.mxu0 %v1304
  %1863 = vmatprep.subr.bf16.mxu0 %v1307
  %1864 = vmatpush1.bf16.msra.mxu0 %v1306
  %1865 = vmatprep.subr.bf16.mxu0 %v1309
  %1866 = vmatpush1.bf16.msra.mxu0 %v1308
  %1867 = vmatprep.subr.bf16.mxu0 %v1311
  %1868 = vmatpush1.bf16.msra.mxu0 %v1310
  %1869 = vmatprep.mubr.bf16.mxu0 %v331
  %1870 = vmatmul.mubr.bf16.gmra.mrb[0].mxu0 %v330
  %v1871 = vpop.f32.mrb[0].mxu0
  %v1872 = vadd.f32 %v1831, %v1871
  %v1873 = vpop.f32.mrb[0].mxu0
  %v1874 = vadd.f32 %v1833, %v1873
  %v1875 = vpop.f32.mrb[0].mxu0
  %v1876 = vpop.f32.mrb[0].mxu0
  %1877 = vdwg.mxu0
  %1878 = vmatprep.subr.bf16.mxu0 %v1313
  %1879 = vmatpush1.bf16.msra.mxu0 %v1312
  %1880 = vmatprep.subr.bf16.mxu0 %v1315
  %1881 = vmatpush1.bf16.msra.mxu0 %v1314
  %1882 = vmatprep.subr.bf16.mxu0 %v1317
  %1883 = vmatpush1.bf16.msra.mxu0 %v1316
  %1884 = vmatprep.subr.bf16.mxu0 %v1319
  %1885 = vmatpush1.bf16.msra.mxu0 %v1318
  %1886 = vmatprep.subr.bf16.mxu0 %v1321
  %1887 = vmatpush1.bf16.msra.mxu0 %v1320
  %1888 = vmatprep.subr.bf16.mxu0 %v1323
  %1889 = vmatpush1.bf16.msra.mxu0 %v1322
  %1890 = vmatprep.subr.bf16.mxu0 %v1325
  %1891 = vmatpush1.bf16.msra.mxu0 %v1324
  %1892 = vmatprep.subr.bf16.mxu0 %v1327
  %1893 = vmatpush1.bf16.msra.mxu0 %v1326
  %1894 = vmatprep.subr.bf16.mxu0 %v1329
  %1895 = vmatpush1.bf16.msra.mxu0 %v1328
  %1896 = vmatprep.subr.bf16.mxu0 %v1331
  %1897 = vmatpush1.bf16.msra.mxu0 %v1330
  %1898 = vmatprep.subr.bf16.mxu0 %v1333
  %1899 = vmatpush1.bf16.msra.mxu0 %v1332
  %1900 = vmatprep.subr.bf16.mxu0 %v1335
  %1901 = vmatpush1.bf16.msra.mxu0 %v1334
  %1902 = vmatprep.subr.bf16.mxu0 %v1337
  %1903 = vmatpush1.bf16.msra.mxu0 %v1336
  %1904 = vmatprep.subr.bf16.mxu0 %v1339
  %1905 = vmatpush1.bf16.msra.mxu0 %v1338
  %1906 = vmatprep.subr.bf16.mxu0 %v1341
  %1907 = vmatpush1.bf16.msra.mxu0 %v1340
  %1908 = vmatprep.subr.bf16.mxu0 %v1343
  %1909 = vmatpush1.bf16.msra.mxu0 %v1342
  %1910 = vmatprep.mubr.bf16.mxu0 %v333
  %1911 = vmatmul.mubr.bf16.gmra.mrb[0].mxu0 %v332
  %v1912 = vpop.f32.mrb[0].mxu0
  %v1913 = vadd.f32 %v1872, %v1912
  %v1914 = vpop.f32.mrb[0].mxu0
  %v1915 = vadd.f32 %v1874, %v1914
  %v1916 = vpop.f32.mrb[0].mxu0
  %v1917 = vpop.f32.mrb[0].mxu0
  %1918 = vdwg.mxu0
  %1919 = vmatprep.subr.bf16.mxu0 %v1345
  %1920 = vmatpush1.bf16.msra.mxu0 %v1344
  %1921 = vmatprep.subr.bf16.mxu0 %v1347
  %1922 = vmatpush1.bf16.msra.mxu0 %v1346
  %1923 = vmatprep.subr.bf16.mxu0 %v1349
  %1924 = vmatpush1.bf16.msra.mxu0 %v1348
  %1925 = vmatprep.subr.bf16.mxu0 %v1351
  %1926 = vmatpush1.bf16.msra.mxu0 %v1350
  %1927 = vmatprep.subr.bf16.mxu0 %v1353
  %1928 = vmatpush1.bf16.msra.mxu0 %v1352
  %1929 = vmatprep.subr.bf16.mxu0 %v1355
  %1930 = vmatpush1.bf16.msra.mxu0 %v1354
  %1931 = vmatprep.subr.bf16.mxu0 %v1357
  %1932 = vmatpush1.bf16.msra.mxu0 %v1356
  %1933 = vmatprep.subr.bf16.mxu0 %v1359
  %1934 = vmatpush1.bf16.msra.mxu0 %v1358
  %1935 = vmatprep.subr.bf16.mxu0 %v1361
  %1936 = vmatpush1.bf16.msra.mxu0 %v1360
  %1937 = vmatprep.subr.bf16.mxu0 %v1363
  %1938 = vmatpush1.bf16.msra.mxu0 %v1362
  %1939 = vmatprep.subr.bf16.mxu0 %v1365
  %1940 = vmatpush1.bf16.msra.mxu0 %v1364
  %1941 = vmatprep.subr.bf16.mxu0 %v1367
  %1942 = vmatpush1.bf16.msra.mxu0 %v1366
  %1943 = vmatprep.subr.bf16.mxu0 %v1369
  %1944 = vmatpush1.bf16.msra.mxu0 %v1368
  %1945 = vmatprep.subr.bf16.mxu0 %v1371
  %1946 = vmatpush1.bf16.msra.mxu0 %v1370
  %1947 = vmatprep.subr.bf16.mxu0 %v1373
  %1948 = vmatpush1.bf16.msra.mxu0 %v1372
  %1949 = vmatprep.subr.bf16.mxu0 %v1375
  %1950 = vmatpush1.bf16.msra.mxu0 %v1374
  %1951 = vmatprep.mubr.bf16.mxu0 %v335
  %1952 = vmatmul.mubr.bf16.gmra.mrb[0].mxu0 %v334
  %v1953 = vpop.f32.mrb[0].mxu0
  %v1954 = vadd.f32 %v1913, %v1953
  %v1955 = vpop.f32.mrb[0].mxu0
  %v1956 = vadd.f32 %v1915, %v1955
  %v1957 = vpop.f32.mrb[0].mxu0
  %v1958 = vpop.f32.mrb[0].mxu0
  %1959 = vdwg.mxu0
  %v1960 = vld [vmem:[%s3] sm:$0x3]
  %v1961 = vld [vmem:[%s4] sm:$0x3]
  %v1962 = vrot.slane %v1954, 4
  %v1963 = vadd.f32 %v1954, %v1962
  %v1964 = vrot.slane %v1963, 2
  %v1965 = vadd.f32 %v1963, %v1964
  %v1966 = vrot.slane %v1965, 1
  %v1967 = vadd.f32 %v1965, %v1966
  %v1968 = vrot.slane %v1956, 4
  %v1969 = vadd.f32 %v1956, %v1968
  %v1970 = vrot.slane %v1969, 2
  %v1971 = vadd.f32 %v1969, %v1970
  %v1972 = vrot.slane %v1971, 1
  %v1973 = vadd.f32 %v1971, %v1972
  %v1974 = vmul.f32 %v1954, %v1954
  %v1975 = vmul.f32 %v1956, %v1956
  %v1976 = vrot.slane %v1974, 4
  %v1977 = vadd.f32 %v1974, %v1976
  %v1978 = vrot.slane %v1977, 2
  %v1979 = vadd.f32 %v1977, %v1978
  %v1980 = vrot.slane %v1979, 1
  %v1981 = vadd.f32 %v1979, %v1980
  %v1982 = vrot.slane %v1975, 4
  %v1983 = vadd.f32 %v1975, %v1982
  %v1984 = vrot.slane %v1983, 2
  %v1985 = vadd.f32 %v1983, %v1984
  %v1986 = vrot.slane %v1985, 1
  %v1987 = vadd.f32 %v1985, %v1986
  %v1988 = vmul.f32 %v1967, 0.125
  %v1989 = vmul.f32 %v1973, 0.125
  %v1990 = vmul.f32 %v1981, 0.125
  %v1991 = vmul.f32 %v1987, 0.125
  %v1992 = vmul.f32 %v1988, %v1988
  %v1993 = vmul.f32 %v1989, %v1989
  %v1994 = vsub.f32 %v1990, %v1992
  %v1995 = vsub.f32 %v1991, %v1993
  %v1996 = vmax.f32 %v1994, 0.0
  %v1997 = vmax.f32 %v1995, 0.0
  %v1998 = vadd.f32 %v1996, 1e-05
  %v1999 = vadd.f32 %v1997, 1e-05
  %v2000 = vrsqrt.pop %v1998
  %v2001 = vrsqrt.pop %v1999
  %v2004 = vcombine.low %v2000, %v2001
  %v2006 = vunpack.c.l.s4 1966171168
  %v2007 = vunpack.c.0.s8 %v2006
  %v2008 = vlaneseq
  %v2009 = vshrl.u32 %v2008, 7
  %v2010 = vsub.s32 %v2007, %v2009
  %v2011 = vrot.slane %v2004, %v2010
  %v2013 = vunpack.c.l.s4 1966171168
  %v2014 = vunpack.c.0.s8 %v2013
  %v2015 = vlaneseq
  %v2016 = vshrl.u32 %v2015, 7
  %v2017 = vsub.s32 %v2014, %v2016
  %v2018 = vrot.slane %v2011, %v2017
  %v2020 = vmul.f32 %v1960, %v2018
  %v2022 = vlaneseq
  %v2023 = vshrl.u32 %v2022, 7
  %v2024 = vsub.s32 0, %v2023
  %v2025 = vrot.slane %v2020, %v2024
  %v2026 = vlaneseq
  %v2027 = vshrl.u32 %v2026, 7
  %v2028 = vsub.s32 1, %v2027
  %v2029 = vrot.slane %v2020, %v2028
  %v2032 = vmul.f32 %v1988, %v2025
  %v2033 = vmul.f32 %v1989, %v2029
  %v2036 = vcombine.low %v2032, %v2033
  %v2038 = vunpack.c.l.s4 1966171168
  %v2039 = vunpack.c.0.s8 %v2038
  %v2040 = vlaneseq
  %v2041 = vshrl.u32 %v2040, 7
  %v2042 = vsub.s32 %v2039, %v2041
  %v2043 = vrot.slane %v2036, %v2042
  %v2045 = vunpack.c.l.s4 1966171168
  %v2046 = vunpack.c.0.s8 %v2045
  %v2047 = vlaneseq
  %v2048 = vshrl.u32 %v2047, 7
  %v2049 = vsub.s32 %v2046, %v2048
  %v2050 = vrot.slane %v2043, %v2049
  %v2052 = vsub.f32 %v1961, %v2050
  %v2053 = vmul.f32 %v1954, %v2025
  %v2054 = vmul.f32 %v1956, %v2029
  %v2056 = vlaneseq
  %v2057 = vshrl.u32 %v2056, 7
  %v2058 = vsub.s32 0, %v2057
  %v2059 = vrot.slane %v2052, %v2058
  %v2060 = vlaneseq
  %v2061 = vshrl.u32 %v2060, 7
  %v2062 = vsub.s32 1, %v2061
  %v2063 = vrot.slane %v2052, %v2062
  %v2066 = vadd.f32 %v2053, %v2059
  %v2067 = vadd.f32 %v2054, %v2063
  %vm2068 = vcmp.ge.f32.partialorder %v2066, 0.0
  %vm2069 = vcmp.ge.f32.partialorder %v2067, 0.0
  %v2070 = vmul.f32 %v2066, 0.2
  %v2071 = vmul.f32 %v2067, 0.2
  %v2072 = vsel %vm2068, %v2066, %v2070
  %v2073 = vsel %vm2069, %v2067, %v2071
  %v2074 = vpack.c.bf16 %v2072, %v2072
  %v2075 = vpack.c.bf16 %v2073, %v2073
  %v2078 = vunpack.c.l.b16 %v2074
  %v2079 = vunpack.c.l.b16 %v2075
  %v2080 = vpack.c.b16 %v2079, %v2078
  %2082 = vst [vmem:[%s5] sm:$0xff] %v2080
  // Predicated region
  $region22: #{discriminator_forward.8} parent=0 // pred_check
    _
  $region23: #{discriminator_forward.8} parent=0 // pred_check_branch
    %2084 = sbr.rel (0) target = $region25
  $region24: #{discriminator_forward.8} parent=0 // pred_region
    _
  $region25: #{discriminator_forward.8} parent=0 // pred_fallthru
    _
  // Predicated region
  $region26: #{discriminator_forward.8} parent=0 // pred_check
    _
  $region27: #{discriminator_forward.8} parent=0 // pred_check_branch
    %2086 = sbr.rel (0) target = $region29
  $region28: #{discriminator_forward.8} parent=0 // pred_region
    _
  $region29: #{discriminator_forward.8} parent=0 // pred_fallthru
    _

// kernel: discriminator_forward.9
$region0: #{discriminator_forward.9}
  #allocation0 [shape = 'u32[]', space=smem, size = 0x4, offset = 0x4, fixed_abs, tag = 'smem constant byte address 0x4 - core index']
  #allocation1 [shape = 'u32[144,128]{1,0:T(1,128)}', space=vmem, size = 0x12000, scoped, tag = 'internal scratch']
  #allocation2 [shape = 'f32[1,1]{1,0:T(1,128)S(1)}', space=vmem, size = 0x200, scoped, tag = 'scoped memory for discriminator_forward.9']
  #allocation3 [shape = 'f32[1,1]{1,0:T(1,128)S(1)}', space=vmem, size = 0x200, scoped, tag = 'scoped memory for discriminator_forward.9']
  #allocation4 [shape = 'f32[1,1]{1,0:T(1,128)S(1)}', space=vmem, size = 0x200, scoped, tag = 'scoped memory for discriminator_forward.9']
  %s0 = inlined_call_operand.vmem [shape: bf16[2,1024], index: 0, kind: input, shape index: {}]
  %s1 = inlined_call_operand.vmem [shape: bf16[1024,512], index: 1, kind: input, shape index: {}]
  %s2 = inlined_call_operand.vmem [shape: bf16[512,512], index: 2, kind: input, shape index: {}]
  %s3 = inlined_call_operand.vmem [shape: bf16[512,512], index: 3, kind: input, shape index: {}]
  %s4 = inlined_call_operand.vmem [shape: bf16[512,1], index: 4, kind: input, shape index: {}]
  %s5 = inlined_call_operand.vmem [shape: f32[1,512], index: 5, kind: input, shape index: {}]
  %s6 = inlined_call_operand.vmem [shape: f32[1,512], index: 6, kind: input, shape index: {}]
  %s7 = inlined_call_operand.vmem [shape: f32[1,512], index: 7, kind: input, shape index: {}]
  %s8 = inlined_call_operand.<no memory space> [shape: f32[1,1], index: 8, kind: input, shape index: {}]
  %s9 = inlined_call_operand.vmem [shape: f32[1,512], index: 9, kind: input, shape index: {}]
  %s10 = inlined_call_operand.vmem [shape: f32[1,512], index: 10, kind: input, shape index: {}]
  %s11 = inlined_call_operand.vmem [shape: f32[1,512], index: 11, kind: input, shape index: {}]
  %s12 = inlined_call_operand.<no memory space> [shape: f32[1,1], index: 12, kind: input, shape index: {}]
  %s13 = inlined_call_operand.vmem [shape: f32[1,512], index: 13, kind: input, shape index: {}]
  %s14 = inlined_call_operand.vmem [shape: f32[1,512], index: 14, kind: input, shape index: {}]
  %s15 = inlined_call_operand.vmem [shape: f32[1,512], index: 15, kind: input, shape index: {}]
  %s16 = inlined_call_operand.<no memory space> [shape: f32[1,1], index: 16, kind: input, shape index: {}]
  %s17 = inlined_call_operand.vmem [shape: f32[2,1], index: 17, kind: output, shape index: {}]
  %s18 = sld [smem:[#allocation0]]
  $region78: #{discriminator_forward.9} parent=0
    _
  %s20 = ssub.s32 1, %s18
  %s21 = scalar_select 0, %s20, %s18
  %v22 = vstv %s8
  %23 = vst [vmem:[#allocation2] sm:$0x1] %v22
  %v24 = vstv %s12
  %25 = vst [vmem:[#allocation3] sm:$0x1] %v24
  %v26 = vstv %s16
  %27 = vst [vmem:[#allocation4] sm:$0x1] %v26
  // Predicated region
  $region2: #{discriminator_forward.9} parent=0 // pred_check
    _
  $region3: #{discriminator_forward.9} parent=0 // pred_check_branch
    %29 = sbr.rel (0) target = $region5
  $region4: #{discriminator_forward.9} parent=0 // pred_region
    _
  $region5: #{discriminator_forward.9} parent=0 // pred_fallthru
    _
  // Predicated region
  $region6: #{discriminator_forward.9} parent=0 // pred_check
    _
  $region7: #{discriminator_forward.9} parent=0 // pred_check_branch
    %31 = sbr.rel (0) target = $region9
  $region8: #{discriminator_forward.9} parent=0 // pred_region
    _
  $region9: #{discriminator_forward.9} parent=0 // pred_fallthru
    _
  // Predicated region
  $region10: #{discriminator_forward.9} parent=0 // pred_check
    _
  $region11: #{discriminator_forward.9} parent=0 // pred_check_branch
    %33 = sbr.rel (0) target = $region13
  $region12: #{discriminator_forward.9} parent=0 // pred_region
    _
  $region13: #{discriminator_forward.9} parent=0 // pred_fallthru
    _
  // Predicated region
  $region14: #{discriminator_forward.9} parent=0 // pred_check
    _
  $region15: #{discriminator_forward.9} parent=0 // pred_check_branch
    %35 = sbr.rel (0) target = $region17
  $region16: #{discriminator_forward.9} parent=0 // pred_region
    _
  $region17: #{discriminator_forward.9} parent=0 // pred_fallthru
    _
  // Predicated region
  $region18: #{discriminator_forward.9} parent=0 // pred_check
    _
  $region19: #{discriminator_forward.9} parent=0 // pred_check_branch
    %37 = sbr.rel (0) target = $region21
  $region20: #{discriminator_forward.9} parent=0 // pred_region
    _
  $region21: #{discriminator_forward.9} parent=0 // pred_fallthru
    _
  // Predicated region
  $region22: #{discriminator_forward.9} parent=0 // pred_check
    _
  $region23: #{discriminator_forward.9} parent=0 // pred_check_branch
    %39 = sbr.rel (0) target = $region25
  $region24: #{discriminator_forward.9} parent=0 // pred_region
    _
  $region25: #{discriminator_forward.9} parent=0 // pred_fallthru
    _
  // Predicated region
  $region26: #{discriminator_forward.9} parent=0 // pred_check
    _
  $region27: #{discriminator_forward.9} parent=0 // pred_check_branch
    %41 = sbr.rel (0) target = $region29
  $region28: #{discriminator_forward.9} parent=0 // pred_region
    _
  $region29: #{discriminator_forward.9} parent=0 // pred_fallthru
    _
  // Predicated region
  $region30: #{discriminator_forward.9} parent=0 // pred_check
    _
  $region31: #{discriminator_forward.9} parent=0 // pred_check_branch
    %43 = sbr.rel (0) target = $region33
  $region32: #{discriminator_forward.9} parent=0 // pred_region
    _
  $region33: #{discriminator_forward.9} parent=0 // pred_fallthru
    _
  // Predicated region
  $region34: #{discriminator_forward.9} parent=0 // pred_check
    _
  $region35: #{discriminator_forward.9} parent=0 // pred_check_branch
    %45 = sbr.rel (0) target = $region37
  $region36: #{discriminator_forward.9} parent=0 // pred_region
    _
  $region37: #{discriminator_forward.9} parent=0 // pred_fallthru
    _
  // Predicated region
  $region38: #{discriminator_forward.9} parent=0 // pred_check
    _
  $region39: #{discriminator_forward.9} parent=0 // pred_check_branch
    %47 = sbr.rel (0) target = $region41
  $region40: #{discriminator_forward.9} parent=0 // pred_region
    _
  $region41: #{discriminator_forward.9} parent=0 // pred_fallthru
    _
  // Predicated region
  $region42: #{discriminator_forward.9} parent=0 // pred_check
    _
  $region43: #{discriminator_forward.9} parent=0 // pred_check_branch
    %49 = sbr.rel (0) target = $region45
  $region44: #{discriminator_forward.9} parent=0 // pred_region
    _
  $region45: #{discriminator_forward.9} parent=0 // pred_fallthru
    _
  // Predicated region
  $region46: #{discriminator_forward.9} parent=0 // pred_check
    _
  $region47: #{discriminator_forward.9} parent=0 // pred_check_branch
    %51 = sbr.rel (0) target = $region49
  $region48: #{discriminator_forward.9} parent=0 // pred_region
    _
  $region49: #{discriminator_forward.9} parent=0 // pred_fallthru
    _
  // Predicated region
  $region50: #{discriminator_forward.9} parent=0 // pred_check
    _
  $region51: #{discriminator_forward.9} parent=0 // pred_check_branch
    %53 = sbr.rel (0) target = $region53
  $region52: #{discriminator_forward.9} parent=0 // pred_region
    _
  $region53: #{discriminator_forward.9} parent=0 // pred_fallthru
    _
  // Predicated region
  $region54: #{discriminator_forward.9} parent=0 // pred_check
    _
  $region55: #{discriminator_forward.9} parent=0 // pred_check_branch
    %55 = sbr.rel (0) target = $region57
  $region56: #{discriminator_forward.9} parent=0 // pred_region
    _
  $region57: #{discriminator_forward.9} parent=0 // pred_fallthru
    _
  // Predicated region
  $region58: #{discriminator_forward.9} parent=0 // pred_check
    _
  $region59: #{discriminator_forward.9} parent=0 // pred_check_branch
    %57 = sbr.rel (0) target = $region61
  $region60: #{discriminator_forward.9} parent=0 // pred_region
    _
  $region61: #{discriminator_forward.9} parent=0 // pred_fallthru
    _
  // Predicated region
  $region62: #{discriminator_forward.9} parent=0 // pred_check
    _
  $region63: #{discriminator_forward.9} parent=0 // pred_check_branch
    %59 = sbr.rel (0) target = $region65
  $region64: #{discriminator_forward.9} parent=0 // pred_region
    _
  $region65: #{discriminator_forward.9} parent=0 // pred_fallthru
    _
  // Predicated region
  $region66: #{discriminator_forward.9} parent=0 // pred_check
    _
  $region67: #{discriminator_forward.9} parent=0 // pred_check_branch
    %61 = sbr.rel (0) target = $region69
  $region68: #{discriminator_forward.9} parent=0 // pred_region
    _
  $region69: #{discriminator_forward.9} parent=0 // pred_fallthru
    _
  %v63 = vld [vmem:[%s0] sm:$0xff]
  %v64 = vld [vmem:[%s1] sm:$0xff]
  %v65 = vld [vmem:[%s1 + $0x8] sm:$0xff]
  %v66 = vld [vmem:[%s1 + $0x10] sm:$0xff]
  %v67 = vld [vmem:[%s1 + $0x18] sm:$0xff]
  %v68 = vld [vmem:[%s1 + $0x20] sm:$0xff]
  %v69 = vld [vmem:[%s1 + $0x28] sm:$0xff]
  %v70 = vld [vmem:[%s1 + $0x30] sm:$0xff]
  %v71 = vld [vmem:[%s1 + $0x38] sm:$0xff]
  %v72 = vld [vmem:[%s1 + $0x40] sm:$0xff]
  %v73 = vld [vmem:[%s1 + $0x48] sm:$0xff]
  %v74 = vld [vmem:[%s1 + $0x50] sm:$0xff]
  %v75 = vld [vmem:[%s1 + $0x58] sm:$0xff]
  %v76 = vld [vmem:[%s1 + $0x60] sm:$0xff]
  %v77 = vld [vmem:[%s1 + $0x68] sm:$0xff]
  %v78 = vld [vmem:[%s1 + $0x70] sm:$0xff]
  %v79 = vld [vmem:[%s1 + $0x78] sm:$0xff]
  %v80 = vld [vmem:[%s1 + $0x80] sm:$0xff]
  %v81 = vld [vmem:[%s1 + $0x88] sm:$0xff]
  %v82 = vld [vmem:[%s1 + $0x90] sm:$0xff]
  %v83 = vld [vmem:[%s1 + $0x98] sm:$0xff]
  %v84 = vld [vmem:[%s1 + $0xa0] sm:$0xff]
  %v85 = vld [vmem:[%s1 + $0xa8] sm:$0xff]
  %v86 = vld [vmem:[%s1 + $0xb0] sm:$0xff]
  %v87 = vld [vmem:[%s1 + $0xb8] sm:$0xff]
  %v88 = vld [vmem:[%s1 + $0xc0] sm:$0xff]
  %v89 = vld [vmem:[%s1 + $0xc8] sm:$0xff]
  %v90 = vld [vmem:[%s1 + $0xd0] sm:$0xff]
  %v91 = vld [vmem:[%s1 + $0xd8] sm:$0xff]
  %v92 = vld [vmem:[%s1 + $0xe0] sm:$0xff]
  %v93 = vld [vmem:[%s1 + $0xe8] sm:$0xff]
  %v94 = vld [vmem:[%s1 + $0xf0] sm:$0xff]
  %v95 = vld [vmem:[%s1 + $0xf8] sm:$0xff]
  %v96 = vld [vmem:[%s1 + $0x100] sm:$0xff]
  %v97 = vld [vmem:[%s1 + $0x108] sm:$0xff]
  %v98 = vld [vmem:[%s1 + $0x110] sm:$0xff]
  %v99 = vld [vmem:[%s1 + $0x118] sm:$0xff]
  %v100 = vld [vmem:[%s1 + $0x120] sm:$0xff]
  %v101 = vld [vmem:[%s1 + $0x128] sm:$0xff]
  %v102 = vld [vmem:[%s1 + $0x130] sm:$0xff]
  %v103 = vld [vmem:[%s1 + $0x138] sm:$0xff]
  %v104 = vld [vmem:[%s1 + $0x140] sm:$0xff]
  %v105 = vld [vmem:[%s1 + $0x148] sm:$0xff]
  %v106 = vld [vmem:[%s1 + $0x150] sm:$0xff]
  %v107 = vld [vmem:[%s1 + $0x158] sm:$0xff]
  %v108 = vld [vmem:[%s1 + $0x160] sm:$0xff]
  %v109 = vld [vmem:[%s1 + $0x168] sm:$0xff]
  %v110 = vld [vmem:[%s1 + $0x170] sm:$0xff]
  %v111 = vld [vmem:[%s1 + $0x178] sm:$0xff]
  %v112 = vld [vmem:[%s1 + $0x180] sm:$0xff]
  %v113 = vld [vmem:[%s1 + $0x188] sm:$0xff]
  %v114 = vld [vmem:[%s1 + $0x190] sm:$0xff]
  %v115 = vld [vmem:[%s1 + $0x198] sm:$0xff]
  %v116 = vld [vmem:[%s1 + $0x1a0] sm:$0xff]
  %v117 = vld [vmem:[%s1 + $0x1a8] sm:$0xff]
  %v118 = vld [vmem:[%s1 + $0x1b0] sm:$0xff]
  %v119 = vld [vmem:[%s1 + $0x1b8] sm:$0xff]
  %v120 = vld [vmem:[%s1 + $0x1c0] sm:$0xff]
  %v121 = vld [vmem:[%s1 + $0x1c8] sm:$0xff]
  %v122 = vld [vmem:[%s1 + $0x1d0] sm:$0xff]
  %v123 = vld [vmem:[%s1 + $0x1d8] sm:$0xff]
  %v124 = vld [vmem:[%s1 + $0x1e0] sm:$0xff]
  %v125 = vld [vmem:[%s1 + $0x1e8] sm:$0xff]
  %v126 = vld [vmem:[%s1 + $0x1f0] sm:$0xff]
  %v127 = vld [vmem:[%s1 + $0x1f8] sm:$0xff]
  %v128 = vld [vmem:[%s1 + $0x200] sm:$0xff]
  %v129 = vld [vmem:[%s1 + $0x208] sm:$0xff]
  %v130 = vld [vmem:[%s1 + $0x210] sm:$0xff]
  %v131 = vld [vmem:[%s1 + $0x218] sm:$0xff]
  %v132 = vld [vmem:[%s1 + $0x220] sm:$0xff]
  %v133 = vld [vmem:[%s1 + $0x228] sm:$0xff]
  %v134 = vld [vmem:[%s1 + $0x230] sm:$0xff]
  %v135 = vld [vmem:[%s1 + $0x238] sm:$0xff]
  %v136 = vld [vmem:[%s1 + $0x240] sm:$0xff]
  %v137 = vld [vmem:[%s1 + $0x248] sm:$0xff]
  %v138 = vld [vmem:[%s1 + $0x250] sm:$0xff]
  %v139 = vld [vmem:[%s1 + $0x258] sm:$0xff]
  %v140 = vld [vmem:[%s1 + $0x260] sm:$0xff]
  %v141 = vld [vmem:[%s1 + $0x268] sm:$0xff]
  %v142 = vld [vmem:[%s1 + $0x270] sm:$0xff]
  %v143 = vld [vmem:[%s1 + $0x278] sm:$0xff]
  %v144 = vld [vmem:[%s1 + $0x280] sm:$0xff]
  %v145 = vld [vmem:[%s1 + $0x288] sm:$0xff]
  %v146 = vld [vmem:[%s1 + $0x290] sm:$0xff]
  %v147 = vld [vmem:[%s1 + $0x298] sm:$0xff]
  %v148 = vld [vmem:[%s1 + $0x2a0] sm:$0xff]
  %v149 = vld [vmem:[%s1 + $0x2a8] sm:$0xff]
  %v150 = vld [vmem:[%s1 + $0x2b0] sm:$0xff]
  %v151 = vld [vmem:[%s1 + $0x2b8] sm:$0xff]
  %v152 = vld [vmem:[%s1 + $0x2c0] sm:$0xff]
  %v153 = vld [vmem:[%s1 + $0x2c8] sm:$0xff]
  %v154 = vld [vmem:[%s1 + $0x2d0] sm:$0xff]
  %v155 = vld [vmem:[%s1 + $0x2d8] sm:$0xff]
  %v156 = vld [vmem:[%s1 + $0x2e0] sm:$0xff]
  %v157 = vld [vmem:[%s1 + $0x2e8] sm:$0xff]
  %v158 = vld [vmem:[%s1 + $0x2f0] sm:$0xff]
  %v159 = vld [vmem:[%s1 + $0x2f8] sm:$0xff]
  %v160 = vld [vmem:[%s1 + $0x300] sm:$0xff]
  %v161 = vld [vmem:[%s1 + $0x308] sm:$0xff]
  %v162 = vld [vmem:[%s1 + $0x310] sm:$0xff]
  %v163 = vld [vmem:[%s1 + $0x318] sm:$0xff]
  %v164 = vld [vmem:[%s1 + $0x320] sm:$0xff]
  %v165 = vld [vmem:[%s1 + $0x328] sm:$0xff]
  %v166 = vld [vmem:[%s1 + $0x330] sm:$0xff]
  %v167 = vld [vmem:[%s1 + $0x338] sm:$0xff]
  %v168 = vld [vmem:[%s1 + $0x340] sm:$0xff]
  %v169 = vld [vmem:[%s1 + $0x348] sm:$0xff]
  %v170 = vld [vmem:[%s1 + $0x350] sm:$0xff]
  %v171 = vld [vmem:[%s1 + $0x358] sm:$0xff]
  %v172 = vld [vmem:[%s1 + $0x360] sm:$0xff]
  %v173 = vld [vmem:[%s1 + $0x368] sm:$0xff]
  %v174 = vld [vmem:[%s1 + $0x370] sm:$0xff]
  %v175 = vld [vmem:[%s1 + $0x378] sm:$0xff]
  %v176 = vld [vmem:[%s1 + $0x380] sm:$0xff]
  %v177 = vld [vmem:[%s1 + $0x388] sm:$0xff]
  %v178 = vld [vmem:[%s1 + $0x390] sm:$0xff]
  %v179 = vld [vmem:[%s1 + $0x398] sm:$0xff]
  %v180 = vld [vmem:[%s1 + $0x3a0] sm:$0xff]
  %v181 = vld [vmem:[%s1 + $0x3a8] sm:$0xff]
  %v182 = vld [vmem:[%s1 + $0x3b0] sm:$0xff]
  %v183 = vld [vmem:[%s1 + $0x3b8] sm:$0xff]
  %v184 = vld [vmem:[%s1 + $0x3c0] sm:$0xff]
  %v185 = vld [vmem:[%s1 + $0x3c8] sm:$0xff]
  %v186 = vld [vmem:[%s1 + $0x3d0] sm:$0xff]
  %v187 = vld [vmem:[%s1 + $0x3d8] sm:$0xff]
  %v188 = vld [vmem:[%s1 + $0x3e0] sm:$0xff]
  %v189 = vld [vmem:[%s1 + $0x3e8] sm:$0xff]
  %v190 = vld [vmem:[%s1 + $0x3f0] sm:$0xff]
  %v191 = vld [vmem:[%s1 + $0x3f8] sm:$0xff]
  %v192 = vld [vmem:[%s1 + $0x400] sm:$0xff]
  %v193 = vld [vmem:[%s1 + $0x408] sm:$0xff]
  %v194 = vld [vmem:[%s1 + $0x410] sm:$0xff]
  %v195 = vld [vmem:[%s1 + $0x418] sm:$0xff]
  %v196 = vld [vmem:[%s1 + $0x420] sm:$0xff]
  %v197 = vld [vmem:[%s1 + $0x428] sm:$0xff]
  %v198 = vld [vmem:[%s1 + $0x430] sm:$0xff]
  %v199 = vld [vmem:[%s1 + $0x438] sm:$0xff]
  %v200 = vld [vmem:[%s1 + $0x440] sm:$0xff]
  %v201 = vld [vmem:[%s1 + $0x448] sm:$0xff]
  %v202 = vld [vmem:[%s1 + $0x450] sm:$0xff]
  %v203 = vld [vmem:[%s1 + $0x458] sm:$0xff]
  %v204 = vld [vmem:[%s1 + $0x460] sm:$0xff]
  %v205 = vld [vmem:[%s1 + $0x468] sm:$0xff]
  %v206 = vld [vmem:[%s1 + $0x470] sm:$0xff]
  %v207 = vld [vmem:[%s1 + $0x478] sm:$0xff]
  %v208 = vld [vmem:[%s1 + $0x480] sm:$0xff]
  %v209 = vld [vmem:[%s1 + $0x488] sm:$0xff]
  %v210 = vld [vmem:[%s1 + $0x490] sm:$0xff]
  %v211 = vld [vmem:[%s1 + $0x498] sm:$0xff]
  %v212 = vld [vmem:[%s1 + $0x4a0] sm:$0xff]
  %v213 = vld [vmem:[%s1 + $0x4a8] sm:$0xff]
  %v214 = vld [vmem:[%s1 + $0x4b0] sm:$0xff]
  %v215 = vld [vmem:[%s1 + $0x4b8] sm:$0xff]
  %v216 = vld [vmem:[%s1 + $0x4c0] sm:$0xff]
  %v217 = vld [vmem:[%s1 + $0x4c8] sm:$0xff]
  %v218 = vld [vmem:[%s1 + $0x4d0] sm:$0xff]
  %v219 = vld [vmem:[%s1 + $0x4d8] sm:$0xff]
  %v220 = vld [vmem:[%s1 + $0x4e0] sm:$0xff]
  %v221 = vld [vmem:[%s1 + $0x4e8] sm:$0xff]
  %v222 = vld [vmem:[%s1 + $0x4f0] sm:$0xff]
  %v223 = vld [vmem:[%s1 + $0x4f8] sm:$0xff]
  %v224 = vld [vmem:[%s1 + $0x500] sm:$0xff]
  %v225 = vld [vmem:[%s1 + $0x508] sm:$0xff]
  %v226 = vld [vmem:[%s1 + $0x510] sm:$0xff]
  %v227 = vld [vmem:[%s1 + $0x518] sm:$0xff]
  %v228 = vld [vmem:[%s1 + $0x520] sm:$0xff]
  %v229 = vld [vmem:[%s1 + $0x528] sm:$0xff]
  %v230 = vld [vmem:[%s1 + $0x530] sm:$0xff]
  %v231 = vld [vmem:[%s1 + $0x538] sm:$0xff]
  %v232 = vld [vmem:[%s1 + $0x540] sm:$0xff]
  %v233 = vld [vmem:[%s1 + $0x548] sm:$0xff]
  %v234 = vld [vmem:[%s1 + $0x550] sm:$0xff]
  %v235 = vld [vmem:[%s1 + $0x558] sm:$0xff]
  %v236 = vld [vmem:[%s1 + $0x560] sm:$0xff]
  %v237 = vld [vmem:[%s1 + $0x568] sm:$0xff]
  %v238 = vld [vmem:[%s1 + $0x570] sm:$0xff]
  %v239 = vld [vmem:[%s1 + $0x578] sm:$0xff]
  %v240 = vld [vmem:[%s1 + $0x580] sm:$0xff]
  %v241 = vld [vmem:[%s1 + $0x588] sm:$0xff]
  %v242 = vld [vmem:[%s1 + $0x590] sm:$0xff]
  %v243 = vld [vmem:[%s1 + $0x598] sm:$0xff]
  %v244 = vld [vmem:[%s1 + $0x5a0] sm:$0xff]
  %v245 = vld [vmem:[%s1 + $0x5a8] sm:$0xff]
  %v246 = vld [vmem:[%s1 + $0x5b0] sm:$0xff]
  %v247 = vld [vmem:[%s1 + $0x5b8] sm:$0xff]
  %v248 = vld [vmem:[%s1 + $0x5c0] sm:$0xff]
  %v249 = vld [vmem:[%s1 + $0x5c8] sm:$0xff]
  %v250 = vld [vmem:[%s1 + $0x5d0] sm:$0xff]
  %v251 = vld [vmem:[%s1 + $0x5d8] sm:$0xff]
  %v252 = vld [vmem:[%s1 + $0x5e0] sm:$0xff]
  %v253 = vld [vmem:[%s1 + $0x5e8] sm:$0xff]
  %v254 = vld [vmem:[%s1 + $0x5f0] sm:$0xff]
  %v255 = vld [vmem:[%s1 + $0x5f8] sm:$0xff]
  %v256 = vld [vmem:[%s1 + $0x600] sm:$0xff]
  %v257 = vld [vmem:[%s1 + $0x608] sm:$0xff]
  %v258 = vld [vmem:[%s1 + $0x610] sm:$0xff]
  %v259 = vld [vmem:[%s1 + $0x618] sm:$0xff]
  %v260 = vld [vmem:[%s1 + $0x620] sm:$0xff]
  %v261 = vld [vmem:[%s1 + $0x628] sm:$0xff]
  %v262 = vld [vmem:[%s1 + $0x630] sm:$0xff]
  %v263 = vld [vmem:[%s1 + $0x638] sm:$0xff]
  %v264 = vld [vmem:[%s1 + $0x640] sm:$0xff]
  %v265 = vld [vmem:[%s1 + $0x648] sm:$0xff]
  %v266 = vld [vmem:[%s1 + $0x650] sm:$0xff]
  %v267 = vld [vmem:[%s1 + $0x658] sm:$0xff]
  %v268 = vld [vmem:[%s1 + $0x660] sm:$0xff]
  %v269 = vld [vmem:[%s1 + $0x668] sm:$0xff]
  %v270 = vld [vmem:[%s1 + $0x670] sm:$0xff]
  %v271 = vld [vmem:[%s1 + $0x678] sm:$0xff]
  %v272 = vld [vmem:[%s1 + $0x680] sm:$0xff]
  %v273 = vld [vmem:[%s1 + $0x688] sm:$0xff]
  %v274 = vld [vmem:[%s1 + $0x690] sm:$0xff]
  %v275 = vld [vmem:[%s1 + $0x698] sm:$0xff]
  %v276 = vld [vmem:[%s1 + $0x6a0] sm:$0xff]
  %v277 = vld [vmem:[%s1 + $0x6a8] sm:$0xff]
  %v278 = vld [vmem:[%s1 + $0x6b0] sm:$0xff]
  %v279 = vld [vmem:[%s1 + $0x6b8] sm:$0xff]
  %v280 = vld [vmem:[%s1 + $0x6c0] sm:$0xff]
  %v281 = vld [vmem:[%s1 + $0x6c8] sm:$0xff]
  %v282 = vld [vmem:[%s1 + $0x6d0] sm:$0xff]
  %v283 = vld [vmem:[%s1 + $0x6d8] sm:$0xff]
  %v284 = vld [vmem:[%s1 + $0x6e0] sm:$0xff]
  %v285 = vld [vmem:[%s1 + $0x6e8] sm:$0xff]
  %v286 = vld [vmem:[%s1 + $0x6f0] sm:$0xff]
  %v287 = vld [vmem:[%s1 + $0x6f8] sm:$0xff]
  %v288 = vld [vmem:[%s1 + $0x700] sm:$0xff]
  %v289 = vld [vmem:[%s1 + $0x708] sm:$0xff]
  %v290 = vld [vmem:[%s1 + $0x710] sm:$0xff]
  %v291 = vld [vmem:[%s1 + $0x718] sm:$0xff]
  %v292 = vld [vmem:[%s1 + $0x720] sm:$0xff]
  %v293 = vld [vmem:[%s1 + $0x728] sm:$0xff]
  %v294 = vld [vmem:[%s1 + $0x730] sm:$0xff]
  %v295 = vld [vmem:[%s1 + $0x738] sm:$0xff]
  %v296 = vld [vmem:[%s1 + $0x740] sm:$0xff]
  %v297 = vld [vmem:[%s1 + $0x748] sm:$0xff]
  %v298 = vld [vmem:[%s1 + $0x750] sm:$0xff]
  %v299 = vld [vmem:[%s1 + $0x758] sm:$0xff]
  %v300 = vld [vmem:[%s1 + $0x760] sm:$0xff]
  %v301 = vld [vmem:[%s1 + $0x768] sm:$0xff]
  %v302 = vld [vmem:[%s1 + $0x770] sm:$0xff]
  %v303 = vld [vmem:[%s1 + $0x778] sm:$0xff]
  %v304 = vld [vmem:[%s1 + $0x780] sm:$0xff]
  %v305 = vld [vmem:[%s1 + $0x788] sm:$0xff]
  %v306 = vld [vmem:[%s1 + $0x790] sm:$0xff]
  %v307 = vld [vmem:[%s1 + $0x798] sm:$0xff]
  %v308 = vld [vmem:[%s1 + $0x7a0] sm:$0xff]
  %v309 = vld [vmem:[%s1 + $0x7a8] sm:$0xff]
  %v310 = vld [vmem:[%s1 + $0x7b0] sm:$0xff]
  %v311 = vld [vmem:[%s1 + $0x7b8] sm:$0xff]
  %v312 = vld [vmem:[%s1 + $0x7c0] sm:$0xff]
  %v313 = vld [vmem:[%s1 + $0x7c8] sm:$0xff]
  %v314 = vld [vmem:[%s1 + $0x7d0] sm:$0xff]
  %v315 = vld [vmem:[%s1 + $0x7d8] sm:$0xff]
  %v316 = vld [vmem:[%s1 + $0x7e0] sm:$0xff]
  %v317 = vld [vmem:[%s1 + $0x7e8] sm:$0xff]
  %v318 = vld [vmem:[%s1 + $0x7f0] sm:$0xff]
  %v319 = vld [vmem:[%s1 + $0x7f8] sm:$0xff]
  %v320 = vld [vmem:[%s5] sm:$0xf]
  %v322 = vlaneseq
  %v323 = vshrl.u32 %v322, 7
  %v324 = vsub.s32 0, %v323
  %v325 = vrot.slane %v320, %v324
  %v326 = vlaneseq
  %v327 = vshrl.u32 %v326, 7
  %v328 = vsub.s32 1, %v327
  %v329 = vrot.slane %v320, %v328
  %v330 = vlaneseq
  %v331 = vshrl.u32 %v330, 7
  %v332 = vsub.s32 2, %v331
  %v333 = vrot.slane %v320, %v332
  %v334 = vlaneseq
  %v335 = vshrl.u32 %v334, 7
  %v336 = vsub.s32 3, %v335
  %v337 = vrot.slane %v320, %v336
  %v343 = vcombine.high %v63, %v63
  %v345 = vunpack.c.l.s4 1966171168
  %v346 = vunpack.c.0.s8 %v345
  %v347 = vlaneseq
  %v348 = vshrl.u32 %v347, 7
  %v349 = vsub.s32 %v346, %v348
  %v350 = vrot.slane %v63, %v349
  %v352 = vunpack.c.l.s4 1966171168
  %v353 = vunpack.c.0.s8 %v352
  %v354 = vlaneseq
  %v355 = vshrl.u32 %v354, 7
  %v356 = vsub.s32 %v353, %v355
  %v357 = vrot.slane %v343, %v356
  %v358 = vcombine.high %v350, %v350
  %v359 = vcombine.high %v357, %v357
  %v361 = vunpack.c.l.s4 1966171168
  %v362 = vunpack.c.0.s8 %v361
  %v363 = vlaneseq
  %v364 = vshrl.u32 %v363, 7
  %v365 = vsub.s32 %v362, %v364
  %v366 = vrot.slane %v350, %v365
  %v368 = vunpack.c.l.s4 1966171168
  %v369 = vunpack.c.0.s8 %v368
  %v370 = vlaneseq
  %v371 = vshrl.u32 %v370, 7
  %v372 = vsub.s32 %v369, %v371
  %v373 = vrot.slane %v357, %v372
  %v375 = vunpack.c.l.s4 1966171168
  %v376 = vunpack.c.0.s8 %v375
  %v377 = vlaneseq
  %v378 = vshrl.u32 %v377, 7
  %v379 = vsub.s32 %v376, %v378
  %v380 = vrot.slane %v358, %v379
  %v382 = vunpack.c.l.s4 1966171168
  %v383 = vunpack.c.0.s8 %v382
  %v384 = vlaneseq
  %v385 = vshrl.u32 %v384, 7
  %v386 = vsub.s32 %v383, %v385
  %v387 = vrot.slane %v359, %v386
  %v388 = vcombine.high %v366, %v366
  %v389 = vcombine.high %v373, %v373
  %v390 = vcombine.high %v380, %v380
  %v391 = vcombine.high %v387, %v387
  %v656 = vunpack.c.l.b16 %v64
  %v657 = vunpack.c.h.b16 %v64
  %v658 = vunpack.c.l.b16 %v65
  %v659 = vunpack.c.h.b16 %v65
  %v660 = vunpack.c.l.b16 %v66
  %v661 = vunpack.c.h.b16 %v66
  %v662 = vunpack.c.l.b16 %v67
  %v663 = vunpack.c.h.b16 %v67
  %v664 = vunpack.c.l.b16 %v68
  %v665 = vunpack.c.h.b16 %v68
  %v666 = vunpack.c.l.b16 %v69
  %v667 = vunpack.c.h.b16 %v69
  %v668 = vunpack.c.l.b16 %v70
  %v669 = vunpack.c.h.b16 %v70
  %v670 = vunpack.c.l.b16 %v71
  %v671 = vunpack.c.h.b16 %v71
  %v672 = vunpack.c.l.b16 %v72
  %v673 = vunpack.c.h.b16 %v72
  %v674 = vunpack.c.l.b16 %v73
  %v675 = vunpack.c.h.b16 %v73
  %v676 = vunpack.c.l.b16 %v74
  %v677 = vunpack.c.h.b16 %v74
  %v678 = vunpack.c.l.b16 %v75
  %v679 = vunpack.c.h.b16 %v75
  %v680 = vunpack.c.l.b16 %v76
  %v681 = vunpack.c.h.b16 %v76
  %v682 = vunpack.c.l.b16 %v77
  %v683 = vunpack.c.h.b16 %v77
  %v684 = vunpack.c.l.b16 %v78
  %v685 = vunpack.c.h.b16 %v78
  %v686 = vunpack.c.l.b16 %v79
  %v687 = vunpack.c.h.b16 %v79
  %v688 = vunpack.c.l.b16 %v80
  %v689 = vunpack.c.h.b16 %v80
  %v690 = vunpack.c.l.b16 %v81
  %v691 = vunpack.c.h.b16 %v81
  %v692 = vunpack.c.l.b16 %v82
  %v693 = vunpack.c.h.b16 %v82
  %v694 = vunpack.c.l.b16 %v83
  %v695 = vunpack.c.h.b16 %v83
  %v696 = vunpack.c.l.b16 %v84
  %v697 = vunpack.c.h.b16 %v84
  %v698 = vunpack.c.l.b16 %v85
  %v699 = vunpack.c.h.b16 %v85
  %v700 = vunpack.c.l.b16 %v86
  %v701 = vunpack.c.h.b16 %v86
  %v702 = vunpack.c.l.b16 %v87
  %v703 = vunpack.c.h.b16 %v87
  %v704 = vunpack.c.l.b16 %v88
  %v705 = vunpack.c.h.b16 %v88
  %v706 = vunpack.c.l.b16 %v89
  %v707 = vunpack.c.h.b16 %v89
  %v708 = vunpack.c.l.b16 %v90
  %v709 = vunpack.c.h.b16 %v90
  %v710 = vunpack.c.l.b16 %v91
  %v711 = vunpack.c.h.b16 %v91
  %v712 = vunpack.c.l.b16 %v92
  %v713 = vunpack.c.h.b16 %v92
  %v714 = vunpack.c.l.b16 %v93
  %v715 = vunpack.c.h.b16 %v93
  %v716 = vunpack.c.l.b16 %v94
  %v717 = vunpack.c.h.b16 %v94
  %v718 = vunpack.c.l.b16 %v95
  %v719 = vunpack.c.h.b16 %v95
  %v720 = vunpack.c.l.b16 %v96
  %v721 = vunpack.c.h.b16 %v96
  %v722 = vunpack.c.l.b16 %v97
  %v723 = vunpack.c.h.b16 %v97
  %v724 = vunpack.c.l.b16 %v98
  %v725 = vunpack.c.h.b16 %v98
  %v726 = vunpack.c.l.b16 %v99
  %v727 = vunpack.c.h.b16 %v99
  %v728 = vunpack.c.l.b16 %v100
  %v729 = vunpack.c.h.b16 %v100
  %v730 = vunpack.c.l.b16 %v101
  %v731 = vunpack.c.h.b16 %v101
  %v732 = vunpack.c.l.b16 %v102
  %v733 = vunpack.c.h.b16 %v102
  %v734 = vunpack.c.l.b16 %v103
  %v735 = vunpack.c.h.b16 %v103
  %v736 = vunpack.c.l.b16 %v104
  %v737 = vunpack.c.h.b16 %v104
  %v738 = vunpack.c.l.b16 %v105
  %v739 = vunpack.c.h.b16 %v105
  %v740 = vunpack.c.l.b16 %v106
  %v741 = vunpack.c.h.b16 %v106
  %v742 = vunpack.c.l.b16 %v107
  %v743 = vunpack.c.h.b16 %v107
  %v744 = vunpack.c.l.b16 %v108
  %v745 = vunpack.c.h.b16 %v108
  %v746 = vunpack.c.l.b16 %v109
  %v747 = vunpack.c.h.b16 %v109
  %v748 = vunpack.c.l.b16 %v110
  %v749 = vunpack.c.h.b16 %v110
  %v750 = vunpack.c.l.b16 %v111
  %v751 = vunpack.c.h.b16 %v111
  %v752 = vunpack.c.l.b16 %v112
  %v753 = vunpack.c.h.b16 %v112
  %v754 = vunpack.c.l.b16 %v113
  %v755 = vunpack.c.h.b16 %v113
  %v756 = vunpack.c.l.b16 %v114
  %v757 = vunpack.c.h.b16 %v114
  %v758 = vunpack.c.l.b16 %v115
  %v759 = vunpack.c.h.b16 %v115
  %v760 = vunpack.c.l.b16 %v116
  %v761 = vunpack.c.h.b16 %v116
  %v762 = vunpack.c.l.b16 %v117
  %v763 = vunpack.c.h.b16 %v117
  %v764 = vunpack.c.l.b16 %v118
  %v765 = vunpack.c.h.b16 %v118
  %v766 = vunpack.c.l.b16 %v119
  %v767 = vunpack.c.h.b16 %v119
  %v768 = vunpack.c.l.b16 %v120
  %v769 = vunpack.c.h.b16 %v120
  %v770 = vunpack.c.l.b16 %v121
  %v771 = vunpack.c.h.b16 %v121
  %v772 = vunpack.c.l.b16 %v122
  %v773 = vunpack.c.h.b16 %v122
  %v774 = vunpack.c.l.b16 %v123
  %v775 = vunpack.c.h.b16 %v123
  %v776 = vunpack.c.l.b16 %v124
  %v777 = vunpack.c.h.b16 %v124
  %v778 = vunpack.c.l.b16 %v125
  %v779 = vunpack.c.h.b16 %v125
  %v780 = vunpack.c.l.b16 %v126
  %v781 = vunpack.c.h.b16 %v126
  %v782 = vunpack.c.l.b16 %v127
  %v783 = vunpack.c.h.b16 %v127
  %v784 = vunpack.c.l.b16 %v128
  %v785 = vunpack.c.h.b16 %v128
  %v786 = vunpack.c.l.b16 %v129
  %v787 = vunpack.c.h.b16 %v129
  %v788 = vunpack.c.l.b16 %v130
  %v789 = vunpack.c.h.b16 %v130
  %v790 = vunpack.c.l.b16 %v131
  %v791 = vunpack.c.h.b16 %v131
  %v792 = vunpack.c.l.b16 %v132
  %v793 = vunpack.c.h.b16 %v132
  %v794 = vunpack.c.l.b16 %v133
  %v795 = vunpack.c.h.b16 %v133
  %v796 = vunpack.c.l.b16 %v134
  %v797 = vunpack.c.h.b16 %v134
  %v798 = vunpack.c.l.b16 %v135
  %v799 = vunpack.c.h.b16 %v135
  %v800 = vunpack.c.l.b16 %v136
  %v801 = vunpack.c.h.b16 %v136
  %v802 = vunpack.c.l.b16 %v137
  %v803 = vunpack.c.h.b16 %v137
  %v804 = vunpack.c.l.b16 %v138
  %v805 = vunpack.c.h.b16 %v138
  %v806 = vunpack.c.l.b16 %v139
  %v807 = vunpack.c.h.b16 %v139
  %v808 = vunpack.c.l.b16 %v140
  %v809 = vunpack.c.h.b16 %v140
  %v810 = vunpack.c.l.b16 %v141
  %v811 = vunpack.c.h.b16 %v141
  %v812 = vunpack.c.l.b16 %v142
  %v813 = vunpack.c.h.b16 %v142
  %v814 = vunpack.c.l.b16 %v143
  %v815 = vunpack.c.h.b16 %v143
  %v816 = vunpack.c.l.b16 %v144
  %v817 = vunpack.c.h.b16 %v144
  %v818 = vunpack.c.l.b16 %v145
  %v819 = vunpack.c.h.b16 %v145
  %v820 = vunpack.c.l.b16 %v146
  %v821 = vunpack.c.h.b16 %v146
  %v822 = vunpack.c.l.b16 %v147
  %v823 = vunpack.c.h.b16 %v147
  %v824 = vunpack.c.l.b16 %v148
  %v825 = vunpack.c.h.b16 %v148
  %v826 = vunpack.c.l.b16 %v149
  %v827 = vunpack.c.h.b16 %v149
  %v828 = vunpack.c.l.b16 %v150
  %v829 = vunpack.c.h.b16 %v150
  %v830 = vunpack.c.l.b16 %v151
  %v831 = vunpack.c.h.b16 %v151
  %v832 = vunpack.c.l.b16 %v152
  %v833 = vunpack.c.h.b16 %v152
  %v834 = vunpack.c.l.b16 %v153
  %v835 = vunpack.c.h.b16 %v153
  %v836 = vunpack.c.l.b16 %v154
  %v837 = vunpack.c.h.b16 %v154
  %v838 = vunpack.c.l.b16 %v155
  %v839 = vunpack.c.h.b16 %v155
  %v840 = vunpack.c.l.b16 %v156
  %v841 = vunpack.c.h.b16 %v156
  %v842 = vunpack.c.l.b16 %v157
  %v843 = vunpack.c.h.b16 %v157
  %v844 = vunpack.c.l.b16 %v158
  %v845 = vunpack.c.h.b16 %v158
  %v846 = vunpack.c.l.b16 %v159
  %v847 = vunpack.c.h.b16 %v159
  %v848 = vunpack.c.l.b16 %v160
  %v849 = vunpack.c.h.b16 %v160
  %v850 = vunpack.c.l.b16 %v161
  %v851 = vunpack.c.h.b16 %v161
  %v852 = vunpack.c.l.b16 %v162
  %v853 = vunpack.c.h.b16 %v162
  %v854 = vunpack.c.l.b16 %v163
  %v855 = vunpack.c.h.b16 %v163
  %v856 = vunpack.c.l.b16 %v164
  %v857 = vunpack.c.h.b16 %v164
  %v858 = vunpack.c.l.b16 %v165
  %v859 = vunpack.c.h.b16 %v165
  %v860 = vunpack.c.l.b16 %v166
  %v861 = vunpack.c.h.b16 %v166
  %v862 = vunpack.c.l.b16 %v167
  %v863 = vunpack.c.h.b16 %v167
  %v864 = vunpack.c.l.b16 %v168
  %v865 = vunpack.c.h.b16 %v168
  %v866 = vunpack.c.l.b16 %v169
  %v867 = vunpack.c.h.b16 %v169
  %v868 = vunpack.c.l.b16 %v170
  %v869 = vunpack.c.h.b16 %v170
  %v870 = vunpack.c.l.b16 %v171
  %v871 = vunpack.c.h.b16 %v171
  %v872 = vunpack.c.l.b16 %v172
  %v873 = vunpack.c.h.b16 %v172
  %v874 = vunpack.c.l.b16 %v173
  %v875 = vunpack.c.h.b16 %v173
  %v876 = vunpack.c.l.b16 %v174
  %v877 = vunpack.c.h.b16 %v174
  %v878 = vunpack.c.l.b16 %v175
  %v879 = vunpack.c.h.b16 %v175
  %v880 = vunpack.c.l.b16 %v176
  %v881 = vunpack.c.h.b16 %v176
  %v882 = vunpack.c.l.b16 %v177
  %v883 = vunpack.c.h.b16 %v177
  %v884 = vunpack.c.l.b16 %v178
  %v885 = vunpack.c.h.b16 %v178
  %v886 = vunpack.c.l.b16 %v179
  %v887 = vunpack.c.h.b16 %v179
  %v888 = vunpack.c.l.b16 %v180
  %v889 = vunpack.c.h.b16 %v180
  %v890 = vunpack.c.l.b16 %v181
  %v891 = vunpack.c.h.b16 %v181
  %v892 = vunpack.c.l.b16 %v182
  %v893 = vunpack.c.h.b16 %v182
  %v894 = vunpack.c.l.b16 %v183
  %v895 = vunpack.c.h.b16 %v183
  %v896 = vunpack.c.l.b16 %v184
  %v897 = vunpack.c.h.b16 %v184
  %v898 = vunpack.c.l.b16 %v185
  %v899 = vunpack.c.h.b16 %v185
  %v900 = vunpack.c.l.b16 %v186
  %v901 = vunpack.c.h.b16 %v186
  %v902 = vunpack.c.l.b16 %v187
  %v903 = vunpack.c.h.b16 %v187
  %v904 = vunpack.c.l.b16 %v188
  %v905 = vunpack.c.h.b16 %v188
  %v906 = vunpack.c.l.b16 %v189
  %v907 = vunpack.c.h.b16 %v189
  %v908 = vunpack.c.l.b16 %v190
  %v909 = vunpack.c.h.b16 %v190
  %v910 = vunpack.c.l.b16 %v191
  %v911 = vunpack.c.h.b16 %v191
  %v912 = vunpack.c.l.b16 %v192
  %v913 = vunpack.c.h.b16 %v192
  %v914 = vunpack.c.l.b16 %v193
  %v915 = vunpack.c.h.b16 %v193
  %v916 = vunpack.c.l.b16 %v194
  %v917 = vunpack.c.h.b16 %v194
  %v918 = vunpack.c.l.b16 %v195
  %v919 = vunpack.c.h.b16 %v195
  %v920 = vunpack.c.l.b16 %v196
  %v921 = vunpack.c.h.b16 %v196
  %v922 = vunpack.c.l.b16 %v197
  %v923 = vunpack.c.h.b16 %v197
  %v924 = vunpack.c.l.b16 %v198
  %v925 = vunpack.c.h.b16 %v198
  %v926 = vunpack.c.l.b16 %v199
  %v927 = vunpack.c.h.b16 %v199
  %v928 = vunpack.c.l.b16 %v200
  %v929 = vunpack.c.h.b16 %v200
  %v930 = vunpack.c.l.b16 %v201
  %v931 = vunpack.c.h.b16 %v201
  %v932 = vunpack.c.l.b16 %v202
  %v933 = vunpack.c.h.b16 %v202
  %v934 = vunpack.c.l.b16 %v203
  %v935 = vunpack.c.h.b16 %v203
  %v936 = vunpack.c.l.b16 %v204
  %v937 = vunpack.c.h.b16 %v204
  %v938 = vunpack.c.l.b16 %v205
  %v939 = vunpack.c.h.b16 %v205
  %v940 = vunpack.c.l.b16 %v206
  %v941 = vunpack.c.h.b16 %v206
  %v942 = vunpack.c.l.b16 %v207
  %v943 = vunpack.c.h.b16 %v207
  %v944 = vunpack.c.l.b16 %v208
  %v945 = vunpack.c.h.b16 %v208
  %v946 = vunpack.c.l.b16 %v209
  %v947 = vunpack.c.h.b16 %v209
  %v948 = vunpack.c.l.b16 %v210
  %v949 = vunpack.c.h.b16 %v210
  %v950 = vunpack.c.l.b16 %v211
  %v951 = vunpack.c.h.b16 %v211
  %v952 = vunpack.c.l.b16 %v212
  %v953 = vunpack.c.h.b16 %v212
  %v954 = vunpack.c.l.b16 %v213
  %v955 = vunpack.c.h.b16 %v213
  %v956 = vunpack.c.l.b16 %v214
  %v957 = vunpack.c.h.b16 %v214
  %v958 = vunpack.c.l.b16 %v215
  %v959 = vunpack.c.h.b16 %v215
  %v960 = vunpack.c.l.b16 %v216
  %v961 = vunpack.c.h.b16 %v216
  %v962 = vunpack.c.l.b16 %v217
  %v963 = vunpack.c.h.b16 %v217
  %v964 = vunpack.c.l.b16 %v218
  %v965 = vunpack.c.h.b16 %v218
  %v966 = vunpack.c.l.b16 %v219
  %v967 = vunpack.c.h.b16 %v219
  %v968 = vunpack.c.l.b16 %v220
  %v969 = vunpack.c.h.b16 %v220
  %v970 = vunpack.c.l.b16 %v221
  %v971 = vunpack.c.h.b16 %v221
  %v972 = vunpack.c.l.b16 %v222
  %v973 = vunpack.c.h.b16 %v222
  %v974 = vunpack.c.l.b16 %v223
  %v975 = vunpack.c.h.b16 %v223
  %v976 = vunpack.c.l.b16 %v224
  %v977 = vunpack.c.h.b16 %v224
  %v978 = vunpack.c.l.b16 %v225
  %v979 = vunpack.c.h.b16 %v225
  %v980 = vunpack.c.l.b16 %v226
  %v981 = vunpack.c.h.b16 %v226
  %v982 = vunpack.c.l.b16 %v227
  %v983 = vunpack.c.h.b16 %v227
  %v984 = vunpack.c.l.b16 %v228
  %v985 = vunpack.c.h.b16 %v228
  %v986 = vunpack.c.l.b16 %v229
  %v987 = vunpack.c.h.b16 %v229
  %v988 = vunpack.c.l.b16 %v230
  %v989 = vunpack.c.h.b16 %v230
  %v990 = vunpack.c.l.b16 %v231
  %v991 = vunpack.c.h.b16 %v231
  %v992 = vunpack.c.l.b16 %v232
  %v993 = vunpack.c.h.b16 %v232
  %v994 = vunpack.c.l.b16 %v233
  %v995 = vunpack.c.h.b16 %v233
  %v996 = vunpack.c.l.b16 %v234
  %v997 = vunpack.c.h.b16 %v234
  %v998 = vunpack.c.l.b16 %v235
  %v999 = vunpack.c.h.b16 %v235
  %v1000 = vunpack.c.l.b16 %v236
  %v1001 = vunpack.c.h.b16 %v236
  %v1002 = vunpack.c.l.b16 %v237
  %v1003 = vunpack.c.h.b16 %v237
  %v1004 = vunpack.c.l.b16 %v238
  %v1005 = vunpack.c.h.b16 %v238
  %v1006 = vunpack.c.l.b16 %v239
  %v1007 = vunpack.c.h.b16 %v239
  %v1008 = vunpack.c.l.b16 %v240
  %v1009 = vunpack.c.h.b16 %v240
  %v1010 = vunpack.c.l.b16 %v241
  %v1011 = vunpack.c.h.b16 %v241
  %v1012 = vunpack.c.l.b16 %v242
  %v1013 = vunpack.c.h.b16 %v242
  %v1014 = vunpack.c.l.b16 %v243
  %v1015 = vunpack.c.h.b16 %v243
  %v1016 = vunpack.c.l.b16 %v244
  %v1017 = vunpack.c.h.b16 %v244
  %v1018 = vunpack.c.l.b16 %v245
  %v1019 = vunpack.c.h.b16 %v245
  %v1020 = vunpack.c.l.b16 %v246
  %v1021 = vunpack.c.h.b16 %v246
  %v1022 = vunpack.c.l.b16 %v247
  %v1023 = vunpack.c.h.b16 %v247
  %v1024 = vunpack.c.l.b16 %v248
  %v1025 = vunpack.c.h.b16 %v248
  %v1026 = vunpack.c.l.b16 %v249
  %v1027 = vunpack.c.h.b16 %v249
  %v1028 = vunpack.c.l.b16 %v250
  %v1029 = vunpack.c.h.b16 %v250
  %v1030 = vunpack.c.l.b16 %v251
  %v1031 = vunpack.c.h.b16 %v251
  %v1032 = vunpack.c.l.b16 %v252
  %v1033 = vunpack.c.h.b16 %v252
  %v1034 = vunpack.c.l.b16 %v253
  %v1035 = vunpack.c.h.b16 %v253
  %v1036 = vunpack.c.l.b16 %v254
  %v1037 = vunpack.c.h.b16 %v254
  %v1038 = vunpack.c.l.b16 %v255
  %v1039 = vunpack.c.h.b16 %v255
  %v1040 = vunpack.c.l.b16 %v256
  %v1041 = vunpack.c.h.b16 %v256
  %v1042 = vunpack.c.l.b16 %v257
  %v1043 = vunpack.c.h.b16 %v257
  %v1044 = vunpack.c.l.b16 %v258
  %v1045 = vunpack.c.h.b16 %v258
  %v1046 = vunpack.c.l.b16 %v259
  %v1047 = vunpack.c.h.b16 %v259
  %v1048 = vunpack.c.l.b16 %v260
  %v1049 = vunpack.c.h.b16 %v260
  %v1050 = vunpack.c.l.b16 %v261
  %v1051 = vunpack.c.h.b16 %v261
  %v1052 = vunpack.c.l.b16 %v262
  %v1053 = vunpack.c.h.b16 %v262
  %v1054 = vunpack.c.l.b16 %v263
  %v1055 = vunpack.c.h.b16 %v263
  %v1056 = vunpack.c.l.b16 %v264
  %v1057 = vunpack.c.h.b16 %v264
  %v1058 = vunpack.c.l.b16 %v265
  %v1059 = vunpack.c.h.b16 %v265
  %v1060 = vunpack.c.l.b16 %v266
  %v1061 = vunpack.c.h.b16 %v266
  %v1062 = vunpack.c.l.b16 %v267
  %v1063 = vunpack.c.h.b16 %v267
  %v1064 = vunpack.c.l.b16 %v268
  %v1065 = vunpack.c.h.b16 %v268
  %v1066 = vunpack.c.l.b16 %v269
  %v1067 = vunpack.c.h.b16 %v269
  %v1068 = vunpack.c.l.b16 %v270
  %v1069 = vunpack.c.h.b16 %v270
  %v1070 = vunpack.c.l.b16 %v271
  %v1071 = vunpack.c.h.b16 %v271
  %v1072 = vunpack.c.l.b16 %v272
  %v1073 = vunpack.c.h.b16 %v272
  %v1074 = vunpack.c.l.b16 %v273
  %v1075 = vunpack.c.h.b16 %v273
  %v1076 = vunpack.c.l.b16 %v274
  %v1077 = vunpack.c.h.b16 %v274
  %v1078 = vunpack.c.l.b16 %v275
  %v1079 = vunpack.c.h.b16 %v275
  %v1080 = vunpack.c.l.b16 %v276
  %v1081 = vunpack.c.h.b16 %v276
  %v1082 = vunpack.c.l.b16 %v277
  %v1083 = vunpack.c.h.b16 %v277
  %v1084 = vunpack.c.l.b16 %v278
  %v1085 = vunpack.c.h.b16 %v278
  %v1086 = vunpack.c.l.b16 %v279
  %v1087 = vunpack.c.h.b16 %v279
  %v1088 = vunpack.c.l.b16 %v280
  %v1089 = vunpack.c.h.b16 %v280
  %v1090 = vunpack.c.l.b16 %v281
  %v1091 = vunpack.c.h.b16 %v281
  %v1092 = vunpack.c.l.b16 %v282
  %v1093 = vunpack.c.h.b16 %v282
  %v1094 = vunpack.c.l.b16 %v283
  %v1095 = vunpack.c.h.b16 %v283
  %v1096 = vunpack.c.l.b16 %v284
  %v1097 = vunpack.c.h.b16 %v284
  %v1098 = vunpack.c.l.b16 %v285
  %v1099 = vunpack.c.h.b16 %v285
  %v1100 = vunpack.c.l.b16 %v286
  %v1101 = vunpack.c.h.b16 %v286
  %v1102 = vunpack.c.l.b16 %v287
  %v1103 = vunpack.c.h.b16 %v287
  %v1104 = vunpack.c.l.b16 %v288
  %v1105 = vunpack.c.h.b16 %v288
  %v1106 = vunpack.c.l.b16 %v289
  %v1107 = vunpack.c.h.b16 %v289
  %v1108 = vunpack.c.l.b16 %v290
  %v1109 = vunpack.c.h.b16 %v290
  %v1110 = vunpack.c.l.b16 %v291
  %v1111 = vunpack.c.h.b16 %v291
  %v1112 = vunpack.c.l.b16 %v292
  %v1113 = vunpack.c.h.b16 %v292
  %v1114 = vunpack.c.l.b16 %v293
  %v1115 = vunpack.c.h.b16 %v293
  %v1116 = vunpack.c.l.b16 %v294
  %v1117 = vunpack.c.h.b16 %v294
  %v1118 = vunpack.c.l.b16 %v295
  %v1119 = vunpack.c.h.b16 %v295
  %v1120 = vunpack.c.l.b16 %v296
  %v1121 = vunpack.c.h.b16 %v296
  %v1122 = vunpack.c.l.b16 %v297
  %v1123 = vunpack.c.h.b16 %v297
  %v1124 = vunpack.c.l.b16 %v298
  %v1125 = vunpack.c.h.b16 %v298
  %v1126 = vunpack.c.l.b16 %v299
  %v1127 = vunpack.c.h.b16 %v299
  %v1128 = vunpack.c.l.b16 %v300
  %v1129 = vunpack.c.h.b16 %v300
  %v1130 = vunpack.c.l.b16 %v301
  %v1131 = vunpack.c.h.b16 %v301
  %v1132 = vunpack.c.l.b16 %v302
  %v1133 = vunpack.c.h.b16 %v302
  %v1134 = vunpack.c.l.b16 %v303
  %v1135 = vunpack.c.h.b16 %v303
  %v1136 = vunpack.c.l.b16 %v304
  %v1137 = vunpack.c.h.b16 %v304
  %v1138 = vunpack.c.l.b16 %v305
  %v1139 = vunpack.c.h.b16 %v305
  %v1140 = vunpack.c.l.b16 %v306
  %v1141 = vunpack.c.h.b16 %v306
  %v1142 = vunpack.c.l.b16 %v307
  %v1143 = vunpack.c.h.b16 %v307
  %v1144 = vunpack.c.l.b16 %v308
  %v1145 = vunpack.c.h.b16 %v308
  %v1146 = vunpack.c.l.b16 %v309
  %v1147 = vunpack.c.h.b16 %v309
  %v1148 = vunpack.c.l.b16 %v310
  %v1149 = vunpack.c.h.b16 %v310
  %v1150 = vunpack.c.l.b16 %v311
  %v1151 = vunpack.c.h.b16 %v311
  %v1152 = vunpack.c.l.b16 %v312
  %v1153 = vunpack.c.h.b16 %v312
  %v1154 = vunpack.c.l.b16 %v313
  %v1155 = vunpack.c.h.b16 %v313
  %v1156 = vunpack.c.l.b16 %v314
  %v1157 = vunpack.c.h.b16 %v314
  %v1158 = vunpack.c.l.b16 %v315
  %v1159 = vunpack.c.h.b16 %v315
  %v1160 = vunpack.c.l.b16 %v316
  %v1161 = vunpack.c.h.b16 %v316
  %v1162 = vunpack.c.l.b16 %v317
  %v1163 = vunpack.c.h.b16 %v317
  %v1164 = vunpack.c.l.b16 %v318
  %v1165 = vunpack.c.h.b16 %v318
  %v1166 = vunpack.c.l.b16 %v319
  %v1167 = vunpack.c.h.b16 %v319
  %v1168 = vpack.c.b16 %v660, %v656
  %v1169 = vpack.c.b16 %v661, %v657
  %v1170 = vpack.c.b16 %v662, %v658
  %v1171 = vpack.c.b16 %v663, %v659
  %v1172 = vpack.c.b16 %v668, %v664
  %v1173 = vpack.c.b16 %v669, %v665
  %v1174 = vpack.c.b16 %v670, %v666
  %v1175 = vpack.c.b16 %v671, %v667
  %v1176 = vpack.c.b16 %v676, %v672
  %v1177 = vpack.c.b16 %v677, %v673
  %v1178 = vpack.c.b16 %v678, %v674
  %v1179 = vpack.c.b16 %v679, %v675
  %v1180 = vpack.c.b16 %v684, %v680
  %v1181 = vpack.c.b16 %v685, %v681
  %v1182 = vpack.c.b16 %v686, %v682
  %v1183 = vpack.c.b16 %v687, %v683
  %v1184 = vpack.c.b16 %v692, %v688
  %v1185 = vpack.c.b16 %v693, %v689
  %v1186 = vpack.c.b16 %v694, %v690
  %v1187 = vpack.c.b16 %v695, %v691
  %v1188 = vpack.c.b16 %v700, %v696
  %v1189 = vpack.c.b16 %v701, %v697
  %v1190 = vpack.c.b16 %v702, %v698
  %v1191 = vpack.c.b16 %v703, %v699
  %v1192 = vpack.c.b16 %v708, %v704
  %v1193 = vpack.c.b16 %v709, %v705
  %v1194 = vpack.c.b16 %v710, %v706
  %v1195 = vpack.c.b16 %v711, %v707
  %v1196 = vpack.c.b16 %v716, %v712
  %v1197 = vpack.c.b16 %v717, %v713
  %v1198 = vpack.c.b16 %v718, %v714
  %v1199 = vpack.c.b16 %v719, %v715
  %v1200 = vpack.c.b16 %v724, %v720
  %v1201 = vpack.c.b16 %v725, %v721
  %v1202 = vpack.c.b16 %v726, %v722
  %v1203 = vpack.c.b16 %v727, %v723
  %v1204 = vpack.c.b16 %v732, %v728
  %v1205 = vpack.c.b16 %v733, %v729
  %v1206 = vpack.c.b16 %v734, %v730
  %v1207 = vpack.c.b16 %v735, %v731
  %v1208 = vpack.c.b16 %v740, %v736
  %v1209 = vpack.c.b16 %v741, %v737
  %v1210 = vpack.c.b16 %v742, %v738
  %v1211 = vpack.c.b16 %v743, %v739
  %v1212 = vpack.c.b16 %v748, %v744
  %v1213 = vpack.c.b16 %v749, %v745
  %v1214 = vpack.c.b16 %v750, %v746
  %v1215 = vpack.c.b16 %v751, %v747
  %v1216 = vpack.c.b16 %v756, %v752
  %v1217 = vpack.c.b16 %v757, %v753
  %v1218 = vpack.c.b16 %v758, %v754
  %v1219 = vpack.c.b16 %v759, %v755
  %v1220 = vpack.c.b16 %v764, %v760
  %v1221 = vpack.c.b16 %v765, %v761
  %v1222 = vpack.c.b16 %v766, %v762
  %v1223 = vpack.c.b16 %v767, %v763
  %v1224 = vpack.c.b16 %v772, %v768
  %v1225 = vpack.c.b16 %v773, %v769
  %v1226 = vpack.c.b16 %v774, %v770
  %v1227 = vpack.c.b16 %v775, %v771
  %v1228 = vpack.c.b16 %v780, %v776
  %v1229 = vpack.c.b16 %v781, %v777
  %v1230 = vpack.c.b16 %v782, %v778
  %v1231 = vpack.c.b16 %v783, %v779
  %v1232 = vpack.c.b16 %v788, %v784
  %v1233 = vpack.c.b16 %v789, %v785
  %v1234 = vpack.c.b16 %v790, %v786
  %v1235 = vpack.c.b16 %v791, %v787
  %v1236 = vpack.c.b16 %v796, %v792
  %v1237 = vpack.c.b16 %v797, %v793
  %v1238 = vpack.c.b16 %v798, %v794
  %v1239 = vpack.c.b16 %v799, %v795
  %v1240 = vpack.c.b16 %v804, %v800
  %v1241 = vpack.c.b16 %v805, %v801
  %v1242 = vpack.c.b16 %v806, %v802
  %v1243 = vpack.c.b16 %v807, %v803
  %v1244 = vpack.c.b16 %v812, %v808
  %v1245 = vpack.c.b16 %v813, %v809
  %v1246 = vpack.c.b16 %v814, %v810
  %v1247 = vpack.c.b16 %v815, %v811
  %v1248 = vpack.c.b16 %v820, %v816
  %v1249 = vpack.c.b16 %v821, %v817
  %v1250 = vpack.c.b16 %v822, %v818
  %v1251 = vpack.c.b16 %v823, %v819
  %v1252 = vpack.c.b16 %v828, %v824
  %v1253 = vpack.c.b16 %v829, %v825
  %v1254 = vpack.c.b16 %v830, %v826
  %v1255 = vpack.c.b16 %v831, %v827
  %v1256 = vpack.c.b16 %v836, %v832
  %v1257 = vpack.c.b16 %v837, %v833
  %v1258 = vpack.c.b16 %v838, %v834
  %v1259 = vpack.c.b16 %v839, %v835
  %v1260 = vpack.c.b16 %v844, %v840
  %v1261 = vpack.c.b16 %v845, %v841
  %v1262 = vpack.c.b16 %v846, %v842
  %v1263 = vpack.c.b16 %v847, %v843
  %v1264 = vpack.c.b16 %v852, %v848
  %v1265 = vpack.c.b16 %v853, %v849
  %v1266 = vpack.c.b16 %v854, %v850
  %v1267 = vpack.c.b16 %v855, %v851
  %v1268 = vpack.c.b16 %v860, %v856
  %v1269 = vpack.c.b16 %v861, %v857
  %v1270 = vpack.c.b16 %v862, %v858
  %v1271 = vpack.c.b16 %v863, %v859
  %v1272 = vpack.c.b16 %v868, %v864
  %v1273 = vpack.c.b16 %v869, %v865
  %v1274 = vpack.c.b16 %v870, %v866
  %v1275 = vpack.c.b16 %v871, %v867
  %v1276 = vpack.c.b16 %v876, %v872
  %v1277 = vpack.c.b16 %v877, %v873
  %v1278 = vpack.c.b16 %v878, %v874
  %v1279 = vpack.c.b16 %v879, %v875
  %v1280 = vpack.c.b16 %v884, %v880
  %v1281 = vpack.c.b16 %v885, %v881
  %v1282 = vpack.c.b16 %v886, %v882
  %v1283 = vpack.c.b16 %v887, %v883
  %v1284 = vpack.c.b16 %v892, %v888
  %v1285 = vpack.c.b16 %v893, %v889
  %v1286 = vpack.c.b16 %v894, %v890
  %v1287 = vpack.c.b16 %v895, %v891
  %v1288 = vpack.c.b16 %v900, %v896
  %v1289 = vpack.c.b16 %v901, %v897
  %v1290 = vpack.c.b16 %v902, %v898
  %v1291 = vpack.c.b16 %v903, %v899
  %v1292 = vpack.c.b16 %v908, %v904
  %v1293 = vpack.c.b16 %v909, %v905
  %v1294 = vpack.c.b16 %v910, %v906
  %v1295 = vpack.c.b16 %v911, %v907
  %v1296 = vpack.c.b16 %v916, %v912
  %v1297 = vpack.c.b16 %v917, %v913
  %v1298 = vpack.c.b16 %v918, %v914
  %v1299 = vpack.c.b16 %v919, %v915
  %v1300 = vpack.c.b16 %v924, %v920
  %v1301 = vpack.c.b16 %v925, %v921
  %v1302 = vpack.c.b16 %v926, %v922
  %v1303 = vpack.c.b16 %v927, %v923
  %v1304 = vpack.c.b16 %v932, %v928
  %v1305 = vpack.c.b16 %v933, %v929
  %v1306 = vpack.c.b16 %v934, %v930
  %v1307 = vpack.c.b16 %v935, %v931
  %v1308 = vpack.c.b16 %v940, %v936
  %v1309 = vpack.c.b16 %v941, %v937
  %v1310 = vpack.c.b16 %v942, %v938
  %v1311 = vpack.c.b16 %v943, %v939
  %v1312 = vpack.c.b16 %v948, %v944
  %v1313 = vpack.c.b16 %v949, %v945
  %v1314 = vpack.c.b16 %v950, %v946
  %v1315 = vpack.c.b16 %v951, %v947
  %v1316 = vpack.c.b16 %v956, %v952
  %v1317 = vpack.c.b16 %v957, %v953
  %v1318 = vpack.c.b16 %v958, %v954
  %v1319 = vpack.c.b16 %v959, %v955
  %v1320 = vpack.c.b16 %v964, %v960
  %v1321 = vpack.c.b16 %v965, %v961
  %v1322 = vpack.c.b16 %v966, %v962
  %v1323 = vpack.c.b16 %v967, %v963
  %v1324 = vpack.c.b16 %v972, %v968
  %v1325 = vpack.c.b16 %v973, %v969
  %v1326 = vpack.c.b16 %v974, %v970
  %v1327 = vpack.c.b16 %v975, %v971
  %v1328 = vpack.c.b16 %v980, %v976
  %v1329 = vpack.c.b16 %v981, %v977
  %v1330 = vpack.c.b16 %v982, %v978
  %v1331 = vpack.c.b16 %v983, %v979
  %v1332 = vpack.c.b16 %v988, %v984
  %v1333 = vpack.c.b16 %v989, %v985
  %v1334 = vpack.c.b16 %v990, %v986
  %v1335 = vpack.c.b16 %v991, %v987
  %v1336 = vpack.c.b16 %v996, %v992
  %v1337 = vpack.c.b16 %v997, %v993
  %v1338 = vpack.c.b16 %v998, %v994
  %v1339 = vpack.c.b16 %v999, %v995
  %v1340 = vpack.c.b16 %v1004, %v1000
  %v1341 = vpack.c.b16 %v1005, %v1001
  %v1342 = vpack.c.b16 %v1006, %v1002
  %v1343 = vpack.c.b16 %v1007, %v1003
  %v1344 = vpack.c.b16 %v1012, %v1008
  %v1345 = vpack.c.b16 %v1013, %v1009
  %v1346 = vpack.c.b16 %v1014, %v1010
  %v1347 = vpack.c.b16 %v1015, %v1011
  %v1348 = vpack.c.b16 %v1020, %v1016
  %v1349 = vpack.c.b16 %v1021, %v1017
  %v1350 = vpack.c.b16 %v1022, %v1018
  %v1351 = vpack.c.b16 %v1023, %v1019
  %v1352 = vpack.c.b16 %v1028, %v1024
  %v1353 = vpack.c.b16 %v1029, %v1025
  %v1354 = vpack.c.b16 %v1030, %v1026
  %v1355 = vpack.c.b16 %v1031, %v1027
  %v1356 = vpack.c.b16 %v1036, %v1032
  %v1357 = vpack.c.b16 %v1037, %v1033
  %v1358 = vpack.c.b16 %v1038, %v1034
  %v1359 = vpack.c.b16 %v1039, %v1035
  %v1360 = vpack.c.b16 %v1044, %v1040
  %v1361 = vpack.c.b16 %v1045, %v1041
  %v1362 = vpack.c.b16 %v1046, %v1042
  %v1363 = vpack.c.b16 %v1047, %v1043
  %v1364 = vpack.c.b16 %v1052, %v1048
  %v1365 = vpack.c.b16 %v1053, %v1049
  %v1366 = vpack.c.b16 %v1054, %v1050
  %v1367 = vpack.c.b16 %v1055, %v1051
  %v1368 = vpack.c.b16 %v1060, %v1056
  %v1369 = vpack.c.b16 %v1061, %v1057
  %v1370 = vpack.c.b16 %v1062, %v1058
  %v1371 = vpack.c.b16 %v1063, %v1059
  %v1372 = vpack.c.b16 %v1068, %v1064
  %v1373 = vpack.c.b16 %v1069, %v1065
  %v1374 = vpack.c.b16 %v1070, %v1066
  %v1375 = vpack.c.b16 %v1071, %v1067
  %v1376 = vpack.c.b16 %v1076, %v1072
  %v1377 = vpack.c.b16 %v1077, %v1073
  %v1378 = vpack.c.b16 %v1078, %v1074
  %v1379 = vpack.c.b16 %v1079, %v1075
  %v1380 = vpack.c.b16 %v1084, %v1080
  %v1381 = vpack.c.b16 %v1085, %v1081
  %v1382 = vpack.c.b16 %v1086, %v1082
  %v1383 = vpack.c.b16 %v1087, %v1083
  %v1384 = vpack.c.b16 %v1092, %v1088
  %v1385 = vpack.c.b16 %v1093, %v1089
  %v1386 = vpack.c.b16 %v1094, %v1090
  %v1387 = vpack.c.b16 %v1095, %v1091
  %v1388 = vpack.c.b16 %v1100, %v1096
  %v1389 = vpack.c.b16 %v1101, %v1097
  %v1390 = vpack.c.b16 %v1102, %v1098
  %v1391 = vpack.c.b16 %v1103, %v1099
  %v1392 = vpack.c.b16 %v1108, %v1104
  %v1393 = vpack.c.b16 %v1109, %v1105
  %v1394 = vpack.c.b16 %v1110, %v1106
  %v1395 = vpack.c.b16 %v1111, %v1107
  %v1396 = vpack.c.b16 %v1116, %v1112
  %v1397 = vpack.c.b16 %v1117, %v1113
  %v1398 = vpack.c.b16 %v1118, %v1114
  %v1399 = vpack.c.b16 %v1119, %v1115
  %v1400 = vpack.c.b16 %v1124, %v1120
  %v1401 = vpack.c.b16 %v1125, %v1121
  %v1402 = vpack.c.b16 %v1126, %v1122
  %v1403 = vpack.c.b16 %v1127, %v1123
  %v1404 = vpack.c.b16 %v1132, %v1128
  %v1405 = vpack.c.b16 %v1133, %v1129
  %v1406 = vpack.c.b16 %v1134, %v1130
  %v1407 = vpack.c.b16 %v1135, %v1131
  %v1408 = vpack.c.b16 %v1140, %v1136
  %v1409 = vpack.c.b16 %v1141, %v1137
  %v1410 = vpack.c.b16 %v1142, %v1138
  %v1411 = vpack.c.b16 %v1143, %v1139
  %v1412 = vpack.c.b16 %v1148, %v1144
  %v1413 = vpack.c.b16 %v1149, %v1145
  %v1414 = vpack.c.b16 %v1150, %v1146
  %v1415 = vpack.c.b16 %v1151, %v1147
  %v1416 = vpack.c.b16 %v1156, %v1152
  %v1417 = vpack.c.b16 %v1157, %v1153
  %v1418 = vpack.c.b16 %v1158, %v1154
  %v1419 = vpack.c.b16 %v1159, %v1155
  %v1420 = vpack.c.b16 %v1164, %v1160
  %v1421 = vpack.c.b16 %v1165, %v1161
  %v1422 = vpack.c.b16 %v1166, %v1162
  %v1423 = vpack.c.b16 %v1167, %v1163
  %1680 = vmatprep.subr.bf16.mxu0 %v1169
  %1681 = vmatpush1.bf16.msra.mxu0 %v1168
  %1682 = vmatprep.subr.bf16.mxu0 %v1173
  %1683 = vmatpush1.bf16.msra.mxu0 %v1172
  %1684 = vmatprep.subr.bf16.mxu0 %v1177
  %1685 = vmatpush1.bf16.msra.mxu0 %v1176
  %1686 = vmatprep.subr.bf16.mxu0 %v1181
  %1687 = vmatpush1.bf16.msra.mxu0 %v1180
  %1688 = vmatprep.subr.bf16.mxu0 %v1185
  %1689 = vmatpush1.bf16.msra.mxu0 %v1184
  %1690 = vmatprep.subr.bf16.mxu0 %v1189
  %1691 = vmatpush1.bf16.msra.mxu0 %v1188
  %1692 = vmatprep.subr.bf16.mxu0 %v1193
  %1693 = vmatpush1.bf16.msra.mxu0 %v1192
  %1694 = vmatprep.subr.bf16.mxu0 %v1197
  %1695 = vmatpush1.bf16.msra.mxu0 %v1196
  %1696 = vmatprep.subr.bf16.mxu0 %v1201
  %1697 = vmatpush1.bf16.msra.mxu0 %v1200
  %1698 = vmatprep.subr.bf16.mxu0 %v1205
  %1699 = vmatpush1.bf16.msra.mxu0 %v1204
  %1700 = vmatprep.subr.bf16.mxu0 %v1209
  %1701 = vmatpush1.bf16.msra.mxu0 %v1208
  %1702 = vmatprep.subr.bf16.mxu0 %v1213
  %1703 = vmatpush1.bf16.msra.mxu0 %v1212
  %1704 = vmatprep.subr.bf16.mxu0 %v1217
  %1705 = vmatpush1.bf16.msra.mxu0 %v1216
  %1706 = vmatprep.subr.bf16.mxu0 %v1221
  %1707 = vmatpush1.bf16.msra.mxu0 %v1220
  %1708 = vmatprep.subr.bf16.mxu0 %v1225
  %1709 = vmatpush1.bf16.msra.mxu0 %v1224
  %1710 = vmatprep.subr.bf16.mxu0 %v1229
  %1711 = vmatpush1.bf16.msra.mxu0 %v1228
  %1712 = vmatprep.mubr.bf16.mxu0 %v380
  %1713 = vmatmul.mubr.bf16.gmra.mrb[0].mxu0 %v366
  %v1714 = vpop.f32.mrb[0].mxu0
  %v1715 = vadd.f32 %v325, %v1714
  %v1716 = vpop.f32.mrb[0].mxu0
  %v1717 = vadd.f32 %v329, %v1716
  %v1718 = vpop.f32.mrb[0].mxu0
  %v1719 = vpop.f32.mrb[0].mxu0
  %1720 = vdwg.mxu0
  %1721 = vmatprep.subr.bf16.mxu0 %v1233
  %1722 = vmatpush1.bf16.msra.mxu0 %v1232
  %1723 = vmatprep.subr.bf16.mxu0 %v1237
  %1724 = vmatpush1.bf16.msra.mxu0 %v1236
  %1725 = vmatprep.subr.bf16.mxu0 %v1241
  %1726 = vmatpush1.bf16.msra.mxu0 %v1240
  %1727 = vmatprep.subr.bf16.mxu0 %v1245
  %1728 = vmatpush1.bf16.msra.mxu0 %v1244
  %1729 = vmatprep.subr.bf16.mxu0 %v1249
  %1730 = vmatpush1.bf16.msra.mxu0 %v1248
  %1731 = vmatprep.subr.bf16.mxu0 %v1253
  %1732 = vmatpush1.bf16.msra.mxu0 %v1252
  %1733 = vmatprep.subr.bf16.mxu0 %v1257
  %1734 = vmatpush1.bf16.msra.mxu0 %v1256
  %1735 = vmatprep.subr.bf16.mxu0 %v1261
  %1736 = vmatpush1.bf16.msra.mxu0 %v1260
  %1737 = vmatprep.subr.bf16.mxu0 %v1265
  %1738 = vmatpush1.bf16.msra.mxu0 %v1264
  %1739 = vmatprep.subr.bf16.mxu0 %v1269
  %1740 = vmatpush1.bf16.msra.mxu0 %v1268
  %1741 = vmatprep.subr.bf16.mxu0 %v1273
  %1742 = vmatpush1.bf16.msra.mxu0 %v1272
  %1743 = vmatprep.subr.bf16.mxu0 %v1277
  %1744 = vmatpush1.bf16.msra.mxu0 %v1276
  %1745 = vmatprep.subr.bf16.mxu0 %v1281
  %1746 = vmatpush1.bf16.msra.mxu0 %v1280
  %1747 = vmatprep.subr.bf16.mxu0 %v1285
  %1748 = vmatpush1.bf16.msra.mxu0 %v1284
  %1749 = vmatprep.subr.bf16.mxu0 %v1289
  %1750 = vmatpush1.bf16.msra.mxu0 %v1288
  %1751 = vmatprep.subr.bf16.mxu0 %v1293
  %1752 = vmatpush1.bf16.msra.mxu0 %v1292
  %1753 = vmatprep.mubr.bf16.mxu0 %v390
  %1754 = vmatmul.mubr.bf16.gmra.mrb[0].mxu0 %v388
  %v1755 = vpop.f32.mrb[0].mxu0
  %v1756 = vadd.f32 %v1715, %v1755
  %v1757 = vpop.f32.mrb[0].mxu0
  %v1758 = vadd.f32 %v1717, %v1757
  %v1759 = vpop.f32.mrb[0].mxu0
  %v1760 = vpop.f32.mrb[0].mxu0
  %1761 = vdwg.mxu0
  %1762 = vmatprep.subr.bf16.mxu0 %v1297
  %1763 = vmatpush1.bf16.msra.mxu0 %v1296
  %1764 = vmatprep.subr.bf16.mxu0 %v1301
  %1765 = vmatpush1.bf16.msra.mxu0 %v1300
  %1766 = vmatprep.subr.bf16.mxu0 %v1305
  %1767 = vmatpush1.bf16.msra.mxu0 %v1304
  %1768 = vmatprep.subr.bf16.mxu0 %v1309
  %1769 = vmatpush1.bf16.msra.mxu0 %v1308
  %1770 = vmatprep.subr.bf16.mxu0 %v1313
  %1771 = vmatpush1.bf16.msra.mxu0 %v1312
  %1772 = vmatprep.subr.bf16.mxu0 %v1317
  %1773 = vmatpush1.bf16.msra.mxu0 %v1316
  %1774 = vmatprep.subr.bf16.mxu0 %v1321
  %1775 = vmatpush1.bf16.msra.mxu0 %v1320
  %1776 = vmatprep.subr.bf16.mxu0 %v1325
  %1777 = vmatpush1.bf16.msra.mxu0 %v1324
  %1778 = vmatprep.subr.bf16.mxu0 %v1329
  %1779 = vmatpush1.bf16.msra.mxu0 %v1328
  %1780 = vmatprep.subr.bf16.mxu0 %v1333
  %1781 = vmatpush1.bf16.msra.mxu0 %v1332
  %1782 = vmatprep.subr.bf16.mxu0 %v1337
  %1783 = vmatpush1.bf16.msra.mxu0 %v1336
  %1784 = vmatprep.subr.bf16.mxu0 %v1341
  %1785 = vmatpush1.bf16.msra.mxu0 %v1340
  %1786 = vmatprep.subr.bf16.mxu0 %v1345
  %1787 = vmatpush1.bf16.msra.mxu0 %v1344
  %1788 = vmatprep.subr.bf16.mxu0 %v1349
  %1789 = vmatpush1.bf16.msra.mxu0 %v1348
  %1790 = vmatprep.subr.bf16.mxu0 %v1353
  %1791 = vmatpush1.bf16.msra.mxu0 %v1352
  %1792 = vmatprep.subr.bf16.mxu0 %v1357
  %1793 = vmatpush1.bf16.msra.mxu0 %v1356
  %1794 = vmatprep.mubr.bf16.mxu0 %v387
  %1795 = vmatmul.mubr.bf16.gmra.mrb[0].mxu0 %v373
  %v1796 = vpop.f32.mrb[0].mxu0
  %v1797 = vadd.f32 %v1756, %v1796
  %v1798 = vpop.f32.mrb[0].mxu0
  %v1799 = vadd.f32 %v1758, %v1798
  %v1800 = vpop.f32.mrb[0].mxu0
  %v1801 = vpop.f32.mrb[0].mxu0
  %1802 = vdwg.mxu0
  %1803 = vmatprep.subr.bf16.mxu0 %v1361
  %1804 = vmatpush1.bf16.msra.mxu0 %v1360
  %1805 = vmatprep.subr.bf16.mxu0 %v1365
  %1806 = vmatpush1.bf16.msra.mxu0 %v1364
  %1807 = vmatprep.subr.bf16.mxu0 %v1369
  %1808 = vmatpush1.bf16.msra.mxu0 %v1368
  %1809 = vmatprep.subr.bf16.mxu0 %v1373
  %1810 = vmatpush1.bf16.msra.mxu0 %v1372
  %1811 = vmatprep.subr.bf16.mxu0 %v1377
  %1812 = vmatpush1.bf16.msra.mxu0 %v1376
  %1813 = vmatprep.subr.bf16.mxu0 %v1381
  %1814 = vmatpush1.bf16.msra.mxu0 %v1380
  %1815 = vmatprep.subr.bf16.mxu0 %v1385
  %1816 = vmatpush1.bf16.msra.mxu0 %v1384
  %1817 = vmatprep.subr.bf16.mxu0 %v1389
  %1818 = vmatpush1.bf16.msra.mxu0 %v1388
  %1819 = vmatprep.subr.bf16.mxu0 %v1393
  %1820 = vmatpush1.bf16.msra.mxu0 %v1392
  %1821 = vmatprep.subr.bf16.mxu0 %v1397
  %1822 = vmatpush1.bf16.msra.mxu0 %v1396
  %1823 = vmatprep.subr.bf16.mxu0 %v1401
  %1824 = vmatpush1.bf16.msra.mxu0 %v1400
  %1825 = vmatprep.subr.bf16.mxu0 %v1405
  %1826 = vmatpush1.bf16.msra.mxu0 %v1404
  %1827 = vmatprep.subr.bf16.mxu0 %v1409
  %1828 = vmatpush1.bf16.msra.mxu0 %v1408
  %1829 = vmatprep.subr.bf16.mxu0 %v1413
  %1830 = vmatpush1.bf16.msra.mxu0 %v1412
  %1831 = vmatprep.subr.bf16.mxu0 %v1417
  %1832 = vmatpush1.bf16.msra.mxu0 %v1416
  %1833 = vmatprep.subr.bf16.mxu0 %v1421
  %1834 = vmatpush1.bf16.msra.mxu0 %v1420
  %1835 = vmatprep.mubr.bf16.mxu0 %v391
  %1836 = vmatmul.mubr.bf16.gmra.mrb[0].mxu0 %v389
  %v1837 = vpop.f32.mrb[0].mxu0
  %v1838 = vadd.f32 %v1797, %v1837
  %v1839 = vpop.f32.mrb[0].mxu0
  %v1840 = vadd.f32 %v1799, %v1839
  %v1841 = vpop.f32.mrb[0].mxu0
  %v1842 = vpop.f32.mrb[0].mxu0
  %1843 = vdwg.mxu0
  %1844 = vmatprep.subr.bf16.mxu0 %v1171
  %1845 = vmatpush1.bf16.msra.mxu0 %v1170
  %1846 = vmatprep.subr.bf16.mxu0 %v1175
  %1847 = vmatpush1.bf16.msra.mxu0 %v1174
  %1848 = vmatprep.subr.bf16.mxu0 %v1179
  %1849 = vmatpush1.bf16.msra.mxu0 %v1178
  %1850 = vmatprep.subr.bf16.mxu0 %v1183
  %1851 = vmatpush1.bf16.msra.mxu0 %v1182
  %1852 = vmatprep.subr.bf16.mxu0 %v1187
  %1853 = vmatpush1.bf16.msra.mxu0 %v1186
  %1854 = vmatprep.subr.bf16.mxu0 %v1191
  %1855 = vmatpush1.bf16.msra.mxu0 %v1190
  %1856 = vmatprep.subr.bf16.mxu0 %v1195
  %1857 = vmatpush1.bf16.msra.mxu0 %v1194
  %1858 = vmatprep.subr.bf16.mxu0 %v1199
  %1859 = vmatpush1.bf16.msra.mxu0 %v1198
  %1860 = vmatprep.subr.bf16.mxu0 %v1203
  %1861 = vmatpush1.bf16.msra.mxu0 %v1202
  %1862 = vmatprep.subr.bf16.mxu0 %v1207
  %1863 = vmatpush1.bf16.msra.mxu0 %v1206
  %1864 = vmatprep.subr.bf16.mxu0 %v1211
  %1865 = vmatpush1.bf16.msra.mxu0 %v1210
  %1866 = vmatprep.subr.bf16.mxu0 %v1215
  %1867 = vmatpush1.bf16.msra.mxu0 %v1214
  %1868 = vmatprep.subr.bf16.mxu0 %v1219
  %1869 = vmatpush1.bf16.msra.mxu0 %v1218
  %1870 = vmatprep.subr.bf16.mxu0 %v1223
  %1871 = vmatpush1.bf16.msra.mxu0 %v1222
  %1872 = vmatprep.subr.bf16.mxu0 %v1227
  %1873 = vmatpush1.bf16.msra.mxu0 %v1226
  %1874 = vmatprep.subr.bf16.mxu0 %v1231
  %1875 = vmatpush1.bf16.msra.mxu0 %v1230
  %1876 = vmatprep.mubr.bf16.mxu0 %v380
  %1877 = vmatmul.mubr.bf16.gmra.mrb[0].mxu0 %v366
  %v1878 = vpop.f32.mrb[0].mxu0
  %v1879 = vadd.f32 %v333, %v1878
  %v1880 = vpop.f32.mrb[0].mxu0
  %v1881 = vadd.f32 %v337, %v1880
  %v1882 = vpop.f32.mrb[0].mxu0
  %v1883 = vpop.f32.mrb[0].mxu0
  %1884 = vdwg.mxu0
  %1885 = vmatprep.subr.bf16.mxu0 %v1235
  %1886 = vmatpush1.bf16.msra.mxu0 %v1234
  %1887 = vmatprep.subr.bf16.mxu0 %v1239
  %1888 = vmatpush1.bf16.msra.mxu0 %v1238
  %1889 = vmatprep.subr.bf16.mxu0 %v1243
  %1890 = vmatpush1.bf16.msra.mxu0 %v1242
  %1891 = vmatprep.subr.bf16.mxu0 %v1247
  %1892 = vmatpush1.bf16.msra.mxu0 %v1246
  %1893 = vmatprep.subr.bf16.mxu0 %v1251
  %1894 = vmatpush1.bf16.msra.mxu0 %v1250
  %1895 = vmatprep.subr.bf16.mxu0 %v1255
  %1896 = vmatpush1.bf16.msra.mxu0 %v1254
  %1897 = vmatprep.subr.bf16.mxu0 %v1259
  %1898 = vmatpush1.bf16.msra.mxu0 %v1258
  %1899 = vmatprep.subr.bf16.mxu0 %v1263
  %1900 = vmatpush1.bf16.msra.mxu0 %v1262
  %1901 = vmatprep.subr.bf16.mxu0 %v1267
  %1902 = vmatpush1.bf16.msra.mxu0 %v1266
  %1903 = vmatprep.subr.bf16.mxu0 %v1271
  %1904 = vmatpush1.bf16.msra.mxu0 %v1270
  %1905 = vmatprep.subr.bf16.mxu0 %v1275
  %1906 = vmatpush1.bf16.msra.mxu0 %v1274
  %1907 = vmatprep.subr.bf16.mxu0 %v1279
  %1908 = vmatpush1.bf16.msra.mxu0 %v1278
  %1909 = vmatprep.subr.bf16.mxu0 %v1283
  %1910 = vmatpush1.bf16.msra.mxu0 %v1282
  %1911 = vmatprep.subr.bf16.mxu0 %v1287
  %1912 = vmatpush1.bf16.msra.mxu0 %v1286
  %1913 = vmatprep.subr.bf16.mxu0 %v1291
  %1914 = vmatpush1.bf16.msra.mxu0 %v1290
  %1915 = vmatprep.subr.bf16.mxu0 %v1295
  %1916 = vmatpush1.bf16.msra.mxu0 %v1294
  %1917 = vmatprep.mubr.bf16.mxu0 %v390
  %1918 = vmatmul.mubr.bf16.gmra.mrb[0].mxu0 %v388
  %v1919 = vpop.f32.mrb[0].mxu0
  %v1920 = vadd.f32 %v1879, %v1919
  %v1921 = vpop.f32.mrb[0].mxu0
  %v1922 = vadd.f32 %v1881, %v1921
  %v1923 = vpop.f32.mrb[0].mxu0
  %v1924 = vpop.f32.mrb[0].mxu0
  %1925 = vdwg.mxu0
  %1926 = vmatprep.subr.bf16.mxu0 %v1299
  %1927 = vmatpush1.bf16.msra.mxu0 %v1298
  %1928 = vmatprep.subr.bf16.mxu0 %v1303
  %1929 = vmatpush1.bf16.msra.mxu0 %v1302
  %1930 = vmatprep.subr.bf16.mxu0 %v1307
  %1931 = vmatpush1.bf16.msra.mxu0 %v1306
  %1932 = vmatprep.subr.bf16.mxu0 %v1311
  %1933 = vmatpush1.bf16.msra.mxu0 %v1310
  %1934 = vmatprep.subr.bf16.mxu0 %v1315
  %1935 = vmatpush1.bf16.msra.mxu0 %v1314
  %1936 = vmatprep.subr.bf16.mxu0 %v1319
  %1937 = vmatpush1.bf16.msra.mxu0 %v1318
  %1938 = vmatprep.subr.bf16.mxu0 %v1323
  %1939 = vmatpush1.bf16.msra.mxu0 %v1322
  %1940 = vmatprep.subr.bf16.mxu0 %v1327
  %1941 = vmatpush1.bf16.msra.mxu0 %v1326
  %1942 = vmatprep.subr.bf16.mxu0 %v1331
  %1943 = vmatpush1.bf16.msra.mxu0 %v1330
  %1944 = vmatprep.subr.bf16.mxu0 %v1335
  %1945 = vmatpush1.bf16.msra.mxu0 %v1334
  %1946 = vmatprep.subr.bf16.mxu0 %v1339
  %1947 = vmatpush1.bf16.msra.mxu0 %v1338
  %1948 = vmatprep.subr.bf16.mxu0 %v1343
  %1949 = vmatpush1.bf16.msra.mxu0 %v1342
  %1950 = vmatprep.subr.bf16.mxu0 %v1347
  %1951 = vmatpush1.bf16.msra.mxu0 %v1346
  %1952 = vmatprep.subr.bf16.mxu0 %v1351
  %1953 = vmatpush1.bf16.msra.mxu0 %v1350
  %1954 = vmatprep.subr.bf16.mxu0 %v1355
  %1955 = vmatpush1.bf16.msra.mxu0 %v1354
  %1956 = vmatprep.subr.bf16.mxu0 %v1359
  %1957 = vmatpush1.bf16.msra.mxu0 %v1358
  %1958 = vmatprep.mubr.bf16.mxu0 %v387
  %1959 = vmatmul.mubr.bf16.gmra.mrb[0].mxu0 %v373
  %v1960 = vpop.f32.mrb[0].mxu0
  %v1961 = vadd.f32 %v1920, %v1960
  %v1962 = vpop.f32.mrb[0].mxu0
  %v1963 = vadd.f32 %v1922, %v1962
  %v1964 = vpop.f32.mrb[0].mxu0
  %v1965 = vpop.f32.mrb[0].mxu0
  %1966 = vdwg.mxu0
  %1967 = vmatprep.subr.bf16.mxu0 %v1363
  %1968 = vmatpush1.bf16.msra.mxu0 %v1362
  %1969 = vmatprep.subr.bf16.mxu0 %v1367
  %1970 = vmatpush1.bf16.msra.mxu0 %v1366
  %1971 = vmatprep.subr.bf16.mxu0 %v1371
  %1972 = vmatpush1.bf16.msra.mxu0 %v1370
  %1973 = vmatprep.subr.bf16.mxu0 %v1375
  %1974 = vmatpush1.bf16.msra.mxu0 %v1374
  %1975 = vmatprep.subr.bf16.mxu0 %v1379
  %1976 = vmatpush1.bf16.msra.mxu0 %v1378
  %1977 = vmatprep.subr.bf16.mxu0 %v1383
  %1978 = vmatpush1.bf16.msra.mxu0 %v1382
  %1979 = vmatprep.subr.bf16.mxu0 %v1387
  %1980 = vmatpush1.bf16.msra.mxu0 %v1386
  %1981 = vmatprep.subr.bf16.mxu0 %v1391
  %1982 = vmatpush1.bf16.msra.mxu0 %v1390
  %1983 = vmatprep.subr.bf16.mxu0 %v1395
  %1984 = vmatpush1.bf16.msra.mxu0 %v1394
  %1985 = vmatprep.subr.bf16.mxu0 %v1399
  %1986 = vmatpush1.bf16.msra.mxu0 %v1398
  %1987 = vmatprep.subr.bf16.mxu0 %v1403
  %1988 = vmatpush1.bf16.msra.mxu0 %v1402
  %1989 = vmatprep.subr.bf16.mxu0 %v1407
  %1990 = vmatpush1.bf16.msra.mxu0 %v1406
  %1991 = vmatprep.subr.bf16.mxu0 %v1411
  %1992 = vmatpush1.bf16.msra.mxu0 %v1410
  %1993 = vmatprep.subr.bf16.mxu0 %v1415
  %1994 = vmatpush1.bf16.msra.mxu0 %v1414
  %1995 = vmatprep.subr.bf16.mxu0 %v1419
  %1996 = vmatpush1.bf16.msra.mxu0 %v1418
  %1997 = vmatprep.subr.bf16.mxu0 %v1423
  %1998 = vmatpush1.bf16.msra.mxu0 %v1422
  %1999 = vmatprep.mubr.bf16.mxu0 %v391
  %2000 = vmatmul.mubr.bf16.gmra.mrb[0].mxu0 %v389
  %v2001 = vpop.f32.mrb[0].mxu0
  %v2002 = vadd.f32 %v1961, %v2001
  %v2003 = vpop.f32.mrb[0].mxu0
  %v2004 = vadd.f32 %v1963, %v2003
  %v2005 = vpop.f32.mrb[0].mxu0
  %v2006 = vpop.f32.mrb[0].mxu0
  %2007 = vdwg.mxu0
  %v2008 = vld [vmem:[%s9] sm:$0xf]
  %v2009 = vld [vmem:[%s13] sm:$0xf]
  %vm2010 = vcmask 1041408
  %v2011 = vsel %vm2010, %v1838, 0.0
  %v2012 = vrot.slane %v2011, 4
  %v2013 = vadd.f32 %v2011, %v2012
  %v2014 = vrot.slane %v2013, 2
  %v2015 = vadd.f32 %v2013, %v2014
  %v2016 = vrot.slane %v2015, 1
  %v2017 = vadd.f32 %v2015, %v2016
  %v2018 = vsel %vm2010, %v1840, 0.0
  %v2019 = vrot.slane %v2018, 4
  %v2020 = vadd.f32 %v2018, %v2019
  %v2021 = vrot.slane %v2020, 2
  %v2022 = vadd.f32 %v2020, %v2021
  %v2023 = vrot.slane %v2022, 1
  %v2024 = vadd.f32 %v2022, %v2023
  %v2025 = vsel %vm2010, %v2002, 0.0
  %v2026 = vrot.slane %v2025, 4
  %v2027 = vadd.f32 %v2025, %v2026
  %v2028 = vrot.slane %v2027, 2
  %v2029 = vadd.f32 %v2027, %v2028
  %v2030 = vrot.slane %v2029, 1
  %v2031 = vadd.f32 %v2029, %v2030
  %v2032 = vsel %vm2010, %v2004, 0.0
  %v2033 = vrot.slane %v2032, 4
  %v2034 = vadd.f32 %v2032, %v2033
  %v2035 = vrot.slane %v2034, 2
  %v2036 = vadd.f32 %v2034, %v2035
  %v2037 = vrot.slane %v2036, 1
  %v2038 = vadd.f32 %v2036, %v2037
  %v2039 = vmul.f32 %v1838, %v1838
  %v2040 = vmul.f32 %v1840, %v1840
  %v2041 = vmul.f32 %v2002, %v2002
  %v2042 = vmul.f32 %v2004, %v2004
  %v2043 = vsel %vm2010, %v2039, 0.0
  %v2044 = vrot.slane %v2043, 4
  %v2045 = vadd.f32 %v2043, %v2044
  %v2046 = vrot.slane %v2045, 2
  %v2047 = vadd.f32 %v2045, %v2046
  %v2048 = vrot.slane %v2047, 1
  %v2049 = vadd.f32 %v2047, %v2048
  %v2050 = vsel %vm2010, %v2040, 0.0
  %v2051 = vrot.slane %v2050, 4
  %v2052 = vadd.f32 %v2050, %v2051
  %v2053 = vrot.slane %v2052, 2
  %v2054 = vadd.f32 %v2052, %v2053
  %v2055 = vrot.slane %v2054, 1
  %v2056 = vadd.f32 %v2054, %v2055
  %v2057 = vsel %vm2010, %v2041, 0.0
  %v2058 = vrot.slane %v2057, 4
  %v2059 = vadd.f32 %v2057, %v2058
  %v2060 = vrot.slane %v2059, 2
  %v2061 = vadd.f32 %v2059, %v2060
  %v2062 = vrot.slane %v2061, 1
  %v2063 = vadd.f32 %v2061, %v2062
  %v2064 = vsel %vm2010, %v2042, 0.0
  %v2065 = vrot.slane %v2064, 4
  %v2066 = vadd.f32 %v2064, %v2065
  %v2067 = vrot.slane %v2066, 2
  %v2068 = vadd.f32 %v2066, %v2067
  %v2069 = vrot.slane %v2068, 1
  %v2070 = vadd.f32 %v2068, %v2069
  %v2071 = vmul.f32 %v2017, 0.5
  %v2072 = vmul.f32 %v2024, 0.5
  %v2073 = vmul.f32 %v2031, 0.5
  %v2074 = vmul.f32 %v2038, 0.5
  %v2075 = vmul.f32 %v2049, 0.5
  %v2076 = vmul.f32 %v2056, 0.5
  %v2077 = vmul.f32 %v2063, 0.5
  %v2078 = vmul.f32 %v2070, 0.5
  %v2079 = vmul.f32 %v2071, %v2071
  %v2080 = vmul.f32 %v2072, %v2072
  %v2081 = vmul.f32 %v2073, %v2073
  %v2082 = vmul.f32 %v2074, %v2074
  %v2083 = vsub.f32 %v2075, %v2079
  %v2084 = vsub.f32 %v2076, %v2080
  %v2085 = vsub.f32 %v2077, %v2081
  %v2086 = vsub.f32 %v2078, %v2082
  %v2087 = vmax.f32 %v2083, 0.0
  %v2088 = vmax.f32 %v2084, 0.0
  %v2089 = vmax.f32 %v2085, 0.0
  %v2090 = vmax.f32 %v2086, 0.0
  %v2091 = vadd.f32 %v2087, 1e-05
  %v2092 = vadd.f32 %v2088, 1e-05
  %v2093 = vadd.f32 %v2089, 1e-05
  %v2094 = vadd.f32 %v2090, 1e-05
  %v2095 = vrsqrt.pop %v2091
  %v2096 = vrsqrt.pop %v2092
  %v2097 = vrsqrt.pop %v2093
  %v2098 = vrsqrt.pop %v2094
  %v2103 = vcombine.low %v2095, %v2096
  %v2104 = vcombine.low %v2097, %v2098
  %v2106 = vunpack.c.l.s4 1966171168
  %v2107 = vunpack.c.0.s8 %v2106
  %v2108 = vlaneseq
  %v2109 = vshrl.u32 %v2108, 7
  %v2110 = vsub.s32 %v2107, %v2109
  %v2111 = vrot.slane %v2103, %v2110
  %v2113 = vunpack.c.l.s4 1966171168
  %v2114 = vunpack.c.0.s8 %v2113
  %v2115 = vlaneseq
  %v2116 = vshrl.u32 %v2115, 7
  %v2117 = vsub.s32 %v2114, %v2116
  %v2118 = vrot.slane %v2104, %v2117
  %v2119 = vcombine.low %v2111, %v2118
  %v2121 = vunpack.c.l.s4 1966171168
  %v2122 = vunpack.c.0.s8 %v2121
  %v2123 = vlaneseq
  %v2124 = vshrl.u32 %v2123, 7
  %v2125 = vsub.s32 %v2122, %v2124
  %v2126 = vrot.slane %v2119, %v2125
  %v2128 = vmul.f32 %v2008, %v2126
  %v2130 = vlaneseq
  %v2131 = vshrl.u32 %v2130, 7
  %v2132 = vsub.s32 0, %v2131
  %v2133 = vrot.slane %v2128, %v2132
  %v2134 = vlaneseq
  %v2135 = vshrl.u32 %v2134, 7
  %v2136 = vsub.s32 1, %v2135
  %v2137 = vrot.slane %v2128, %v2136
  %v2138 = vlaneseq
  %v2139 = vshrl.u32 %v2138, 7
  %v2140 = vsub.s32 2, %v2139
  %v2141 = vrot.slane %v2128, %v2140
  %v2142 = vlaneseq
  %v2143 = vshrl.u32 %v2142, 7
  %v2144 = vsub.s32 3, %v2143
  %v2145 = vrot.slane %v2128, %v2144
  %v2150 = vmul.f32 %v2071, %v2133
  %v2151 = vmul.f32 %v2072, %v2137
  %v2152 = vmul.f32 %v2073, %v2141
  %v2153 = vmul.f32 %v2074, %v2145
  %v2158 = vcombine.low %v2150, %v2151
  %v2159 = vcombine.low %v2152, %v2153
  %v2161 = vunpack.c.l.s4 1966171168
  %v2162 = vunpack.c.0.s8 %v2161
  %v2163 = vlaneseq
  %v2164 = vshrl.u32 %v2163, 7
  %v2165 = vsub.s32 %v2162, %v2164
  %v2166 = vrot.slane %v2158, %v2165
  %v2168 = vunpack.c.l.s4 1966171168
  %v2169 = vunpack.c.0.s8 %v2168
  %v2170 = vlaneseq
  %v2171 = vshrl.u32 %v2170, 7
  %v2172 = vsub.s32 %v2169, %v2171
  %v2173 = vrot.slane %v2159, %v2172
  %v2174 = vcombine.low %v2166, %v2173
  %v2176 = vunpack.c.l.s4 1966171168
  %v2177 = vunpack.c.0.s8 %v2176
  %v2178 = vlaneseq
  %v2179 = vshrl.u32 %v2178, 7
  %v2180 = vsub.s32 %v2177, %v2179
  %v2181 = vrot.slane %v2174, %v2180
  %v2183 = vsub.f32 %v2009, %v2181
  %v2184 = vmul.f32 %v1838, %v2133
  %v2185 = vmul.f32 %v1840, %v2137
  %v2186 = vmul.f32 %v2002, %v2141
  %v2187 = vmul.f32 %v2004, %v2145
  %v2189 = vlaneseq
  %v2190 = vshrl.u32 %v2189, 7
  %v2191 = vsub.s32 0, %v2190
  %v2192 = vrot.slane %v2183, %v2191
  %v2193 = vlaneseq
  %v2194 = vshrl.u32 %v2193, 7
  %v2195 = vsub.s32 1, %v2194
  %v2196 = vrot.slane %v2183, %v2195
  %v2197 = vlaneseq
  %v2198 = vshrl.u32 %v2197, 7
  %v2199 = vsub.s32 2, %v2198
  %v2200 = vrot.slane %v2183, %v2199
  %v2201 = vlaneseq
  %v2202 = vshrl.u32 %v2201, 7
  %v2203 = vsub.s32 3, %v2202
  %v2204 = vrot.slane %v2183, %v2203
  %v2209 = vadd.f32 %v2184, %v2192
  %v2210 = vadd.f32 %v2185, %v2196
  %v2211 = vadd.f32 %v2186, %v2200
  %v2212 = vadd.f32 %v2187, %v2204
  %vm2213 = vcmp.ge.f32.partialorder %v2209, 0.0
  %vm2214 = vcmp.ge.f32.partialorder %v2210, 0.0
  %vm2215 = vcmp.ge.f32.partialorder %v2211, 0.0
  %vm2216 = vcmp.ge.f32.partialorder %v2212, 0.0
  %v2217 = vmul.f32 %v2209, 0.2
  %v2218 = vmul.f32 %v2210, 0.2
  %v2219 = vmul.f32 %v2211, 0.2
  %v2220 = vmul.f32 %v2212, 0.2
  %v2221 = vsel %vm2213, %v2209, %v2217
  %v2222 = vsel %vm2214, %v2210, %v2218
  %v2223 = vsel %vm2215, %v2211, %v2219
  %v2224 = vsel %vm2216, %v2212, %v2220
  %v2225 = vpack.c.bf16 %v2221, %v2221
  %v2226 = vpack.c.bf16 %v2222, %v2222
  %v2227 = vpack.c.bf16 %v2223, %v2223
  %v2228 = vpack.c.bf16 %v2224, %v2224
  %v2229 = vld [vmem:[%s2] sm:$0xff]
  %v2230 = vld [vmem:[%s2 + $0x8] sm:$0xff]
  %v2231 = vld [vmem:[%s2 + $0x10] sm:$0xff]
  %v2232 = vld [vmem:[%s2 + $0x18] sm:$0xff]
  %v2233 = vld [vmem:[%s2 + $0x20] sm:$0xff]
  %v2234 = vld [vmem:[%s2 + $0x28] sm:$0xff]
  %v2235 = vld [vmem:[%s2 + $0x30] sm:$0xff]
  %v2236 = vld [vmem:[%s2 + $0x38] sm:$0xff]
  %v2237 = vld [vmem:[%s2 + $0x40] sm:$0xff]
  %v2238 = vld [vmem:[%s2 + $0x48] sm:$0xff]
  %v2239 = vld [vmem:[%s2 + $0x50] sm:$0xff]
  %v2240 = vld [vmem:[%s2 + $0x58] sm:$0xff]
  %v2241 = vld [vmem:[%s2 + $0x60] sm:$0xff]
  %v2242 = vld [vmem:[%s2 + $0x68] sm:$0xff]
  %v2243 = vld [vmem:[%s2 + $0x70] sm:$0xff]
  %v2244 = vld [vmem:[%s2 + $0x78] sm:$0xff]
  %v2245 = vld [vmem:[%s2 + $0x80] sm:$0xff]
  %v2246 = vld [vmem:[%s2 + $0x88] sm:$0xff]
  %v2247 = vld [vmem:[%s2 + $0x90] sm:$0xff]
  %v2248 = vld [vmem:[%s2 + $0x98] sm:$0xff]
  %v2249 = vld [vmem:[%s2 + $0xa0] sm:$0xff]
  %v2250 = vld [vmem:[%s2 + $0xa8] sm:$0xff]
  %v2251 = vld [vmem:[%s2 + $0xb0] sm:$0xff]
  %v2252 = vld [vmem:[%s2 + $0xb8] sm:$0xff]
  %v2253 = vld [vmem:[%s2 + $0xc0] sm:$0xff]
  %v2254 = vld [vmem:[%s2 + $0xc8] sm:$0xff]
  %v2255 = vld [vmem:[%s2 + $0xd0] sm:$0xff]
  %v2256 = vld [vmem:[%s2 + $0xd8] sm:$0xff]
  %v2257 = vld [vmem:[%s2 + $0xe0] sm:$0xff]
  %v2258 = vld [vmem:[%s2 + $0xe8] sm:$0xff]
  %v2259 = vld [vmem:[%s2 + $0xf0] sm:$0xff]
  %v2260 = vld [vmem:[%s2 + $0xf8] sm:$0xff]
  %v2261 = vld [vmem:[%s2 + $0x100] sm:$0xff]
  %v2262 = vld [vmem:[%s2 + $0x108] sm:$0xff]
  %v2263 = vld [vmem:[%s2 + $0x110] sm:$0xff]
  %v2264 = vld [vmem:[%s2 + $0x118] sm:$0xff]
  %v2265 = vld [vmem:[%s2 + $0x120] sm:$0xff]
  %v2266 = vld [vmem:[%s2 + $0x128] sm:$0xff]
  %v2267 = vld [vmem:[%s2 + $0x130] sm:$0xff]
  %v2268 = vld [vmem:[%s2 + $0x138] sm:$0xff]
  %v2269 = vld [vmem:[%s2 + $0x140] sm:$0xff]
  %v2270 = vld [vmem:[%s2 + $0x148] sm:$0xff]
  %v2271 = vld [vmem:[%s2 + $0x150] sm:$0xff]
  %v2272 = vld [vmem:[%s2 + $0x158] sm:$0xff]
  %v2273 = vld [vmem:[%s2 + $0x160] sm:$0xff]
  %v2274 = vld [vmem:[%s2 + $0x168] sm:$0xff]
  %v2275 = vld [vmem:[%s2 + $0x170] sm:$0xff]
  %v2276 = vld [vmem:[%s2 + $0x178] sm:$0xff]
  %v2277 = vld [vmem:[%s2 + $0x180] sm:$0xff]
  %v2278 = vld [vmem:[%s2 + $0x188] sm:$0xff]
  %v2279 = vld [vmem:[%s2 + $0x190] sm:$0xff]
  %v2280 = vld [vmem:[%s2 + $0x198] sm:$0xff]
  %v2281 = vld [vmem:[%s2 + $0x1a0] sm:$0xff]
  %v2282 = vld [vmem:[%s2 + $0x1a8] sm:$0xff]
  %v2283 = vld [vmem:[%s2 + $0x1b0] sm:$0xff]
  %v2284 = vld [vmem:[%s2 + $0x1b8] sm:$0xff]
  %v2285 = vld [vmem:[%s2 + $0x1c0] sm:$0xff]
  %v2286 = vld [vmem:[%s2 + $0x1c8] sm:$0xff]
  %v2287 = vld [vmem:[%s2 + $0x1d0] sm:$0xff]
  %v2288 = vld [vmem:[%s2 + $0x1d8] sm:$0xff]
  %v2289 = vld [vmem:[%s2 + $0x1e0] sm:$0xff]
  %v2290 = vld [vmem:[%s2 + $0x1e8] sm:$0xff]
  %v2291 = vld [vmem:[%s2 + $0x1f0] sm:$0xff]
  %v2292 = vld [vmem:[%s2 + $0x1f8] sm:$0xff]
  %v2293 = vld [vmem:[%s2 + $0x200] sm:$0xff]
  %v2294 = vld [vmem:[%s2 + $0x208] sm:$0xff]
  %v2295 = vld [vmem:[%s2 + $0x210] sm:$0xff]
  %v2296 = vld [vmem:[%s2 + $0x218] sm:$0xff]
  %v2297 = vld [vmem:[%s2 + $0x220] sm:$0xff]
  %v2298 = vld [vmem:[%s2 + $0x228] sm:$0xff]
  %v2299 = vld [vmem:[%s2 + $0x230] sm:$0xff]
  %v2300 = vld [vmem:[%s2 + $0x238] sm:$0xff]
  %v2301 = vld [vmem:[%s2 + $0x240] sm:$0xff]
  %v2302 = vld [vmem:[%s2 + $0x248] sm:$0xff]
  %v2303 = vld [vmem:[%s2 + $0x250] sm:$0xff]
  %v2304 = vld [vmem:[%s2 + $0x258] sm:$0xff]
  %v2305 = vld [vmem:[%s2 + $0x260] sm:$0xff]
  %v2306 = vld [vmem:[%s2 + $0x268] sm:$0xff]
  %v2307 = vld [vmem:[%s2 + $0x270] sm:$0xff]
  %v2308 = vld [vmem:[%s2 + $0x278] sm:$0xff]
  %v2309 = vld [vmem:[%s2 + $0x280] sm:$0xff]
  %v2310 = vld [vmem:[%s2 + $0x288] sm:$0xff]
  %v2311 = vld [vmem:[%s2 + $0x290] sm:$0xff]
  %v2312 = vld [vmem:[%s2 + $0x298] sm:$0xff]
  %v2313 = vld [vmem:[%s2 + $0x2a0] sm:$0xff]
  %v2314 = vld [vmem:[%s2 + $0x2a8] sm:$0xff]
  %v2315 = vld [vmem:[%s2 + $0x2b0] sm:$0xff]
  %v2316 = vld [vmem:[%s2 + $0x2b8] sm:$0xff]
  %v2317 = vld [vmem:[%s2 + $0x2c0] sm:$0xff]
  %v2318 = vld [vmem:[%s2 + $0x2c8] sm:$0xff]
  %v2319 = vld [vmem:[%s2 + $0x2d0] sm:$0xff]
  %v2320 = vld [vmem:[%s2 + $0x2d8] sm:$0xff]
  %v2321 = vld [vmem:[%s2 + $0x2e0] sm:$0xff]
  %v2322 = vld [vmem:[%s2 + $0x2e8] sm:$0xff]
  %v2323 = vld [vmem:[%s2 + $0x2f0] sm:$0xff]
  %v2324 = vld [vmem:[%s2 + $0x2f8] sm:$0xff]
  %v2325 = vld [vmem:[%s2 + $0x300] sm:$0xff]
  %v2326 = vld [vmem:[%s2 + $0x308] sm:$0xff]
  %v2327 = vld [vmem:[%s2 + $0x310] sm:$0xff]
  %v2328 = vld [vmem:[%s2 + $0x318] sm:$0xff]
  %v2329 = vld [vmem:[%s2 + $0x320] sm:$0xff]
  %v2330 = vld [vmem:[%s2 + $0x328] sm:$0xff]
  %v2331 = vld [vmem:[%s2 + $0x330] sm:$0xff]
  %v2332 = vld [vmem:[%s2 + $0x338] sm:$0xff]
  %v2333 = vld [vmem:[%s2 + $0x340] sm:$0xff]
  %v2334 = vld [vmem:[%s2 + $0x348] sm:$0xff]
  %v2335 = vld [vmem:[%s2 + $0x350] sm:$0xff]
  %v2336 = vld [vmem:[%s2 + $0x358] sm:$0xff]
  %v2337 = vld [vmem:[%s2 + $0x360] sm:$0xff]
  %v2338 = vld [vmem:[%s2 + $0x368] sm:$0xff]
  %v2339 = vld [vmem:[%s2 + $0x370] sm:$0xff]
  %v2340 = vld [vmem:[%s2 + $0x378] sm:$0xff]
  %v2341 = vld [vmem:[%s2 + $0x380] sm:$0xff]
  %v2342 = vld [vmem:[%s2 + $0x388] sm:$0xff]
  %v2343 = vld [vmem:[%s2 + $0x390] sm:$0xff]
  %v2344 = vld [vmem:[%s2 + $0x398] sm:$0xff]
  %v2345 = vld [vmem:[%s2 + $0x3a0] sm:$0xff]
  %v2346 = vld [vmem:[%s2 + $0x3a8] sm:$0xff]
  %v2347 = vld [vmem:[%s2 + $0x3b0] sm:$0xff]
  %v2348 = vld [vmem:[%s2 + $0x3b8] sm:$0xff]
  %v2349 = vld [vmem:[%s2 + $0x3c0] sm:$0xff]
  %v2350 = vld [vmem:[%s2 + $0x3c8] sm:$0xff]
  %v2351 = vld [vmem:[%s2 + $0x3d0] sm:$0xff]
  %v2352 = vld [vmem:[%s2 + $0x3d8] sm:$0xff]
  %v2353 = vld [vmem:[%s2 + $0x3e0] sm:$0xff]
  %v2354 = vld [vmem:[%s2 + $0x3e8] sm:$0xff]
  %v2355 = vld [vmem:[%s2 + $0x3f0] sm:$0xff]
  %v2356 = vld [vmem:[%s2 + $0x3f8] sm:$0xff]
  %v2357 = vld [vmem:[%s6] sm:$0xf]
  %v2359 = vlaneseq
  %v2360 = vshrl.u32 %v2359, 7
  %v2361 = vsub.s32 0, %v2360
  %v2362 = vrot.slane %v2357, %v2361
  %v2363 = vlaneseq
  %v2364 = vshrl.u32 %v2363, 7
  %v2365 = vsub.s32 1, %v2364
  %v2366 = vrot.slane %v2357, %v2365
  %v2367 = vlaneseq
  %v2368 = vshrl.u32 %v2367, 7
  %v2369 = vsub.s32 2, %v2368
  %v2370 = vrot.slane %v2357, %v2369
  %v2371 = vlaneseq
  %v2372 = vshrl.u32 %v2371, 7
  %v2373 = vsub.s32 3, %v2372
  %v2374 = vrot.slane %v2357, %v2373
  %v2507 = vunpack.c.l.b16 %v2229
  %v2508 = vunpack.c.h.b16 %v2229
  %v2509 = vunpack.c.l.b16 %v2230
  %v2510 = vunpack.c.h.b16 %v2230
  %v2511 = vunpack.c.l.b16 %v2231
  %v2512 = vunpack.c.h.b16 %v2231
  %v2513 = vunpack.c.l.b16 %v2232
  %v2514 = vunpack.c.h.b16 %v2232
  %v2515 = vunpack.c.l.b16 %v2233
  %v2516 = vunpack.c.h.b16 %v2233
  %v2517 = vunpack.c.l.b16 %v2234
  %v2518 = vunpack.c.h.b16 %v2234
  %v2519 = vunpack.c.l.b16 %v2235
  %v2520 = vunpack.c.h.b16 %v2235
  %v2521 = vunpack.c.l.b16 %v2236
  %v2522 = vunpack.c.h.b16 %v2236
  %v2523 = vunpack.c.l.b16 %v2237
  %v2524 = vunpack.c.h.b16 %v2237
  %v2525 = vunpack.c.l.b16 %v2238
  %v2526 = vunpack.c.h.b16 %v2238
  %v2527 = vunpack.c.l.b16 %v2239
  %v2528 = vunpack.c.h.b16 %v2239
  %v2529 = vunpack.c.l.b16 %v2240
  %v2530 = vunpack.c.h.b16 %v2240
  %v2531 = vunpack.c.l.b16 %v2241
  %v2532 = vunpack.c.h.b16 %v2241
  %v2533 = vunpack.c.l.b16 %v2242
  %v2534 = vunpack.c.h.b16 %v2242
  %v2535 = vunpack.c.l.b16 %v2243
  %v2536 = vunpack.c.h.b16 %v2243
  %v2537 = vunpack.c.l.b16 %v2244
  %v2538 = vunpack.c.h.b16 %v2244
  %v2539 = vunpack.c.l.b16 %v2245
  %v2540 = vunpack.c.h.b16 %v2245
  %v2541 = vunpack.c.l.b16 %v2246
  %v2542 = vunpack.c.h.b16 %v2246
  %v2543 = vunpack.c.l.b16 %v2247
  %v2544 = vunpack.c.h.b16 %v2247
  %v2545 = vunpack.c.l.b16 %v2248
  %v2546 = vunpack.c.h.b16 %v2248
  %v2547 = vunpack.c.l.b16 %v2249
  %v2548 = vunpack.c.h.b16 %v2249
  %v2549 = vunpack.c.l.b16 %v2250
  %v2550 = vunpack.c.h.b16 %v2250
  %v2551 = vunpack.c.l.b16 %v2251
  %v2552 = vunpack.c.h.b16 %v2251
  %v2553 = vunpack.c.l.b16 %v2252
  %v2554 = vunpack.c.h.b16 %v2252
  %v2555 = vunpack.c.l.b16 %v2253
  %v2556 = vunpack.c.h.b16 %v2253
  %v2557 = vunpack.c.l.b16 %v2254
  %v2558 = vunpack.c.h.b16 %v2254
  %v2559 = vunpack.c.l.b16 %v2255
  %v2560 = vunpack.c.h.b16 %v2255
  %v2561 = vunpack.c.l.b16 %v2256
  %v2562 = vunpack.c.h.b16 %v2256
  %v2563 = vunpack.c.l.b16 %v2257
  %v2564 = vunpack.c.h.b16 %v2257
  %v2565 = vunpack.c.l.b16 %v2258
  %v2566 = vunpack.c.h.b16 %v2258
  %v2567 = vunpack.c.l.b16 %v2259
  %v2568 = vunpack.c.h.b16 %v2259
  %v2569 = vunpack.c.l.b16 %v2260
  %v2570 = vunpack.c.h.b16 %v2260
  %v2571 = vunpack.c.l.b16 %v2261
  %v2572 = vunpack.c.h.b16 %v2261
  %v2573 = vunpack.c.l.b16 %v2262
  %v2574 = vunpack.c.h.b16 %v2262
  %v2575 = vunpack.c.l.b16 %v2263
  %v2576 = vunpack.c.h.b16 %v2263
  %v2577 = vunpack.c.l.b16 %v2264
  %v2578 = vunpack.c.h.b16 %v2264
  %v2579 = vunpack.c.l.b16 %v2265
  %v2580 = vunpack.c.h.b16 %v2265
  %v2581 = vunpack.c.l.b16 %v2266
  %v2582 = vunpack.c.h.b16 %v2266
  %v2583 = vunpack.c.l.b16 %v2267
  %v2584 = vunpack.c.h.b16 %v2267
  %v2585 = vunpack.c.l.b16 %v2268
  %v2586 = vunpack.c.h.b16 %v2268
  %v2587 = vunpack.c.l.b16 %v2269
  %v2588 = vunpack.c.h.b16 %v2269
  %v2589 = vunpack.c.l.b16 %v2270
  %v2590 = vunpack.c.h.b16 %v2270
  %v2591 = vunpack.c.l.b16 %v2271
  %v2592 = vunpack.c.h.b16 %v2271
  %v2593 = vunpack.c.l.b16 %v2272
  %v2594 = vunpack.c.h.b16 %v2272
  %v2595 = vunpack.c.l.b16 %v2273
  %v2596 = vunpack.c.h.b16 %v2273
  %v2597 = vunpack.c.l.b16 %v2274
  %v2598 = vunpack.c.h.b16 %v2274
  %v2599 = vunpack.c.l.b16 %v2275
  %v2600 = vunpack.c.h.b16 %v2275
  %v2601 = vunpack.c.l.b16 %v2276
  %v2602 = vunpack.c.h.b16 %v2276
  %v2603 = vunpack.c.l.b16 %v2277
  %v2604 = vunpack.c.h.b16 %v2277
  %v2605 = vunpack.c.l.b16 %v2278
  %v2606 = vunpack.c.h.b16 %v2278
  %v2607 = vunpack.c.l.b16 %v2279
  %v2608 = vunpack.c.h.b16 %v2279
  %v2609 = vunpack.c.l.b16 %v2280
  %v2610 = vunpack.c.h.b16 %v2280
  %v2611 = vunpack.c.l.b16 %v2281
  %v2612 = vunpack.c.h.b16 %v2281
  %v2613 = vunpack.c.l.b16 %v2282
  %v2614 = vunpack.c.h.b16 %v2282
  %v2615 = vunpack.c.l.b16 %v2283
  %v2616 = vunpack.c.h.b16 %v2283
  %v2617 = vunpack.c.l.b16 %v2284
  %v2618 = vunpack.c.h.b16 %v2284
  %v2619 = vunpack.c.l.b16 %v2285
  %v2620 = vunpack.c.h.b16 %v2285
  %v2621 = vunpack.c.l.b16 %v2286
  %v2622 = vunpack.c.h.b16 %v2286
  %v2623 = vunpack.c.l.b16 %v2287
  %v2624 = vunpack.c.h.b16 %v2287
  %v2625 = vunpack.c.l.b16 %v2288
  %v2626 = vunpack.c.h.b16 %v2288
  %v2627 = vunpack.c.l.b16 %v2289
  %v2628 = vunpack.c.h.b16 %v2289
  %v2629 = vunpack.c.l.b16 %v2290
  %v2630 = vunpack.c.h.b16 %v2290
  %v2631 = vunpack.c.l.b16 %v2291
  %v2632 = vunpack.c.h.b16 %v2291
  %v2633 = vunpack.c.l.b16 %v2292
  %v2634 = vunpack.c.h.b16 %v2292
  %v2635 = vunpack.c.l.b16 %v2293
  %v2636 = vunpack.c.h.b16 %v2293
  %v2637 = vunpack.c.l.b16 %v2294
  %v2638 = vunpack.c.h.b16 %v2294
  %v2639 = vunpack.c.l.b16 %v2295
  %v2640 = vunpack.c.h.b16 %v2295
  %v2641 = vunpack.c.l.b16 %v2296
  %v2642 = vunpack.c.h.b16 %v2296
  %v2643 = vunpack.c.l.b16 %v2297
  %v2644 = vunpack.c.h.b16 %v2297
  %v2645 = vunpack.c.l.b16 %v2298
  %v2646 = vunpack.c.h.b16 %v2298
  %v2647 = vunpack.c.l.b16 %v2299
  %v2648 = vunpack.c.h.b16 %v2299
  %v2649 = vunpack.c.l.b16 %v2300
  %v2650 = vunpack.c.h.b16 %v2300
  %v2651 = vunpack.c.l.b16 %v2301
  %v2652 = vunpack.c.h.b16 %v2301
  %v2653 = vunpack.c.l.b16 %v2302
  %v2654 = vunpack.c.h.b16 %v2302
  %v2655 = vunpack.c.l.b16 %v2303
  %v2656 = vunpack.c.h.b16 %v2303
  %v2657 = vunpack.c.l.b16 %v2304
  %v2658 = vunpack.c.h.b16 %v2304
  %v2659 = vunpack.c.l.b16 %v2305
  %v2660 = vunpack.c.h.b16 %v2305
  %v2661 = vunpack.c.l.b16 %v2306
  %v2662 = vunpack.c.h.b16 %v2306
  %v2663 = vunpack.c.l.b16 %v2307
  %v2664 = vunpack.c.h.b16 %v2307
  %v2665 = vunpack.c.l.b16 %v2308
  %v2666 = vunpack.c.h.b16 %v2308
  %v2667 = vunpack.c.l.b16 %v2309
  %v2668 = vunpack.c.h.b16 %v2309
  %v2669 = vunpack.c.l.b16 %v2310
  %v2670 = vunpack.c.h.b16 %v2310
  %v2671 = vunpack.c.l.b16 %v2311
  %v2672 = vunpack.c.h.b16 %v2311
  %v2673 = vunpack.c.l.b16 %v2312
  %v2674 = vunpack.c.h.b16 %v2312
  %v2675 = vunpack.c.l.b16 %v2313
  %v2676 = vunpack.c.h.b16 %v2313
  %v2677 = vunpack.c.l.b16 %v2314
  %v2678 = vunpack.c.h.b16 %v2314
  %v2679 = vunpack.c.l.b16 %v2315
  %v2680 = vunpack.c.h.b16 %v2315
  %v2681 = vunpack.c.l.b16 %v2316
  %v2682 = vunpack.c.h.b16 %v2316
  %v2683 = vunpack.c.l.b16 %v2317
  %v2684 = vunpack.c.h.b16 %v2317
  %v2685 = vunpack.c.l.b16 %v2318
  %v2686 = vunpack.c.h.b16 %v2318
  %v2687 = vunpack.c.l.b16 %v2319
  %v2688 = vunpack.c.h.b16 %v2319
  %v2689 = vunpack.c.l.b16 %v2320
  %v2690 = vunpack.c.h.b16 %v2320
  %v2691 = vunpack.c.l.b16 %v2321
  %v2692 = vunpack.c.h.b16 %v2321
  %v2693 = vunpack.c.l.b16 %v2322
  %v2694 = vunpack.c.h.b16 %v2322
  %v2695 = vunpack.c.l.b16 %v2323
  %v2696 = vunpack.c.h.b16 %v2323
  %v2697 = vunpack.c.l.b16 %v2324
  %v2698 = vunpack.c.h.b16 %v2324
  %v2699 = vunpack.c.l.b16 %v2325
  %v2700 = vunpack.c.h.b16 %v2325
  %v2701 = vunpack.c.l.b16 %v2326
  %v2702 = vunpack.c.h.b16 %v2326
  %v2703 = vunpack.c.l.b16 %v2327
  %v2704 = vunpack.c.h.b16 %v2327
  %v2705 = vunpack.c.l.b16 %v2328
  %v2706 = vunpack.c.h.b16 %v2328
  %v2707 = vunpack.c.l.b16 %v2329
  %v2708 = vunpack.c.h.b16 %v2329
  %v2709 = vunpack.c.l.b16 %v2330
  %v2710 = vunpack.c.h.b16 %v2330
  %v2711 = vunpack.c.l.b16 %v2331
  %v2712 = vunpack.c.h.b16 %v2331
  %v2713 = vunpack.c.l.b16 %v2332
  %v2714 = vunpack.c.h.b16 %v2332
  %v2715 = vunpack.c.l.b16 %v2333
  %v2716 = vunpack.c.h.b16 %v2333
  %v2717 = vunpack.c.l.b16 %v2334
  %v2718 = vunpack.c.h.b16 %v2334
  %v2719 = vunpack.c.l.b16 %v2335
  %v2720 = vunpack.c.h.b16 %v2335
  %v2721 = vunpack.c.l.b16 %v2336
  %v2722 = vunpack.c.h.b16 %v2336
  %v2723 = vunpack.c.l.b16 %v2337
  %v2724 = vunpack.c.h.b16 %v2337
  %v2725 = vunpack.c.l.b16 %v2338
  %v2726 = vunpack.c.h.b16 %v2338
  %v2727 = vunpack.c.l.b16 %v2339
  %v2728 = vunpack.c.h.b16 %v2339
  %v2729 = vunpack.c.l.b16 %v2340
  %v2730 = vunpack.c.h.b16 %v2340
  %v2731 = vunpack.c.l.b16 %v2341
  %v2732 = vunpack.c.h.b16 %v2341
  %v2733 = vunpack.c.l.b16 %v2342
  %v2734 = vunpack.c.h.b16 %v2342
  %v2735 = vunpack.c.l.b16 %v2343
  %v2736 = vunpack.c.h.b16 %v2343
  %v2737 = vunpack.c.l.b16 %v2344
  %v2738 = vunpack.c.h.b16 %v2344
  %v2739 = vunpack.c.l.b16 %v2345
  %v2740 = vunpack.c.h.b16 %v2345
  %v2741 = vunpack.c.l.b16 %v2346
  %v2742 = vunpack.c.h.b16 %v2346
  %v2743 = vunpack.c.l.b16 %v2347
  %v2744 = vunpack.c.h.b16 %v2347
  %v2745 = vunpack.c.l.b16 %v2348
  %v2746 = vunpack.c.h.b16 %v2348
  %v2747 = vunpack.c.l.b16 %v2349
  %v2748 = vunpack.c.h.b16 %v2349
  %v2749 = vunpack.c.l.b16 %v2350
  %v2750 = vunpack.c.h.b16 %v2350
  %v2751 = vunpack.c.l.b16 %v2351
  %v2752 = vunpack.c.h.b16 %v2351
  %v2753 = vunpack.c.l.b16 %v2352
  %v2754 = vunpack.c.h.b16 %v2352
  %v2755 = vunpack.c.l.b16 %v2353
  %v2756 = vunpack.c.h.b16 %v2353
  %v2757 = vunpack.c.l.b16 %v2354
  %v2758 = vunpack.c.h.b16 %v2354
  %v2759 = vunpack.c.l.b16 %v2355
  %v2760 = vunpack.c.h.b16 %v2355
  %v2761 = vunpack.c.l.b16 %v2356
  %v2762 = vunpack.c.h.b16 %v2356
  %v2763 = vpack.c.b16 %v2511, %v2507
  %v2764 = vpack.c.b16 %v2512, %v2508
  %v2765 = vpack.c.b16 %v2513, %v2509
  %v2766 = vpack.c.b16 %v2514, %v2510
  %v2767 = vpack.c.b16 %v2519, %v2515
  %v2768 = vpack.c.b16 %v2520, %v2516
  %v2769 = vpack.c.b16 %v2521, %v2517
  %v2770 = vpack.c.b16 %v2522, %v2518
  %v2771 = vpack.c.b16 %v2527, %v2523
  %v2772 = vpack.c.b16 %v2528, %v2524
  %v2773 = vpack.c.b16 %v2529, %v2525
  %v2774 = vpack.c.b16 %v2530, %v2526
  %v2775 = vpack.c.b16 %v2535, %v2531
  %v2776 = vpack.c.b16 %v2536, %v2532
  %v2777 = vpack.c.b16 %v2537, %v2533
  %v2778 = vpack.c.b16 %v2538, %v2534
  %v2779 = vpack.c.b16 %v2543, %v2539
  %v2780 = vpack.c.b16 %v2544, %v2540
  %v2781 = vpack.c.b16 %v2545, %v2541
  %v2782 = vpack.c.b16 %v2546, %v2542
  %v2783 = vpack.c.b16 %v2551, %v2547
  %v2784 = vpack.c.b16 %v2552, %v2548
  %v2785 = vpack.c.b16 %v2553, %v2549
  %v2786 = vpack.c.b16 %v2554, %v2550
  %v2787 = vpack.c.b16 %v2559, %v2555
  %v2788 = vpack.c.b16 %v2560, %v2556
  %v2789 = vpack.c.b16 %v2561, %v2557
  %v2790 = vpack.c.b16 %v2562, %v2558
  %v2791 = vpack.c.b16 %v2567, %v2563
  %v2792 = vpack.c.b16 %v2568, %v2564
  %v2793 = vpack.c.b16 %v2569, %v2565
  %v2794 = vpack.c.b16 %v2570, %v2566
  %v2795 = vpack.c.b16 %v2575, %v2571
  %v2796 = vpack.c.b16 %v2576, %v2572
  %v2797 = vpack.c.b16 %v2577, %v2573
  %v2798 = vpack.c.b16 %v2578, %v2574
  %v2799 = vpack.c.b16 %v2583, %v2579
  %v2800 = vpack.c.b16 %v2584, %v2580
  %v2801 = vpack.c.b16 %v2585, %v2581
  %v2802 = vpack.c.b16 %v2586, %v2582
  %v2803 = vpack.c.b16 %v2591, %v2587
  %v2804 = vpack.c.b16 %v2592, %v2588
  %v2805 = vpack.c.b16 %v2593, %v2589
  %v2806 = vpack.c.b16 %v2594, %v2590
  %v2807 = vpack.c.b16 %v2599, %v2595
  %v2808 = vpack.c.b16 %v2600, %v2596
  %v2809 = vpack.c.b16 %v2601, %v2597
  %v2810 = vpack.c.b16 %v2602, %v2598
  %v2811 = vpack.c.b16 %v2607, %v2603
  %v2812 = vpack.c.b16 %v2608, %v2604
  %v2813 = vpack.c.b16 %v2609, %v2605
  %v2814 = vpack.c.b16 %v2610, %v2606
  %v2815 = vpack.c.b16 %v2615, %v2611
  %v2816 = vpack.c.b16 %v2616, %v2612
  %v2817 = vpack.c.b16 %v2617, %v2613
  %v2818 = vpack.c.b16 %v2618, %v2614
  %v2819 = vpack.c.b16 %v2623, %v2619
  %v2820 = vpack.c.b16 %v2624, %v2620
  %v2821 = vpack.c.b16 %v2625, %v2621
  %v2822 = vpack.c.b16 %v2626, %v2622
  %v2823 = vpack.c.b16 %v2631, %v2627
  %v2824 = vpack.c.b16 %v2632, %v2628
  %v2825 = vpack.c.b16 %v2633, %v2629
  %v2826 = vpack.c.b16 %v2634, %v2630
  %v2827 = vpack.c.b16 %v2639, %v2635
  %v2828 = vpack.c.b16 %v2640, %v2636
  %v2829 = vpack.c.b16 %v2641, %v2637
  %v2830 = vpack.c.b16 %v2642, %v2638
  %v2831 = vpack.c.b16 %v2647, %v2643
  %v2832 = vpack.c.b16 %v2648, %v2644
  %v2833 = vpack.c.b16 %v2649, %v2645
  %v2834 = vpack.c.b16 %v2650, %v2646
  %v2835 = vpack.c.b16 %v2655, %v2651
  %v2836 = vpack.c.b16 %v2656, %v2652
  %v2837 = vpack.c.b16 %v2657, %v2653
  %v2838 = vpack.c.b16 %v2658, %v2654
  %v2839 = vpack.c.b16 %v2663, %v2659
  %v2840 = vpack.c.b16 %v2664, %v2660
  %v2841 = vpack.c.b16 %v2665, %v2661
  %v2842 = vpack.c.b16 %v2666, %v2662
  %v2843 = vpack.c.b16 %v2671, %v2667
  %v2844 = vpack.c.b16 %v2672, %v2668
  %v2845 = vpack.c.b16 %v2673, %v2669
  %v2846 = vpack.c.b16 %v2674, %v2670
  %v2847 = vpack.c.b16 %v2679, %v2675
  %v2848 = vpack.c.b16 %v2680, %v2676
  %v2849 = vpack.c.b16 %v2681, %v2677
  %v2850 = vpack.c.b16 %v2682, %v2678
  %v2851 = vpack.c.b16 %v2687, %v2683
  %v2852 = vpack.c.b16 %v2688, %v2684
  %v2853 = vpack.c.b16 %v2689, %v2685
  %v2854 = vpack.c.b16 %v2690, %v2686
  %v2855 = vpack.c.b16 %v2695, %v2691
  %v2856 = vpack.c.b16 %v2696, %v2692
  %v2857 = vpack.c.b16 %v2697, %v2693
  %v2858 = vpack.c.b16 %v2698, %v2694
  %v2859 = vpack.c.b16 %v2703, %v2699
  %v2860 = vpack.c.b16 %v2704, %v2700
  %v2861 = vpack.c.b16 %v2705, %v2701
  %v2862 = vpack.c.b16 %v2706, %v2702
  %v2863 = vpack.c.b16 %v2711, %v2707
  %v2864 = vpack.c.b16 %v2712, %v2708
  %v2865 = vpack.c.b16 %v2713, %v2709
  %v2866 = vpack.c.b16 %v2714, %v2710
  %v2867 = vpack.c.b16 %v2719, %v2715
  %v2868 = vpack.c.b16 %v2720, %v2716
  %v2869 = vpack.c.b16 %v2721, %v2717
  %v2870 = vpack.c.b16 %v2722, %v2718
  %v2871 = vpack.c.b16 %v2727, %v2723
  %v2872 = vpack.c.b16 %v2728, %v2724
  %v2873 = vpack.c.b16 %v2729, %v2725
  %v2874 = vpack.c.b16 %v2730, %v2726
  %v2875 = vpack.c.b16 %v2735, %v2731
  %v2876 = vpack.c.b16 %v2736, %v2732
  %v2877 = vpack.c.b16 %v2737, %v2733
  %v2878 = vpack.c.b16 %v2738, %v2734
  %v2879 = vpack.c.b16 %v2743, %v2739
  %v2880 = vpack.c.b16 %v2744, %v2740
  %v2881 = vpack.c.b16 %v2745, %v2741
  %v2882 = vpack.c.b16 %v2746, %v2742
  %v2883 = vpack.c.b16 %v2751, %v2747
  %v2884 = vpack.c.b16 %v2752, %v2748
  %v2885 = vpack.c.b16 %v2753, %v2749
  %v2886 = vpack.c.b16 %v2754, %v2750
  %v2887 = vpack.c.b16 %v2759, %v2755
  %v2888 = vpack.c.b16 %v2760, %v2756
  %v2889 = vpack.c.b16 %v2761, %v2757
  %v2890 = vpack.c.b16 %v2762, %v2758
  %3019 = vmatprep.subr.bf16.mxu0 %v2764
  %3020 = vmatpush1.bf16.msra.mxu0 %v2763
  %3021 = vmatprep.subr.bf16.mxu0 %v2768
  %3022 = vmatpush1.bf16.msra.mxu0 %v2767
  %3023 = vmatprep.subr.bf16.mxu0 %v2772
  %3024 = vmatpush1.bf16.msra.mxu0 %v2771
  %3025 = vmatprep.subr.bf16.mxu0 %v2776
  %3026 = vmatpush1.bf16.msra.mxu0 %v2775
  %3027 = vmatprep.subr.bf16.mxu0 %v2780
  %3028 = vmatpush1.bf16.msra.mxu0 %v2779
  %3029 = vmatprep.subr.bf16.mxu0 %v2784
  %3030 = vmatpush1.bf16.msra.mxu0 %v2783
  %3031 = vmatprep.subr.bf16.mxu0 %v2788
  %3032 = vmatpush1.bf16.msra.mxu0 %v2787
  %3033 = vmatprep.subr.bf16.mxu0 %v2792
  %3034 = vmatpush1.bf16.msra.mxu0 %v2791
  %3035 = vmatprep.subr.bf16.mxu0 %v2796
  %3036 = vmatpush1.bf16.msra.mxu0 %v2795
  %3037 = vmatprep.subr.bf16.mxu0 %v2800
  %3038 = vmatpush1.bf16.msra.mxu0 %v2799
  %3039 = vmatprep.subr.bf16.mxu0 %v2804
  %3040 = vmatpush1.bf16.msra.mxu0 %v2803
  %3041 = vmatprep.subr.bf16.mxu0 %v2808
  %3042 = vmatpush1.bf16.msra.mxu0 %v2807
  %3043 = vmatprep.subr.bf16.mxu0 %v2812
  %3044 = vmatpush1.bf16.msra.mxu0 %v2811
  %3045 = vmatprep.subr.bf16.mxu0 %v2816
  %3046 = vmatpush1.bf16.msra.mxu0 %v2815
  %3047 = vmatprep.subr.bf16.mxu0 %v2820
  %3048 = vmatpush1.bf16.msra.mxu0 %v2819
  %3049 = vmatprep.subr.bf16.mxu0 %v2824
  %3050 = vmatpush1.bf16.msra.mxu0 %v2823
  %3051 = vmatprep.mubr.bf16.mxu0 %v2226
  %3052 = vmatmul.mubr.bf16.gmra.mrb[0].mxu0 %v2225
  %v3053 = vpop.f32.mrb[0].mxu0
  %v3054 = vadd.f32 %v2362, %v3053
  %v3055 = vpop.f32.mrb[0].mxu0
  %v3056 = vadd.f32 %v2366, %v3055
  %v3057 = vpop.f32.mrb[0].mxu0
  %v3058 = vpop.f32.mrb[0].mxu0
  %3059 = vdwg.mxu0
  %3060 = vmatprep.subr.bf16.mxu0 %v2828
  %3061 = vmatpush1.bf16.msra.mxu0 %v2827
  %3062 = vmatprep.subr.bf16.mxu0 %v2832
  %3063 = vmatpush1.bf16.msra.mxu0 %v2831
  %3064 = vmatprep.subr.bf16.mxu0 %v2836
  %3065 = vmatpush1.bf16.msra.mxu0 %v2835
  %3066 = vmatprep.subr.bf16.mxu0 %v2840
  %3067 = vmatpush1.bf16.msra.mxu0 %v2839
  %3068 = vmatprep.subr.bf16.mxu0 %v2844
  %3069 = vmatpush1.bf16.msra.mxu0 %v2843
  %3070 = vmatprep.subr.bf16.mxu0 %v2848
  %3071 = vmatpush1.bf16.msra.mxu0 %v2847
  %3072 = vmatprep.subr.bf16.mxu0 %v2852
  %3073 = vmatpush1.bf16.msra.mxu0 %v2851
  %3074 = vmatprep.subr.bf16.mxu0 %v2856
  %3075 = vmatpush1.bf16.msra.mxu0 %v2855
  %3076 = vmatprep.subr.bf16.mxu0 %v2860
  %3077 = vmatpush1.bf16.msra.mxu0 %v2859
  %3078 = vmatprep.subr.bf16.mxu0 %v2864
  %3079 = vmatpush1.bf16.msra.mxu0 %v2863
  %3080 = vmatprep.subr.bf16.mxu0 %v2868
  %3081 = vmatpush1.bf16.msra.mxu0 %v2867
  %3082 = vmatprep.subr.bf16.mxu0 %v2872
  %3083 = vmatpush1.bf16.msra.mxu0 %v2871
  %3084 = vmatprep.subr.bf16.mxu0 %v2876
  %3085 = vmatpush1.bf16.msra.mxu0 %v2875
  %3086 = vmatprep.subr.bf16.mxu0 %v2880
  %3087 = vmatpush1.bf16.msra.mxu0 %v2879
  %3088 = vmatprep.subr.bf16.mxu0 %v2884
  %3089 = vmatpush1.bf16.msra.mxu0 %v2883
  %3090 = vmatprep.subr.bf16.mxu0 %v2888
  %3091 = vmatpush1.bf16.msra.mxu0 %v2887
  %3092 = vmatprep.mubr.bf16.mxu0 %v2228
  %3093 = vmatmul.mubr.bf16.gmra.mrb[0].mxu0 %v2227
  %v3094 = vpop.f32.mrb[0].mxu0
  %v3095 = vadd.f32 %v3054, %v3094
  %v3096 = vpop.f32.mrb[0].mxu0
  %v3097 = vadd.f32 %v3056, %v3096
  %v3098 = vpop.f32.mrb[0].mxu0
  %v3099 = vpop.f32.mrb[0].mxu0
  %3100 = vdwg.mxu0
  %3101 = vmatprep.subr.bf16.mxu0 %v2766
  %3102 = vmatpush1.bf16.msra.mxu0 %v2765
  %3103 = vmatprep.subr.bf16.mxu0 %v2770
  %3104 = vmatpush1.bf16.msra.mxu0 %v2769
  %3105 = vmatprep.subr.bf16.mxu0 %v2774
  %3106 = vmatpush1.bf16.msra.mxu0 %v2773
  %3107 = vmatprep.subr.bf16.mxu0 %v2778
  %3108 = vmatpush1.bf16.msra.mxu0 %v2777
  %3109 = vmatprep.subr.bf16.mxu0 %v2782
  %3110 = vmatpush1.bf16.msra.mxu0 %v2781
  %3111 = vmatprep.subr.bf16.mxu0 %v2786
  %3112 = vmatpush1.bf16.msra.mxu0 %v2785
  %3113 = vmatprep.subr.bf16.mxu0 %v2790
  %3114 = vmatpush1.bf16.msra.mxu0 %v2789
  %3115 = vmatprep.subr.bf16.mxu0 %v2794
  %3116 = vmatpush1.bf16.msra.mxu0 %v2793
  %3117 = vmatprep.subr.bf16.mxu0 %v2798
  %3118 = vmatpush1.bf16.msra.mxu0 %v2797
  %3119 = vmatprep.subr.bf16.mxu0 %v2802
  %3120 = vmatpush1.bf16.msra.mxu0 %v2801
  %3121 = vmatprep.subr.bf16.mxu0 %v2806
  %3122 = vmatpush1.bf16.msra.mxu0 %v2805
  %3123 = vmatprep.subr.bf16.mxu0 %v2810
  %3124 = vmatpush1.bf16.msra.mxu0 %v2809
  %3125 = vmatprep.subr.bf16.mxu0 %v2814
  %3126 = vmatpush1.bf16.msra.mxu0 %v2813
  %3127 = vmatprep.subr.bf16.mxu0 %v2818
  %3128 = vmatpush1.bf16.msra.mxu0 %v2817
  %3129 = vmatprep.subr.bf16.mxu0 %v2822
  %3130 = vmatpush1.bf16.msra.mxu0 %v2821
  %3131 = vmatprep.subr.bf16.mxu0 %v2826
  %3132 = vmatpush1.bf16.msra.mxu0 %v2825
  %3133 = vmatprep.mubr.bf16.mxu0 %v2226
  %3134 = vmatmul.mubr.bf16.gmra.mrb[0].mxu0 %v2225
  %v3135 = vpop.f32.mrb[0].mxu0
  %v3136 = vadd.f32 %v2370, %v3135
  %v3137 = vpop.f32.mrb[0].mxu0
  %v3138 = vadd.f32 %v2374, %v3137
  %v3139 = vpop.f32.mrb[0].mxu0
  %v3140 = vpop.f32.mrb[0].mxu0
  %3141 = vdwg.mxu0
  %3142 = vmatprep.subr.bf16.mxu0 %v2830
  %3143 = vmatpush1.bf16.msra.mxu0 %v2829
  %3144 = vmatprep.subr.bf16.mxu0 %v2834
  %3145 = vmatpush1.bf16.msra.mxu0 %v2833
  %3146 = vmatprep.subr.bf16.mxu0 %v2838
  %3147 = vmatpush1.bf16.msra.mxu0 %v2837
  %3148 = vmatprep.subr.bf16.mxu0 %v2842
  %3149 = vmatpush1.bf16.msra.mxu0 %v2841
  %3150 = vmatprep.subr.bf16.mxu0 %v2846
  %3151 = vmatpush1.bf16.msra.mxu0 %v2845
  %3152 = vmatprep.subr.bf16.mxu0 %v2850
  %3153 = vmatpush1.bf16.msra.mxu0 %v2849
  %3154 = vmatprep.subr.bf16.mxu0 %v2854
  %3155 = vmatpush1.bf16.msra.mxu0 %v2853
  %3156 = vmatprep.subr.bf16.mxu0 %v2858
  %3157 = vmatpush1.bf16.msra.mxu0 %v2857
  %3158 = vmatprep.subr.bf16.mxu0 %v2862
  %3159 = vmatpush1.bf16.msra.mxu0 %v2861
  %3160 = vmatprep.subr.bf16.mxu0 %v2866
  %3161 = vmatpush1.bf16.msra.mxu0 %v2865
  %3162 = vmatprep.subr.bf16.mxu0 %v2870
  %3163 = vmatpush1.bf16.msra.mxu0 %v2869
  %3164 = vmatprep.subr.bf16.mxu0 %v2874
  %3165 = vmatpush1.bf16.msra.mxu0 %v2873
  %3166 = vmatprep.subr.bf16.mxu0 %v2878
  %3167 = vmatpush1.bf16.msra.mxu0 %v2877
  %3168 = vmatprep.subr.bf16.mxu0 %v2882
  %3169 = vmatpush1.bf16.msra.mxu0 %v2881
  %3170 = vmatprep.subr.bf16.mxu0 %v2886
  %3171 = vmatpush1.bf16.msra.mxu0 %v2885
  %3172 = vmatprep.subr.bf16.mxu0 %v2890
  %3173 = vmatpush1.bf16.msra.mxu0 %v2889
  %3174 = vmatprep.mubr.bf16.mxu0 %v2228
  %3175 = vmatmul.mubr.bf16.gmra.mrb[0].mxu0 %v2227
  %v3176 = vpop.f32.mrb[0].mxu0
  %v3177 = vadd.f32 %v3136, %v3176
  %v3178 = vpop.f32.mrb[0].mxu0
  %v3179 = vadd.f32 %v3138, %v3178
  %v3180 = vpop.f32.mrb[0].mxu0
  %v3181 = vpop.f32.mrb[0].mxu0
  %3182 = vdwg.mxu0
  %v3183 = vld [vmem:[%s10] sm:$0xf]
  %v3184 = vld [vmem:[%s14] sm:$0xf]
  %v3185 = vsel %vm2010, %v3095, 0.0
  %v3186 = vrot.slane %v3185, 4
  %v3187 = vadd.f32 %v3185, %v3186
  %v3188 = vrot.slane %v3187, 2
  %v3189 = vadd.f32 %v3187, %v3188
  %v3190 = vrot.slane %v3189, 1
  %v3191 = vadd.f32 %v3189, %v3190
  %v3192 = vsel %vm2010, %v3097, 0.0
  %v3193 = vrot.slane %v3192, 4
  %v3194 = vadd.f32 %v3192, %v3193
  %v3195 = vrot.slane %v3194, 2
  %v3196 = vadd.f32 %v3194, %v3195
  %v3197 = vrot.slane %v3196, 1
  %v3198 = vadd.f32 %v3196, %v3197
  %v3199 = vsel %vm2010, %v3177, 0.0
  %v3200 = vrot.slane %v3199, 4
  %v3201 = vadd.f32 %v3199, %v3200
  %v3202 = vrot.slane %v3201, 2
  %v3203 = vadd.f32 %v3201, %v3202
  %v3204 = vrot.slane %v3203, 1
  %v3205 = vadd.f32 %v3203, %v3204
  %v3206 = vsel %vm2010, %v3179, 0.0
  %v3207 = vrot.slane %v3206, 4
  %v3208 = vadd.f32 %v3206, %v3207
  %v3209 = vrot.slane %v3208, 2
  %v3210 = vadd.f32 %v3208, %v3209
  %v3211 = vrot.slane %v3210, 1
  %v3212 = vadd.f32 %v3210, %v3211
  %v3213 = vmul.f32 %v3095, %v3095
  %v3214 = vmul.f32 %v3097, %v3097
  %v3215 = vmul.f32 %v3177, %v3177
  %v3216 = vmul.f32 %v3179, %v3179
  %v3217 = vsel %vm2010, %v3213, 0.0
  %v3218 = vrot.slane %v3217, 4
  %v3219 = vadd.f32 %v3217, %v3218
  %v3220 = vrot.slane %v3219, 2
  %v3221 = vadd.f32 %v3219, %v3220
  %v3222 = vrot.slane %v3221, 1
  %v3223 = vadd.f32 %v3221, %v3222
  %v3224 = vsel %vm2010, %v3214, 0.0
  %v3225 = vrot.slane %v3224, 4
  %v3226 = vadd.f32 %v3224, %v3225
  %v3227 = vrot.slane %v3226, 2
  %v3228 = vadd.f32 %v3226, %v3227
  %v3229 = vrot.slane %v3228, 1
  %v3230 = vadd.f32 %v3228, %v3229
  %v3231 = vsel %vm2010, %v3215, 0.0
  %v3232 = vrot.slane %v3231, 4
  %v3233 = vadd.f32 %v3231, %v3232
  %v3234 = vrot.slane %v3233, 2
  %v3235 = vadd.f32 %v3233, %v3234
  %v3236 = vrot.slane %v3235, 1
  %v3237 = vadd.f32 %v3235, %v3236
  %v3238 = vsel %vm2010, %v3216, 0.0
  %v3239 = vrot.slane %v3238, 4
  %v3240 = vadd.f32 %v3238, %v3239
  %v3241 = vrot.slane %v3240, 2
  %v3242 = vadd.f32 %v3240, %v3241
  %v3243 = vrot.slane %v3242, 1
  %v3244 = vadd.f32 %v3242, %v3243
  %v3245 = vmul.f32 %v3191, 0.5
  %v3246 = vmul.f32 %v3198, 0.5
  %v3247 = vmul.f32 %v3205, 0.5
  %v3248 = vmul.f32 %v3212, 0.5
  %v3249 = vmul.f32 %v3223, 0.5
  %v3250 = vmul.f32 %v3230, 0.5
  %v3251 = vmul.f32 %v3237, 0.5
  %v3252 = vmul.f32 %v3244, 0.5
  %v3253 = vmul.f32 %v3245, %v3245
  %v3254 = vmul.f32 %v3246, %v3246
  %v3255 = vmul.f32 %v3247, %v3247
  %v3256 = vmul.f32 %v3248, %v3248
  %v3257 = vsub.f32 %v3249, %v3253
  %v3258 = vsub.f32 %v3250, %v3254
  %v3259 = vsub.f32 %v3251, %v3255
  %v3260 = vsub.f32 %v3252, %v3256
  %v3261 = vmax.f32 %v3257, 0.0
  %v3262 = vmax.f32 %v3258, 0.0
  %v3263 = vmax.f32 %v3259, 0.0
  %v3264 = vmax.f32 %v3260, 0.0
  %v3265 = vadd.f32 %v3261, 1e-05
  %v3266 = vadd.f32 %v3262, 1e-05
  %v3267 = vadd.f32 %v3263, 1e-05
  %v3268 = vadd.f32 %v3264, 1e-05
  %v3269 = vrsqrt.pop %v3265
  %v3270 = vrsqrt.pop %v3266
  %v3271 = vrsqrt.pop %v3267
  %v3272 = vrsqrt.pop %v3268
  %v3277 = vcombine.low %v3269, %v3270
  %v3278 = vcombine.low %v3271, %v3272
  %v3280 = vunpack.c.l.s4 1966171168
  %v3281 = vunpack.c.0.s8 %v3280
  %v3282 = vlaneseq
  %v3283 = vshrl.u32 %v3282, 7
  %v3284 = vsub.s32 %v3281, %v3283
  %v3285 = vrot.slane %v3277, %v3284
  %v3287 = vunpack.c.l.s4 1966171168
  %v3288 = vunpack.c.0.s8 %v3287
  %v3289 = vlaneseq
  %v3290 = vshrl.u32 %v3289, 7
  %v3291 = vsub.s32 %v3288, %v3290
  %v3292 = vrot.slane %v3278, %v3291
  %v3293 = vcombine.low %v3285, %v3292
  %v3295 = vunpack.c.l.s4 1966171168
  %v3296 = vunpack.c.0.s8 %v3295
  %v3297 = vlaneseq
  %v3298 = vshrl.u32 %v3297, 7
  %v3299 = vsub.s32 %v3296, %v3298
  %v3300 = vrot.slane %v3293, %v3299
  %v3302 = vmul.f32 %v3183, %v3300
  %v3304 = vlaneseq
  %v3305 = vshrl.u32 %v3304, 7
  %v3306 = vsub.s32 0, %v3305
  %v3307 = vrot.slane %v3302, %v3306
  %v3308 = vlaneseq
  %v3309 = vshrl.u32 %v3308, 7
  %v3310 = vsub.s32 1, %v3309
  %v3311 = vrot.slane %v3302, %v3310
  %v3312 = vlaneseq
  %v3313 = vshrl.u32 %v3312, 7
  %v3314 = vsub.s32 2, %v3313
  %v3315 = vrot.slane %v3302, %v3314
  %v3316 = vlaneseq
  %v3317 = vshrl.u32 %v3316, 7
  %v3318 = vsub.s32 3, %v3317
  %v3319 = vrot.slane %v3302, %v3318
  %v3324 = vmul.f32 %v3245, %v3307
  %v3325 = vmul.f32 %v3246, %v3311
  %v3326 = vmul.f32 %v3247, %v3315
  %v3327 = vmul.f32 %v3248, %v3319
  %v3332 = vcombine.low %v3324, %v3325
  %v3333 = vcombine.low %v3326, %v3327
  %v3335 = vunpack.c.l.s4 1966171168
  %v3336 = vunpack.c.0.s8 %v3335
  %v3337 = vlaneseq
  %v3338 = vshrl.u32 %v3337, 7
  %v3339 = vsub.s32 %v3336, %v3338
  %v3340 = vrot.slane %v3332, %v3339
  %v3342 = vunpack.c.l.s4 1966171168
  %v3343 = vunpack.c.0.s8 %v3342
  %v3344 = vlaneseq
  %v3345 = vshrl.u32 %v3344, 7
  %v3346 = vsub.s32 %v3343, %v3345
  %v3347 = vrot.slane %v3333, %v3346
  %v3348 = vcombine.low %v3340, %v3347
  %v3350 = vunpack.c.l.s4 1966171168
  %v3351 = vunpack.c.0.s8 %v3350
  %v3352 = vlaneseq
  %v3353 = vshrl.u32 %v3352, 7
  %v3354 = vsub.s32 %v3351, %v3353
  %v3355 = vrot.slane %v3348, %v3354
  %v3357 = vsub.f32 %v3184, %v3355
  %v3358 = vmul.f32 %v3095, %v3307
  %v3359 = vmul.f32 %v3097, %v3311
  %v3360 = vmul.f32 %v3177, %v3315
  %v3361 = vmul.f32 %v3179, %v3319
  %v3363 = vlaneseq
  %v3364 = vshrl.u32 %v3363, 7
  %v3365 = vsub.s32 0, %v3364
  %v3366 = vrot.slane %v3357, %v3365
  %v3367 = vlaneseq
  %v3368 = vshrl.u32 %v3367, 7
  %v3369 = vsub.s32 1, %v3368
  %v3370 = vrot.slane %v3357, %v3369
  %v3371 = vlaneseq
  %v3372 = vshrl.u32 %v3371, 7
  %v3373 = vsub.s32 2, %v3372
  %v3374 = vrot.slane %v3357, %v3373
  %v3375 = vlaneseq
  %v3376 = vshrl.u32 %v3375, 7
  %v3377 = vsub.s32 3, %v3376
  %v3378 = vrot.slane %v3357, %v3377
  %v3383 = vadd.f32 %v3358, %v3366
  %v3384 = vadd.f32 %v3359, %v3370
  %v3385 = vadd.f32 %v3360, %v3374
  %v3386 = vadd.f32 %v3361, %v3378
  %vm3387 = vcmp.ge.f32.partialorder %v3383, 0.0
  %vm3388 = vcmp.ge.f32.partialorder %v3384, 0.0
  %vm3389 = vcmp.ge.f32.partialorder %v3385, 0.0
  %vm3390 = vcmp.ge.f32.partialorder %v3386, 0.0
  %v3391 = vmul.f32 %v3383, 0.2
  %v3392 = vmul.f32 %v3384, 0.2
  %v3393 = vmul.f32 %v3385, 0.2
  %v3394 = vmul.f32 %v3386, 0.2
  %v3395 = vsel %vm3387, %v3383, %v3391
  %v3396 = vsel %vm3388, %v3384, %v3392
  %v3397 = vsel %vm3389, %v3385, %v3393
  %v3398 = vsel %vm3390, %v3386, %v3394
  %v3399 = vpack.c.bf16 %v3395, %v3395
  %v3400 = vpack.c.bf16 %v3396, %v3396
  %v3401 = vpack.c.bf16 %v3397, %v3397
  %v3402 = vpack.c.bf16 %v3398, %v3398
  %v3403 = vld [vmem:[%s3] sm:$0xff]
  %v3404 = vld [vmem:[%s3 + $0x8] sm:$0xff]
  %v3405 = vld [vmem:[%s3 + $0x10] sm:$0xff]
  %v3406 = vld [vmem:[%s3 + $0x18] sm:$0xff]
  %v3407 = vld [vmem:[%s3 + $0x20] sm:$0xff]
  %v3408 = vld [vmem:[%s3 + $0x28] sm:$0xff]
  %v3409 = vld [vmem:[%s3 + $0x30] sm:$0xff]
  %v3410 = vld [vmem:[%s3 + $0x38] sm:$0xff]
  %v3411 = vld [vmem:[%s3 + $0x40] sm:$0xff]
  %v3412 = vld [vmem:[%s3 + $0x48] sm:$0xff]
  %v3413 = vld [vmem:[%s3 + $0x50] sm:$0xff]
  %v3414 = vld [vmem:[%s3 + $0x58] sm:$0xff]
  %v3415 = vld [vmem:[%s3 + $0x60] sm:$0xff]
  %v3416 = vld [vmem:[%s3 + $0x68] sm:$0xff]
  %v3417 = vld [vmem:[%s3 + $0x70] sm:$0xff]
  %v3418 = vld [vmem:[%s3 + $0x78] sm:$0xff]
  %v3419 = vld [vmem:[%s3 + $0x80] sm:$0xff]
  %v3420 = vld [vmem:[%s3 + $0x88] sm:$0xff]
  %v3421 = vld [vmem:[%s3 + $0x90] sm:$0xff]
  %v3422 = vld [vmem:[%s3 + $0x98] sm:$0xff]
  %v3423 = vld [vmem:[%s3 + $0xa0] sm:$0xff]
  %v3424 = vld [vmem:[%s3 + $0xa8] sm:$0xff]
  %v3425 = vld [vmem:[%s3 + $0xb0] sm:$0xff]
  %v3426 = vld [vmem:[%s3 + $0xb8] sm:$0xff]
  %v3427 = vld [vmem:[%s3 + $0xc0] sm:$0xff]
  %v3428 = vld [vmem:[%s3 + $0xc8] sm:$0xff]
  %v3429 = vld [vmem:[%s3 + $0xd0] sm:$0xff]
  %v3430 = vld [vmem:[%s3 + $0xd8] sm:$0xff]
  %v3431 = vld [vmem:[%s3 + $0xe0] sm:$0xff]
  %v3432 = vld [vmem:[%s3 + $0xe8] sm:$0xff]
  %v3433 = vld [vmem:[%s3 + $0xf0] sm:$0xff]
  %v3434 = vld [vmem:[%s3 + $0xf8] sm:$0xff]
  %v3435 = vld [vmem:[%s3 + $0x100] sm:$0xff]
  %v3436 = vld [vmem:[%s3 + $0x108] sm:$0xff]
  %v3437 = vld [vmem:[%s3 + $0x110] sm:$0xff]
  %v3438 = vld [vmem:[%s3 + $0x118] sm:$0xff]
  %v3439 = vld [vmem:[%s3 + $0x120] sm:$0xff]
  %v3440 = vld [vmem:[%s3 + $0x128] sm:$0xff]
  %v3441 = vld [vmem:[%s3 + $0x130] sm:$0xff]
  %v3442 = vld [vmem:[%s3 + $0x138] sm:$0xff]
  %v3443 = vld [vmem:[%s3 + $0x140] sm:$0xff]
  %v3444 = vld [vmem:[%s3 + $0x148] sm:$0xff]
  %v3445 = vld [vmem:[%s3 + $0x150] sm:$0xff]
  %v3446 = vld [vmem:[%s3 + $0x158] sm:$0xff]
  %v3447 = vld [vmem:[%s3 + $0x160] sm:$0xff]
  %v3448 = vld [vmem:[%s3 + $0x168] sm:$0xff]
  %v3449 = vld [vmem:[%s3 + $0x170] sm:$0xff]
  %v3450 = vld [vmem:[%s3 + $0x178] sm:$0xff]
  %v3451 = vld [vmem:[%s3 + $0x180] sm:$0xff]
  %v3452 = vld [vmem:[%s3 + $0x188] sm:$0xff]
  %v3453 = vld [vmem:[%s3 + $0x190] sm:$0xff]
  %v3454 = vld [vmem:[%s3 + $0x198] sm:$0xff]
  %v3455 = vld [vmem:[%s3 + $0x1a0] sm:$0xff]
  %v3456 = vld [vmem:[%s3 + $0x1a8] sm:$0xff]
  %v3457 = vld [vmem:[%s3 + $0x1b0] sm:$0xff]
  %v3458 = vld [vmem:[%s3 + $0x1b8] sm:$0xff]
  %v3459 = vld [vmem:[%s3 + $0x1c0] sm:$0xff]
  %v3460 = vld [vmem:[%s3 + $0x1c8] sm:$0xff]
  %v3461 = vld [vmem:[%s3 + $0x1d0] sm:$0xff]
  %v3462 = vld [vmem:[%s3 + $0x1d8] sm:$0xff]
  %v3463 = vld [vmem:[%s3 + $0x1e0] sm:$0xff]
  %v3464 = vld [vmem:[%s3 + $0x1e8] sm:$0xff]
  %v3465 = vld [vmem:[%s3 + $0x1f0] sm:$0xff]
  %v3466 = vld [vmem:[%s3 + $0x1f8] sm:$0xff]
  %v3467 = vld [vmem:[%s3 + $0x200] sm:$0xff]
  %v3468 = vld [vmem:[%s3 + $0x208] sm:$0xff]
  %v3469 = vld [vmem:[%s3 + $0x210] sm:$0xff]
  %v3470 = vld [vmem:[%s3 + $0x218] sm:$0xff]
  %v3471 = vld [vmem:[%s3 + $0x220] sm:$0xff]
  %v3472 = vld [vmem:[%s3 + $0x228] sm:$0xff]
  %v3473 = vld [vmem:[%s3 + $0x230] sm:$0xff]
  %v3474 = vld [vmem:[%s3 + $0x238] sm:$0xff]
  %v3475 = vld [vmem:[%s3 + $0x240] sm:$0xff]
  %v3476 = vld [vmem:[%s3 + $0x248] sm:$0xff]
  %v3477 = vld [vmem:[%s3 + $0x250] sm:$0xff]
  %v3478 = vld [vmem:[%s3 + $0x258] sm:$0xff]
  %v3479 = vld [vmem:[%s3 + $0x260] sm:$0xff]
  %v3480 = vld [vmem:[%s3 + $0x268] sm:$0xff]
  %v3481 = vld [vmem:[%s3 + $0x270] sm:$0xff]
  %v3482 = vld [vmem:[%s3 + $0x278] sm:$0xff]
  %v3483 = vld [vmem:[%s3 + $0x280] sm:$0xff]
  %v3484 = vld [vmem:[%s3 + $0x288] sm:$0xff]
  %v3485 = vld [vmem:[%s3 + $0x290] sm:$0xff]
  %v3486 = vld [vmem:[%s3 + $0x298] sm:$0xff]
  %v3487 = vld [vmem:[%s3 + $0x2a0] sm:$0xff]
  %v3488 = vld [vmem:[%s3 + $0x2a8] sm:$0xff]
  %v3489 = vld [vmem:[%s3 + $0x2b0] sm:$0xff]
  %v3490 = vld [vmem:[%s3 + $0x2b8] sm:$0xff]
  %v3491 = vld [vmem:[%s3 + $0x2c0] sm:$0xff]
  %v3492 = vld [vmem:[%s3 + $0x2c8] sm:$0xff]
  %v3493 = vld [vmem:[%s3 + $0x2d0] sm:$0xff]
  %v3494 = vld [vmem:[%s3 + $0x2d8] sm:$0xff]
  %v3495 = vld [vmem:[%s3 + $0x2e0] sm:$0xff]
  %v3496 = vld [vmem:[%s3 + $0x2e8] sm:$0xff]
  %v3497 = vld [vmem:[%s3 + $0x2f0] sm:$0xff]
  %v3498 = vld [vmem:[%s3 + $0x2f8] sm:$0xff]
  %v3499 = vld [vmem:[%s3 + $0x300] sm:$0xff]
  %v3500 = vld [vmem:[%s3 + $0x308] sm:$0xff]
  %v3501 = vld [vmem:[%s3 + $0x310] sm:$0xff]
  %v3502 = vld [vmem:[%s3 + $0x318] sm:$0xff]
  %v3503 = vld [vmem:[%s3 + $0x320] sm:$0xff]
  %v3504 = vld [vmem:[%s3 + $0x328] sm:$0xff]
  %v3505 = vld [vmem:[%s3 + $0x330] sm:$0xff]
  %v3506 = vld [vmem:[%s3 + $0x338] sm:$0xff]
  %v3507 = vld [vmem:[%s3 + $0x340] sm:$0xff]
  %v3508 = vld [vmem:[%s3 + $0x348] sm:$0xff]
  %v3509 = vld [vmem:[%s3 + $0x350] sm:$0xff]
  %v3510 = vld [vmem:[%s3 + $0x358] sm:$0xff]
  %v3511 = vld [vmem:[%s3 + $0x360] sm:$0xff]
  %v3512 = vld [vmem:[%s3 + $0x368] sm:$0xff]
  %v3513 = vld [vmem:[%s3 + $0x370] sm:$0xff]
  %v3514 = vld [vmem:[%s3 + $0x378] sm:$0xff]
  %v3515 = vld [vmem:[%s3 + $0x380] sm:$0xff]
  %v3516 = vld [vmem:[%s3 + $0x388] sm:$0xff]
  %v3517 = vld [vmem:[%s3 + $0x390] sm:$0xff]
  %v3518 = vld [vmem:[%s3 + $0x398] sm:$0xff]
  %v3519 = vld [vmem:[%s3 + $0x3a0] sm:$0xff]
  %v3520 = vld [vmem:[%s3 + $0x3a8] sm:$0xff]
  %v3521 = vld [vmem:[%s3 + $0x3b0] sm:$0xff]
  %v3522 = vld [vmem:[%s3 + $0x3b8] sm:$0xff]
  %v3523 = vld [vmem:[%s3 + $0x3c0] sm:$0xff]
  %v3524 = vld [vmem:[%s3 + $0x3c8] sm:$0xff]
  %v3525 = vld [vmem:[%s3 + $0x3d0] sm:$0xff]
  %v3526 = vld [vmem:[%s3 + $0x3d8] sm:$0xff]
  %v3527 = vld [vmem:[%s3 + $0x3e0] sm:$0xff]
  %v3528 = vld [vmem:[%s3 + $0x3e8] sm:$0xff]
  %v3529 = vld [vmem:[%s3 + $0x3f0] sm:$0xff]
  %v3530 = vld [vmem:[%s3 + $0x3f8] sm:$0xff]
  %v3531 = vld [vmem:[%s7] sm:$0xf]
  %v3533 = vlaneseq
  %v3534 = vshrl.u32 %v3533, 7
  %v3535 = vsub.s32 0, %v3534
  %v3536 = vrot.slane %v3531, %v3535
  %v3537 = vlaneseq
  %v3538 = vshrl.u32 %v3537, 7
  %v3539 = vsub.s32 1, %v3538
  %v3540 = vrot.slane %v3531, %v3539
  %v3541 = vlaneseq
  %v3542 = vshrl.u32 %v3541, 7
  %v3543 = vsub.s32 2, %v3542
  %v3544 = vrot.slane %v3531, %v3543
  %v3545 = vlaneseq
  %v3546 = vshrl.u32 %v3545, 7
  %v3547 = vsub.s32 3, %v3546
  %v3548 = vrot.slane %v3531, %v3547
  %v3681 = vunpack.c.l.b16 %v3403
  %v3682 = vunpack.c.h.b16 %v3403
  %v3683 = vunpack.c.l.b16 %v3404
  %v3684 = vunpack.c.h.b16 %v3404
  %v3685 = vunpack.c.l.b16 %v3405
  %v3686 = vunpack.c.h.b16 %v3405
  %v3687 = vunpack.c.l.b16 %v3406
  %v3688 = vunpack.c.h.b16 %v3406
  %v3689 = vunpack.c.l.b16 %v3407
  %v3690 = vunpack.c.h.b16 %v3407
  %v3691 = vunpack.c.l.b16 %v3408
  %v3692 = vunpack.c.h.b16 %v3408
  %v3693 = vunpack.c.l.b16 %v3409
  %v3694 = vunpack.c.h.b16 %v3409
  %v3695 = vunpack.c.l.b16 %v3410
  %v3696 = vunpack.c.h.b16 %v3410
  %v3697 = vunpack.c.l.b16 %v3411
  %v3698 = vunpack.c.h.b16 %v3411
  %v3699 = vunpack.c.l.b16 %v3412
  %v3700 = vunpack.c.h.b16 %v3412
  %v3701 = vunpack.c.l.b16 %v3413
  %v3702 = vunpack.c.h.b16 %v3413
  %v3703 = vunpack.c.l.b16 %v3414
  %v3704 = vunpack.c.h.b16 %v3414
  %v3705 = vunpack.c.l.b16 %v3415
  %v3706 = vunpack.c.h.b16 %v3415
  %v3707 = vunpack.c.l.b16 %v3416
  %v3708 = vunpack.c.h.b16 %v3416
  %v3709 = vunpack.c.l.b16 %v3417
  %v3710 = vunpack.c.h.b16 %v3417
  %v3711 = vunpack.c.l.b16 %v3418
  %v3712 = vunpack.c.h.b16 %v3418
  %v3713 = vunpack.c.l.b16 %v3419
  %v3714 = vunpack.c.h.b16 %v3419
  %v3715 = vunpack.c.l.b16 %v3420
  %v3716 = vunpack.c.h.b16 %v3420
  %v3717 = vunpack.c.l.b16 %v3421
  %v3718 = vunpack.c.h.b16 %v3421
  %v3719 = vunpack.c.l.b16 %v3422
  %v3720 = vunpack.c.h.b16 %v3422
  %v3721 = vunpack.c.l.b16 %v3423
  %v3722 = vunpack.c.h.b16 %v3423
  %v3723 = vunpack.c.l.b16 %v3424
  %v3724 = vunpack.c.h.b16 %v3424
  %v3725 = vunpack.c.l.b16 %v3425
  %v3726 = vunpack.c.h.b16 %v3425
  %v3727 = vunpack.c.l.b16 %v3426
  %v3728 = vunpack.c.h.b16 %v3426
  %v3729 = vunpack.c.l.b16 %v3427
  %v3730 = vunpack.c.h.b16 %v3427
  %v3731 = vunpack.c.l.b16 %v3428
  %v3732 = vunpack.c.h.b16 %v3428
  %v3733 = vunpack.c.l.b16 %v3429
  %v3734 = vunpack.c.h.b16 %v3429
  %v3735 = vunpack.c.l.b16 %v3430
  %v3736 = vunpack.c.h.b16 %v3430
  %v3737 = vunpack.c.l.b16 %v3431
  %v3738 = vunpack.c.h.b16 %v3431
  %v3739 = vunpack.c.l.b16 %v3432
  %v3740 = vunpack.c.h.b16 %v3432
  %v3741 = vunpack.c.l.b16 %v3433
  %v3742 = vunpack.c.h.b16 %v3433
  %v3743 = vunpack.c.l.b16 %v3434
  %v3744 = vunpack.c.h.b16 %v3434
  %v3745 = vunpack.c.l.b16 %v3435
  %v3746 = vunpack.c.h.b16 %v3435
  %v3747 = vunpack.c.l.b16 %v3436
  %v3748 = vunpack.c.h.b16 %v3436
  %v3749 = vunpack.c.l.b16 %v3437
  %v3750 = vunpack.c.h.b16 %v3437
  %v3751 = vunpack.c.l.b16 %v3438
  %v3752 = vunpack.c.h.b16 %v3438
  %v3753 = vunpack.c.l.b16 %v3439
  %v3754 = vunpack.c.h.b16 %v3439
  %v3755 = vunpack.c.l.b16 %v3440
  %v3756 = vunpack.c.h.b16 %v3440
  %v3757 = vunpack.c.l.b16 %v3441
  %v3758 = vunpack.c.h.b16 %v3441
  %v3759 = vunpack.c.l.b16 %v3442
  %v3760 = vunpack.c.h.b16 %v3442
  %v3761 = vunpack.c.l.b16 %v3443
  %v3762 = vunpack.c.h.b16 %v3443
  %v3763 = vunpack.c.l.b16 %v3444
  %v3764 = vunpack.c.h.b16 %v3444
  %v3765 = vunpack.c.l.b16 %v3445
  %v3766 = vunpack.c.h.b16 %v3445
  %v3767 = vunpack.c.l.b16 %v3446
  %v3768 = vunpack.c.h.b16 %v3446
  %v3769 = vunpack.c.l.b16 %v3447
  %v3770 = vunpack.c.h.b16 %v3447
  %v3771 = vunpack.c.l.b16 %v3448
  %v3772 = vunpack.c.h.b16 %v3448
  %v3773 = vunpack.c.l.b16 %v3449
  %v3774 = vunpack.c.h.b16 %v3449
  %v3775 = vunpack.c.l.b16 %v3450
  %v3776 = vunpack.c.h.b16 %v3450
  %v3777 = vunpack.c.l.b16 %v3451
  %v3778 = vunpack.c.h.b16 %v3451
  %v3779 = vunpack.c.l.b16 %v3452
  %v3780 = vunpack.c.h.b16 %v3452
  %v3781 = vunpack.c.l.b16 %v3453
  %v3782 = vunpack.c.h.b16 %v3453
  %v3783 = vunpack.c.l.b16 %v3454
  %v3784 = vunpack.c.h.b16 %v3454
  %v3785 = vunpack.c.l.b16 %v3455
  %v3786 = vunpack.c.h.b16 %v3455
  %v3787 = vunpack.c.l.b16 %v3456
  %v3788 = vunpack.c.h.b16 %v3456
  %v3789 = vunpack.c.l.b16 %v3457
  %v3790 = vunpack.c.h.b16 %v3457
  %v3791 = vunpack.c.l.b16 %v3458
  %v3792 = vunpack.c.h.b16 %v3458
  %v3793 = vunpack.c.l.b16 %v3459
  %v3794 = vunpack.c.h.b16 %v3459
  %v3795 = vunpack.c.l.b16 %v3460
  %v3796 = vunpack.c.h.b16 %v3460
  %v3797 = vunpack.c.l.b16 %v3461
  %v3798 = vunpack.c.h.b16 %v3461
  %v3799 = vunpack.c.l.b16 %v3462
  %v3800 = vunpack.c.h.b16 %v3462
  %v3801 = vunpack.c.l.b16 %v3463
  %v3802 = vunpack.c.h.b16 %v3463
  %v3803 = vunpack.c.l.b16 %v3464
  %v3804 = vunpack.c.h.b16 %v3464
  %v3805 = vunpack.c.l.b16 %v3465
  %v3806 = vunpack.c.h.b16 %v3465
  %v3807 = vunpack.c.l.b16 %v3466
  %v3808 = vunpack.c.h.b16 %v3466
  %v3809 = vunpack.c.l.b16 %v3467
  %v3810 = vunpack.c.h.b16 %v3467
  %v3811 = vunpack.c.l.b16 %v3468
  %v3812 = vunpack.c.h.b16 %v3468
  %v3813 = vunpack.c.l.b16 %v3469
  %v3814 = vunpack.c.h.b16 %v3469
  %v3815 = vunpack.c.l.b16 %v3470
  %v3816 = vunpack.c.h.b16 %v3470
  %v3817 = vunpack.c.l.b16 %v3471
  %v3818 = vunpack.c.h.b16 %v3471
  %v3819 = vunpack.c.l.b16 %v3472
  %v3820 = vunpack.c.h.b16 %v3472
  %v3821 = vunpack.c.l.b16 %v3473
  %v3822 = vunpack.c.h.b16 %v3473
  %v3823 = vunpack.c.l.b16 %v3474
  %v3824 = vunpack.c.h.b16 %v3474
  %v3825 = vunpack.c.l.b16 %v3475
  %v3826 = vunpack.c.h.b16 %v3475
  %v3827 = vunpack.c.l.b16 %v3476
  %v3828 = vunpack.c.h.b16 %v3476
  %v3829 = vunpack.c.l.b16 %v3477
  %v3830 = vunpack.c.h.b16 %v3477
  %v3831 = vunpack.c.l.b16 %v3478
  %v3832 = vunpack.c.h.b16 %v3478
  %v3833 = vunpack.c.l.b16 %v3479
  %v3834 = vunpack.c.h.b16 %v3479
  %v3835 = vunpack.c.l.b16 %v3480
  %v3836 = vunpack.c.h.b16 %v3480
  %v3837 = vunpack.c.l.b16 %v3481
  %v3838 = vunpack.c.h.b16 %v3481
  %v3839 = vunpack.c.l.b16 %v3482
  %v3840 = vunpack.c.h.b16 %v3482
  %v3841 = vunpack.c.l.b16 %v3483
  %v3842 = vunpack.c.h.b16 %v3483
  %v3843 = vunpack.c.l.b16 %v3484
  %v3844 = vunpack.c.h.b16 %v3484
  %v3845 = vunpack.c.l.b16 %v3485
  %v3846 = vunpack.c.h.b16 %v3485
  %v3847 = vunpack.c.l.b16 %v3486
  %v3848 = vunpack.c.h.b16 %v3486
  %v3849 = vunpack.c.l.b16 %v3487
  %v3850 = vunpack.c.h.b16 %v3487
  %v3851 = vunpack.c.l.b16 %v3488
  %v3852 = vunpack.c.h.b16 %v3488
  %v3853 = vunpack.c.l.b16 %v3489
  %v3854 = vunpack.c.h.b16 %v3489
  %v3855 = vunpack.c.l.b16 %v3490
  %v3856 = vunpack.c.h.b16 %v3490
  %v3857 = vunpack.c.l.b16 %v3491
  %v3858 = vunpack.c.h.b16 %v3491
  %v3859 = vunpack.c.l.b16 %v3492
  %v3860 = vunpack.c.h.b16 %v3492
  %v3861 = vunpack.c.l.b16 %v3493
  %v3862 = vunpack.c.h.b16 %v3493
  %v3863 = vunpack.c.l.b16 %v3494
  %v3864 = vunpack.c.h.b16 %v3494
  %v3865 = vunpack.c.l.b16 %v3495
  %v3866 = vunpack.c.h.b16 %v3495
  %v3867 = vunpack.c.l.b16 %v3496
  %v3868 = vunpack.c.h.b16 %v3496
  %v3869 = vunpack.c.l.b16 %v3497
  %v3870 = vunpack.c.h.b16 %v3497
  %v3871 = vunpack.c.l.b16 %v3498
  %v3872 = vunpack.c.h.b16 %v3498
  %v3873 = vunpack.c.l.b16 %v3499
  %v3874 = vunpack.c.h.b16 %v3499
  %v3875 = vunpack.c.l.b16 %v3500
  %v3876 = vunpack.c.h.b16 %v3500
  %v3877 = vunpack.c.l.b16 %v3501
  %v3878 = vunpack.c.h.b16 %v3501
  %v3879 = vunpack.c.l.b16 %v3502
  %v3880 = vunpack.c.h.b16 %v3502
  %v3881 = vunpack.c.l.b16 %v3503
  %v3882 = vunpack.c.h.b16 %v3503
  %v3883 = vunpack.c.l.b16 %v3504
  %v3884 = vunpack.c.h.b16 %v3504
  %v3885 = vunpack.c.l.b16 %v3505
  %v3886 = vunpack.c.h.b16 %v3505
  %v3887 = vunpack.c.l.b16 %v3506
  %v3888 = vunpack.c.h.b16 %v3506
  %v3889 = vunpack.c.l.b16 %v3507
  %v3890 = vunpack.c.h.b16 %v3507
  %v3891 = vunpack.c.l.b16 %v3508
  %v3892 = vunpack.c.h.b16 %v3508
  %v3893 = vunpack.c.l.b16 %v3509
  %v3894 = vunpack.c.h.b16 %v3509
  %v3895 = vunpack.c.l.b16 %v3510
  %v3896 = vunpack.c.h.b16 %v3510
  %v3897 = vunpack.c.l.b16 %v3511
  %v3898 = vunpack.c.h.b16 %v3511
  %v3899 = vunpack.c.l.b16 %v3512
  %v3900 = vunpack.c.h.b16 %v3512
  %v3901 = vunpack.c.l.b16 %v3513
  %v3902 = vunpack.c.h.b16 %v3513
  %v3903 = vunpack.c.l.b16 %v3514
  %v3904 = vunpack.c.h.b16 %v3514
  %v3905 = vunpack.c.l.b16 %v3515
  %v3906 = vunpack.c.h.b16 %v3515
  %v3907 = vunpack.c.l.b16 %v3516
  %v3908 = vunpack.c.h.b16 %v3516
  %v3909 = vunpack.c.l.b16 %v3517
  %v3910 = vunpack.c.h.b16 %v3517
  %v3911 = vunpack.c.l.b16 %v3518
  %v3912 = vunpack.c.h.b16 %v3518
  %v3913 = vunpack.c.l.b16 %v3519
  %v3914 = vunpack.c.h.b16 %v3519
  %v3915 = vunpack.c.l.b16 %v3520
  %v3916 = vunpack.c.h.b16 %v3520
  %v3917 = vunpack.c.l.b16 %v3521
  %v3918 = vunpack.c.h.b16 %v3521
  %v3919 = vunpack.c.l.b16 %v3522
  %v3920 = vunpack.c.h.b16 %v3522
  %v3921 = vunpack.c.l.b16 %v3523
  %v3922 = vunpack.c.h.b16 %v3523
  %v3923 = vunpack.c.l.b16 %v3524
  %v3924 = vunpack.c.h.b16 %v3524
  %v3925 = vunpack.c.l.b16 %v3525
  %v3926 = vunpack.c.h.b16 %v3525
  %v3927 = vunpack.c.l.b16 %v3526
  %v3928 = vunpack.c.h.b16 %v3526
  %v3929 = vunpack.c.l.b16 %v3527
  %v3930 = vunpack.c.h.b16 %v3527
  %v3931 = vunpack.c.l.b16 %v3528
  %v3932 = vunpack.c.h.b16 %v3528
  %v3933 = vunpack.c.l.b16 %v3529
  %v3934 = vunpack.c.h.b16 %v3529
  %v3935 = vunpack.c.l.b16 %v3530
  %v3936 = vunpack.c.h.b16 %v3530
  %v3937 = vpack.c.b16 %v3685, %v3681
  %v3938 = vpack.c.b16 %v3686, %v3682
  %v3939 = vpack.c.b16 %v3687, %v3683
  %v3940 = vpack.c.b16 %v3688, %v3684
  %v3941 = vpack.c.b16 %v3693, %v3689
  %v3942 = vpack.c.b16 %v3694, %v3690
  %v3943 = vpack.c.b16 %v3695, %v3691
  %v3944 = vpack.c.b16 %v3696, %v3692
  %v3945 = vpack.c.b16 %v3701, %v3697
  %v3946 = vpack.c.b16 %v3702, %v3698
  %v3947 = vpack.c.b16 %v3703, %v3699
  %v3948 = vpack.c.b16 %v3704, %v3700
  %v3949 = vpack.c.b16 %v3709, %v3705
  %v3950 = vpack.c.b16 %v3710, %v3706
  %v3951 = vpack.c.b16 %v3711, %v3707
  %v3952 = vpack.c.b16 %v3712, %v3708
  %v3953 = vpack.c.b16 %v3717, %v3713
  %v3954 = vpack.c.b16 %v3718, %v3714
  %v3955 = vpack.c.b16 %v3719, %v3715
  %v3956 = vpack.c.b16 %v3720, %v3716
  %v3957 = vpack.c.b16 %v3725, %v3721
  %v3958 = vpack.c.b16 %v3726, %v3722
  %v3959 = vpack.c.b16 %v3727, %v3723
  %v3960 = vpack.c.b16 %v3728, %v3724
  %v3961 = vpack.c.b16 %v3733, %v3729
  %v3962 = vpack.c.b16 %v3734, %v3730
  %v3963 = vpack.c.b16 %v3735, %v3731
  %v3964 = vpack.c.b16 %v3736, %v3732
  %v3965 = vpack.c.b16 %v3741, %v3737
  %v3966 = vpack.c.b16 %v3742, %v3738
  %v3967 = vpack.c.b16 %v3743, %v3739
  %v3968 = vpack.c.b16 %v3744, %v3740
  %v3969 = vpack.c.b16 %v3749, %v3745
  %v3970 = vpack.c.b16 %v3750, %v3746
  %v3971 = vpack.c.b16 %v3751, %v3747
  %v3972 = vpack.c.b16 %v3752, %v3748
  %v3973 = vpack.c.b16 %v3757, %v3753
  %v3974 = vpack.c.b16 %v3758, %v3754
  %v3975 = vpack.c.b16 %v3759, %v3755
  %v3976 = vpack.c.b16 %v3760, %v3756
  %v3977 = vpack.c.b16 %v3765, %v3761
  %v3978 = vpack.c.b16 %v3766, %v3762
  %v3979 = vpack.c.b16 %v3767, %v3763
  %v3980 = vpack.c.b16 %v3768, %v3764
  %v3981 = vpack.c.b16 %v3773, %v3769
  %v3982 = vpack.c.b16 %v3774, %v3770
  %v3983 = vpack.c.b16 %v3775, %v3771
  %v3984 = vpack.c.b16 %v3776, %v3772
  %v3985 = vpack.c.b16 %v3781, %v3777
  %v3986 = vpack.c.b16 %v3782, %v3778
  %v3987 = vpack.c.b16 %v3783, %v3779
  %v3988 = vpack.c.b16 %v3784, %v3780
  %v3989 = vpack.c.b16 %v3789, %v3785
  %v3990 = vpack.c.b16 %v3790, %v3786
  %v3991 = vpack.c.b16 %v3791, %v3787
  %v3992 = vpack.c.b16 %v3792, %v3788
  %v3993 = vpack.c.b16 %v3797, %v3793
  %v3994 = vpack.c.b16 %v3798, %v3794
  %v3995 = vpack.c.b16 %v3799, %v3795
  %v3996 = vpack.c.b16 %v3800, %v3796
  %v3997 = vpack.c.b16 %v3805, %v3801
  %v3998 = vpack.c.b16 %v3806, %v3802
  %v3999 = vpack.c.b16 %v3807, %v3803
  %v4000 = vpack.c.b16 %v3808, %v3804
  %v4001 = vpack.c.b16 %v3813, %v3809
  %v4002 = vpack.c.b16 %v3814, %v3810
  %v4003 = vpack.c.b16 %v3815, %v3811
  %v4004 = vpack.c.b16 %v3816, %v3812
  %v4005 = vpack.c.b16 %v3821, %v3817
  %v4006 = vpack.c.b16 %v3822, %v3818
  %v4007 = vpack.c.b16 %v3823, %v3819
  %v4008 = vpack.c.b16 %v3824, %v3820
  %v4009 = vpack.c.b16 %v3829, %v3825
  %v4010 = vpack.c.b16 %v3830, %v3826
  %v4011 = vpack.c.b16 %v3831, %v3827
  %v4012 = vpack.c.b16 %v3832, %v3828
  %v4013 = vpack.c.b16 %v3837, %v3833
  %v4014 = vpack.c.b16 %v3838, %v3834
  %v4015 = vpack.c.b16 %v3839, %v3835
  %v4016 = vpack.c.b16 %v3840, %v3836
  %v4017 = vpack.c.b16 %v3845, %v3841
  %v4018 = vpack.c.b16 %v3846, %v3842
  %v4019 = vpack.c.b16 %v3847, %v3843
  %v4020 = vpack.c.b16 %v3848, %v3844
  %v4021 = vpack.c.b16 %v3853, %v3849
  %v4022 = vpack.c.b16 %v3854, %v3850
  %v4023 = vpack.c.b16 %v3855, %v3851
  %v4024 = vpack.c.b16 %v3856, %v3852
  %v4025 = vpack.c.b16 %v3861, %v3857
  %v4026 = vpack.c.b16 %v3862, %v3858
  %v4027 = vpack.c.b16 %v3863, %v3859
  %v4028 = vpack.c.b16 %v3864, %v3860
  %v4029 = vpack.c.b16 %v3869, %v3865
  %v4030 = vpack.c.b16 %v3870, %v3866
  %v4031 = vpack.c.b16 %v3871, %v3867
  %v4032 = vpack.c.b16 %v3872, %v3868
  %v4033 = vpack.c.b16 %v3877, %v3873
  %v4034 = vpack.c.b16 %v3878, %v3874
  %v4035 = vpack.c.b16 %v3879, %v3875
  %v4036 = vpack.c.b16 %v3880, %v3876
  %v4037 = vpack.c.b16 %v3885, %v3881
  %v4038 = vpack.c.b16 %v3886, %v3882
  %v4039 = vpack.c.b16 %v3887, %v3883
  %v4040 = vpack.c.b16 %v3888, %v3884
  %v4041 = vpack.c.b16 %v3893, %v3889
  %v4042 = vpack.c.b16 %v3894, %v3890
  %v4043 = vpack.c.b16 %v3895, %v3891
  %v4044 = vpack.c.b16 %v3896, %v3892
  %v4045 = vpack.c.b16 %v3901, %v3897
  %v4046 = vpack.c.b16 %v3902, %v3898
  %v4047 = vpack.c.b16 %v3903, %v3899
  %v4048 = vpack.c.b16 %v3904, %v3900
  %v4049 = vpack.c.b16 %v3909, %v3905
  %v4050 = vpack.c.b16 %v3910, %v3906
  %v4051 = vpack.c.b16 %v3911, %v3907
  %v4052 = vpack.c.b16 %v3912, %v3908
  %v4053 = vpack.c.b16 %v3917, %v3913
  %v4054 = vpack.c.b16 %v3918, %v3914
  %v4055 = vpack.c.b16 %v3919, %v3915
  %v4056 = vpack.c.b16 %v3920, %v3916
  %v4057 = vpack.c.b16 %v3925, %v3921
  %v4058 = vpack.c.b16 %v3926, %v3922
  %v4059 = vpack.c.b16 %v3927, %v3923
  %v4060 = vpack.c.b16 %v3928, %v3924
  %v4061 = vpack.c.b16 %v3933, %v3929
  %v4062 = vpack.c.b16 %v3934, %v3930
  %v4063 = vpack.c.b16 %v3935, %v3931
  %v4064 = vpack.c.b16 %v3936, %v3932
  %4193 = vmatprep.subr.bf16.mxu0 %v3938
  %4194 = vmatpush1.bf16.msra.mxu0 %v3937
  %4195 = vmatprep.subr.bf16.mxu0 %v3942
  %4196 = vmatpush1.bf16.msra.mxu0 %v3941
  %4197 = vmatprep.subr.bf16.mxu0 %v3946
  %4198 = vmatpush1.bf16.msra.mxu0 %v3945
  %4199 = vmatprep.subr.bf16.mxu0 %v3950
  %4200 = vmatpush1.bf16.msra.mxu0 %v3949
  %4201 = vmatprep.subr.bf16.mxu0 %v3954
  %4202 = vmatpush1.bf16.msra.mxu0 %v3953
  %4203 = vmatprep.subr.bf16.mxu0 %v3958
  %4204 = vmatpush1.bf16.msra.mxu0 %v3957
  %4205 = vmatprep.subr.bf16.mxu0 %v3962
  %4206 = vmatpush1.bf16.msra.mxu0 %v3961
  %4207 = vmatprep.subr.bf16.mxu0 %v3966
  %4208 = vmatpush1.bf16.msra.mxu0 %v3965
  %4209 = vmatprep.subr.bf16.mxu0 %v3970
  %4210 = vmatpush1.bf16.msra.mxu0 %v3969
  %4211 = vmatprep.subr.bf16.mxu0 %v3974
  %4212 = vmatpush1.bf16.msra.mxu0 %v3973
  %4213 = vmatprep.subr.bf16.mxu0 %v3978
  %4214 = vmatpush1.bf16.msra.mxu0 %v3977
  %4215 = vmatprep.subr.bf16.mxu0 %v3982
  %4216 = vmatpush1.bf16.msra.mxu0 %v3981
  %4217 = vmatprep.subr.bf16.mxu0 %v3986
  %4218 = vmatpush1.bf16.msra.mxu0 %v3985
  %4219 = vmatprep.subr.bf16.mxu0 %v3990
  %4220 = vmatpush1.bf16.msra.mxu0 %v3989
  %4221 = vmatprep.subr.bf16.mxu0 %v3994
  %4222 = vmatpush1.bf16.msra.mxu0 %v3993
  %4223 = vmatprep.subr.bf16.mxu0 %v3998
  %4224 = vmatpush1.bf16.msra.mxu0 %v3997
  %4225 = vmatprep.mubr.bf16.mxu0 %v3400
  %4226 = vmatmul.mubr.bf16.gmra.mrb[0].mxu0 %v3399
  %v4227 = vpop.f32.mrb[0].mxu0
  %v4228 = vadd.f32 %v3536, %v4227
  %v4229 = vpop.f32.mrb[0].mxu0
  %v4230 = vadd.f32 %v3540, %v4229
  %v4231 = vpop.f32.mrb[0].mxu0
  %v4232 = vpop.f32.mrb[0].mxu0
  %4233 = vdwg.mxu0
  %4234 = vmatprep.subr.bf16.mxu0 %v4002
  %4235 = vmatpush1.bf16.msra.mxu0 %v4001
  %4236 = vmatprep.subr.bf16.mxu0 %v4006
  %4237 = vmatpush1.bf16.msra.mxu0 %v4005
  %4238 = vmatprep.subr.bf16.mxu0 %v4010
  %4239 = vmatpush1.bf16.msra.mxu0 %v4009
  %4240 = vmatprep.subr.bf16.mxu0 %v4014
  %4241 = vmatpush1.bf16.msra.mxu0 %v4013
  %4242 = vmatprep.subr.bf16.mxu0 %v4018
  %4243 = vmatpush1.bf16.msra.mxu0 %v4017
  %4244 = vmatprep.subr.bf16.mxu0 %v4022
  %4245 = vmatpush1.bf16.msra.mxu0 %v4021
  %4246 = vmatprep.subr.bf16.mxu0 %v4026
  %4247 = vmatpush1.bf16.msra.mxu0 %v4025
  %4248 = vmatprep.subr.bf16.mxu0 %v4030
  %4249 = vmatpush1.bf16.msra.mxu0 %v4029
  %4250 = vmatprep.subr.bf16.mxu0 %v4034
  %4251 = vmatpush1.bf16.msra.mxu0 %v4033
  %4252 = vmatprep.subr.bf16.mxu0 %v4038
  %4253 = vmatpush1.bf16.msra.mxu0 %v4037
  %4254 = vmatprep.subr.bf16.mxu0 %v4042
  %4255 = vmatpush1.bf16.msra.mxu0 %v4041
  %4256 = vmatprep.subr.bf16.mxu0 %v4046
  %4257 = vmatpush1.bf16.msra.mxu0 %v4045
  %4258 = vmatprep.subr.bf16.mxu0 %v4050
  %4259 = vmatpush1.bf16.msra.mxu0 %v4049
  %4260 = vmatprep.subr.bf16.mxu0 %v4054
  %4261 = vmatpush1.bf16.msra.mxu0 %v4053
  %4262 = vmatprep.subr.bf16.mxu0 %v4058
  %4263 = vmatpush1.bf16.msra.mxu0 %v4057
  %4264 = vmatprep.subr.bf16.mxu0 %v4062
  %4265 = vmatpush1.bf16.msra.mxu0 %v4061
  %4266 = vmatprep.mubr.bf16.mxu0 %v3402
  %4267 = vmatmul.mubr.bf16.gmra.mrb[0].mxu0 %v3401
  %v4268 = vpop.f32.mrb[0].mxu0
  %v4269 = vadd.f32 %v4228, %v4268
  %v4270 = vpop.f32.mrb[0].mxu0
  %v4271 = vadd.f32 %v4230, %v4270
  %v4272 = vpop.f32.mrb[0].mxu0
  %v4273 = vpop.f32.mrb[0].mxu0
  %4274 = vdwg.mxu0
  %4275 = vmatprep.subr.bf16.mxu0 %v3940
  %4276 = vmatpush1.bf16.msra.mxu0 %v3939
  %4277 = vmatprep.subr.bf16.mxu0 %v3944
  %4278 = vmatpush1.bf16.msra.mxu0 %v3943
  %4279 = vmatprep.subr.bf16.mxu0 %v3948
  %4280 = vmatpush1.bf16.msra.mxu0 %v3947
  %4281 = vmatprep.subr.bf16.mxu0 %v3952
  %4282 = vmatpush1.bf16.msra.mxu0 %v3951
  %4283 = vmatprep.subr.bf16.mxu0 %v3956
  %4284 = vmatpush1.bf16.msra.mxu0 %v3955
  %4285 = vmatprep.subr.bf16.mxu0 %v3960
  %4286 = vmatpush1.bf16.msra.mxu0 %v3959
  %4287 = vmatprep.subr.bf16.mxu0 %v3964
  %4288 = vmatpush1.bf16.msra.mxu0 %v3963
  %4289 = vmatprep.subr.bf16.mxu0 %v3968
  %4290 = vmatpush1.bf16.msra.mxu0 %v3967
  %4291 = vmatprep.subr.bf16.mxu0 %v3972
  %4292 = vmatpush1.bf16.msra.mxu0 %v3971
  %4293 = vmatprep.subr.bf16.mxu0 %v3976
  %4294 = vmatpush1.bf16.msra.mxu0 %v3975
  %4295 = vmatprep.subr.bf16.mxu0 %v3980
  %4296 = vmatpush1.bf16.msra.mxu0 %v3979
  %4297 = vmatprep.subr.bf16.mxu0 %v3984
  %4298 = vmatpush1.bf16.msra.mxu0 %v3983
  %4299 = vmatprep.subr.bf16.mxu0 %v3988
  %4300 = vmatpush1.bf16.msra.mxu0 %v3987
  %4301 = vmatprep.subr.bf16.mxu0 %v3992
  %4302 = vmatpush1.bf16.msra.mxu0 %v3991
  %4303 = vmatprep.subr.bf16.mxu0 %v3996
  %4304 = vmatpush1.bf16.msra.mxu0 %v3995
  %4305 = vmatprep.subr.bf16.mxu0 %v4000
  %4306 = vmatpush1.bf16.msra.mxu0 %v3999
  %4307 = vmatprep.mubr.bf16.mxu0 %v3400
  %4308 = vmatmul.mubr.bf16.gmra.mrb[0].mxu0 %v3399
  %v4309 = vpop.f32.mrb[0].mxu0
  %v4310 = vadd.f32 %v3544, %v4309
  %v4311 = vpop.f32.mrb[0].mxu0
  %v4312 = vadd.f32 %v3548, %v4311
  %v4313 = vpop.f32.mrb[0].mxu0
  %v4314 = vpop.f32.mrb[0].mxu0
  %4315 = vdwg.mxu0
  %4316 = vmatprep.subr.bf16.mxu0 %v4004
  %4317 = vmatpush1.bf16.msra.mxu0 %v4003
  %4318 = vmatprep.subr.bf16.mxu0 %v4008
  %4319 = vmatpush1.bf16.msra.mxu0 %v4007
  %4320 = vmatprep.subr.bf16.mxu0 %v4012
  %4321 = vmatpush1.bf16.msra.mxu0 %v4011
  %4322 = vmatprep.subr.bf16.mxu0 %v4016
  %4323 = vmatpush1.bf16.msra.mxu0 %v4015
  %4324 = vmatprep.subr.bf16.mxu0 %v4020
  %4325 = vmatpush1.bf16.msra.mxu0 %v4019
  %4326 = vmatprep.subr.bf16.mxu0 %v4024
  %4327 = vmatpush1.bf16.msra.mxu0 %v4023
  %4328 = vmatprep.subr.bf16.mxu0 %v4028
  %4329 = vmatpush1.bf16.msra.mxu0 %v4027
  %4330 = vmatprep.subr.bf16.mxu0 %v4032
  %4331 = vmatpush1.bf16.msra.mxu0 %v4031
  %4332 = vmatprep.subr.bf16.mxu0 %v4036
  %4333 = vmatpush1.bf16.msra.mxu0 %v4035
  %4334 = vmatprep.subr.bf16.mxu0 %v4040
  %4335 = vmatpush1.bf16.msra.mxu0 %v4039
  %4336 = vmatprep.subr.bf16.mxu0 %v4044
  %4337 = vmatpush1.bf16.msra.mxu0 %v4043
  %4338 = vmatprep.subr.bf16.mxu0 %v4048
  %4339 = vmatpush1.bf16.msra.mxu0 %v4047
  %4340 = vmatprep.subr.bf16.mxu0 %v4052
  %4341 = vmatpush1.bf16.msra.mxu0 %v4051
  %4342 = vmatprep.subr.bf16.mxu0 %v4056
  %4343 = vmatpush1.bf16.msra.mxu0 %v4055
  %4344 = vmatprep.subr.bf16.mxu0 %v4060
  %4345 = vmatpush1.bf16.msra.mxu0 %v4059
  %4346 = vmatprep.subr.bf16.mxu0 %v4064
  %4347 = vmatpush1.bf16.msra.mxu0 %v4063
  %4348 = vmatprep.mubr.bf16.mxu0 %v3402
  %4349 = vmatmul.mubr.bf16.gmra.mrb[0].mxu0 %v3401
  %v4350 = vpop.f32.mrb[0].mxu0
  %v4351 = vadd.f32 %v4310, %v4350
  %v4352 = vpop.f32.mrb[0].mxu0
  %v4353 = vadd.f32 %v4312, %v4352
  %v4354 = vpop.f32.mrb[0].mxu0
  %v4355 = vpop.f32.mrb[0].mxu0
  %4356 = vdwg.mxu0
  %v4357 = vld [vmem:[%s11] sm:$0xf]
  %v4358 = vld [vmem:[%s15] sm:$0xf]
  %v4359 = vsel %vm2010, %v4269, 0.0
  %v4360 = vrot.slane %v4359, 4
  %v4361 = vadd.f32 %v4359, %v4360
  %v4362 = vrot.slane %v4361, 2
  %v4363 = vadd.f32 %v4361, %v4362
  %v4364 = vrot.slane %v4363, 1
  %v4365 = vadd.f32 %v4363, %v4364
  %v4366 = vsel %vm2010, %v4271, 0.0
  %v4367 = vrot.slane %v4366, 4
  %v4368 = vadd.f32 %v4366, %v4367
  %v4369 = vrot.slane %v4368, 2
  %v4370 = vadd.f32 %v4368, %v4369
  %v4371 = vrot.slane %v4370, 1
  %v4372 = vadd.f32 %v4370, %v4371
  %v4373 = vsel %vm2010, %v4351, 0.0
  %v4374 = vrot.slane %v4373, 4
  %v4375 = vadd.f32 %v4373, %v4374
  %v4376 = vrot.slane %v4375, 2
  %v4377 = vadd.f32 %v4375, %v4376
  %v4378 = vrot.slane %v4377, 1
  %v4379 = vadd.f32 %v4377, %v4378
  %v4380 = vsel %vm2010, %v4353, 0.0
  %v4381 = vrot.slane %v4380, 4
  %v4382 = vadd.f32 %v4380, %v4381
  %v4383 = vrot.slane %v4382, 2
  %v4384 = vadd.f32 %v4382, %v4383
  %v4385 = vrot.slane %v4384, 1
  %v4386 = vadd.f32 %v4384, %v4385
  %v4387 = vmul.f32 %v4269, %v4269
  %v4388 = vmul.f32 %v4271, %v4271
  %v4389 = vmul.f32 %v4351, %v4351
  %v4390 = vmul.f32 %v4353, %v4353
  %v4391 = vsel %vm2010, %v4387, 0.0
  %v4392 = vrot.slane %v4391, 4
  %v4393 = vadd.f32 %v4391, %v4392
  %v4394 = vrot.slane %v4393, 2
  %v4395 = vadd.f32 %v4393, %v4394
  %v4396 = vrot.slane %v4395, 1
  %v4397 = vadd.f32 %v4395, %v4396
  %v4398 = vsel %vm2010, %v4388, 0.0
  %v4399 = vrot.slane %v4398, 4
  %v4400 = vadd.f32 %v4398, %v4399
  %v4401 = vrot.slane %v4400, 2
  %v4402 = vadd.f32 %v4400, %v4401
  %v4403 = vrot.slane %v4402, 1
  %v4404 = vadd.f32 %v4402, %v4403
  %v4405 = vsel %vm2010, %v4389, 0.0
  %v4406 = vrot.slane %v4405, 4
  %v4407 = vadd.f32 %v4405, %v4406
  %v4408 = vrot.slane %v4407, 2
  %v4409 = vadd.f32 %v4407, %v4408
  %v4410 = vrot.slane %v4409, 1
  %v4411 = vadd.f32 %v4409, %v4410
  %v4412 = vsel %vm2010, %v4390, 0.0
  %v4413 = vrot.slane %v4412, 4
  %v4414 = vadd.f32 %v4412, %v4413
  %v4415 = vrot.slane %v4414, 2
  %v4416 = vadd.f32 %v4414, %v4415
  %v4417 = vrot.slane %v4416, 1
  %v4418 = vadd.f32 %v4416, %v4417
  %v4419 = vmul.f32 %v4365, 0.5
  %v4420 = vmul.f32 %v4372, 0.5
  %v4421 = vmul.f32 %v4379, 0.5
  %v4422 = vmul.f32 %v4386, 0.5
  %v4423 = vmul.f32 %v4397, 0.5
  %v4424 = vmul.f32 %v4404, 0.5
  %v4425 = vmul.f32 %v4411, 0.5
  %v4426 = vmul.f32 %v4418, 0.5
  %v4427 = vmul.f32 %v4419, %v4419
  %v4428 = vmul.f32 %v4420, %v4420
  %v4429 = vmul.f32 %v4421, %v4421
  %v4430 = vmul.f32 %v4422, %v4422
  %v4431 = vsub.f32 %v4423, %v4427
  %v4432 = vsub.f32 %v4424, %v4428
  %v4433 = vsub.f32 %v4425, %v4429
  %v4434 = vsub.f32 %v4426, %v4430
  %v4435 = vmax.f32 %v4431, 0.0
  %v4436 = vmax.f32 %v4432, 0.0
  %v4437 = vmax.f32 %v4433, 0.0
  %v4438 = vmax.f32 %v4434, 0.0
  %v4439 = vadd.f32 %v4435, 1e-05
  %v4440 = vadd.f32 %v4436, 1e-05
  %v4441 = vadd.f32 %v4437, 1e-05
  %v4442 = vadd.f32 %v4438, 1e-05
  %v4443 = vrsqrt.pop %v4439
  %v4444 = vrsqrt.pop %v4440
  %v4445 = vrsqrt.pop %v4441
  %v4446 = vrsqrt.pop %v4442
  %v4451 = vcombine.low %v4443, %v4444
  %v4452 = vcombine.low %v4445, %v4446
  %v4454 = vunpack.c.l.s4 1966171168
  %v4455 = vunpack.c.0.s8 %v4454
  %v4456 = vlaneseq
  %v4457 = vshrl.u32 %v4456, 7
  %v4458 = vsub.s32 %v4455, %v4457
  %v4459 = vrot.slane %v4451, %v4458
  %v4461 = vunpack.c.l.s4 1966171168
  %v4462 = vunpack.c.0.s8 %v4461
  %v4463 = vlaneseq
  %v4464 = vshrl.u32 %v4463, 7
  %v4465 = vsub.s32 %v4462, %v4464
  %v4466 = vrot.slane %v4452, %v4465
  %v4467 = vcombine.low %v4459, %v4466
  %v4469 = vunpack.c.l.s4 1966171168
  %v4470 = vunpack.c.0.s8 %v4469
  %v4471 = vlaneseq
  %v4472 = vshrl.u32 %v4471, 7
  %v4473 = vsub.s32 %v4470, %v4472
  %v4474 = vrot.slane %v4467, %v4473
  %v4476 = vmul.f32 %v4357, %v4474
  %v4478 = vlaneseq
  %v4479 = vshrl.u32 %v4478, 7
  %v4480 = vsub.s32 0, %v4479
  %v4481 = vrot.slane %v4476, %v4480
  %v4482 = vlaneseq
  %v4483 = vshrl.u32 %v4482, 7
  %v4484 = vsub.s32 1, %v4483
  %v4485 = vrot.slane %v4476, %v4484
  %v4486 = vlaneseq
  %v4487 = vshrl.u32 %v4486, 7
  %v4488 = vsub.s32 2, %v4487
  %v4489 = vrot.slane %v4476, %v4488
  %v4490 = vlaneseq
  %v4491 = vshrl.u32 %v4490, 7
  %v4492 = vsub.s32 3, %v4491
  %v4493 = vrot.slane %v4476, %v4492
  %v4498 = vmul.f32 %v4419, %v4481
  %v4499 = vmul.f32 %v4420, %v4485
  %v4500 = vmul.f32 %v4421, %v4489
  %v4501 = vmul.f32 %v4422, %v4493
  %v4506 = vcombine.low %v4498, %v4499
  %v4507 = vcombine.low %v4500, %v4501
  %v4509 = vunpack.c.l.s4 1966171168
  %v4510 = vunpack.c.0.s8 %v4509
  %v4511 = vlaneseq
  %v4512 = vshrl.u32 %v4511, 7
  %v4513 = vsub.s32 %v4510, %v4512
  %v4514 = vrot.slane %v4506, %v4513
  %v4516 = vunpack.c.l.s4 1966171168
  %v4517 = vunpack.c.0.s8 %v4516
  %v4518 = vlaneseq
  %v4519 = vshrl.u32 %v4518, 7
  %v4520 = vsub.s32 %v4517, %v4519
  %v4521 = vrot.slane %v4507, %v4520
  %v4522 = vcombine.low %v4514, %v4521
  %v4524 = vunpack.c.l.s4 1966171168
  %v4525 = vunpack.c.0.s8 %v4524
  %v4526 = vlaneseq
  %v4527 = vshrl.u32 %v4526, 7
  %v4528 = vsub.s32 %v4525, %v4527
  %v4529 = vrot.slane %v4522, %v4528
  %v4531 = vsub.f32 %v4358, %v4529
  %v4532 = vmul.f32 %v4269, %v4481
  %v4533 = vmul.f32 %v4271, %v4485
  %v4534 = vmul.f32 %v4351, %v4489
  %v4535 = vmul.f32 %v4353, %v4493
  %v4537 = vlaneseq
  %v4538 = vshrl.u32 %v4537, 7
  %v4539 = vsub.s32 0, %v4538
  %v4540 = vrot.slane %v4531, %v4539
  %v4541 = vlaneseq
  %v4542 = vshrl.u32 %v4541, 7
  %v4543 = vsub.s32 1, %v4542
  %v4544 = vrot.slane %v4531, %v4543
  %v4545 = vlaneseq
  %v4546 = vshrl.u32 %v4545, 7
  %v4547 = vsub.s32 2, %v4546
  %v4548 = vrot.slane %v4531, %v4547
  %v4549 = vlaneseq
  %v4550 = vshrl.u32 %v4549, 7
  %v4551 = vsub.s32 3, %v4550
  %v4552 = vrot.slane %v4531, %v4551
  %v4557 = vadd.f32 %v4532, %v4540
  %v4558 = vadd.f32 %v4533, %v4544
  %v4559 = vadd.f32 %v4534, %v4548
  %v4560 = vadd.f32 %v4535, %v4552
  %vm4561 = vcmp.ge.f32.partialorder %v4557, 0.0
  %vm4562 = vcmp.ge.f32.partialorder %v4558, 0.0
  %vm4563 = vcmp.ge.f32.partialorder %v4559, 0.0
  %vm4564 = vcmp.ge.f32.partialorder %v4560, 0.0
  %v4565 = vmul.f32 %v4557, 0.2
  %v4566 = vmul.f32 %v4558, 0.2
  %v4567 = vmul.f32 %v4559, 0.2
  %v4568 = vmul.f32 %v4560, 0.2
  %v4569 = vsel %vm4561, %v4557, %v4565
  %v4570 = vsel %vm4562, %v4558, %v4566
  %v4571 = vsel %vm4563, %v4559, %v4567
  %v4572 = vsel %vm4564, %v4560, %v4568
  %v4573 = vpack.c.bf16 %v4569, %v4569
  %v4574 = vpack.c.bf16 %v4570, %v4570
  %v4575 = vpack.c.bf16 %v4571, %v4571
  %v4576 = vpack.c.bf16 %v4572, %v4572
  %v4577 = vld [vmem:[%s4] sm:$0xf]
  %v4578 = vld [vmem:[%s4 + $0x4] sm:$0xf]
  %v4579 = vld [vmem:[%s4 + $0x8] sm:$0xf]
  %v4580 = vld [vmem:[%s4 + $0xc] sm:$0xf]
  %v4581 = vld [vmem:[%s4 + $0x10] sm:$0xf]
  %v4582 = vld [vmem:[%s4 + $0x14] sm:$0xf]
  %v4583 = vld [vmem:[%s4 + $0x18] sm:$0xf]
  %v4584 = vld [vmem:[%s4 + $0x1c] sm:$0xf]
  %v4585 = vld [vmem:[%s4 + $0x20] sm:$0xf]
  %v4586 = vld [vmem:[%s4 + $0x24] sm:$0xf]
  %v4587 = vld [vmem:[%s4 + $0x28] sm:$0xf]
  %v4588 = vld [vmem:[%s4 + $0x2c] sm:$0xf]
  %v4589 = vld [vmem:[%s4 + $0x30] sm:$0xf]
  %v4590 = vld [vmem:[%s4 + $0x34] sm:$0xf]
  %v4591 = vld [vmem:[%s4 + $0x38] sm:$0xf]
  %v4592 = vld [vmem:[%s4 + $0x3c] sm:$0xf]
  %v4593 = vld [vmem:[%s4 + $0x40] sm:$0xf]
  %v4594 = vld [vmem:[%s4 + $0x44] sm:$0xf]
  %v4595 = vld [vmem:[%s4 + $0x48] sm:$0xf]
  %v4596 = vld [vmem:[%s4 + $0x4c] sm:$0xf]
  %v4597 = vld [vmem:[%s4 + $0x50] sm:$0xf]
  %v4598 = vld [vmem:[%s4 + $0x54] sm:$0xf]
  %v4599 = vld [vmem:[%s4 + $0x58] sm:$0xf]
  %v4600 = vld [vmem:[%s4 + $0x5c] sm:$0xf]
  %v4601 = vld [vmem:[%s4 + $0x60] sm:$0xf]
  %v4602 = vld [vmem:[%s4 + $0x64] sm:$0xf]
  %v4603 = vld [vmem:[%s4 + $0x68] sm:$0xf]
  %v4604 = vld [vmem:[%s4 + $0x6c] sm:$0xf]
  %v4605 = vld [vmem:[%s4 + $0x70] sm:$0xf]
  %v4606 = vld [vmem:[%s4 + $0x74] sm:$0xf]
  %v4607 = vld [vmem:[%s4 + $0x78] sm:$0xf]
  %v4608 = vld [vmem:[%s4 + $0x7c] sm:$0xf]
  %v4609 = vld [vmem:[%s4 + $0x80] sm:$0xf]
  %v4610 = vld [vmem:[%s4 + $0x84] sm:$0xf]
  %v4611 = vld [vmem:[%s4 + $0x88] sm:$0xf]
  %v4612 = vld [vmem:[%s4 + $0x8c] sm:$0xf]
  %v4613 = vld [vmem:[%s4 + $0x90] sm:$0xf]
  %v4614 = vld [vmem:[%s4 + $0x94] sm:$0xf]
  %v4615 = vld [vmem:[%s4 + $0x98] sm:$0xf]
  %v4616 = vld [vmem:[%s4 + $0x9c] sm:$0xf]
  %v4617 = vld [vmem:[%s4 + $0xa0] sm:$0xf]
  %v4618 = vld [vmem:[%s4 + $0xa4] sm:$0xf]
  %v4619 = vld [vmem:[%s4 + $0xa8] sm:$0xf]
  %v4620 = vld [vmem:[%s4 + $0xac] sm:$0xf]
  %v4621 = vld [vmem:[%s4 + $0xb0] sm:$0xf]
  %v4622 = vld [vmem:[%s4 + $0xb4] sm:$0xf]
  %v4623 = vld [vmem:[%s4 + $0xb8] sm:$0xf]
  %v4624 = vld [vmem:[%s4 + $0xbc] sm:$0xf]
  %v4625 = vld [vmem:[%s4 + $0xc0] sm:$0xf]
  %v4626 = vld [vmem:[%s4 + $0xc4] sm:$0xf]
  %v4627 = vld [vmem:[%s4 + $0xc8] sm:$0xf]
  %v4628 = vld [vmem:[%s4 + $0xcc] sm:$0xf]
  %v4629 = vld [vmem:[%s4 + $0xd0] sm:$0xf]
  %v4630 = vld [vmem:[%s4 + $0xd4] sm:$0xf]
  %v4631 = vld [vmem:[%s4 + $0xd8] sm:$0xf]
  %v4632 = vld [vmem:[%s4 + $0xdc] sm:$0xf]
  %v4633 = vld [vmem:[%s4 + $0xe0] sm:$0xf]
  %v4634 = vld [vmem:[%s4 + $0xe4] sm:$0xf]
  %v4635 = vld [vmem:[%s4 + $0xe8] sm:$0xf]
  %v4636 = vld [vmem:[%s4 + $0xec] sm:$0xf]
  %v4637 = vld [vmem:[%s4 + $0xf0] sm:$0xf]
  %v4638 = vld [vmem:[%s4 + $0xf4] sm:$0xf]
  %v4639 = vld [vmem:[%s4 + $0xf8] sm:$0xf]
  %v4640 = vld [vmem:[%s4 + $0xfc] sm:$0xf]
  %v4641 = vld [vmem:[#allocation2] sm:$0x1]
  %v4643 = vlaneseq
  %v4644 = vshrl.u32 %v4643, 7
  %v4645 = vsub.s32 0, %v4644
  %v4646 = vrot.slane %v4641, %v4645
  %v4712 = vunpack.c.l.b16 %v4577
  %v4713 = vunpack.c.l.b16 %v4578
  %v4714 = vunpack.c.l.b16 %v4579
  %v4715 = vunpack.c.l.b16 %v4580
  %v4716 = vunpack.c.l.b16 %v4581
  %v4717 = vunpack.c.l.b16 %v4582
  %v4718 = vunpack.c.l.b16 %v4583
  %v4719 = vunpack.c.l.b16 %v4584
  %v4720 = vunpack.c.l.b16 %v4585
  %v4721 = vunpack.c.l.b16 %v4586
  %v4722 = vunpack.c.l.b16 %v4587
  %v4723 = vunpack.c.l.b16 %v4588
  %v4724 = vunpack.c.l.b16 %v4589
  %v4725 = vunpack.c.l.b16 %v4590
  %v4726 = vunpack.c.l.b16 %v4591
  %v4727 = vunpack.c.l.b16 %v4592
  %v4728 = vunpack.c.l.b16 %v4593
  %v4729 = vunpack.c.l.b16 %v4594
  %v4730 = vunpack.c.l.b16 %v4595
  %v4731 = vunpack.c.l.b16 %v4596
  %v4732 = vunpack.c.l.b16 %v4597
  %v4733 = vunpack.c.l.b16 %v4598
  %v4734 = vunpack.c.l.b16 %v4599
  %v4735 = vunpack.c.l.b16 %v4600
  %v4736 = vunpack.c.l.b16 %v4601
  %v4737 = vunpack.c.l.b16 %v4602
  %v4738 = vunpack.c.l.b16 %v4603
  %v4739 = vunpack.c.l.b16 %v4604
  %v4740 = vunpack.c.l.b16 %v4605
  %v4741 = vunpack.c.l.b16 %v4606
  %v4742 = vunpack.c.l.b16 %v4607
  %v4743 = vunpack.c.l.b16 %v4608
  %v4744 = vunpack.c.l.b16 %v4609
  %v4745 = vunpack.c.l.b16 %v4610
  %v4746 = vunpack.c.l.b16 %v4611
  %v4747 = vunpack.c.l.b16 %v4612
  %v4748 = vunpack.c.l.b16 %v4613
  %v4749 = vunpack.c.l.b16 %v4614
  %v4750 = vunpack.c.l.b16 %v4615
  %v4751 = vunpack.c.l.b16 %v4616
  %v4752 = vunpack.c.l.b16 %v4617
  %v4753 = vunpack.c.l.b16 %v4618
  %v4754 = vunpack.c.l.b16 %v4619
  %v4755 = vunpack.c.l.b16 %v4620
  %v4756 = vunpack.c.l.b16 %v4621
  %v4757 = vunpack.c.l.b16 %v4622
  %v4758 = vunpack.c.l.b16 %v4623
  %v4759 = vunpack.c.l.b16 %v4624
  %v4760 = vunpack.c.l.b16 %v4625
  %v4761 = vunpack.c.l.b16 %v4626
  %v4762 = vunpack.c.l.b16 %v4627
  %v4763 = vunpack.c.l.b16 %v4628
  %v4764 = vunpack.c.l.b16 %v4629
  %v4765 = vunpack.c.l.b16 %v4630
  %v4766 = vunpack.c.l.b16 %v4631
  %v4767 = vunpack.c.l.b16 %v4632
  %v4768 = vunpack.c.l.b16 %v4633
  %v4769 = vunpack.c.l.b16 %v4634
  %v4770 = vunpack.c.l.b16 %v4635
  %v4771 = vunpack.c.l.b16 %v4636
  %v4772 = vunpack.c.l.b16 %v4637
  %v4773 = vunpack.c.l.b16 %v4638
  %v4774 = vunpack.c.l.b16 %v4639
  %v4775 = vunpack.c.l.b16 %v4640
  %v4776 = vpack.c.b16 %v4713, %v4712
  %v4777 = vpack.c.b16 %v4715, %v4714
  %v4778 = vpack.c.b16 %v4717, %v4716
  %v4779 = vpack.c.b16 %v4719, %v4718
  %v4780 = vpack.c.b16 %v4721, %v4720
  %v4781 = vpack.c.b16 %v4723, %v4722
  %v4782 = vpack.c.b16 %v4725, %v4724
  %v4783 = vpack.c.b16 %v4727, %v4726
  %v4784 = vpack.c.b16 %v4729, %v4728
  %v4785 = vpack.c.b16 %v4731, %v4730
  %v4786 = vpack.c.b16 %v4733, %v4732
  %v4787 = vpack.c.b16 %v4735, %v4734
  %v4788 = vpack.c.b16 %v4737, %v4736
  %v4789 = vpack.c.b16 %v4739, %v4738
  %v4790 = vpack.c.b16 %v4741, %v4740
  %v4791 = vpack.c.b16 %v4743, %v4742
  %v4792 = vpack.c.b16 %v4745, %v4744
  %v4793 = vpack.c.b16 %v4747, %v4746
  %v4794 = vpack.c.b16 %v4749, %v4748
  %v4795 = vpack.c.b16 %v4751, %v4750
  %v4796 = vpack.c.b16 %v4753, %v4752
  %v4797 = vpack.c.b16 %v4755, %v4754
  %v4798 = vpack.c.b16 %v4757, %v4756
  %v4799 = vpack.c.b16 %v4759, %v4758
  %v4800 = vpack.c.b16 %v4761, %v4760
  %v4801 = vpack.c.b16 %v4763, %v4762
  %v4802 = vpack.c.b16 %v4765, %v4764
  %v4803 = vpack.c.b16 %v4767, %v4766
  %v4804 = vpack.c.b16 %v4769, %v4768
  %v4805 = vpack.c.b16 %v4771, %v4770
  %v4806 = vpack.c.b16 %v4773, %v4772
  %v4807 = vpack.c.b16 %v4775, %v4774
  %4840 = vmatprep.subr.bf16.mxu0 0
  %4841 = vmatpush1.bf16.msra.mxu0 %v4776
  %4842 = vmatprep.subr.bf16.mxu0 0
  %4843 = vmatpush1.bf16.msra.mxu0 %v4777
  %4844 = vmatprep.subr.bf16.mxu0 0
  %4845 = vmatpush1.bf16.msra.mxu0 %v4778
  %4846 = vmatprep.subr.bf16.mxu0 0
  %4847 = vmatpush1.bf16.msra.mxu0 %v4779
  %4848 = vmatprep.subr.bf16.mxu0 0
  %4849 = vmatpush1.bf16.msra.mxu0 %v4780
  %4850 = vmatprep.subr.bf16.mxu0 0
  %4851 = vmatpush1.bf16.msra.mxu0 %v4781
  %4852 = vmatprep.subr.bf16.mxu0 0
  %4853 = vmatpush1.bf16.msra.mxu0 %v4782
  %4854 = vmatprep.subr.bf16.mxu0 0
  %4855 = vmatpush1.bf16.msra.mxu0 %v4783
  %4856 = vmatprep.subr.bf16.mxu0 0
  %4857 = vmatpush1.bf16.msra.mxu0 %v4784
  %4858 = vmatprep.subr.bf16.mxu0 0
  %4859 = vmatpush1.bf16.msra.mxu0 %v4785
  %4860 = vmatprep.subr.bf16.mxu0 0
  %4861 = vmatpush1.bf16.msra.mxu0 %v4786
  %4862 = vmatprep.subr.bf16.mxu0 0
  %4863 = vmatpush1.bf16.msra.mxu0 %v4787
  %4864 = vmatprep.subr.bf16.mxu0 0
  %4865 = vmatpush1.bf16.msra.mxu0 %v4788
  %4866 = vmatprep.subr.bf16.mxu0 0
  %4867 = vmatpush1.bf16.msra.mxu0 %v4789
  %4868 = vmatprep.subr.bf16.mxu0 0
  %4869 = vmatpush1.bf16.msra.mxu0 %v4790
  %4870 = vmatprep.subr.bf16.mxu0 0
  %4871 = vmatpush1.bf16.msra.mxu0 %v4791
  %4872 = vmatprep.mubr.bf16.mxu0 %v4574
  %4873 = vmatmul.mubr.bf16.gmra.mrb[0].mxu0 %v4573
  %v4874 = vpop.f32.mrb[0].mxu0
  %v4875 = vadd.f32 %v4646, %v4874
  %v4876 = vpop.f32.mrb[0].mxu0
  %v4877 = vpop.f32.mrb[0].mxu0
  %v4878 = vpop.f32.mrb[0].mxu0
  %4879 = vdwg.mxu0
  %4880 = vmatprep.subr.bf16.mxu0 0
  %4881 = vmatpush1.bf16.msra.mxu0 %v4792
  %4882 = vmatprep.subr.bf16.mxu0 0
  %4883 = vmatpush1.bf16.msra.mxu0 %v4793
  %4884 = vmatprep.subr.bf16.mxu0 0
  %4885 = vmatpush1.bf16.msra.mxu0 %v4794
  %4886 = vmatprep.subr.bf16.mxu0 0
  %4887 = vmatpush1.bf16.msra.mxu0 %v4795
  %4888 = vmatprep.subr.bf16.mxu0 0
  %4889 = vmatpush1.bf16.msra.mxu0 %v4796
  %4890 = vmatprep.subr.bf16.mxu0 0
  %4891 = vmatpush1.bf16.msra.mxu0 %v4797
  %4892 = vmatprep.subr.bf16.mxu0 0
  %4893 = vmatpush1.bf16.msra.mxu0 %v4798
  %4894 = vmatprep.subr.bf16.mxu0 0
  %4895 = vmatpush1.bf16.msra.mxu0 %v4799
  %4896 = vmatprep.subr.bf16.mxu0 0
  %4897 = vmatpush1.bf16.msra.mxu0 %v4800
  %4898 = vmatprep.subr.bf16.mxu0 0
  %4899 = vmatpush1.bf16.msra.mxu0 %v4801
  %4900 = vmatprep.subr.bf16.mxu0 0
  %4901 = vmatpush1.bf16.msra.mxu0 %v4802
  %4902 = vmatprep.subr.bf16.mxu0 0
  %4903 = vmatpush1.bf16.msra.mxu0 %v4803
  %4904 = vmatprep.subr.bf16.mxu0 0
  %4905 = vmatpush1.bf16.msra.mxu0 %v4804
  %4906 = vmatprep.subr.bf16.mxu0 0
  %4907 = vmatpush1.bf16.msra.mxu0 %v4805
  %4908 = vmatprep.subr.bf16.mxu0 0
  %4909 = vmatpush1.bf16.msra.mxu0 %v4806
  %4910 = vmatprep.subr.bf16.mxu0 0
  %4911 = vmatpush1.bf16.msra.mxu0 %v4807
  %4912 = vmatprep.mubr.bf16.mxu0 %v4576
  %4913 = vmatmul.mubr.bf16.gmra.mrb[0].mxu0 %v4575
  %v4914 = vpop.f32.mrb[0].mxu0
  %v4915 = vadd.f32 %v4875, %v4914
  %v4916 = vpop.f32.mrb[0].mxu0
  %v4917 = vpop.f32.mrb[0].mxu0
  %v4918 = vpop.f32.mrb[0].mxu0
  %4919 = vdwg.mxu0
  %v4920 = vld [vmem:[#allocation3] sm:$0x1]
  %v4921 = vld [vmem:[#allocation4] sm:$0x1]
  %vm4922 = vcmask 1024
  %v4923 = vsel %vm4922, %v4915, 0.0
  %v4924 = vrot.slane %v4923, 4
  %v4925 = vadd.f32 %v4923, %v4924
  %v4926 = vrot.slane %v4925, 2
  %v4927 = vadd.f32 %v4925, %v4926
  %v4928 = vrot.slane %v4927, 1
  %v4929 = vadd.f32 %v4927, %v4928
  %v4930 = vmul.f32 %v4915, %v4915
  %v4931 = vsel %vm4922, %v4930, 0.0
  %v4932 = vrot.slane %v4931, 4
  %v4933 = vadd.f32 %v4931, %v4932
  %v4934 = vrot.slane %v4933, 2
  %v4935 = vadd.f32 %v4933, %v4934
  %v4936 = vrot.slane %v4935, 1
  %v4937 = vadd.f32 %v4935, %v4936
  %v4938 = vmul.f32 %v4929, 0.5
  %v4939 = vmul.f32 %v4937, 0.5
  %v4940 = vmul.f32 %v4938, %v4938
  %v4941 = vsub.f32 %v4939, %v4940
  %v4942 = vmax.f32 %v4941, 0.0
  %v4943 = vadd.f32 %v4942, 1e-05
  %v4944 = vrsqrt.pop %v4943
  %v4945 = vmul.f32 %v4920, %v4944
  %v4946 = vmul.f32 %v4938, %v4945
  %v4947 = vsub.f32 %v4921, %v4946
  %v4949 = vlaneseq
  %v4950 = vshrl.u32 %v4949, 7
  %v4951 = vsub.s32 0, %v4950
  %v4952 = vrot.slane %v4945, %v4951
  %v4954 = vmul.f32 %v4915, %v4952
  %v4956 = vlaneseq
  %v4957 = vshrl.u32 %v4956, 7
  %v4958 = vsub.s32 0, %v4957
  %v4959 = vrot.slane %v4947, %v4958
  %v4961 = vadd.f32 %v4954, %v4959
  %vm4962 = vcmp.ge.f32.partialorder %v4961, 0.0
  %v4963 = vmul.f32 %v4961, 0.2
  %v4964 = vsel %vm4962, %v4961, %v4963
  %v4965 = vsub.f32 0.0, %v4964
  %v4966 = vmul.f32 %v4965, 1.442695
  %v4967 = vpow.pop %v4966
  %v4968 = vadd.f32 %v4967, 1.0
  %v4969 = vrcp.pop %v4968
  %v4970 = vmul.f32 1.0, %v4969
  %4971 = vst.msk [vmem:[%s17] sm:$0x3] %vm4922, %v4970
  // Predicated region
  $region70: #{discriminator_forward.9} parent=0 // pred_check
    _
  $region71: #{discriminator_forward.9} parent=0 // pred_check_branch
    %4973 = sbr.rel (0) target = $region73
  $region72: #{discriminator_forward.9} parent=0 // pred_region
    _
  $region73: #{discriminator_forward.9} parent=0 // pred_fallthru
    _
  // Predicated region
  $region74: #{discriminator_forward.9} parent=0 // pred_check
    _
  $region75: #{discriminator_forward.9} parent=0 // pred_check_branch
    %4975 = sbr.rel (0) target = $region77
  $region76: #{discriminator_forward.9} parent=0 // pred_region
    _
  $region77: #{discriminator_forward.9} parent=0 // pred_fallthru
    _

</llo_original>
